<compile_context>
chip_gen: v6e
topology: v6e:2x2x1
jax: 0.10.0
libtpu: 0.0.40
codegen_flags: <defaults>
</compile_context>

<pallas_src>
import jax
import jax.numpy as jnp
import numpy as np
from jax import lax
from jax.experimental import pallas as pl
from jax.experimental.pallas import tpu as pltpu

# ----------------------------- configuration --------------------------------
NTYPES = ("user", "item")
META_PATHS = ("mp0", "mp1")
NUM_NODES = {"user": 16, "item": 24}
IN_DIM = 32
HIDDEN_DIM = 16          # per-head hidden size (DGL GATConv out_feats)
NUM_HEADS = 4            # num_heads = [4]  -> single HANLayer
OUT_DIM = 8
SEM_HIDDEN = 128         # DGL SemanticAttention hidden_size default
LEAKY_SLOPE = 0.2        # GATConv negative_slope default
NEG_INF = -1e30
# dropout (p=0.2) is skipped -> eval-mode / deterministic forward.

P = len(META_PATHS)                    # meta-paths
T = len(NTYPES)                        # node types (grid size)
HD = NUM_HEADS * HIDDEN_DIM            # 64  (one meta-path's GAT output width)
PHD = P * HD                           # 128 (lane-dense combined fc width)
N_MAX = ((max(NUM_NODES.values()) + 7) // 8) * 8   # padded node count (24)


# ------------------------------ fused Pallas kernel ---------------------------
def han_fused_kernel(x_ref, adj_ref, wmask_ref,
                     wfc_ref, al_ref, ar_ref, gatb_ref,
                     semw_ref, semb_ref, semq_ref,
                     outw_ref, outb_ref, o_ref):
    """Whole HAN forward for one node type (one grid step), fully in VMEM.

    x:     [N, IN_DIM]       node features, padded to N_MAX rows
    adj:   [P, N, N]         adj[p, i, j] = 1  <=>  edge j (src) -> i (dst)
    wmask: [N, 1]            1/n_real for real rows, 0 for padded rows
    wfc:   [IN_DIM, P*H*Dh]  all meta-path GAT fc weights, concatenated on lanes
    al/ar: [P*H, P*H*Dh]     block-diagonal attn_l / attn_r (row k = (p, h))
    gatb:  [1, P*H*Dh]       GAT biases, concatenated on lanes
    semw:  [H*Dh, S]  semb: [1, S]  semq: [1, S]     semantic attention params
    outw:  [H*Dh, OUT]  outb: [1, OUT]               per-ntype output head
    o:     [N, OUT]
    """
    n = x_ref.shape[0]

    # (1) GAT fc for every meta-path / head in a single MXU matmul: [N,32]@[32,128].
    z_all = jnp.dot(x_ref[...], wfc_ref[...], preferred_element_type=jnp.float32)

    # (2) Attention logits for every (meta-path, head) in two dots (instead of
    #     2*P*H tiny mat-vecs):
    #       el[k, j] = a_l(k) . z_j(k)   source term, one row per (p, h)
    #       er[i, k] = a_r(k) . z_i(k)   destination term, one column per (p, h)
    el_rows = lax.dot_general(al_ref[...], z_all, (((1,), (1,)), ((), ())),
                              preferred_element_type=jnp.float32)    # [P*H, N]
    er_cols = lax.dot_general(z_all, ar_ref[...], (((1,), (1,)), ((), ())),
                              preferred_element_type=jnp.float32)    # [N, P*H]

    gat_bias = gatb_ref[...]                                         # [1, P*H*Dh]
    sem_q = semq_ref[...]                                            # [1, S]
    wmask = wmask_ref[...]                                           # [N, 1]
    lane = lax.broadcasted_iota(jnp.int32, (1, HD), 1)               # head selector

    sem_embeds = []   # per meta-path [N, H*Dh] GAT embeddings
    sem_scores = []   # per meta-path scalar semantic-attention score

    for p in range(P):
        adj = adj_ref[p]                                             # [N, N]
        mask = adj > 0.0
        z_mp = z_all[:, p * HD:(p + 1) * HD]                         # [N, H*Dh]

        acc = jnp.zeros((n, HD), jnp.float32)
        for h in range(NUM_HEADS):
            k = p * NUM_HEADS + h
            # e[i, j] = leaky_relu( a_r.z_i + a_l.z_j ), masked to existing edges
            e = er_cols[:, k:k + 1] + el_rows[k:k + 1, :]            # [N, N]
            e = jnp.where(e > 0.0, e, LEAKY_SLOPE * e)
            e = jnp.where(mask, e, NEG_INF)
            # masked softmax over incoming edges (source axis)
            e_max = jnp.max(e, axis=1, keepdims=True)
            pexp = jnp.where(mask, jnp.exp(e - e_max), 0.0)
            denom = jnp.sum(pexp, axis=1, keepdims=True)
            alpha = pexp * pl.reciprocal(jnp.maximum(denom, 1e-9), approx=True)
            # aggregate straight into the [N, H*Dh] lane layout: zero out the
            # lanes of the other heads instead of slicing + concatenating.
            z_h = jnp.where((lane >= h * HIDDEN_DIM) &
                            (lane < (h + 1) * HIDDEN_DIM), z_mp, 0.0)
            acc = acc + jnp.dot(alpha, z_h, preferred_element_type=jnp.float32)

        gat = acc + gat_bias[:, p * HD:(p + 1) * HD]
        # ELU; exp argument clamped so the discarded branch stays finite.
        gat = jnp.where(gat > 0.0, gat, jnp.exp(jnp.minimum(gat, 0.0)) - 1.0)
        sem_embeds.append(gat)

        # semantic-attention score: mean_n( q . tanh(W gat + b) ); padded rows
        # are excluded via wmask, which already carries the 1/n_real factor.
        proj = jnp.tanh(
            jnp.dot(gat, semw_ref[...], preferred_element_type=jnp.float32)
            + semb_ref[...])                                         # [N, S]
        sem_scores.append(jnp.sum(proj * sem_q * wmask))

    # (3) semantic softmax over the P meta-path scores + weighted combine.
    m = sem_scores[0]
    for s in sem_scores[1:]:
        m = jnp.maximum(m, s)
    exps = [jnp.exp(s - m) for s in sem_scores]
    denom = exps[0]
    for e in exps[1:]:
        denom = denom + e
    inv = 1.0 / denom
    fused = (exps[0] * inv) * sem_embeds[0]
    for p in range(1, P):
        fused = fused + (exps[p] * inv) * sem_embeds[p]               # [N, H*Dh]

    # (4) per-node-type output Linear.
    o_ref[...] = (jnp.dot(fused, outw_ref[...], preferred_element_type=jnp.float32)
                  + outb_ref[...]).astype(o_ref.dtype)


# ------------------------------ input / param packing -------------------------
def pack_inputs(params, block, feats):
    """Pad per-ntype graph data and pack parameters for the fused kernel."""
    x_pad = np.zeros((T, N_MAX, IN_DIM), np.float32)
    adj_pad = np.zeros((T, P, N_MAX, N_MAX), np.float32)
    wmask = np.zeros((T, N_MAX, 1), np.float32)
    for t, nt in enumerate(NTYPES):
        n = NUM_NODES[nt]
        x_pad[t, :n] = np.asarray(feats[nt])
        wmask[t, :n, 0] = 1.0 / n
        for p, mp in enumerate(META_PATHS):
            adj_pad[t, p, :n, :n] = np.asarray(block[(nt, mp)])

    gat = params["layer"]["gat"]
    w_fc = np.concatenate([np.asarray(gat[mp]["W"]) for mp in META_PATHS], axis=1)
    gat_b = np.concatenate([np.asarray(gat[mp]["bias"]) for mp in META_PATHS], axis=1)

    # block matrices so that  el = AL . z_all^T  /  er = z_all . AR^T  compute
    # every (meta-path, head) attention logit in one dot each.
    al_blk = np.zeros((P * NUM_HEADS, PHD), np.float32)
    ar_blk = np.zeros((P * NUM_HEADS, PHD), np.float32)
    for p, mp in enumerate(META_PATHS):
        attn_l = np.asarray(gat[mp]["attn_l"])
        attn_r = np.asarray(gat[mp]["attn_r"])
        for h in range(NUM_HEADS):
            k = p * NUM_HEADS + h
            c0 = p * HD + h * HIDDEN_DIM
            al_blk[k, c0:c0 + HIDDEN_DIM] = attn_l[h]
            ar_blk[k, c0:c0 + HIDDEN_DIM] = attn_r[h]

    sem = params["layer"]["sem"]
    sem_q = np.asarray(sem["q"]).reshape(1, SEM_HIDDEN)

    out_w = np.stack([np.asarray(params["out"][nt]["W"]) for nt in NTYPES], axis=0)
    out_b = np.stack([np.asarray(params["out"][nt]["b"]) for nt in NTYPES], axis=0)

    args = (x_pad, adj_pad, wmask, w_fc, al_blk, ar_blk, gat_b,
            np.asarray(sem["W"]), np.asarray(sem["b"]), sem_q, out_w, out_b)
    return tuple(jnp.asarray(a) for a in args)


# ------------------------------ HAN forward -----------------------------------
def han_forward(params, g_blocks, h_list):
    """HAN.forward: single HANLayer (num_heads=[4]) + per-ntype output Linear."""
    assert len(g_blocks) == 1, "num_heads=[4] -> single HANLayer"
    h = h_list[0]                                    # `h = h[0]` in the reference
    args = pack_inputs(params, g_blocks[0], h)

    in_specs = [
        pl.BlockSpec((None, N_MAX, IN_DIM), lambda t: (t, 0, 0)),         # x
        pl.BlockSpec((None, P, N_MAX, N_MAX), lambda t: (t, 0, 0, 0)),    # adj
        pl.BlockSpec((None, N_MAX, 1), lambda t: (t, 0, 0)),              # wmask
        pl.BlockSpec((IN_DIM, PHD), lambda t: (0, 0)),                    # fc W
        pl.BlockSpec((P * NUM_HEADS, PHD), lambda t: (0, 0)),             # attn_l
        pl.BlockSpec((P * NUM_HEADS, PHD), lambda t: (0, 0)),             # attn_r
        pl.BlockSpec((1, PHD), lambda t: (0, 0)),                         # gat bias
        pl.BlockSpec((HD, SEM_HIDDEN), lambda t: (0, 0)),                 # sem W
        pl.BlockSpec((1, SEM_HIDDEN), lambda t: (0, 0)),                  # sem b
        pl.BlockSpec((1, SEM_HIDDEN), lambda t: (0, 0)),                  # sem q
        pl.BlockSpec((None, HD, OUT_DIM), lambda t: (t, 0, 0)),           # out W
        pl.BlockSpec((None, 1, OUT_DIM), lambda t: (t, 0, 0)),            # out b
    ]
    out_spec = pl.BlockSpec((None, N_MAX, OUT_DIM), lambda t: (t, 0, 0))

    out = pl.pallas_call(
        han_fused_kernel,
        out_shape=jax.ShapeDtypeStruct((T, N_MAX, OUT_DIM), jnp.float32),
        grid_spec=pltpu.PrefetchScalarGridSpec(
            num_scalar_prefetch=0, grid=(T,),
            in_specs=in_specs, out_specs=out_spec),
        compiler_params=pltpu.CompilerParams(
            dimension_semantics=("parallel",)),       # 2 TCs on v7x, loop elsewhere
    )(*args)

    return {nt: out[t, :NUM_NODES[nt], :] for t, nt in enumerate(NTYPES)}


# TODO(synk): `predict` / `totrain` rely on DGL edge-wise u_mul_v scoring over
# graph structure and an undeclared `self.rel_embedding`; not translated.


# ------------------------------ parameter init --------------------------------
def init_params(key):
    params = {"layer": {"gat": {}, "sem": {}}, "out": {}}
    hd = NUM_HEADS * HIDDEN_DIM

    for mp in META_PATHS:
        key, k1, k2, k3 = jax.random.split(key, 4)
        params["layer"]["gat"][mp] = {
            "W": 0.1 * jax.random.normal(k1, (IN_DIM, hd), jnp.float32),
            "attn_l": 0.1 * jax.random.normal(k2, (NUM_HEADS, HIDDEN_DIM), jnp.float32),
            "attn_r": 0.1 * jax.random.normal(k3, (NUM_HEADS, HIDDEN_DIM), jnp.float32),
            "bias": jnp.zeros((1, hd), jnp.float32),
        }

    key, k1, k2, k3 = jax.random.split(key, 4)
    params["layer"]["sem"] = {
        "W": 0.1 * jax.random.normal(k1, (hd, SEM_HIDDEN), jnp.float32),
        "b": 0.01 * jax.random.normal(k2, (1, SEM_HIDDEN), jnp.float32),
        "q": 0.1 * jax.random.normal(k3, (SEM_HIDDEN, 1), jnp.float32),
    }

    for nt in NTYPES:
        key, k1, k2 = jax.random.split(key, 3)
        params["out"][nt] = {
            "W": 0.1 * jax.random.normal(k1, (hd, OUT_DIM), jnp.float32),
            "b": 0.01 * jax.random.normal(k2, (1, OUT_DIM), jnp.float32),
        }
    return params


def make_blocks(key):
    """One 'block' per HAN layer; each block = dense adjacency per (ntype, meta-path)."""
    block = {}
    for nt in NTYPES:
        n = NUM_NODES[nt]
        for mp in META_PATHS:
            key, k = jax.random.split(key)
            adj = jax.random.bernoulli(k, 0.3, (n, n)).astype(jnp.float32)
            adj = jnp.clip(adj + jnp.eye(n, dtype=jnp.float32), 0.0, 1.0)  # self-loops
            block[(nt, mp)] = adj
    return [block]   # single HANLayer


# ------------------------------ pure-JAX reference -----------------------------
def han_reference(params, g_blocks, h_list):
    h = h_list[0]
    lp = params["layer"]
    block = g_blocks[0]
    new_h = {}
    for nt in NTYPES:
        embeds = []
        for mp in META_PATHS:
            gp = lp["gat"][mp]
            z = h[nt] @ gp["W"]                                   # [N, H*Dh]
            n = z.shape[0]
            zh = z.reshape(n, NUM_HEADS, HIDDEN_DIM)              # [N, H, Dh]
            el = jnp.einsum("nhd,hd->nh", zh, gp["attn_l"])       # source term
            er = jnp.einsum("nhd,hd->nh", zh, gp["attn_r"])       # destination term
            adj = block[(nt, mp)]                                 # [N_dst, N_src]
            e = er[:, None, :] + el[None, :, :]                   # [i, j, h]
            e = jnp.where(e > 0.0, e, LEAKY_SLOPE * e)
            mask = (adj > 0.0)[:, :, None]
            e = jnp.where(mask, e, -jnp.inf)
            alpha = jax.nn.softmax(e, axis=1)
            out = jnp.einsum("ijh,jhd->ihd", alpha, zh).reshape(n, -1)
            out = jax.nn.elu(out + gp["bias"])
            embeds.append(out)
        zs = jnp.stack(embeds, axis=0)                            # [P, N, H*Dh]
        w = jnp.tanh(zs @ lp["sem"]["W"] + lp["sem"]["b"]) @ lp["sem"]["q"]
        beta = jax.nn.softmax(w.mean(axis=1), axis=0)             # [P, 1]
        new_h[nt] = jnp.sum(beta[:, None, :] * zs, axis=0)
    out = {}
    for nt in NTYPES:
        op = params["out"][nt]
        out[nt] = new_h[nt] @ op["W"] + op["b"]
    return out


# ----------------------------------- main --------------------------------------
if __name__ == "__main__":
    jax.config.update("jax_default_matmul_precision", "highest")

    key = jax.random.PRNGKey(0)
    k_params, k_graph, k_feat = jax.random.split(key, 3)

    params = init_params(k_params)
    g_blocks = make_blocks(k_graph)

    feats = {}
    for nt in NTYPES:
        k_feat, k = jax.random.split(k_feat)
        feats[nt] = jax.random.normal(k, (NUM_NODES[nt], IN_DIM), jnp.float32)
    h_list = [feats]                                 # forward does h = h[0]

    out = han_forward(params, g_blocks, h_list)
    out = jax.tree_util.tree_map(jax.block_until_ready, out)

    ref = han_reference(params, g_blocks, h_list)

    for nt in NTYPES:
        assert out[nt].shape == (NUM_NODES[nt], OUT_DIM), out[nt].shape
        assert bool(jnp.all(jnp.isfinite(out[nt])))
        err = float(jnp.max(jnp.abs(out[nt] - ref[nt])))
        assert err < 2e-2, (nt, err)

    print("KERNEL_OK")
</pallas_src>

<mosaic_0001>
module attributes {stable_mosaic.version = 11 : i64} {
  func.func @han_fused_kernel(%arg0: i32, %arg1: memref<1x24x32xf32, #tpu.memory_space<vmem>>, %arg2: memref<1x2x24x24xf32, #tpu.memory_space<vmem>>, %arg3: memref<1x24x1xf32, #tpu.memory_space<vmem>>, %arg4: memref<32x128xf32, #tpu.memory_space<vmem>>, %arg5: memref<8x128xf32, #tpu.memory_space<vmem>>, %arg6: memref<8x128xf32, #tpu.memory_space<vmem>>, %arg7: memref<1x128xf32, #tpu.memory_space<vmem>>, %arg8: memref<64x128xf32, #tpu.memory_space<vmem>>, %arg9: memref<1x128xf32, #tpu.memory_space<vmem>>, %arg10: memref<1x128xf32, #tpu.memory_space<vmem>>, %arg11: memref<1x64x8xf32, #tpu.memory_space<vmem>>, %arg12: memref<1x1x8xf32, #tpu.memory_space<vmem>>, %arg13: memref<1x24x8xf32, #tpu.memory_space<vmem>>) attributes {dimension_semantics = [#tpu.dimension_semantics<parallel>], iteration_bounds = array<i64: 2>, scalar_prefetch = 0 : i64, scratch_operands = 0 : i64, tpu.core_type = #tpu.core_type<tc>, window_params = [{transform_indices = @transform_0, window_bounds = array<i64: 1, 24, 32>}, {transform_indices = @transform_1, window_bounds = array<i64: 1, 2, 24, 24>}, {transform_indices = @transform_2, window_bounds = array<i64: 1, 24, 1>}, {pipeline_mode = #tpu.pipeline_mode<synchronous>, transform_indices = @transform_3, window_bounds = array<i64: 32, 128>}, {pipeline_mode = #tpu.pipeline_mode<synchronous>, transform_indices = @transform_4, window_bounds = array<i64: 8, 128>}, {pipeline_mode = #tpu.pipeline_mode<synchronous>, transform_indices = @transform_5, window_bounds = array<i64: 8, 128>}, {pipeline_mode = #tpu.pipeline_mode<synchronous>, transform_indices = @transform_6, window_bounds = array<i64: 1, 128>}, {pipeline_mode = #tpu.pipeline_mode<synchronous>, transform_indices = @transform_7, window_bounds = array<i64: 64, 128>}, {pipeline_mode = #tpu.pipeline_mode<synchronous>, transform_indices = @transform_8, window_bounds = array<i64: 1, 128>}, {pipeline_mode = #tpu.pipeline_mode<synchronous>, transform_indices = @transform_9, window_bounds = array<i64: 1, 128>}, {transform_indices = @transform_10, window_bounds = array<i64: 1, 64, 8>}, {transform_indices = @transform_11, window_bounds = array<i64: 1, 1, 8>}, {transform_indices = @transform_12, window_bounds = array<i64: 1, 24, 8>}]} {
    %c0 = arith.constant 0 : index
    %c0_0 = arith.constant 0 : index
    %c0_1 = arith.constant 0 : index
    %0 = vector.load %arg1[%c0, %c0_0, %c0_1] : memref<1x24x32xf32, #tpu.memory_space<vmem>>, vector<1x24x32xf32>
    %1 = vector.shape_cast %0 : vector<1x24x32xf32> to vector<24x32xf32>
    %c0_2 = arith.constant 0 : index
    %c0_3 = arith.constant 0 : index
    %2 = vector.load %arg4[%c0_2, %c0_3] : memref<32x128xf32, #tpu.memory_space<vmem>>, vector<32x128xf32>
    %cst = arith.constant dense<0.000000e+00> : vector<24x128xf32>
    %3 = tpu.matmul %1, %2, %cst {dimension_numbers = #tpu.dot_dimension_numbers<[1], [0], [0], [1], [0, 0, 1, 1], [], []>, precision = #tpu.contract_precision<fp32>} : vector<24x32xf32>, vector<32x128xf32>, vector<24x128xf32> -> vector<24x128xf32>
    %c0_4 = arith.constant 0 : index
    %c0_5 = arith.constant 0 : index
    %4 = vector.load %arg5[%c0_4, %c0_5] : memref<8x128xf32, #tpu.memory_space<vmem>>, vector<8x128xf32>
    %cst_6 = arith.constant dense<0.000000e+00> : vector<8x24xf32>
    %5 = tpu.matmul %4, %3, %cst_6 {dimension_numbers = #tpu.dot_dimension_numbers<[1], [1], [0], [0], [0, 0, 1, 0], [], []>, precision = #tpu.contract_precision<fp32>} : vector<8x128xf32>, vector<24x128xf32>, vector<8x24xf32> -> vector<8x24xf32>
    %c0_7 = arith.constant 0 : index
    %c0_8 = arith.constant 0 : index
    %6 = vector.load %arg6[%c0_7, %c0_8] : memref<8x128xf32, #tpu.memory_space<vmem>>, vector<8x128xf32>
    %cst_9 = arith.constant dense<0.000000e+00> : vector<24x8xf32>
    %7 = tpu.matmul %3, %6, %cst_9 {dimension_numbers = #tpu.dot_dimension_numbers<[1], [1], [0], [0], [0, 0, 1, 0], [], []>, precision = #tpu.contract_precision<fp32>} : vector<24x128xf32>, vector<8x128xf32>, vector<24x8xf32> -> vector<24x8xf32>
    %c0_10 = arith.constant 0 : index
    %c0_11 = arith.constant 0 : index
    %8 = vector.load %arg7[%c0_10, %c0_11] : memref<1x128xf32, #tpu.memory_space<vmem>>, vector<1x128xf32>
    %c0_12 = arith.constant 0 : index
    %c0_13 = arith.constant 0 : index
    %9 = vector.load %arg10[%c0_12, %c0_13] : memref<1x128xf32, #tpu.memory_space<vmem>>, vector<1x128xf32>
    %c0_14 = arith.constant 0 : index
    %c0_15 = arith.constant 0 : index
    %c0_16 = arith.constant 0 : index
    %10 = vector.load %arg3[%c0_14, %c0_15, %c0_16] : memref<1x24x1xf32, #tpu.memory_space<vmem>>, vector<1x24x1xf32>
    %11 = vector.shape_cast %10 : vector<1x24x1xf32> to vector<24x1xf32>
    %12 = tpu.iota {dimensions = array<i32: 1>} : vector<1x64xi32>
    %c0_17 = arith.constant 0 : index
    %c0_18 = arith.constant 0 : index
    %c0_19 = arith.constant 0 : index
    %c0_20 = arith.constant 0 : index
    %13 = vector.load %arg2[%c0_17, %c0_18, %c0_19, %c0_20] : memref<1x2x24x24xf32, #tpu.memory_space<vmem>>, vector<1x1x24x24xf32>
    %14 = vector.shape_cast %13 : vector<1x1x24x24xf32> to vector<24x24xf32>
    %cst_21 = arith.constant 0.000000e+00 : f32
    %15 = vector.broadcast %cst_21 : f32 to vector<24x24xf32>
    %16 = arith.cmpf ogt, %14, %15 : vector<24x24xf32>
    %17 = vector.extract_strided_slice %3 {offsets = [0, 0], sizes = [24, 64], strides = [1, 1]} : vector<24x128xf32> to vector<24x64xf32>
    %cst_22 = arith.constant 0.000000e+00 : f32
    %18 = vector.broadcast %cst_22 : f32 to vector<24x64xf32>
    %19 = vector.extract_strided_slice %7 {offsets = [0, 0], sizes = [24, 1], strides = [1, 1]} : vector<24x8xf32> to vector<24x1xf32>
    %20 = vector.extract_strided_slice %5 {offsets = [0, 0], sizes = [1, 24], strides = [1, 1]} : vector<8x24xf32> to vector<1x24xf32>
    %21 = vector.broadcast %19 : vector<24x1xf32> to vector<24x24xf32>
    %22 = vector.broadcast %20 : vector<1x24xf32> to vector<24x24xf32>
    %23 = arith.addf %21, %22 : vector<24x24xf32>
    %cst_23 = arith.constant 0.000000e+00 : f32
    %24 = vector.broadcast %cst_23 : f32 to vector<24x24xf32>
    %25 = arith.cmpf ogt, %23, %24 : vector<24x24xf32>
    %cst_24 = arith.constant 2.000000e-01 : f32
    %26 = vector.broadcast %cst_24 : f32 to vector<24x24xf32>
    %27 = arith.mulf %26, %23 : vector<24x24xf32>
    %28 = arith.select %25, %23, %27 : vector<24x24xi1>, vector<24x24xf32>
    %cst_25 = arith.constant -1.000000e+30 : f32
    %29 = vector.broadcast %cst_25 : f32 to vector<24x24xf32>
    %30 = arith.select %16, %28, %29 : vector<24x24xi1>, vector<24x24xf32>
    %cst_26 = arith.constant dense<0xFF800000> : vector<24xf32>
    %31 = vector.multi_reduction <maximumf>, %30, %cst_26 [1] : vector<24x24xf32> to vector<24xf32>
    %32 = vector.shape_cast %31 : vector<24xf32> to vector<24x1xf32>
    %33 = vector.broadcast %32 : vector<24x1xf32> to vector<24x24xf32>
    %34 = arith.subf %30, %33 : vector<24x24xf32>
    %35 = math.exp %34 : vector<24x24xf32>
    %cst_27 = arith.constant 0.000000e+00 : f32
    %36 = vector.broadcast %cst_27 : f32 to vector<24x24xf32>
    %37 = arith.select %16, %35, %36 : vector<24x24xi1>, vector<24x24xf32>
    %cst_28 = arith.constant dense<0.000000e+00> : vector<24xf32>
    %38 = vector.multi_reduction <add>, %37, %cst_28 [1] : vector<24x24xf32> to vector<24xf32>
    %39 = vector.shape_cast %38 : vector<24xf32> to vector<24x1xf32>
    %cst_29 = arith.constant 9.99999971E-10 : f32
    %40 = vector.broadcast %cst_29 : f32 to vector<24x1xf32>
    %41 = arith.maximumf %39, %40 : vector<24x1xf32>
    %42 = tpu.reciprocal %41 {approx = true} : vector<24x1xf32> -> vector<24x1xf32>
    %43 = vector.broadcast %42 : vector<24x1xf32> to vector<24x24xf32>
    %44 = arith.mulf %37, %43 : vector<24x24xf32>
    %c0_i32 = arith.constant 0 : i32
    %45 = vector.broadcast %c0_i32 : i32 to vector<1x64xi32>
    %46 = arith.cmpi sge, %12, %45 : vector<1x64xi32>
    %c16_i32 = arith.constant 16 : i32
    %47 = vector.broadcast %c16_i32 : i32 to vector<1x64xi32>
    %48 = arith.cmpi slt, %12, %47 : vector<1x64xi32>
    %49 = arith.andi %46, %48 : vector<1x64xi1>
    %cst_30 = arith.constant 0.000000e+00 : f32
    %50 = vector.shape_cast %49 : vector<1x64xi1> to vector<1x64xi1>
    %51 = vector.broadcast %50 : vector<1x64xi1> to vector<24x64xi1>
    %52 = vector.broadcast %cst_30 : f32 to vector<24x64xf32>
    %53 = arith.select %51, %17, %52 : vector<24x64xi1>, vector<24x64xf32>
    %cst_31 = arith.constant dense<0.000000e+00> : vector<24x64xf32>
    %54 = tpu.matmul %44, %53, %cst_31 {dimension_numbers = #tpu.dot_dimension_numbers<[1], [0], [0], [1], [0, 0, 1, 1], [], []>, precision = #tpu.contract_precision<fp32>} : vector<24x24xf32>, vector<24x64xf32>, vector<24x64xf32> -> vector<24x64xf32>
    %55 = arith.addf %18, %54 : vector<24x64xf32>
    %56 = vector.extract_strided_slice %7 {offsets = [0, 1], sizes = [24, 1], strides = [1, 1]} : vector<24x8xf32> to vector<24x1xf32>
    %57 = vector.extract_strided_slice %5 {offsets = [1, 0], sizes = [1, 24], strides = [1, 1]} : vector<8x24xf32> to vector<1x24xf32>
    %58 = vector.broadcast %56 : vector<24x1xf32> to vector<24x24xf32>
    %59 = vector.broadcast %57 : vector<1x24xf32> to vector<24x24xf32>
    %60 = arith.addf %58, %59 : vector<24x24xf32>
    %cst_32 = arith.constant 0.000000e+00 : f32
    %61 = vector.broadcast %cst_32 : f32 to vector<24x24xf32>
    %62 = arith.cmpf ogt, %60, %61 : vector<24x24xf32>
    %cst_33 = arith.constant 2.000000e-01 : f32
    %63 = vector.broadcast %cst_33 : f32 to vector<24x24xf32>
    %64 = arith.mulf %63, %60 : vector<24x24xf32>
    %65 = arith.select %62, %60, %64 : vector<24x24xi1>, vector<24x24xf32>
    %cst_34 = arith.constant -1.000000e+30 : f32
    %66 = vector.broadcast %cst_34 : f32 to vector<24x24xf32>
    %67 = arith.select %16, %65, %66 : vector<24x24xi1>, vector<24x24xf32>
    %cst_35 = arith.constant dense<0xFF800000> : vector<24xf32>
    %68 = vector.multi_reduction <maximumf>, %67, %cst_35 [1] : vector<24x24xf32> to vector<24xf32>
    %69 = vector.shape_cast %68 : vector<24xf32> to vector<24x1xf32>
    %70 = vector.broadcast %69 : vector<24x1xf32> to vector<24x24xf32>
    %71 = arith.subf %67, %70 : vector<24x24xf32>
    %72 = math.exp %71 : vector<24x24xf32>
    %cst_36 = arith.constant 0.000000e+00 : f32
    %73 = vector.broadcast %cst_36 : f32 to vector<24x24xf32>
    %74 = arith.select %16, %72, %73 : vector<24x24xi1>, vector<24x24xf32>
    %cst_37 = arith.constant dense<0.000000e+00> : vector<24xf32>
    %75 = vector.multi_reduction <add>, %74, %cst_37 [1] : vector<24x24xf32> to vector<24xf32>
    %76 = vector.shape_cast %75 : vector<24xf32> to vector<24x1xf32>
    %cst_38 = arith.constant 9.99999971E-10 : f32
    %77 = vector.broadcast %cst_38 : f32 to vector<24x1xf32>
    %78 = arith.maximumf %76, %77 : vector<24x1xf32>
    %79 = tpu.reciprocal %78 {approx = true} : vector<24x1xf32> -> vector<24x1xf32>
    %80 = vector.broadcast %79 : vector<24x1xf32> to vector<24x24xf32>
    %81 = arith.mulf %74, %80 : vector<24x24xf32>
    %c16_i32_39 = arith.constant 16 : i32
    %82 = vector.broadcast %c16_i32_39 : i32 to vector<1x64xi32>
    %83 = arith.cmpi sge, %12, %82 : vector<1x64xi32>
    %c32_i32 = arith.constant 32 : i32
    %84 = vector.broadcast %c32_i32 : i32 to vector<1x64xi32>
    %85 = arith.cmpi slt, %12, %84 : vector<1x64xi32>
    %86 = arith.andi %83, %85 : vector<1x64xi1>
    %cst_40 = arith.constant 0.000000e+00 : f32
    %87 = vector.shape_cast %86 : vector<1x64xi1> to vector<1x64xi1>
    %88 = vector.broadcast %87 : vector<1x64xi1> to vector<24x64xi1>
    %89 = vector.broadcast %cst_40 : f32 to vector<24x64xf32>
    %90 = arith.select %88, %17, %89 : vector<24x64xi1>, vector<24x64xf32>
    %cst_41 = arith.constant dense<0.000000e+00> : vector<24x64xf32>
    %91 = tpu.matmul %81, %90, %cst_41 {dimension_numbers = #tpu.dot_dimension_numbers<[1], [0], [0], [1], [0, 0, 1, 1], [], []>, precision = #tpu.contract_precision<fp32>} : vector<24x24xf32>, vector<24x64xf32>, vector<24x64xf32> -> vector<24x64xf32>
    %92 = arith.addf %55, %91 : vector<24x64xf32>
    %93 = vector.extract_strided_slice %7 {offsets = [0, 2], sizes = [24, 1], strides = [1, 1]} : vector<24x8xf32> to vector<24x1xf32>
    %94 = vector.extract_strided_slice %5 {offsets = [2, 0], sizes = [1, 24], strides = [1, 1]} : vector<8x24xf32> to vector<1x24xf32>
    %95 = vector.broadcast %93 : vector<24x1xf32> to vector<24x24xf32>
    %96 = vector.broadcast %94 : vector<1x24xf32> to vector<24x24xf32>
    %97 = arith.addf %95, %96 : vector<24x24xf32>
    %cst_42 = arith.constant 0.000000e+00 : f32
    %98 = vector.broadcast %cst_42 : f32 to vector<24x24xf32>
    %99 = arith.cmpf ogt, %97, %98 : vector<24x24xf32>
    %cst_43 = arith.constant 2.000000e-01 : f32
    %100 = vector.broadcast %cst_43 : f32 to vector<24x24xf32>
    %101 = arith.mulf %100, %97 : vector<24x24xf32>
    %102 = arith.select %99, %97, %101 : vector<24x24xi1>, vector<24x24xf32>
    %cst_44 = arith.constant -1.000000e+30 : f32
    %103 = vector.broadcast %cst_44 : f32 to vector<24x24xf32>
    %104 = arith.select %16, %102, %103 : vector<24x24xi1>, vector<24x24xf32>
    %cst_45 = arith.constant dense<0xFF800000> : vector<24xf32>
    %105 = vector.multi_reduction <maximumf>, %104, %cst_45 [1] : vector<24x24xf32> to vector<24xf32>
    %106 = vector.shape_cast %105 : vector<24xf32> to vector<24x1xf32>
    %107 = vector.broadcast %106 : vector<24x1xf32> to vector<24x24xf32>
    %108 = arith.subf %104, %107 : vector<24x24xf32>
    %109 = math.exp %108 : vector<24x24xf32>
    %cst_46 = arith.constant 0.000000e+00 : f32
    %110 = vector.broadcast %cst_46 : f32 to vector<24x24xf32>
    %111 = arith.select %16, %109, %110 : vector<24x24xi1>, vector<24x24xf32>
    %cst_47 = arith.constant dense<0.000000e+00> : vector<24xf32>
    %112 = vector.multi_reduction <add>, %111, %cst_47 [1] : vector<24x24xf32> to vector<24xf32>
    %113 = vector.shape_cast %112 : vector<24xf32> to vector<24x1xf32>
    %cst_48 = arith.constant 9.99999971E-10 : f32
    %114 = vector.broadcast %cst_48 : f32 to vector<24x1xf32>
    %115 = arith.maximumf %113, %114 : vector<24x1xf32>
    %116 = tpu.reciprocal %115 {approx = true} : vector<24x1xf32> -> vector<24x1xf32>
    %117 = vector.broadcast %116 : vector<24x1xf32> to vector<24x24xf32>
    %118 = arith.mulf %111, %117 : vector<24x24xf32>
    %c32_i32_49 = arith.constant 32 : i32
    %119 = vector.broadcast %c32_i32_49 : i32 to vector<1x64xi32>
    %120 = arith.cmpi sge, %12, %119 : vector<1x64xi32>
    %c48_i32 = arith.constant 48 : i32
    %121 = vector.broadcast %c48_i32 : i32 to vector<1x64xi32>
    %122 = arith.cmpi slt, %12, %121 : vector<1x64xi32>
    %123 = arith.andi %120, %122 : vector<1x64xi1>
    %cst_50 = arith.constant 0.000000e+00 : f32
    %124 = vector.shape_cast %123 : vector<1x64xi1> to vector<1x64xi1>
    %125 = vector.broadcast %124 : vector<1x64xi1> to vector<24x64xi1>
    %126 = vector.broadcast %cst_50 : f32 to vector<24x64xf32>
    %127 = arith.select %125, %17, %126 : vector<24x64xi1>, vector<24x64xf32>
    %cst_51 = arith.constant dense<0.000000e+00> : vector<24x64xf32>
    %128 = tpu.matmul %118, %127, %cst_51 {dimension_numbers = #tpu.dot_dimension_numbers<[1], [0], [0], [1], [0, 0, 1, 1], [], []>, precision = #tpu.contract_precision<fp32>} : vector<24x24xf32>, vector<24x64xf32>, vector<24x64xf32> -> vector<24x64xf32>
    %129 = arith.addf %92, %128 : vector<24x64xf32>
    %130 = vector.extract_strided_slice %7 {offsets = [0, 3], sizes = [24, 1], strides = [1, 1]} : vector<24x8xf32> to vector<24x1xf32>
    %131 = vector.extract_strided_slice %5 {offsets = [3, 0], sizes = [1, 24], strides = [1, 1]} : vector<8x24xf32> to vector<1x24xf32>
    %132 = vector.broadcast %130 : vector<24x1xf32> to vector<24x24xf32>
    %133 = vector.broadcast %131 : vector<1x24xf32> to vector<24x24xf32>
    %134 = arith.addf %132, %133 : vector<24x24xf32>
    %cst_52 = arith.constant 0.000000e+00 : f32
    %135 = vector.broadcast %cst_52 : f32 to vector<24x24xf32>
    %136 = arith.cmpf ogt, %134, %135 : vector<24x24xf32>
    %cst_53 = arith.constant 2.000000e-01 : f32
    %137 = vector.broadcast %cst_53 : f32 to vector<24x24xf32>
    %138 = arith.mulf %137, %134 : vector<24x24xf32>
    %139 = arith.select %136, %134, %138 : vector<24x24xi1>, vector<24x24xf32>
    %cst_54 = arith.constant -1.000000e+30 : f32
    %140 = vector.broadcast %cst_54 : f32 to vector<24x24xf32>
    %141 = arith.select %16, %139, %140 : vector<24x24xi1>, vector<24x24xf32>
    %cst_55 = arith.constant dense<0xFF800000> : vector<24xf32>
    %142 = vector.multi_reduction <maximumf>, %141, %cst_55 [1] : vector<24x24xf32> to vector<24xf32>
    %143 = vector.shape_cast %142 : vector<24xf32> to vector<24x1xf32>
    %144 = vector.broadcast %143 : vector<24x1xf32> to vector<24x24xf32>
    %145 = arith.subf %141, %144 : vector<24x24xf32>
    %146 = math.exp %145 : vector<24x24xf32>
    %cst_56 = arith.constant 0.000000e+00 : f32
    %147 = vector.broadcast %cst_56 : f32 to vector<24x24xf32>
    %148 = arith.select %16, %146, %147 : vector<24x24xi1>, vector<24x24xf32>
    %cst_57 = arith.constant dense<0.000000e+00> : vector<24xf32>
    %149 = vector.multi_reduction <add>, %148, %cst_57 [1] : vector<24x24xf32> to vector<24xf32>
    %150 = vector.shape_cast %149 : vector<24xf32> to vector<24x1xf32>
    %cst_58 = arith.constant 9.99999971E-10 : f32
    %151 = vector.broadcast %cst_58 : f32 to vector<24x1xf32>
    %152 = arith.maximumf %150, %151 : vector<24x1xf32>
    %153 = tpu.reciprocal %152 {approx = true} : vector<24x1xf32> -> vector<24x1xf32>
    %154 = vector.broadcast %153 : vector<24x1xf32> to vector<24x24xf32>
    %155 = arith.mulf %148, %154 : vector<24x24xf32>
    %c48_i32_59 = arith.constant 48 : i32
    %156 = vector.broadcast %c48_i32_59 : i32 to vector<1x64xi32>
    %157 = arith.cmpi sge, %12, %156 : vector<1x64xi32>
    %c64_i32 = arith.constant 64 : i32
    %158 = vector.broadcast %c64_i32 : i32 to vector<1x64xi32>
    %159 = arith.cmpi slt, %12, %158 : vector<1x64xi32>
    %160 = arith.andi %157, %159 : vector<1x64xi1>
    %cst_60 = arith.constant 0.000000e+00 : f32
    %161 = vector.shape_cast %160 : vector<1x64xi1> to vector<1x64xi1>
    %162 = vector.broadcast %161 : vector<1x64xi1> to vector<24x64xi1>
    %163 = vector.broadcast %cst_60 : f32 to vector<24x64xf32>
    %164 = arith.select %162, %17, %163 : vector<24x64xi1>, vector<24x64xf32>
    %cst_61 = arith.constant dense<0.000000e+00> : vector<24x64xf32>
    %165 = tpu.matmul %155, %164, %cst_61 {dimension_numbers = #tpu.dot_dimension_numbers<[1], [0], [0], [1], [0, 0, 1, 1], [], []>, precision = #tpu.contract_precision<fp32>} : vector<24x24xf32>, vector<24x64xf32>, vector<24x64xf32> -> vector<24x64xf32>
    %166 = arith.addf %129, %165 : vector<24x64xf32>
    %167 = vector.extract_strided_slice %8 {offsets = [0, 0], sizes = [1, 64], strides = [1, 1]} : vector<1x128xf32> to vector<1x64xf32>
    %168 = vector.broadcast %167 : vector<1x64xf32> to vector<24x64xf32>
    %169 = arith.addf %166, %168 : vector<24x64xf32>
    %cst_62 = arith.constant 0.000000e+00 : f32
    %170 = vector.broadcast %cst_62 : f32 to vector<24x64xf32>
    %171 = arith.cmpf ogt, %169, %170 : vector<24x64xf32>
    %cst_63 = arith.constant 0.000000e+00 : f32
    %172 = vector.broadcast %cst_63 : f32 to vector<24x64xf32>
    %173 = arith.minimumf %169, %172 : vector<24x64xf32>
    %174 = math.exp %173 : vector<24x64xf32>
    %cst_64 = arith.constant 1.000000e+00 : f32
    %175 = vector.broadcast %cst_64 : f32 to vector<24x64xf32>
    %176 = arith.subf %174, %175 : vector<24x64xf32>
    %177 = arith.select %171, %169, %176 : vector<24x64xi1>, vector<24x64xf32>
    %c0_65 = arith.constant 0 : index
    %c0_66 = arith.constant 0 : index
    %178 = vector.load %arg8[%c0_65, %c0_66] : memref<64x128xf32, #tpu.memory_space<vmem>>, vector<64x128xf32>
    %cst_67 = arith.constant dense<0.000000e+00> : vector<24x128xf32>
    %179 = tpu.matmul %177, %178, %cst_67 {dimension_numbers = #tpu.dot_dimension_numbers<[1], [0], [0], [1], [0, 0, 1, 1], [], []>, precision = #tpu.contract_precision<fp32>} : vector<24x64xf32>, vector<64x128xf32>, vector<24x128xf32> -> vector<24x128xf32>
    %c0_68 = arith.constant 0 : index
    %c0_69 = arith.constant 0 : index
    %180 = vector.load %arg9[%c0_68, %c0_69] : memref<1x128xf32, #tpu.memory_space<vmem>>, vector<1x128xf32>
    %181 = vector.broadcast %180 : vector<1x128xf32> to vector<24x128xf32>
    %182 = arith.addf %179, %181 : vector<24x128xf32>
    %183 = math.tanh %182 : vector<24x128xf32>
    %184 = vector.broadcast %9 : vector<1x128xf32> to vector<24x128xf32>
    %185 = arith.mulf %183, %184 : vector<24x128xf32>
    %186 = vector.broadcast %11 : vector<24x1xf32> to vector<24x128xf32>
    %187 = arith.mulf %185, %186 : vector<24x128xf32>
    %188 = vector.shape_cast %187 : vector<24x128xf32> to vector<1x24x128xf32>
    %cst_70 = arith.constant dense<0.000000e+00> : vector<1xf32>
    %189 = vector.multi_reduction <add>, %188, %cst_70 [1, 2] : vector<1x24x128xf32> to vector<1xf32>
    %190 = vector.shape_cast %189 : vector<1xf32> to vector<1x1x1xf32>
    %191 = vector.extract %190[0, 0, 0] : f32 from vector<1x1x1xf32>
    %c0_71 = arith.constant 0 : index
    %c1 = arith.constant 1 : index
    %c0_72 = arith.constant 0 : index
    %c0_73 = arith.constant 0 : index
    %192 = vector.load %arg2[%c0_71, %c1, %c0_72, %c0_73] : memref<1x2x24x24xf32, #tpu.memory_space<vmem>>, vector<1x1x24x24xf32>
    %193 = vector.shape_cast %192 : vector<1x1x24x24xf32> to vector<24x24xf32>
    %cst_74 = arith.constant 0.000000e+00 : f32
    %194 = vector.broadcast %cst_74 : f32 to vector<24x24xf32>
    %195 = arith.cmpf ogt, %193, %194 : vector<24x24xf32>
    %196 = vector.extract_strided_slice %3 {offsets = [0, 64], sizes = [24, 64], strides = [1, 1]} : vector<24x128xf32> to vector<24x64xf32>
    %cst_75 = arith.constant 0.000000e+00 : f32
    %197 = vector.broadcast %cst_75 : f32 to vector<24x64xf32>
    %198 = vector.extract_strided_slice %7 {offsets = [0, 4], sizes = [24, 1], strides = [1, 1]} : vector<24x8xf32> to vector<24x1xf32>
    %199 = vector.extract_strided_slice %5 {offsets = [4, 0], sizes = [1, 24], strides = [1, 1]} : vector<8x24xf32> to vector<1x24xf32>
    %200 = vector.broadcast %198 : vector<24x1xf32> to vector<24x24xf32>
    %201 = vector.broadcast %199 : vector<1x24xf32> to vector<24x24xf32>
    %202 = arith.addf %200, %201 : vector<24x24xf32>
    %cst_76 = arith.constant 0.000000e+00 : f32
    %203 = vector.broadcast %cst_76 : f32 to vector<24x24xf32>
    %204 = arith.cmpf ogt, %202, %203 : vector<24x24xf32>
    %cst_77 = arith.constant 2.000000e-01 : f32
    %205 = vector.broadcast %cst_77 : f32 to vector<24x24xf32>
    %206 = arith.mulf %205, %202 : vector<24x24xf32>
    %207 = arith.select %204, %202, %206 : vector<24x24xi1>, vector<24x24xf32>
    %cst_78 = arith.constant -1.000000e+30 : f32
    %208 = vector.broadcast %cst_78 : f32 to vector<24x24xf32>
    %209 = arith.select %195, %207, %208 : vector<24x24xi1>, vector<24x24xf32>
    %cst_79 = arith.constant dense<0xFF800000> : vector<24xf32>
    %210 = vector.multi_reduction <maximumf>, %209, %cst_79 [1] : vector<24x24xf32> to vector<24xf32>
    %211 = vector.shape_cast %210 : vector<24xf32> to vector<24x1xf32>
    %212 = vector.broadcast %211 : vector<24x1xf32> to vector<24x24xf32>
    %213 = arith.subf %209, %212 : vector<24x24xf32>
    %214 = math.exp %213 : vector<24x24xf32>
    %cst_80 = arith.constant 0.000000e+00 : f32
    %215 = vector.broadcast %cst_80 : f32 to vector<24x24xf32>
    %216 = arith.select %195, %214, %215 : vector<24x24xi1>, vector<24x24xf32>
    %cst_81 = arith.constant dense<0.000000e+00> : vector<24xf32>
    %217 = vector.multi_reduction <add>, %216, %cst_81 [1] : vector<24x24xf32> to vector<24xf32>
    %218 = vector.shape_cast %217 : vector<24xf32> to vector<24x1xf32>
    %cst_82 = arith.constant 9.99999971E-10 : f32
    %219 = vector.broadcast %cst_82 : f32 to vector<24x1xf32>
    %220 = arith.maximumf %218, %219 : vector<24x1xf32>
    %221 = tpu.reciprocal %220 {approx = true} : vector<24x1xf32> -> vector<24x1xf32>
    %222 = vector.broadcast %221 : vector<24x1xf32> to vector<24x24xf32>
    %223 = arith.mulf %216, %222 : vector<24x24xf32>
    %c0_i32_83 = arith.constant 0 : i32
    %224 = vector.broadcast %c0_i32_83 : i32 to vector<1x64xi32>
    %225 = arith.cmpi sge, %12, %224 : vector<1x64xi32>
    %c16_i32_84 = arith.constant 16 : i32
    %226 = vector.broadcast %c16_i32_84 : i32 to vector<1x64xi32>
    %227 = arith.cmpi slt, %12, %226 : vector<1x64xi32>
    %228 = arith.andi %225, %227 : vector<1x64xi1>
    %cst_85 = arith.constant 0.000000e+00 : f32
    %229 = vector.shape_cast %228 : vector<1x64xi1> to vector<1x64xi1>
    %230 = vector.broadcast %229 : vector<1x64xi1> to vector<24x64xi1>
    %231 = vector.broadcast %cst_85 : f32 to vector<24x64xf32>
    %232 = arith.select %230, %196, %231 : vector<24x64xi1>, vector<24x64xf32>
    %cst_86 = arith.constant dense<0.000000e+00> : vector<24x64xf32>
    %233 = tpu.matmul %223, %232, %cst_86 {dimension_numbers = #tpu.dot_dimension_numbers<[1], [0], [0], [1], [0, 0, 1, 1], [], []>, precision = #tpu.contract_precision<fp32>} : vector<24x24xf32>, vector<24x64xf32>, vector<24x64xf32> -> vector<24x64xf32>
    %234 = arith.addf %197, %233 : vector<24x64xf32>
    %235 = vector.extract_strided_slice %7 {offsets = [0, 5], sizes = [24, 1], strides = [1, 1]} : vector<24x8xf32> to vector<24x1xf32>
    %236 = vector.extract_strided_slice %5 {offsets = [5, 0], sizes = [1, 24], strides = [1, 1]} : vector<8x24xf32> to vector<1x24xf32>
    %237 = vector.broadcast %235 : vector<24x1xf32> to vector<24x24xf32>
    %238 = vector.broadcast %236 : vector<1x24xf32> to vector<24x24xf32>
    %239 = arith.addf %237, %238 : vector<24x24xf32>
    %cst_87 = arith.constant 0.000000e+00 : f32
    %240 = vector.broadcast %cst_87 : f32 to vector<24x24xf32>
    %241 = arith.cmpf ogt, %239, %240 : vector<24x24xf32>
    %cst_88 = arith.constant 2.000000e-01 : f32
    %242 = vector.broadcast %cst_88 : f32 to vector<24x24xf32>
    %243 = arith.mulf %242, %239 : vector<24x24xf32>
    %244 = arith.select %241, %239, %243 : vector<24x24xi1>, vector<24x24xf32>
    %cst_89 = arith.constant -1.000000e+30 : f32
    %245 = vector.broadcast %cst_89 : f32 to vector<24x24xf32>
    %246 = arith.select %195, %244, %245 : vector<24x24xi1>, vector<24x24xf32>
    %cst_90 = arith.constant dense<0xFF800000> : vector<24xf32>
    %247 = vector.multi_reduction <maximumf>, %246, %cst_90 [1] : vector<24x24xf32> to vector<24xf32>
    %248 = vector.shape_cast %247 : vector<24xf32> to vector<24x1xf32>
    %249 = vector.broadcast %248 : vector<24x1xf32> to vector<24x24xf32>
    %250 = arith.subf %246, %249 : vector<24x24xf32>
    %251 = math.exp %250 : vector<24x24xf32>
    %cst_91 = arith.constant 0.000000e+00 : f32
    %252 = vector.broadcast %cst_91 : f32 to vector<24x24xf32>
    %253 = arith.select %195, %251, %252 : vector<24x24xi1>, vector<24x24xf32>
    %cst_92 = arith.constant dense<0.000000e+00> : vector<24xf32>
    %254 = vector.multi_reduction <add>, %253, %cst_92 [1] : vector<24x24xf32> to vector<24xf32>
    %255 = vector.shape_cast %254 : vector<24xf32> to vector<24x1xf32>
    %cst_93 = arith.constant 9.99999971E-10 : f32
    %256 = vector.broadcast %cst_93 : f32 to vector<24x1xf32>
    %257 = arith.maximumf %255, %256 : vector<24x1xf32>
    %258 = tpu.reciprocal %257 {approx = true} : vector<24x1xf32> -> vector<24x1xf32>
    %259 = vector.broadcast %258 : vector<24x1xf32> to vector<24x24xf32>
    %260 = arith.mulf %253, %259 : vector<24x24xf32>
    %c16_i32_94 = arith.constant 16 : i32
    %261 = vector.broadcast %c16_i32_94 : i32 to vector<1x64xi32>
    %262 = arith.cmpi sge, %12, %261 : vector<1x64xi32>
    %c32_i32_95 = arith.constant 32 : i32
    %263 = vector.broadcast %c32_i32_95 : i32 to vector<1x64xi32>
    %264 = arith.cmpi slt, %12, %263 : vector<1x64xi32>
    %265 = arith.andi %262, %264 : vector<1x64xi1>
    %cst_96 = arith.constant 0.000000e+00 : f32
    %266 = vector.shape_cast %265 : vector<1x64xi1> to vector<1x64xi1>
    %267 = vector.broadcast %266 : vector<1x64xi1> to vector<24x64xi1>
    %268 = vector.broadcast %cst_96 : f32 to vector<24x64xf32>
    %269 = arith.select %267, %196, %268 : vector<24x64xi1>, vector<24x64xf32>
    %cst_97 = arith.constant dense<0.000000e+00> : vector<24x64xf32>
    %270 = tpu.matmul %260, %269, %cst_97 {dimension_numbers = #tpu.dot_dimension_numbers<[1], [0], [0], [1], [0, 0, 1, 1], [], []>, precision = #tpu.contract_precision<fp32>} : vector<24x24xf32>, vector<24x64xf32>, vector<24x64xf32> -> vector<24x64xf32>
    %271 = arith.addf %234, %270 : vector<24x64xf32>
    %272 = vector.extract_strided_slice %7 {offsets = [0, 6], sizes = [24, 1], strides = [1, 1]} : vector<24x8xf32> to vector<24x1xf32>
    %273 = vector.extract_strided_slice %5 {offsets = [6, 0], sizes = [1, 24], strides = [1, 1]} : vector<8x24xf32> to vector<1x24xf32>
    %274 = vector.broadcast %272 : vector<24x1xf32> to vector<24x24xf32>
    %275 = vector.broadcast %273 : vector<1x24xf32> to vector<24x24xf32>
    %276 = arith.addf %274, %275 : vector<24x24xf32>
    %cst_98 = arith.constant 0.000000e+00 : f32
    %277 = vector.broadcast %cst_98 : f32 to vector<24x24xf32>
    %278 = arith.cmpf ogt, %276, %277 : vector<24x24xf32>
    %cst_99 = arith.constant 2.000000e-01 : f32
    %279 = vector.broadcast %cst_99 : f32 to vector<24x24xf32>
    %280 = arith.mulf %279, %276 : vector<24x24xf32>
    %281 = arith.select %278, %276, %280 : vector<24x24xi1>, vector<24x24xf32>
    %cst_100 = arith.constant -1.000000e+30 : f32
    %282 = vector.broadcast %cst_100 : f32 to vector<24x24xf32>
    %283 = arith.select %195, %281, %282 : vector<24x24xi1>, vector<24x24xf32>
    %cst_101 = arith.constant dense<0xFF800000> : vector<24xf32>
    %284 = vector.multi_reduction <maximumf>, %283, %cst_101 [1] : vector<24x24xf32> to vector<24xf32>
    %285 = vector.shape_cast %284 : vector<24xf32> to vector<24x1xf32>
    %286 = vector.broadcast %285 : vector<24x1xf32> to vector<24x24xf32>
    %287 = arith.subf %283, %286 : vector<24x24xf32>
    %288 = math.exp %287 : vector<24x24xf32>
    %cst_102 = arith.constant 0.000000e+00 : f32
    %289 = vector.broadcast %cst_102 : f32 to vector<24x24xf32>
    %290 = arith.select %195, %288, %289 : vector<24x24xi1>, vector<24x24xf32>
    %cst_103 = arith.constant dense<0.000000e+00> : vector<24xf32>
    %291 = vector.multi_reduction <add>, %290, %cst_103 [1] : vector<24x24xf32> to vector<24xf32>
    %292 = vector.shape_cast %291 : vector<24xf32> to vector<24x1xf32>
    %cst_104 = arith.constant 9.99999971E-10 : f32
    %293 = vector.broadcast %cst_104 : f32 to vector<24x1xf32>
    %294 = arith.maximumf %292, %293 : vector<24x1xf32>
    %295 = tpu.reciprocal %294 {approx = true} : vector<24x1xf32> -> vector<24x1xf32>
    %296 = vector.broadcast %295 : vector<24x1xf32> to vector<24x24xf32>
    %297 = arith.mulf %290, %296 : vector<24x24xf32>
    %c32_i32_105 = arith.constant 32 : i32
    %298 = vector.broadcast %c32_i32_105 : i32 to vector<1x64xi32>
    %299 = arith.cmpi sge, %12, %298 : vector<1x64xi32>
    %c48_i32_106 = arith.constant 48 : i32
    %300 = vector.broadcast %c48_i32_106 : i32 to vector<1x64xi32>
    %301 = arith.cmpi slt, %12, %300 : vector<1x64xi32>
    %302 = arith.andi %299, %301 : vector<1x64xi1>
    %cst_107 = arith.constant 0.000000e+00 : f32
    %303 = vector.shape_cast %302 : vector<1x64xi1> to vector<1x64xi1>
    %304 = vector.broadcast %303 : vector<1x64xi1> to vector<24x64xi1>
    %305 = vector.broadcast %cst_107 : f32 to vector<24x64xf32>
    %306 = arith.select %304, %196, %305 : vector<24x64xi1>, vector<24x64xf32>
    %cst_108 = arith.constant dense<0.000000e+00> : vector<24x64xf32>
    %307 = tpu.matmul %297, %306, %cst_108 {dimension_numbers = #tpu.dot_dimension_numbers<[1], [0], [0], [1], [0, 0, 1, 1], [], []>, precision = #tpu.contract_precision<fp32>} : vector<24x24xf32>, vector<24x64xf32>, vector<24x64xf32> -> vector<24x64xf32>
    %308 = arith.addf %271, %307 : vector<24x64xf32>
    %309 = vector.extract_strided_slice %7 {offsets = [0, 7], sizes = [24, 1], strides = [1, 1]} : vector<24x8xf32> to vector<24x1xf32>
    %310 = vector.extract_strided_slice %5 {offsets = [7, 0], sizes = [1, 24], strides = [1, 1]} : vector<8x24xf32> to vector<1x24xf32>
    %311 = vector.broadcast %309 : vector<24x1xf32> to vector<24x24xf32>
    %312 = vector.broadcast %310 : vector<1x24xf32> to vector<24x24xf32>
    %313 = arith.addf %311, %312 : vector<24x24xf32>
    %cst_109 = arith.constant 0.000000e+00 : f32
    %314 = vector.broadcast %cst_109 : f32 to vector<24x24xf32>
    %315 = arith.cmpf ogt, %313, %314 : vector<24x24xf32>
    %cst_110 = arith.constant 2.000000e-01 : f32
    %316 = vector.broadcast %cst_110 : f32 to vector<24x24xf32>
    %317 = arith.mulf %316, %313 : vector<24x24xf32>
    %318 = arith.select %315, %313, %317 : vector<24x24xi1>, vector<24x24xf32>
    %cst_111 = arith.constant -1.000000e+30 : f32
    %319 = vector.broadcast %cst_111 : f32 to vector<24x24xf32>
    %320 = arith.select %195, %318, %319 : vector<24x24xi1>, vector<24x24xf32>
    %cst_112 = arith.constant dense<0xFF800000> : vector<24xf32>
    %321 = vector.multi_reduction <maximumf>, %320, %cst_112 [1] : vector<24x24xf32> to vector<24xf32>
    %322 = vector.shape_cast %321 : vector<24xf32> to vector<24x1xf32>
    %323 = vector.broadcast %322 : vector<24x1xf32> to vector<24x24xf32>
    %324 = arith.subf %320, %323 : vector<24x24xf32>
    %325 = math.exp %324 : vector<24x24xf32>
    %cst_113 = arith.constant 0.000000e+00 : f32
    %326 = vector.broadcast %cst_113 : f32 to vector<24x24xf32>
    %327 = arith.select %195, %325, %326 : vector<24x24xi1>, vector<24x24xf32>
    %cst_114 = arith.constant dense<0.000000e+00> : vector<24xf32>
    %328 = vector.multi_reduction <add>, %327, %cst_114 [1] : vector<24x24xf32> to vector<24xf32>
    %329 = vector.shape_cast %328 : vector<24xf32> to vector<24x1xf32>
    %cst_115 = arith.constant 9.99999971E-10 : f32
    %330 = vector.broadcast %cst_115 : f32 to vector<24x1xf32>
    %331 = arith.maximumf %329, %330 : vector<24x1xf32>
    %332 = tpu.reciprocal %331 {approx = true} : vector<24x1xf32> -> vector<24x1xf32>
    %333 = vector.broadcast %332 : vector<24x1xf32> to vector<24x24xf32>
    %334 = arith.mulf %327, %333 : vector<24x24xf32>
    %c48_i32_116 = arith.constant 48 : i32
    %335 = vector.broadcast %c48_i32_116 : i32 to vector<1x64xi32>
    %336 = arith.cmpi sge, %12, %335 : vector<1x64xi32>
    %c64_i32_117 = arith.constant 64 : i32
    %337 = vector.broadcast %c64_i32_117 : i32 to vector<1x64xi32>
    %338 = arith.cmpi slt, %12, %337 : vector<1x64xi32>
    %339 = arith.andi %336, %338 : vector<1x64xi1>
    %cst_118 = arith.constant 0.000000e+00 : f32
    %340 = vector.shape_cast %339 : vector<1x64xi1> to vector<1x64xi1>
    %341 = vector.broadcast %340 : vector<1x64xi1> to vector<24x64xi1>
    %342 = vector.broadcast %cst_118 : f32 to vector<24x64xf32>
    %343 = arith.select %341, %196, %342 : vector<24x64xi1>, vector<24x64xf32>
    %cst_119 = arith.constant dense<0.000000e+00> : vector<24x64xf32>
    %344 = tpu.matmul %334, %343, %cst_119 {dimension_numbers = #tpu.dot_dimension_numbers<[1], [0], [0], [1], [0, 0, 1, 1], [], []>, precision = #tpu.contract_precision<fp32>} : vector<24x24xf32>, vector<24x64xf32>, vector<24x64xf32> -> vector<24x64xf32>
    %345 = arith.addf %308, %344 : vector<24x64xf32>
    %346 = vector.extract_strided_slice %8 {offsets = [0, 64], sizes = [1, 64], strides = [1, 1]} : vector<1x128xf32> to vector<1x64xf32>
    %347 = vector.broadcast %346 : vector<1x64xf32> to vector<24x64xf32>
    %348 = arith.addf %345, %347 : vector<24x64xf32>
    %cst_120 = arith.constant 0.000000e+00 : f32
    %349 = vector.broadcast %cst_120 : f32 to vector<24x64xf32>
    %350 = arith.cmpf ogt, %348, %349 : vector<24x64xf32>
    %cst_121 = arith.constant 0.000000e+00 : f32
    %351 = vector.broadcast %cst_121 : f32 to vector<24x64xf32>
    %352 = arith.minimumf %348, %351 : vector<24x64xf32>
    %353 = math.exp %352 : vector<24x64xf32>
    %cst_122 = arith.constant 1.000000e+00 : f32
    %354 = vector.broadcast %cst_122 : f32 to vector<24x64xf32>
    %355 = arith.subf %353, %354 : vector<24x64xf32>
    %356 = arith.select %350, %348, %355 : vector<24x64xi1>, vector<24x64xf32>
    %c0_123 = arith.constant 0 : index
    %c0_124 = arith.constant 0 : index
    %357 = vector.load %arg8[%c0_123, %c0_124] : memref<64x128xf32, #tpu.memory_space<vmem>>, vector<64x128xf32>
    %cst_125 = arith.constant dense<0.000000e+00> : vector<24x128xf32>
    %358 = tpu.matmul %356, %357, %cst_125 {dimension_numbers = #tpu.dot_dimension_numbers<[1], [0], [0], [1], [0, 0, 1, 1], [], []>, precision = #tpu.contract_precision<fp32>} : vector<24x64xf32>, vector<64x128xf32>, vector<24x128xf32> -> vector<24x128xf32>
    %c0_126 = arith.constant 0 : index
    %c0_127 = arith.constant 0 : index
    %359 = vector.load %arg9[%c0_126, %c0_127] : memref<1x128xf32, #tpu.memory_space<vmem>>, vector<1x128xf32>
    %360 = vector.broadcast %359 : vector<1x128xf32> to vector<24x128xf32>
    %361 = arith.addf %358, %360 : vector<24x128xf32>
    %362 = math.tanh %361 : vector<24x128xf32>
    %363 = vector.broadcast %9 : vector<1x128xf32> to vector<24x128xf32>
    %364 = arith.mulf %362, %363 : vector<24x128xf32>
    %365 = vector.broadcast %11 : vector<24x1xf32> to vector<24x128xf32>
    %366 = arith.mulf %364, %365 : vector<24x128xf32>
    %367 = vector.shape_cast %366 : vector<24x128xf32> to vector<1x24x128xf32>
    %cst_128 = arith.constant dense<0.000000e+00> : vector<1xf32>
    %368 = vector.multi_reduction <add>, %367, %cst_128 [1, 2] : vector<1x24x128xf32> to vector<1xf32>
    %369 = vector.shape_cast %368 : vector<1xf32> to vector<1x1x1xf32>
    %370 = vector.extract %369[0, 0, 0] : f32 from vector<1x1x1xf32>
    %371 = arith.maximumf %191, %370 : f32
    %372 = arith.subf %191, %371 : f32
    %373 = math.exp %372 : f32
    %374 = arith.subf %370, %371 : f32
    %375 = math.exp %374 : f32
    %376 = arith.addf %373, %375 : f32
    %cst_129 = arith.constant 1.000000e+00 : f32
    %377 = arith.divf %cst_129, %376 : f32
    %378 = arith.mulf %373, %377 : f32
    %379 = vector.broadcast %378 : f32 to vector<24x64xf32>
    %380 = arith.mulf %379, %177 : vector<24x64xf32>
    %381 = arith.mulf %375, %377 : f32
    %382 = vector.broadcast %381 : f32 to vector<24x64xf32>
    %383 = arith.mulf %382, %356 : vector<24x64xf32>
    %384 = arith.addf %380, %383 : vector<24x64xf32>
    %c0_130 = arith.constant 0 : index
    %c0_131 = arith.constant 0 : index
    %c0_132 = arith.constant 0 : index
    %385 = vector.load %arg11[%c0_130, %c0_131, %c0_132] : memref<1x64x8xf32, #tpu.memory_space<vmem>>, vector<1x64x8xf32>
    %386 = vector.shape_cast %385 : vector<1x64x8xf32> to vector<64x8xf32>
    %cst_133 = arith.constant dense<0.000000e+00> : vector<24x8xf32>
    %387 = tpu.matmul %384, %386, %cst_133 {dimension_numbers = #tpu.dot_dimension_numbers<[1], [0], [0], [1], [0, 0, 1, 1], [], []>, precision = #tpu.contract_precision<fp32>} : vector<24x64xf32>, vector<64x8xf32>, vector<24x8xf32> -> vector<24x8xf32>
    %c0_134 = arith.constant 0 : index
    %c0_135 = arith.constant 0 : index
    %c0_136 = arith.constant 0 : index
    %388 = vector.load %arg12[%c0_134, %c0_135, %c0_136] : memref<1x1x8xf32, #tpu.memory_space<vmem>>, vector<1x1x8xf32>
    %389 = vector.shape_cast %388 : vector<1x1x8xf32> to vector<1x8xf32>
    %390 = vector.broadcast %389 : vector<1x8xf32> to vector<24x8xf32>
    %391 = arith.addf %387, %390 : vector<24x8xf32>
    %c0_137 = arith.constant 0 : index
    %c0_138 = arith.constant 0 : index
    %c0_139 = arith.constant 0 : index
    %392 = vector.load %arg13[%c0_137, %c0_138, %c0_139] : memref<1x24x8xf32, #tpu.memory_space<vmem>>, vector<1x24x8xf32>
    %393 = vector.shape_cast %392 : vector<1x24x8xf32> to vector<24x8xf32>
    %394 = vector.shape_cast %391 : vector<24x8xf32> to vector<1x24x8xf32>
    tpu.vector_store %arg13[%c0_137, %c0_138, %c0_139], %394 {strides = array<i32>} : memref<1x24x8xf32, #tpu.memory_space<vmem>>, vector<1x24x8xf32>,
    return
  }
  func.func @transform_0(%arg0: i32) -> (i32, i32, i32) {
    %c0_i32 = arith.constant 0 : i32
    %c0_i32_0 = arith.constant 0 : i32
    %c0_i32_1 = arith.constant 0 : i32
    return %arg0, %c0_i32, %c0_i32_0 : i32, i32, i32
  }
  func.func @transform_1(%arg0: i32) -> (i32, i32, i32, i32) {
    %c0_i32 = arith.constant 0 : i32
    %c0_i32_0 = arith.constant 0 : i32
    %c0_i32_1 = arith.constant 0 : i32
    %c0_i32_2 = arith.constant 0 : i32
    return %arg0, %c0_i32, %c0_i32_0, %c0_i32_1 : i32, i32, i32, i32
  }
  func.func @transform_2(%arg0: i32) -> (i32, i32, i32) {
    %c0_i32 = arith.constant 0 : i32
    %c0_i32_0 = arith.constant 0 : i32
    %c0_i32_1 = arith.constant 0 : i32
    return %arg0, %c0_i32, %c0_i32_0 : i32, i32, i32
  }
  func.func @transform_3(%arg0: i32) -> (i32, i32) {
    %c0_i32 = arith.constant 0 : i32
    %c0_i32_0 = arith.constant 0 : i32
    %c0_i32_1 = arith.constant 0 : i32
    return %c0_i32, %c0_i32_0 : i32, i32
  }
  func.func @transform_4(%arg0: i32) -> (i32, i32) {
    %c0_i32 = arith.constant 0 : i32
    %c0_i32_0 = arith.constant 0 : i32
    %c0_i32_1 = arith.constant 0 : i32
    return %c0_i32, %c0_i32_0 : i32, i32
  }
  func.func @transform_5(%arg0: i32) -> (i32, i32) {
    %c0_i32 = arith.constant 0 : i32
    %c0_i32_0 = arith.constant 0 : i32
    %c0_i32_1 = arith.constant 0 : i32
    return %c0_i32, %c0_i32_0 : i32, i32
  }
  func.func @transform_6(%arg0: i32) -> (i32, i32) {
    %c0_i32 = arith.constant 0 : i32
    %c0_i32_0 = arith.constant 0 : i32
    %c0_i32_1 = arith.constant 0 : i32
    return %c0_i32, %c0_i32_0 : i32, i32
  }
  func.func @transform_7(%arg0: i32) -> (i32, i32) {
    %c0_i32 = arith.constant 0 : i32
    %c0_i32_0 = arith.constant 0 : i32
    %c0_i32_1 = arith.constant 0 : i32
    return %c0_i32, %c0_i32_0 : i32, i32
  }
  func.func @transform_8(%arg0: i32) -> (i32, i32) {
    %c0_i32 = arith.constant 0 : i32
    %c0_i32_0 = arith.constant 0 : i32
    %c0_i32_1 = arith.constant 0 : i32
    return %c0_i32, %c0_i32_0 : i32, i32
  }
  func.func @transform_9(%arg0: i32) -> (i32, i32) {
    %c0_i32 = arith.constant 0 : i32
    %c0_i32_0 = arith.constant 0 : i32
    %c0_i32_1 = arith.constant 0 : i32
    return %c0_i32, %c0_i32_0 : i32, i32
  }
  func.func @transform_10(%arg0: i32) -> (i32, i32, i32) {
    %c0_i32 = arith.constant 0 : i32
    %c0_i32_0 = arith.constant 0 : i32
    %c0_i32_1 = arith.constant 0 : i32
    return %arg0, %c0_i32, %c0_i32_0 : i32, i32, i32
  }
  func.func @transform_11(%arg0: i32) -> (i32, i32, i32) {
    %c0_i32 = arith.constant 0 : i32
    %c0_i32_0 = arith.constant 0 : i32
    %c0_i32_1 = arith.constant 0 : i32
    return %arg0, %c0_i32, %c0_i32_0 : i32, i32, i32
  }
  func.func @transform_12(%arg0: i32) -> (i32, i32, i32) {
    %c0_i32 = arith.constant 0 : i32
    %c0_i32_0 = arith.constant 0 : i32
    %c0_i32_1 = arith.constant 0 : i32
    return %arg0, %c0_i32, %c0_i32_0 : i32, i32, i32
  }
}

</mosaic_0001>

<llo_original>
// kernel: tpu_custom_call.1
$region0: #{tpu_custom_call.1}
  #allocation0 [shape = 'u32[]', space=smem, size = 0x4, offset = 0x4, fixed_abs, tag = 'smem constant byte address 0x4 - core index']
  #allocation1 [shape = 'u32[144,128]{1,0:T(1,128)}', space=vmem, size = 0x12000, scoped, tag = 'internal scratch']
  %s0 = inlined_call_operand.hbm [shape: f32[2,24,32], index: 0, kind: input, shape index: {}]
  %s1 = inlined_call_operand.vmem [shape: f32[2,2,24,24], index: 1, kind: input, shape index: {}]
  %s2 = inlined_call_operand.vmem [shape: f32[2,24,1], index: 2, kind: input, shape index: {}]
  %s3 = inlined_call_operand.vmem [shape: f32[32,128], index: 3, kind: input, shape index: {}]
  %s4 = inlined_call_operand.hbm [shape: f32[8,128], index: 4, kind: input, shape index: {}]
  %s5 = inlined_call_operand.hbm [shape: f32[8,128], index: 5, kind: input, shape index: {}]
  %s6 = inlined_call_operand.hbm [shape: f32[1,128], index: 6, kind: input, shape index: {}]
  %s7 = inlined_call_operand.vmem [shape: f32[64,128], index: 7, kind: input, shape index: {}]
  %s8 = inlined_call_operand.hbm [shape: f32[1,128], index: 8, kind: input, shape index: {}]
  %s9 = inlined_call_operand.hbm [shape: f32[1,128], index: 9, kind: input, shape index: {}]
  %s10 = inlined_call_operand.vmem [shape: f32[2,64,8], index: 10, kind: input, shape index: {}]
  %s11 = inlined_call_operand.vmem [shape: f32[2,1,8], index: 11, kind: input, shape index: {}]
  %s12 = inlined_call_operand.vmem [shape: f32[2,24,8], index: 12, kind: output, shape index: {}]
  %s13 = sld [smem:[#allocation0]]
  $region105: #{tpu_custom_call.1} parent=0
    _
  %s15 = ssub.s32 1, %s13
  %s16 = scalar_select 0, %s15, %s13
  $region1: #{tpu_custom_call.1} parent=0
    #allocation2 [shape = 'u8[24576]{0}', space=vmem, size = 0x6000, scoped, tag = 'input window, operand 0']
    #allocation3 [shape = 's32[2]{0}', space=sflag, size = 0x8, scoped, tag = 'scoped memory for tpu_custom_call.1']
    #allocation4 [shape = 'u8[4096]{0}', space=vmem, size = 0x1000, scoped, tag = 'input window, operand 4, single buffered']
    #allocation5 [shape = 's32[1]{0}', space=sflag, size = 0x4, scoped, tag = 'scoped memory for tpu_custom_call.1']
    #allocation6 [shape = 'u8[4096]{0}', space=vmem, size = 0x1000, scoped, tag = 'input window, operand 5, single buffered']
    #allocation7 [shape = 'u8[512]{0}', space=vmem, size = 0x400, scoped, tag = 'input window, operand 6, single buffered']
    #allocation8 [shape = 's32[1]{0}', space=sflag, size = 0x4, scoped, tag = 'scoped memory for tpu_custom_call.1']
    #allocation9 [shape = 'u8[512]{0}', space=vmem, size = 0x400, scoped, tag = 'input window, operand 8, single buffered']
    #allocation10 [shape = 'u8[512]{0}', space=vmem, size = 0x400, scoped, tag = 'input window, operand 9, single buffered']
    #allocation11 [shape = 's32[1]{0}', space=sflag, size = 0x4, scoped, tag = 'scoped memory for tpu_custom_call.1']
    %17 = vsyncpa [#allocation3], 0
    %s18 = scalar_lea.sflag [#allocation3], 1
    %19 = vsyncpa %s18, 0
    %20 = vsyncpa [#allocation5], 0
    %21 = vsyncpa [#allocation8], 0
    %22 = vsyncpa [#allocation11], 0
    loop: start=0, step=1, limit=4
    $region2: #{tpu_custom_call.1} parent=1 // loop_pre_header
      _
    $region3: #{tpu_custom_call.1} parent=1 // loop_header
      %s24 = sphi 0, %s28
      %p25 = scmp.ge.s32.totalorder %s24, 4
      %s34 = sphi 0, %s36
      %s37 = sphi 0, %s34
      %s38 = sphi 0, %s37
      %s54 = sphi 0, %s38
      %s60 = sphi 0, %s62
      %s63 = sphi 0, %s60
      %s64 = sphi 0, %s63
      %s80 = sphi 0, %s64
      %s86 = sphi 0, %s88
      %s89 = sphi 0, %s86
      %s90 = sphi 0, %s89
      %s106 = sphi 0, %s90
      %s110 = sphi 0, %s110
      %s112 = sphi 0, %s110
      %s113 = sphi 0, %s112
      %s127 = sphi 0, %s113
      %s131 = sphi 0, %s131
      %s133 = sphi 0, %s131
      %s134 = sphi 0, %s133
      %s148 = sphi 0, %s134
      %s152 = sphi 0, %s152
      %s154 = sphi 0, %s152
      %s155 = sphi 0, %s154
      %s169 = sphi 0, %s155
      %s173 = sphi 0, %s173
      %s175 = sphi 0, %s173
      %s176 = sphi 0, %s175
      %s190 = sphi 0, %s176
      %s194 = sphi 0, %s194
      %s196 = sphi 0, %s194
      %s197 = sphi 0, %s196
      %s211 = sphi 0, %s197
      %s215 = sphi 0, %s215
      %s217 = sphi 0, %s215
      %s218 = sphi 0, %s217
      %s232 = sphi 0, %s218
      %s236 = sphi 0, %s236
      %s238 = sphi 0, %s236
      %s239 = sphi 0, %s238
      %s253 = sphi 0, %s239
      %s259 = sphi 0, %s261
      %s262 = sphi 0, %s259
      %s263 = sphi 0, %s262
      %s279 = sphi 0, %s263
      %s285 = sphi 0, %s287
      %s288 = sphi 0, %s285
      %s289 = sphi 0, %s288
      %s305 = sphi 0, %s289
      %s311 = sphi 0, %s313
      %s314 = sphi 0, %s311
      %s315 = sphi 0, %s314
      %s331 = sphi 0, %s315
    $region4: #{tpu_custom_call.1} parent=1 // loop_header_branch
      %27 = sbr.rel (%p25) target = $region8
    $region5: #{tpu_custom_call.1} parent=1 // loop_body
      %s29 = ssub.s32 %s24, 1
      %s30 = ssub.s32 %s24, 2
      %s31 = sadd.s32 %s24, 1
      %s32 = ssub.s32 %s24, %s31
      %p33 = scmp.eq.s32.totalorder %s32, 0
      %s35 = sadd.s32 %s34, 1
      %s36 = scalar_select %p33, %s34, %s35
      %p39 = pneg %p33
      %p40 = scmp.eq.s32.totalorder %s24, 1
      %p41 = por %p39, %p40
      %p42 = scmp.ne.s32.totalorder %s34, %s37
      %p43 = scmp.eq.s32.totalorder %s24, 0
      %p44 = por %p42, %p43
      %p45 = scmp.ne.s32.totalorder %s34, %s37
      %p46 = scmp.eq.s32.totalorder %s29, 1
      %p47 = por %p45, %p46
      %p48 = scmp.ne.s32.totalorder %s37, %s38
      %p49 = scmp.eq.s32.totalorder %s29, 0
      %p50 = por %p48, %p49
      %p51 = scmp.ne.s32.totalorder %s37, %s38
      %p52 = scmp.eq.s32.totalorder %s30, 1
      %p53 = por %p51, %p52
      %p55 = scmp.ne.s32.totalorder %s38, %s54
      %p56 = scmp.eq.s32.totalorder %s30, 0
      %p57 = por %p55, %p56
      %s58 = ssub.s32 %s24, %s31
      %p59 = scmp.eq.s32.totalorder %s58, 0
      %s61 = sadd.s32 %s60, 1
      %s62 = scalar_select %p59, %s60, %s61
      %p65 = pneg %p59
      %p66 = scmp.eq.s32.totalorder %s24, 1
      %p67 = por %p65, %p66
      %p68 = scmp.ne.s32.totalorder %s60, %s63
      %p69 = scmp.eq.s32.totalorder %s24, 0
      %p70 = por %p68, %p69
      %p71 = scmp.ne.s32.totalorder %s60, %s63
      %p72 = scmp.eq.s32.totalorder %s29, 1
      %p73 = por %p71, %p72
      %p74 = scmp.ne.s32.totalorder %s63, %s64
      %p75 = scmp.eq.s32.totalorder %s29, 0
      %p76 = por %p74, %p75
      %p77 = scmp.ne.s32.totalorder %s63, %s64
      %p78 = scmp.eq.s32.totalorder %s30, 1
      %p79 = por %p77, %p78
      %p81 = scmp.ne.s32.totalorder %s64, %s80
      %p82 = scmp.eq.s32.totalorder %s30, 0
      %p83 = por %p81, %p82
      %s84 = ssub.s32 %s24, %s31
      %p85 = scmp.eq.s32.totalorder %s84, 0
      %s87 = sadd.s32 %s86, 1
      %s88 = scalar_select %p85, %s86, %s87
      %p91 = pneg %p85
      %p92 = scmp.eq.s32.totalorder %s24, 1
      %p93 = por %p91, %p92
      %p94 = scmp.ne.s32.totalorder %s86, %s89
      %p95 = scmp.eq.s32.totalorder %s24, 0
      %p96 = por %p94, %p95
      %p97 = scmp.ne.s32.totalorder %s86, %s89
      %p98 = scmp.eq.s32.totalorder %s29, 1
      %p99 = por %p97, %p98
      %p100 = scmp.ne.s32.totalorder %s89, %s90
      %p101 = scmp.eq.s32.totalorder %s29, 0
      %p102 = por %p100, %p101
      %p103 = scmp.ne.s32.totalorder %s89, %s90
      %p104 = scmp.eq.s32.totalorder %s30, 1
      %p105 = por %p103, %p104
      %p107 = scmp.ne.s32.totalorder %s90, %s106
      %p108 = scmp.eq.s32.totalorder %s30, 0
      %p109 = por %p107, %p108
      %s111 = sadd.s32 %s110, 1
      %p114 = scmp.eq.s32.totalorder %s24, 1
      %p115 = scmp.ne.s32.totalorder %s110, %s112
      %p116 = scmp.eq.s32.totalorder %s24, 0
      %p117 = por %p115, %p116
      %p118 = scmp.ne.s32.totalorder %s110, %s112
      %p119 = scmp.eq.s32.totalorder %s29, 1
      %p120 = por %p118, %p119
      %p121 = scmp.ne.s32.totalorder %s112, %s113
      %p122 = scmp.eq.s32.totalorder %s29, 0
      %p123 = por %p121, %p122
      %p124 = scmp.ne.s32.totalorder %s112, %s113
      %p125 = scmp.eq.s32.totalorder %s30, 1
      %p126 = por %p124, %p125
      %p128 = scmp.ne.s32.totalorder %s113, %s127
      %p129 = scmp.eq.s32.totalorder %s30, 0
      %p130 = por %p128, %p129
      %s132 = sadd.s32 %s131, 1
      %p135 = scmp.eq.s32.totalorder %s24, 1
      %p136 = scmp.ne.s32.totalorder %s131, %s133
      %p137 = scmp.eq.s32.totalorder %s24, 0
      %p138 = por %p136, %p137
      %p139 = scmp.ne.s32.totalorder %s131, %s133
      %p140 = scmp.eq.s32.totalorder %s29, 1
      %p141 = por %p139, %p140
      %p142 = scmp.ne.s32.totalorder %s133, %s134
      %p143 = scmp.eq.s32.totalorder %s29, 0
      %p144 = por %p142, %p143
      %p145 = scmp.ne.s32.totalorder %s133, %s134
      %p146 = scmp.eq.s32.totalorder %s30, 1
      %p147 = por %p145, %p146
      %p149 = scmp.ne.s32.totalorder %s134, %s148
      %p150 = scmp.eq.s32.totalorder %s30, 0
      %p151 = por %p149, %p150
      %s153 = sadd.s32 %s152, 1
      %p156 = scmp.eq.s32.totalorder %s24, 1
      %p157 = scmp.ne.s32.totalorder %s152, %s154
      %p158 = scmp.eq.s32.totalorder %s24, 0
      %p159 = por %p157, %p158
      %p160 = scmp.ne.s32.totalorder %s152, %s154
      %p161 = scmp.eq.s32.totalorder %s29, 1
      %p162 = por %p160, %p161
      %p163 = scmp.ne.s32.totalorder %s154, %s155
      %p164 = scmp.eq.s32.totalorder %s29, 0
      %p165 = por %p163, %p164
      %p166 = scmp.ne.s32.totalorder %s154, %s155
      %p167 = scmp.eq.s32.totalorder %s30, 1
      %p168 = por %p166, %p167
      %p170 = scmp.ne.s32.totalorder %s155, %s169
      %p171 = scmp.eq.s32.totalorder %s30, 0
      %p172 = por %p170, %p171
      %s174 = sadd.s32 %s173, 1
      %p177 = scmp.eq.s32.totalorder %s24, 1
      %p178 = scmp.ne.s32.totalorder %s173, %s175
      %p179 = scmp.eq.s32.totalorder %s24, 0
      %p180 = por %p178, %p179
      %p181 = scmp.ne.s32.totalorder %s173, %s175
      %p182 = scmp.eq.s32.totalorder %s29, 1
      %p183 = por %p181, %p182
      %p184 = scmp.ne.s32.totalorder %s175, %s176
      %p185 = scmp.eq.s32.totalorder %s29, 0
      %p186 = por %p184, %p185
      %p187 = scmp.ne.s32.totalorder %s175, %s176
      %p188 = scmp.eq.s32.totalorder %s30, 1
      %p189 = por %p187, %p188
      %p191 = scmp.ne.s32.totalorder %s176, %s190
      %p192 = scmp.eq.s32.totalorder %s30, 0
      %p193 = por %p191, %p192
      %s195 = sadd.s32 %s194, 1
      %p198 = scmp.eq.s32.totalorder %s24, 1
      %p199 = scmp.ne.s32.totalorder %s194, %s196
      %p200 = scmp.eq.s32.totalorder %s24, 0
      %p201 = por %p199, %p200
      %p202 = scmp.ne.s32.totalorder %s194, %s196
      %p203 = scmp.eq.s32.totalorder %s29, 1
      %p204 = por %p202, %p203
      %p205 = scmp.ne.s32.totalorder %s196, %s197
      %p206 = scmp.eq.s32.totalorder %s29, 0
      %p207 = por %p205, %p206
      %p208 = scmp.ne.s32.totalorder %s196, %s197
      %p209 = scmp.eq.s32.totalorder %s30, 1
      %p210 = por %p208, %p209
      %p212 = scmp.ne.s32.totalorder %s197, %s211
      %p213 = scmp.eq.s32.totalorder %s30, 0
      %p214 = por %p212, %p213
      %s216 = sadd.s32 %s215, 1
      %p219 = scmp.eq.s32.totalorder %s24, 1
      %p220 = scmp.ne.s32.totalorder %s215, %s217
      %p221 = scmp.eq.s32.totalorder %s24, 0
      %p222 = por %p220, %p221
      %p223 = scmp.ne.s32.totalorder %s215, %s217
      %p224 = scmp.eq.s32.totalorder %s29, 1
      %p225 = por %p223, %p224
      %p226 = scmp.ne.s32.totalorder %s217, %s218
      %p227 = scmp.eq.s32.totalorder %s29, 0
      %p228 = por %p226, %p227
      %p229 = scmp.ne.s32.totalorder %s217, %s218
      %p230 = scmp.eq.s32.totalorder %s30, 1
      %p231 = por %p229, %p230
      %p233 = scmp.ne.s32.totalorder %s218, %s232
      %p234 = scmp.eq.s32.totalorder %s30, 0
      %p235 = por %p233, %p234
      %s237 = sadd.s32 %s236, 1
      %p240 = scmp.eq.s32.totalorder %s24, 1
      %p241 = scmp.ne.s32.totalorder %s236, %s238
      %p242 = scmp.eq.s32.totalorder %s24, 0
      %p243 = por %p241, %p242
      %p244 = scmp.ne.s32.totalorder %s236, %s238
      %p245 = scmp.eq.s32.totalorder %s29, 1
      %p246 = por %p244, %p245
      %p247 = scmp.ne.s32.totalorder %s238, %s239
      %p248 = scmp.eq.s32.totalorder %s29, 0
      %p249 = por %p247, %p248
      %p250 = scmp.ne.s32.totalorder %s238, %s239
      %p251 = scmp.eq.s32.totalorder %s30, 1
      %p252 = por %p250, %p251
      %p254 = scmp.ne.s32.totalorder %s239, %s253
      %p255 = scmp.eq.s32.totalorder %s30, 0
      %p256 = por %p254, %p255
      %s257 = ssub.s32 %s24, %s31
      %p258 = scmp.eq.s32.totalorder %s257, 0
      %s260 = sadd.s32 %s259, 1
      %s261 = scalar_select %p258, %s259, %s260
      %p264 = pneg %p258
      %p265 = scmp.eq.s32.totalorder %s24, 1
      %p266 = por %p264, %p265
      %p267 = scmp.ne.s32.totalorder %s259, %s262
      %p268 = scmp.eq.s32.totalorder %s24, 0
      %p269 = por %p267, %p268
      %p270 = scmp.ne.s32.totalorder %s259, %s262
      %p271 = scmp.eq.s32.totalorder %s29, 1
      %p272 = por %p270, %p271
      %p273 = scmp.ne.s32.totalorder %s262, %s263
      %p274 = scmp.eq.s32.totalorder %s29, 0
      %p275 = por %p273, %p274
      %p276 = scmp.ne.s32.totalorder %s262, %s263
      %p277 = scmp.eq.s32.totalorder %s30, 1
      %p278 = por %p276, %p277
      %p280 = scmp.ne.s32.totalorder %s263, %s279
      %p281 = scmp.eq.s32.totalorder %s30, 0
      %p282 = por %p280, %p281
      %s283 = ssub.s32 %s24, %s31
      %p284 = scmp.eq.s32.totalorder %s283, 0
      %s286 = sadd.s32 %s285, 1
      %s287 = scalar_select %p284, %s285, %s286
      %p290 = pneg %p284
      %p291 = scmp.eq.s32.totalorder %s24, 1
      %p292 = por %p290, %p291
      %p293 = scmp.ne.s32.totalorder %s285, %s288
      %p294 = scmp.eq.s32.totalorder %s24, 0
      %p295 = por %p293, %p294
      %p296 = scmp.ne.s32.totalorder %s285, %s288
      %p297 = scmp.eq.s32.totalorder %s29, 1
      %p298 = por %p296, %p297
      %p299 = scmp.ne.s32.totalorder %s288, %s289
      %p300 = scmp.eq.s32.totalorder %s29, 0
      %p301 = por %p299, %p300
      %p302 = scmp.ne.s32.totalorder %s288, %s289
      %p303 = scmp.eq.s32.totalorder %s30, 1
      %p304 = por %p302, %p303
      %p306 = scmp.ne.s32.totalorder %s289, %s305
      %p307 = scmp.eq.s32.totalorder %s30, 0
      %p308 = por %p306, %p307
      %s309 = ssub.s32 %s24, %s31
      %p310 = scmp.eq.s32.totalorder %s309, 0
      %s312 = sadd.s32 %s311, 1
      %s313 = scalar_select %p310, %s311, %s312
      %p316 = pneg %p310
      %p317 = scmp.eq.s32.totalorder %s24, 1
      %p318 = por %p316, %p317
      %p319 = scmp.ne.s32.totalorder %s311, %s314
      %p320 = scmp.eq.s32.totalorder %s24, 0
      %p321 = por %p319, %p320
      %p322 = scmp.ne.s32.totalorder %s311, %s314
      %p323 = scmp.eq.s32.totalorder %s29, 1
      %p324 = por %p322, %p323
      %p325 = scmp.ne.s32.totalorder %s314, %s315
      %p326 = scmp.eq.s32.totalorder %s29, 0
      %p327 = por %p325, %p326
      %p328 = scmp.ne.s32.totalorder %s314, %s315
      %p329 = scmp.eq.s32.totalorder %s30, 1
      %p330 = por %p328, %p329
      %p332 = scmp.ne.s32.totalorder %s315, %s331
      %p333 = scmp.eq.s32.totalorder %s30, 0
      %p334 = por %p332, %p333
      %p335 = scmp.le.s32.totalorder 1, %s24
      %p336 = scmp.lt.s32.totalorder %s24, 3
      %p337 = pnand %p335, %p336
      %p338 = pneg %p337
      // Predicated region
      $region9: #{tpu_custom_call.1} parent=5 // pred_check
        _
      $region10: #{tpu_custom_call.1} parent=5 // pred_check_branch
        %340 = sbr.rel (%p337) target = $region12
      $region11: #{tpu_custom_call.1} parent=5 // pred_region
        %s341 = ssub.s32 %s24, 1
        // Predicated region
        $region13: #{tpu_custom_call.1} parent=11 // pred_check
          %p342 = pneg %p123
        $region14: #{tpu_custom_call.1} parent=11 // pred_check_branch
          %344 = sbr.rel (%p342) target = $region16
        $region15: #{tpu_custom_call.1} parent=11 // pred_region
          _
        $region16: #{tpu_custom_call.1} parent=11 // pred_fallthru
          _
        // Predicated region
        $region17: #{tpu_custom_call.1} parent=11 // pred_check
          %p345 = pneg %p144
        $region18: #{tpu_custom_call.1} parent=11 // pred_check_branch
          %347 = sbr.rel (%p345) target = $region20
        $region19: #{tpu_custom_call.1} parent=11 // pred_region
          %s349 = ssub.s32 128, 128
          %350 = vsyncadd [#allocation5], %s349
          %s352 = sshll.u32 [#allocation4], 4
          %s353 = int_to_ptr.vmem [resolvable:$true] %s352
          %355 = dma.hbm_to_vmem [thread:$0]  %s4, 128, %s353, [#allocation5]
        $region20: #{tpu_custom_call.1} parent=11 // pred_fallthru
          _
        // Predicated region
        $region21: #{tpu_custom_call.1} parent=11 // pred_check
          %p356 = pneg %p165
        $region22: #{tpu_custom_call.1} parent=11 // pred_check_branch
          %358 = sbr.rel (%p356) target = $region24
        $region23: #{tpu_custom_call.1} parent=11 // pred_region
          %s360 = ssub.s32 128, 128
          %361 = vsyncadd [#allocation5], %s360
          %s363 = sshll.u32 [#allocation6], 4
          %s364 = int_to_ptr.vmem [resolvable:$true] %s363
          %366 = dma.hbm_to_vmem [thread:$0]  %s5, 128, %s364, [#allocation5]
        $region24: #{tpu_custom_call.1} parent=11 // pred_fallthru
          _
        // Predicated region
        $region25: #{tpu_custom_call.1} parent=11 // pred_check
          %p367 = pneg %p186
        $region26: #{tpu_custom_call.1} parent=11 // pred_check_branch
          %369 = sbr.rel (%p367) target = $region28
        $region27: #{tpu_custom_call.1} parent=11 // pred_region
          %s371 = ssub.s32 16, 16
          %372 = vsyncadd [#allocation8], %s371
          %s374 = sshll.u32 [#allocation7], 4
          %s375 = int_to_ptr.vmem [resolvable:$true] %s374
          %377 = dma.hbm_to_vmem [thread:$0]  %s6, 16, %s375, [#allocation8]
        $region28: #{tpu_custom_call.1} parent=11 // pred_fallthru
          _
        // Predicated region
        $region29: #{tpu_custom_call.1} parent=11 // pred_check
          %p378 = pneg %p207
        $region30: #{tpu_custom_call.1} parent=11 // pred_check_branch
          %380 = sbr.rel (%p378) target = $region32
        $region31: #{tpu_custom_call.1} parent=11 // pred_region
          _
        $region32: #{tpu_custom_call.1} parent=11 // pred_fallthru
          _
        // Predicated region
        $region33: #{tpu_custom_call.1} parent=11 // pred_check
          %p381 = pneg %p228
        $region34: #{tpu_custom_call.1} parent=11 // pred_check_branch
          %383 = sbr.rel (%p381) target = $region36
        $region35: #{tpu_custom_call.1} parent=11 // pred_region
          %s385 = ssub.s32 16, 16
          %386 = vsyncadd [#allocation8], %s385
          %s388 = sshll.u32 [#allocation9], 4
          %s389 = int_to_ptr.vmem [resolvable:$true] %s388
          %391 = dma.hbm_to_vmem [thread:$0]  %s8, 16, %s389, [#allocation8]
        $region36: #{tpu_custom_call.1} parent=11 // pred_fallthru
          _
        // Predicated region
        $region37: #{tpu_custom_call.1} parent=11 // pred_check
          %p392 = pneg %p249
        $region38: #{tpu_custom_call.1} parent=11 // pred_check_branch
          %394 = sbr.rel (%p392) target = $region40
        $region39: #{tpu_custom_call.1} parent=11 // pred_region
          %s396 = ssub.s32 16, 16
          %397 = vsyncadd [#allocation11], %s396
          %s399 = sshll.u32 [#allocation10], 4
          %s400 = int_to_ptr.vmem [resolvable:$true] %s399
          %402 = dma.hbm_to_vmem [thread:$0]  %s9, 16, %s400, [#allocation11]
        $region40: #{tpu_custom_call.1} parent=11 // pred_fallthru
          _
      $region12: #{tpu_custom_call.1} parent=5 // pred_fallthru
        _
      %p403 = scmp.lt.s32.totalorder %s24, 2
      // Predicated region
      $region41: #{tpu_custom_call.1} parent=5 // pred_check
        %p404 = pneg %p403
      $region42: #{tpu_custom_call.1} parent=5 // pred_check_branch
        %406 = sbr.rel (%p404) target = $region44
      $region43: #{tpu_custom_call.1} parent=5 // pred_region
        // Predicated region
        $region45: #{tpu_custom_call.1} parent=43 // pred_check
          %p407 = pneg %p44
        $region46: #{tpu_custom_call.1} parent=43 // pred_check_branch
          %409 = sbr.rel (%p407) target = $region48
        $region47: #{tpu_custom_call.1} parent=43 // pred_region
          %s410 = sand.u32 %s34, 1
          %s411 = scalar_lea.sflag [#allocation3], %s410
          %s412 = sand.u32 %s34, 1
          %s413 = smul.addr %s412, 24
          %s414 = scalar_lea.vmem [#allocation2], %s413
          %s416 = ssub.s32 384, 384
          %417 = vsyncadd %s411, %s416
          %s418 = smul.addr %s24, 3
          %s419 = smul.addr %s418, 128
          %s420 = scalar_lea.hbm %s0, %s419
          %s421 = sshll.u32 %s414, 4
          %s422 = int_to_ptr.vmem [resolvable:$true] %s421
          %427 = dma.hbm_to_vmem [thread:$0]  %s420, 384, %s422, %s411, 128, 128, 8
        $region48: #{tpu_custom_call.1} parent=43 // pred_fallthru
          _
        // Predicated region
        $region49: #{tpu_custom_call.1} parent=43 // pred_check
          %p428 = pneg %p70
        $region50: #{tpu_custom_call.1} parent=43 // pred_check_branch
          %430 = sbr.rel (%p428) target = $region52
        $region51: #{tpu_custom_call.1} parent=43 // pred_region
          %p431 = scmp.lt.s32.totalorder %s24, 1
          %s432 = scalar_select %p431, %s24, 1
          %s433 = smul.addr %s432, 6
          %s434 = smul.addr %s433, 8
          %s435 = scalar_lea.vmem %s1, %s434
        $region52: #{tpu_custom_call.1} parent=43 // pred_fallthru
          _
        // Predicated region
        $region53: #{tpu_custom_call.1} parent=43 // pred_check
          %p436 = pneg %p96
        $region54: #{tpu_custom_call.1} parent=43 // pred_check_branch
          %438 = sbr.rel (%p436) target = $region56
        $region55: #{tpu_custom_call.1} parent=43 // pred_region
          %p439 = scmp.lt.s32.totalorder %s24, 1
          %s440 = scalar_select %p439, %s24, 1
          %s441 = smul.addr %s440, 3
          %s442 = smul.addr %s441, 8
          %s443 = scalar_lea.vmem %s2, %s442
        $region56: #{tpu_custom_call.1} parent=43 // pred_fallthru
          _
        // Predicated region
        $region57: #{tpu_custom_call.1} parent=43 // pred_check
          %p444 = pneg %p269
        $region58: #{tpu_custom_call.1} parent=43 // pred_check_branch
          %446 = sbr.rel (%p444) target = $region60
        $region59: #{tpu_custom_call.1} parent=43 // pred_region
          %p447 = scmp.lt.s32.totalorder %s24, 1
          %s448 = scalar_select %p447, %s24, 1
          %s449 = smul.addr %s448, 8
          %s450 = smul.addr %s449, 8
          %s451 = scalar_lea.vmem %s10, %s450
        $region60: #{tpu_custom_call.1} parent=43 // pred_fallthru
          _
        // Predicated region
        $region61: #{tpu_custom_call.1} parent=43 // pred_check
          %p452 = pneg %p295
        $region62: #{tpu_custom_call.1} parent=43 // pred_check_branch
          %454 = sbr.rel (%p452) target = $region64
        $region63: #{tpu_custom_call.1} parent=43 // pred_region
          %p455 = scmp.lt.s32.totalorder %s24, 1
          %s456 = scalar_select %p455, %s24, 1
          %s457 = scalar_lea.vmem %s11, %s456
        $region64: #{tpu_custom_call.1} parent=43 // pred_fallthru
          _
      $region44: #{tpu_custom_call.1} parent=5 // pred_fallthru
        _
      %p458 = scmp.le.s32.totalorder 1, %s24
      %p459 = scmp.lt.s32.totalorder %s24, 3
      %p460 = pnand %p458, %p459
      %p461 = pneg %p460
      // Predicated region
      $region65: #{tpu_custom_call.1} parent=5 // pred_check
        _
      $region66: #{tpu_custom_call.1} parent=5 // pred_check_branch
        %463 = sbr.rel (%p460) target = $region68
      $region67: #{tpu_custom_call.1} parent=5 // pred_region
        %s464 = ssub.s32 %s24, 1
        %s465 = sand.u32 %s37, 1
        %s466 = scalar_lea.sflag [#allocation3], %s465
        %s467 = sand.u32 %s37, 1
        %s468 = smul.addr %s467, 24
        %s469 = scalar_lea.vmem [#allocation2], %s468
        // Predicated region
        $region69: #{tpu_custom_call.1} parent=67 // pred_check
          %p470 = pneg %p50
        $region70: #{tpu_custom_call.1} parent=67 // pred_check_branch
          %472 = sbr.rel (%p470) target = $region72
        $region71: #{tpu_custom_call.1} parent=67 // pred_region
          %473 = dma.done %s466, 384
        $region72: #{tpu_custom_call.1} parent=67 // pred_fallthru
          _
        // Predicated region
        $region73: #{tpu_custom_call.1} parent=67 // pred_check
          %p474 = pneg %p144
        $region74: #{tpu_custom_call.1} parent=67 // pred_check_branch
          %476 = sbr.rel (%p474) target = $region76
        $region75: #{tpu_custom_call.1} parent=67 // pred_region
          %477 = dma.done [#allocation5], 128
        $region76: #{tpu_custom_call.1} parent=67 // pred_fallthru
          _
        // Predicated region
        $region77: #{tpu_custom_call.1} parent=67 // pred_check
          %p478 = pneg %p165
        $region78: #{tpu_custom_call.1} parent=67 // pred_check_branch
          %480 = sbr.rel (%p478) target = $region80
        $region79: #{tpu_custom_call.1} parent=67 // pred_region
          %481 = dma.done [#allocation5], 128
        $region80: #{tpu_custom_call.1} parent=67 // pred_fallthru
          _
        // Predicated region
        $region81: #{tpu_custom_call.1} parent=67 // pred_check
          %p482 = pneg %p186
        $region82: #{tpu_custom_call.1} parent=67 // pred_check_branch
          %484 = sbr.rel (%p482) target = $region84
        $region83: #{tpu_custom_call.1} parent=67 // pred_region
          %485 = dma.done [#allocation8], 16
        $region84: #{tpu_custom_call.1} parent=67 // pred_fallthru
          _
        // Predicated region
        $region85: #{tpu_custom_call.1} parent=67 // pred_check
          %p486 = pneg %p228
        $region86: #{tpu_custom_call.1} parent=67 // pred_check_branch
          %488 = sbr.rel (%p486) target = $region88
        $region87: #{tpu_custom_call.1} parent=67 // pred_region
          %489 = dma.done [#allocation8], 16
        $region88: #{tpu_custom_call.1} parent=67 // pred_fallthru
          _
        // Predicated region
        $region89: #{tpu_custom_call.1} parent=67 // pred_check
          %p490 = pneg %p249
        $region90: #{tpu_custom_call.1} parent=67 // pred_check_branch
          %492 = sbr.rel (%p490) target = $region92
        $region91: #{tpu_custom_call.1} parent=67 // pred_region
          %493 = dma.done [#allocation11], 16
        $region92: #{tpu_custom_call.1} parent=67 // pred_fallthru
          _
        %s494 = sand.u32 %s37, 1
        %s495 = scalar_lea.sflag [#allocation3], %s494
        %s496 = sand.u32 %s37, 1
        %s497 = smul.addr %s496, 24
        %s498 = scalar_lea.vmem [#allocation2], %s497
        %p499 = pneg %p50
        %p500 = pneg %p47
        %p501 = scmp.lt.s32.totalorder %s29, 1
        %s502 = scalar_select %p501, %s29, 1
        %s503 = smul.addr %s502, 6
        %s504 = smul.addr %s503, 8
        %s505 = scalar_lea.vmem %s1, %s504
        %p506 = pneg %p76
        %p507 = pneg %p73
        %p508 = scmp.lt.s32.totalorder %s29, 1
        %s509 = scalar_select %p508, %s29, 1
        %s510 = smul.addr %s509, 3
        %s511 = smul.addr %s510, 8
        %s512 = scalar_lea.vmem %s2, %s511
        %p513 = pneg %p102
        %p514 = pneg %p99
        %p515 = pneg %p123
        %p516 = pneg %p120
        %p517 = pneg %p144
        %p518 = pneg %p141
        %p519 = pneg %p165
        %p520 = pneg %p162
        %p521 = pneg %p186
        %p522 = pneg %p183
        %p523 = pneg %p207
        %p524 = pneg %p204
        %p525 = pneg %p228
        %p526 = pneg %p225
        %p527 = pneg %p249
        %p528 = pneg %p246
        %p529 = scmp.lt.s32.totalorder %s29, 1
        %s530 = scalar_select %p529, %s29, 1
        %s531 = smul.addr %s530, 8
        %s532 = smul.addr %s531, 8
        %s533 = scalar_lea.vmem %s10, %s532
        %p534 = pneg %p275
        %p535 = pneg %p272
        %p536 = scmp.lt.s32.totalorder %s29, 1
        %s537 = scalar_select %p536, %s29, 1
        %s538 = scalar_lea.vmem %s11, %s537
        %p539 = pneg %p301
        %p540 = pneg %p298
        %p541 = pneg %p327
        %p542 = pneg %p324
        %p543 = scmp.lt.s32.totalorder %s29, 1
        %s544 = scalar_select %p543, %s29, 1
        %s545 = smul.addr %s544, 3
        %s546 = smul.addr %s545, 8
        %s547 = scalar_lea.vmem %s12, %s546
        %p548 = scmp.lt.s32.totalorder %s29, 1
        %s549 = scalar_select %p548, %s29, 1
        %s550 = smul.addr %s549, 6
        %s551 = smul.addr %s550, 8
        %s552 = scalar_lea.vmem %s1, %s551
        %p553 = scmp.lt.s32.totalorder %s29, 1
        %s554 = scalar_select %p553, %s29, 1
        %s555 = smul.addr %s554, 3
        %s556 = smul.addr %s555, 8
        %s557 = scalar_lea.vmem %s2, %s556
        %p558 = scmp.lt.s32.totalorder %s29, 1
        %s559 = scalar_select %p558, %s29, 1
        %s560 = smul.addr %s559, 8
        %s561 = smul.addr %s560, 8
        %s562 = scalar_lea.vmem %s10, %s561
        %p563 = scmp.lt.s32.totalorder %s29, 1
        %s564 = scalar_select %p563, %s29, 1
        %s565 = scalar_lea.vmem %s11, %s564
        %p566 = scmp.lt.s32.totalorder %s29, 1
        %s567 = scalar_select %p566, %s29, 1
        %s568 = smul.addr %s567, 3
        %s569 = smul.addr %s568, 8
        %s570 = scalar_lea.vmem %s12, %s569
        %v571 = vld [vmem:[%s469] sm:$0xff]
        %v572 = vld [vmem:[%s469 + $0x8] sm:$0xff]
        %v573 = vld [vmem:[%s469 + $0x10] sm:$0xff]
        %v574 = vld [vmem:[%s3] sm:$0xff]
        %v575 = vld [vmem:[%s3 + $0x8] sm:$0xff]
        %v576 = vld [vmem:[%s3 + $0x10] sm:$0xff]
        %v577 = vld [vmem:[%s3 + $0x18] sm:$0xff]
        %vm578 = vcmask 261120
        %v580 = vsel %vm578, %v571, 0
        %v583 = vsel %vm578, %v572, 0
        %v586 = vsel %vm578, %v573, 0
        %588 = vmatprep.subr.mxu0 0.0
        %589 = vmatpush1.msra.mxu0 0.0
        %590 = vmatprep.subr.mxu0 0.0
        %591 = vmatpush1.msra.mxu0 0.0
        %592 = vmatprep.subr.mxu0 0.0
        %593 = vmatpush1.msra.mxu0 0.0
        %594 = vmatprep.subr.mxu0 0.0
        %595 = vmatpush1.msra.mxu0 0.0
        %596 = vmatprep.subr.mxu0 0.0
        %597 = vmatpush1.msra.mxu0 0.0
        %598 = vmatprep.subr.mxu0 0.0
        %599 = vmatpush1.msra.mxu0 0.0
        %600 = vmatprep.subr.mxu0 0.0
        %601 = vmatpush1.msra.mxu0 0.0
        %602 = vmatprep.subr.mxu0 0.0
        %603 = vmatpush1.msra.mxu0 0.0
        %604 = vmatprep.subr.mxu0 0.0
        %605 = vmatpush1.msra.mxu0 0.0
        %606 = vmatprep.subr.mxu0 0.0
        %607 = vmatpush1.msra.mxu0 0.0
        %608 = vmatprep.subr.mxu0 0.0
        %609 = vmatpush1.msra.mxu0 0.0
        %610 = vmatprep.subr.mxu0 0.0
        %611 = vmatpush1.msra.mxu0 0.0
        %612 = vmatprep.subr.mxu0 0.0
        %v613 = vand.u32 %v577, 4294901760
        %614 = vmatpush1.msra.mxu0 %v613
        %615 = vmatprep.subr.mxu0 0.0
        %v616 = vand.u32 %v576, 4294901760
        %617 = vmatpush1.msra.mxu0 %v616
        %618 = vmatprep.subr.mxu0 0.0
        %v619 = vand.u32 %v575, 4294901760
        %620 = vmatpush1.msra.mxu0 %v619
        %621 = vmatprep.subr.mxu0 0.0
        %v622 = vand.u32 %v574, 4294901760
        %623 = vmatpush1.msra.mxu0 %v622
        %624 = vmatprep.subr.mxu0 0.0
        %625 = vmatpush2.msra.mxu0 0.0
        %626 = vmatprep.subr.mxu0 0.0
        %627 = vmatpush2.msra.mxu0 0.0
        %628 = vmatprep.subr.mxu0 0.0
        %629 = vmatpush2.msra.mxu0 0.0
        %630 = vmatprep.subr.mxu0 0.0
        %631 = vmatpush2.msra.mxu0 0.0
        %632 = vmatprep.subr.mxu0 0.0
        %633 = vmatpush2.msra.mxu0 0.0
        %634 = vmatprep.subr.mxu0 0.0
        %635 = vmatpush2.msra.mxu0 0.0
        %636 = vmatprep.subr.mxu0 0.0
        %637 = vmatpush2.msra.mxu0 0.0
        %638 = vmatprep.subr.mxu0 0.0
        %639 = vmatpush2.msra.mxu0 0.0
        %640 = vmatprep.subr.mxu0 0.0
        %641 = vmatpush2.msra.mxu0 0.0
        %642 = vmatprep.subr.mxu0 0.0
        %643 = vmatpush2.msra.mxu0 0.0
        %644 = vmatprep.subr.mxu0 0.0
        %645 = vmatpush2.msra.mxu0 0.0
        %646 = vmatprep.subr.mxu0 0.0
        %647 = vmatpush2.msra.mxu0 0.0
        %648 = vmatprep.subr.mxu0 0.0
        %649 = vmatpush2.msra.mxu0 0.0
        %650 = vmatprep.subr.mxu0 0.0
        %651 = vmatpush2.msra.mxu0 0.0
        %652 = vmatprep.subr.mxu0 0.0
        %653 = vmatpush2.msra.mxu0 0.0
        %654 = vmatprep.subr.mxu0 0.0
        %655 = vmatpush2.msra.mxu0 0.0
        %656 = vmatprep.mubr.f32.mxu0 0.0
        %v657 = vand.u32 %v580, 4294901760
        %v658 = vsub.f32 %v580, %v657
        %v659 = vand.u32 %v658, 4294901760
        %v660 = vsub.f32 %v658, %v659
        %v661 = vand.u32 %v660, 4294901760
        %662 = vmatmul.mubr.f32.gmra.mxu0 %v661
        %v663 = vpop.f32.mrf.mxu0
        %v664 = vadd.f32 0.0, %v663
        %v665 = vpop.f32.mrf.mxu0
        %666 = vmatprep.mubr.f32.mxu0 0.0
        %v667 = vand.u32 %v583, 4294901760
        %v668 = vsub.f32 %v583, %v667
        %v669 = vand.u32 %v668, 4294901760
        %v670 = vsub.f32 %v668, %v669
        %v671 = vand.u32 %v670, 4294901760
        %672 = vmatmul.mubr.f32.gmra.mxu0 %v671
        %v673 = vpop.f32.mrf.mxu0
        %v674 = vadd.f32 0.0, %v673
        %v675 = vpop.f32.mrf.mxu0
        %676 = vmatprep.mubr.f32.mxu0 0.0
        %v677 = vand.u32 %v586, 4294901760
        %v678 = vsub.f32 %v586, %v677
        %v679 = vand.u32 %v678, 4294901760
        %v680 = vsub.f32 %v678, %v679
        %v681 = vand.u32 %v680, 4294901760
        %682 = vmatmul.mubr.f32.gmra.mxu0 %v681
        %v683 = vpop.f32.mrf.mxu0
        %v684 = vadd.f32 0.0, %v683
        %v685 = vpop.f32.mrf.mxu0
        %686 = vdwg.mxu0
        %687 = vmatprep.subr.mxu0 0.0
        %688 = vmatpush1.msra.mxu0 0.0
        %689 = vmatprep.subr.mxu0 0.0
        %690 = vmatpush1.msra.mxu0 0.0
        %691 = vmatprep.subr.mxu0 0.0
        %692 = vmatpush1.msra.mxu0 0.0
        %693 = vmatprep.subr.mxu0 0.0
        %694 = vmatpush1.msra.mxu0 0.0
        %695 = vmatprep.subr.mxu0 0.0
        %696 = vmatpush1.msra.mxu0 0.0
        %697 = vmatprep.subr.mxu0 0.0
        %698 = vmatpush1.msra.mxu0 0.0
        %699 = vmatprep.subr.mxu0 0.0
        %700 = vmatpush1.msra.mxu0 0.0
        %701 = vmatprep.subr.mxu0 0.0
        %702 = vmatpush1.msra.mxu0 0.0
        %703 = vmatprep.subr.mxu0 0.0
        %704 = vmatpush1.msra.mxu0 0.0
        %705 = vmatprep.subr.mxu0 0.0
        %706 = vmatpush1.msra.mxu0 0.0
        %707 = vmatprep.subr.mxu0 0.0
        %708 = vmatpush1.msra.mxu0 0.0
        %709 = vmatprep.subr.mxu0 0.0
        %710 = vmatpush1.msra.mxu0 0.0
        %711 = vmatprep.subr.mxu0 0.0
        %v712 = vand.u32 %v577, 4294901760
        %v713 = vsub.f32 %v577, %v712
        %v714 = vand.u32 %v713, 4294901760
        %v715 = vsub.f32 %v713, %v714
        %v716 = vand.u32 %v715, 4294901760
        %717 = vmatpush1.msra.mxu0 %v716
        %718 = vmatprep.subr.mxu0 0.0
        %v719 = vand.u32 %v576, 4294901760
        %v720 = vsub.f32 %v576, %v719
        %v721 = vand.u32 %v720, 4294901760
        %v722 = vsub.f32 %v720, %v721
        %v723 = vand.u32 %v722, 4294901760
        %724 = vmatpush1.msra.mxu0 %v723
        %725 = vmatprep.subr.mxu0 0.0
        %v726 = vand.u32 %v575, 4294901760
        %v727 = vsub.f32 %v575, %v726
        %v728 = vand.u32 %v727, 4294901760
        %v729 = vsub.f32 %v727, %v728
        %v730 = vand.u32 %v729, 4294901760
        %731 = vmatpush1.msra.mxu0 %v730
        %732 = vmatprep.subr.mxu0 0.0
        %v733 = vand.u32 %v574, 4294901760
        %v734 = vsub.f32 %v574, %v733
        %v735 = vand.u32 %v734, 4294901760
        %v736 = vsub.f32 %v734, %v735
        %v737 = vand.u32 %v736, 4294901760
        %738 = vmatpush1.msra.mxu0 %v737
        %739 = vmatprep.subr.mxu0 0.0
        %740 = vmatpush2.msra.mxu0 0.0
        %741 = vmatprep.subr.mxu0 0.0
        %742 = vmatpush2.msra.mxu0 0.0
        %743 = vmatprep.subr.mxu0 0.0
        %744 = vmatpush2.msra.mxu0 0.0
        %745 = vmatprep.subr.mxu0 0.0
        %746 = vmatpush2.msra.mxu0 0.0
        %747 = vmatprep.subr.mxu0 0.0
        %748 = vmatpush2.msra.mxu0 0.0
        %749 = vmatprep.subr.mxu0 0.0
        %750 = vmatpush2.msra.mxu0 0.0
        %751 = vmatprep.subr.mxu0 0.0
        %752 = vmatpush2.msra.mxu0 0.0
        %753 = vmatprep.subr.mxu0 0.0
        %754 = vmatpush2.msra.mxu0 0.0
        %755 = vmatprep.subr.mxu0 0.0
        %756 = vmatpush2.msra.mxu0 0.0
        %757 = vmatprep.subr.mxu0 0.0
        %758 = vmatpush2.msra.mxu0 0.0
        %759 = vmatprep.subr.mxu0 0.0
        %760 = vmatpush2.msra.mxu0 0.0
        %761 = vmatprep.subr.mxu0 0.0
        %762 = vmatpush2.msra.mxu0 0.0
        %763 = vmatprep.subr.mxu0 0.0
        %764 = vmatpush2.msra.mxu0 0.0
        %765 = vmatprep.subr.mxu0 0.0
        %766 = vmatpush2.msra.mxu0 0.0
        %767 = vmatprep.subr.mxu0 0.0
        %768 = vmatpush2.msra.mxu0 0.0
        %769 = vmatprep.subr.mxu0 0.0
        %770 = vmatpush2.msra.mxu0 0.0
        %771 = vmatprep.mubr.f32.mxu0 0.0
        %v772 = vand.u32 %v580, 4294901760
        %773 = vmatmul.mubr.f32.gmra.mxu0 %v772
        %v774 = vpop.f32.mrf.mxu0
        %v775 = vadd.f32 %v664, %v774
        %v776 = vpop.f32.mrf.mxu0
        %777 = vmatprep.mubr.f32.mxu0 0.0
        %v778 = vand.u32 %v583, 4294901760
        %779 = vmatmul.mubr.f32.gmra.mxu0 %v778
        %v780 = vpop.f32.mrf.mxu0
        %v781 = vadd.f32 %v674, %v780
        %v782 = vpop.f32.mrf.mxu0
        %783 = vmatprep.mubr.f32.mxu0 0.0
        %v784 = vand.u32 %v586, 4294901760
        %785 = vmatmul.mubr.f32.gmra.mxu0 %v784
        %v786 = vpop.f32.mrf.mxu0
        %v787 = vadd.f32 %v684, %v786
        %v788 = vpop.f32.mrf.mxu0
        %789 = vdwg.mxu0
        %790 = vmatprep.subr.mxu0 0.0
        %791 = vmatpush1.msra.mxu0 0.0
        %792 = vmatprep.subr.mxu0 0.0
        %793 = vmatpush1.msra.mxu0 0.0
        %794 = vmatprep.subr.mxu0 0.0
        %795 = vmatpush1.msra.mxu0 0.0
        %796 = vmatprep.subr.mxu0 0.0
        %797 = vmatpush1.msra.mxu0 0.0
        %798 = vmatprep.subr.mxu0 0.0
        %799 = vmatpush1.msra.mxu0 0.0
        %800 = vmatprep.subr.mxu0 0.0
        %801 = vmatpush1.msra.mxu0 0.0
        %802 = vmatprep.subr.mxu0 0.0
        %803 = vmatpush1.msra.mxu0 0.0
        %804 = vmatprep.subr.mxu0 0.0
        %805 = vmatpush1.msra.mxu0 0.0
        %806 = vmatprep.subr.mxu0 0.0
        %807 = vmatpush1.msra.mxu0 0.0
        %808 = vmatprep.subr.mxu0 0.0
        %809 = vmatpush1.msra.mxu0 0.0
        %810 = vmatprep.subr.mxu0 0.0
        %811 = vmatpush1.msra.mxu0 0.0
        %812 = vmatprep.subr.mxu0 0.0
        %813 = vmatpush1.msra.mxu0 0.0
        %814 = vmatprep.subr.mxu0 0.0
        %v815 = vand.u32 %v577, 4294901760
        %v816 = vsub.f32 %v577, %v815
        %817 = vmatpush1.msra.mxu0 %v816
        %818 = vmatprep.subr.mxu0 0.0
        %v819 = vand.u32 %v576, 4294901760
        %v820 = vsub.f32 %v576, %v819
        %821 = vmatpush1.msra.mxu0 %v820
        %822 = vmatprep.subr.mxu0 0.0
        %v823 = vand.u32 %v575, 4294901760
        %v824 = vsub.f32 %v575, %v823
        %825 = vmatpush1.msra.mxu0 %v824
        %826 = vmatprep.subr.mxu0 0.0
        %v827 = vand.u32 %v574, 4294901760
        %v828 = vsub.f32 %v574, %v827
        %829 = vmatpush1.msra.mxu0 %v828
        %830 = vmatprep.subr.mxu0 0.0
        %831 = vmatpush2.msra.mxu0 0.0
        %832 = vmatprep.subr.mxu0 0.0
        %833 = vmatpush2.msra.mxu0 0.0
        %834 = vmatprep.subr.mxu0 0.0
        %835 = vmatpush2.msra.mxu0 0.0
        %836 = vmatprep.subr.mxu0 0.0
        %837 = vmatpush2.msra.mxu0 0.0
        %838 = vmatprep.subr.mxu0 0.0
        %839 = vmatpush2.msra.mxu0 0.0
        %840 = vmatprep.subr.mxu0 0.0
        %841 = vmatpush2.msra.mxu0 0.0
        %842 = vmatprep.subr.mxu0 0.0
        %843 = vmatpush2.msra.mxu0 0.0
        %844 = vmatprep.subr.mxu0 0.0
        %845 = vmatpush2.msra.mxu0 0.0
        %846 = vmatprep.subr.mxu0 0.0
        %847 = vmatpush2.msra.mxu0 0.0
        %848 = vmatprep.subr.mxu0 0.0
        %849 = vmatpush2.msra.mxu0 0.0
        %850 = vmatprep.subr.mxu0 0.0
        %851 = vmatpush2.msra.mxu0 0.0
        %852 = vmatprep.subr.mxu0 0.0
        %853 = vmatpush2.msra.mxu0 0.0
        %854 = vmatprep.subr.mxu0 0.0
        %855 = vmatpush2.msra.mxu0 0.0
        %856 = vmatprep.subr.mxu0 0.0
        %857 = vmatpush2.msra.mxu0 0.0
        %858 = vmatprep.subr.mxu0 0.0
        %859 = vmatpush2.msra.mxu0 0.0
        %860 = vmatprep.subr.mxu0 0.0
        %861 = vmatpush2.msra.mxu0 0.0
        %862 = vmatprep.mubr.f32.mxu0 0.0
        %v863 = vand.u32 %v580, 4294901760
        %v864 = vsub.f32 %v580, %v863
        %865 = vmatmul.mubr.f32.gmra.mxu0 %v864
        %v866 = vpop.f32.mrf.mxu0
        %v867 = vadd.f32 %v775, %v866
        %v868 = vpop.f32.mrf.mxu0
        %869 = vmatprep.mubr.f32.mxu0 0.0
        %v870 = vand.u32 %v583, 4294901760
        %v871 = vsub.f32 %v583, %v870
        %872 = vmatmul.mubr.f32.gmra.mxu0 %v871
        %v873 = vpop.f32.mrf.mxu0
        %v874 = vadd.f32 %v781, %v873
        %v875 = vpop.f32.mrf.mxu0
        %876 = vmatprep.mubr.f32.mxu0 0.0
        %v877 = vand.u32 %v586, 4294901760
        %v878 = vsub.f32 %v586, %v877
        %879 = vmatmul.mubr.f32.gmra.mxu0 %v878
        %v880 = vpop.f32.mrf.mxu0
        %v881 = vadd.f32 %v787, %v880
        %v882 = vpop.f32.mrf.mxu0
        %883 = vdwg.mxu0
        %884 = vmatprep.subr.mxu0 0.0
        %885 = vmatpush1.msra.mxu0 0.0
        %886 = vmatprep.subr.mxu0 0.0
        %887 = vmatpush1.msra.mxu0 0.0
        %888 = vmatprep.subr.mxu0 0.0
        %889 = vmatpush1.msra.mxu0 0.0
        %890 = vmatprep.subr.mxu0 0.0
        %891 = vmatpush1.msra.mxu0 0.0
        %892 = vmatprep.subr.mxu0 0.0
        %893 = vmatpush1.msra.mxu0 0.0
        %894 = vmatprep.subr.mxu0 0.0
        %895 = vmatpush1.msra.mxu0 0.0
        %896 = vmatprep.subr.mxu0 0.0
        %897 = vmatpush1.msra.mxu0 0.0
        %898 = vmatprep.subr.mxu0 0.0
        %899 = vmatpush1.msra.mxu0 0.0
        %900 = vmatprep.subr.mxu0 0.0
        %901 = vmatpush1.msra.mxu0 0.0
        %902 = vmatprep.subr.mxu0 0.0
        %903 = vmatpush1.msra.mxu0 0.0
        %904 = vmatprep.subr.mxu0 0.0
        %905 = vmatpush1.msra.mxu0 0.0
        %906 = vmatprep.subr.mxu0 0.0
        %907 = vmatpush1.msra.mxu0 0.0
        %908 = vmatprep.subr.mxu0 0.0
        %v909 = vand.u32 %v577, 4294901760
        %910 = vmatpush1.msra.mxu0 %v909
        %911 = vmatprep.subr.mxu0 0.0
        %v912 = vand.u32 %v576, 4294901760
        %913 = vmatpush1.msra.mxu0 %v912
        %914 = vmatprep.subr.mxu0 0.0
        %v915 = vand.u32 %v575, 4294901760
        %916 = vmatpush1.msra.mxu0 %v915
        %917 = vmatprep.subr.mxu0 0.0
        %v918 = vand.u32 %v574, 4294901760
        %919 = vmatpush1.msra.mxu0 %v918
        %920 = vmatprep.subr.mxu0 0.0
        %921 = vmatpush2.msra.mxu0 0.0
        %922 = vmatprep.subr.mxu0 0.0
        %923 = vmatpush2.msra.mxu0 0.0
        %924 = vmatprep.subr.mxu0 0.0
        %925 = vmatpush2.msra.mxu0 0.0
        %926 = vmatprep.subr.mxu0 0.0
        %927 = vmatpush2.msra.mxu0 0.0
        %928 = vmatprep.subr.mxu0 0.0
        %929 = vmatpush2.msra.mxu0 0.0
        %930 = vmatprep.subr.mxu0 0.0
        %931 = vmatpush2.msra.mxu0 0.0
        %932 = vmatprep.subr.mxu0 0.0
        %933 = vmatpush2.msra.mxu0 0.0
        %934 = vmatprep.subr.mxu0 0.0
        %935 = vmatpush2.msra.mxu0 0.0
        %936 = vmatprep.subr.mxu0 0.0
        %937 = vmatpush2.msra.mxu0 0.0
        %938 = vmatprep.subr.mxu0 0.0
        %939 = vmatpush2.msra.mxu0 0.0
        %940 = vmatprep.subr.mxu0 0.0
        %941 = vmatpush2.msra.mxu0 0.0
        %942 = vmatprep.subr.mxu0 0.0
        %943 = vmatpush2.msra.mxu0 0.0
        %944 = vmatprep.subr.mxu0 0.0
        %945 = vmatpush2.msra.mxu0 0.0
        %946 = vmatprep.subr.mxu0 0.0
        %947 = vmatpush2.msra.mxu0 0.0
        %948 = vmatprep.subr.mxu0 0.0
        %949 = vmatpush2.msra.mxu0 0.0
        %950 = vmatprep.subr.mxu0 0.0
        %951 = vmatpush2.msra.mxu0 0.0
        %952 = vmatprep.mubr.f32.mxu0 0.0
        %v953 = vand.u32 %v580, 4294901760
        %v954 = vsub.f32 %v580, %v953
        %v955 = vand.u32 %v954, 4294901760
        %956 = vmatmul.mubr.f32.gmra.mxu0 %v955
        %v957 = vpop.f32.mrf.mxu0
        %v958 = vadd.f32 %v867, %v957
        %v959 = vpop.f32.mrf.mxu0
        %960 = vmatprep.mubr.f32.mxu0 0.0
        %v961 = vand.u32 %v583, 4294901760
        %v962 = vsub.f32 %v583, %v961
        %v963 = vand.u32 %v962, 4294901760
        %964 = vmatmul.mubr.f32.gmra.mxu0 %v963
        %v965 = vpop.f32.mrf.mxu0
        %v966 = vadd.f32 %v874, %v965
        %v967 = vpop.f32.mrf.mxu0
        %968 = vmatprep.mubr.f32.mxu0 0.0
        %v969 = vand.u32 %v586, 4294901760
        %v970 = vsub.f32 %v586, %v969
        %v971 = vand.u32 %v970, 4294901760
        %972 = vmatmul.mubr.f32.gmra.mxu0 %v971
        %v973 = vpop.f32.mrf.mxu0
        %v974 = vadd.f32 %v881, %v973
        %v975 = vpop.f32.mrf.mxu0
        %976 = vdwg.mxu0
        %977 = vmatprep.subr.mxu0 0.0
        %978 = vmatpush1.msra.mxu0 0.0
        %979 = vmatprep.subr.mxu0 0.0
        %980 = vmatpush1.msra.mxu0 0.0
        %981 = vmatprep.subr.mxu0 0.0
        %982 = vmatpush1.msra.mxu0 0.0
        %983 = vmatprep.subr.mxu0 0.0
        %984 = vmatpush1.msra.mxu0 0.0
        %985 = vmatprep.subr.mxu0 0.0
        %986 = vmatpush1.msra.mxu0 0.0
        %987 = vmatprep.subr.mxu0 0.0
        %988 = vmatpush1.msra.mxu0 0.0
        %989 = vmatprep.subr.mxu0 0.0
        %990 = vmatpush1.msra.mxu0 0.0
        %991 = vmatprep.subr.mxu0 0.0
        %992 = vmatpush1.msra.mxu0 0.0
        %993 = vmatprep.subr.mxu0 0.0
        %994 = vmatpush1.msra.mxu0 0.0
        %995 = vmatprep.subr.mxu0 0.0
        %996 = vmatpush1.msra.mxu0 0.0
        %997 = vmatprep.subr.mxu0 0.0
        %998 = vmatpush1.msra.mxu0 0.0
        %999 = vmatprep.subr.mxu0 0.0
        %1000 = vmatpush1.msra.mxu0 0.0
        %1001 = vmatprep.subr.mxu0 0.0
        %v1002 = vand.u32 %v577, 4294901760
        %v1003 = vsub.f32 %v577, %v1002
        %v1004 = vand.u32 %v1003, 4294901760
        %1005 = vmatpush1.msra.mxu0 %v1004
        %1006 = vmatprep.subr.mxu0 0.0
        %v1007 = vand.u32 %v576, 4294901760
        %v1008 = vsub.f32 %v576, %v1007
        %v1009 = vand.u32 %v1008, 4294901760
        %1010 = vmatpush1.msra.mxu0 %v1009
        %1011 = vmatprep.subr.mxu0 0.0
        %v1012 = vand.u32 %v575, 4294901760
        %v1013 = vsub.f32 %v575, %v1012
        %v1014 = vand.u32 %v1013, 4294901760
        %1015 = vmatpush1.msra.mxu0 %v1014
        %1016 = vmatprep.subr.mxu0 0.0
        %v1017 = vand.u32 %v574, 4294901760
        %v1018 = vsub.f32 %v574, %v1017
        %v1019 = vand.u32 %v1018, 4294901760
        %1020 = vmatpush1.msra.mxu0 %v1019
        %1021 = vmatprep.subr.mxu0 0.0
        %1022 = vmatpush2.msra.mxu0 0.0
        %1023 = vmatprep.subr.mxu0 0.0
        %1024 = vmatpush2.msra.mxu0 0.0
        %1025 = vmatprep.subr.mxu0 0.0
        %1026 = vmatpush2.msra.mxu0 0.0
        %1027 = vmatprep.subr.mxu0 0.0
        %1028 = vmatpush2.msra.mxu0 0.0
        %1029 = vmatprep.subr.mxu0 0.0
        %1030 = vmatpush2.msra.mxu0 0.0
        %1031 = vmatprep.subr.mxu0 0.0
        %1032 = vmatpush2.msra.mxu0 0.0
        %1033 = vmatprep.subr.mxu0 0.0
        %1034 = vmatpush2.msra.mxu0 0.0
        %1035 = vmatprep.subr.mxu0 0.0
        %1036 = vmatpush2.msra.mxu0 0.0
        %1037 = vmatprep.subr.mxu0 0.0
        %1038 = vmatpush2.msra.mxu0 0.0
        %1039 = vmatprep.subr.mxu0 0.0
        %1040 = vmatpush2.msra.mxu0 0.0
        %1041 = vmatprep.subr.mxu0 0.0
        %1042 = vmatpush2.msra.mxu0 0.0
        %1043 = vmatprep.subr.mxu0 0.0
        %1044 = vmatpush2.msra.mxu0 0.0
        %1045 = vmatprep.subr.mxu0 0.0
        %1046 = vmatpush2.msra.mxu0 0.0
        %1047 = vmatprep.subr.mxu0 0.0
        %1048 = vmatpush2.msra.mxu0 0.0
        %1049 = vmatprep.subr.mxu0 0.0
        %1050 = vmatpush2.msra.mxu0 0.0
        %1051 = vmatprep.subr.mxu0 0.0
        %1052 = vmatpush2.msra.mxu0 0.0
        %1053 = vmatprep.mubr.f32.mxu0 0.0
        %v1054 = vand.u32 %v580, 4294901760
        %1055 = vmatmul.mubr.f32.gmra.mxu0 %v1054
        %v1056 = vpop.f32.mrf.mxu0
        %v1057 = vadd.f32 %v958, %v1056
        %v1058 = vpop.f32.mrf.mxu0
        %1059 = vmatprep.mubr.f32.mxu0 0.0
        %v1060 = vand.u32 %v583, 4294901760
        %1061 = vmatmul.mubr.f32.gmra.mxu0 %v1060
        %v1062 = vpop.f32.mrf.mxu0
        %v1063 = vadd.f32 %v966, %v1062
        %v1064 = vpop.f32.mrf.mxu0
        %1065 = vmatprep.mubr.f32.mxu0 0.0
        %v1066 = vand.u32 %v586, 4294901760
        %1067 = vmatmul.mubr.f32.gmra.mxu0 %v1066
        %v1068 = vpop.f32.mrf.mxu0
        %v1069 = vadd.f32 %v974, %v1068
        %v1070 = vpop.f32.mrf.mxu0
        %1071 = vdwg.mxu0
        %1072 = vmatprep.subr.mxu0 0.0
        %1073 = vmatpush1.msra.mxu0 0.0
        %1074 = vmatprep.subr.mxu0 0.0
        %1075 = vmatpush1.msra.mxu0 0.0
        %1076 = vmatprep.subr.mxu0 0.0
        %1077 = vmatpush1.msra.mxu0 0.0
        %1078 = vmatprep.subr.mxu0 0.0
        %1079 = vmatpush1.msra.mxu0 0.0
        %1080 = vmatprep.subr.mxu0 0.0
        %1081 = vmatpush1.msra.mxu0 0.0
        %1082 = vmatprep.subr.mxu0 0.0
        %1083 = vmatpush1.msra.mxu0 0.0
        %1084 = vmatprep.subr.mxu0 0.0
        %1085 = vmatpush1.msra.mxu0 0.0
        %1086 = vmatprep.subr.mxu0 0.0
        %1087 = vmatpush1.msra.mxu0 0.0
        %1088 = vmatprep.subr.mxu0 0.0
        %1089 = vmatpush1.msra.mxu0 0.0
        %1090 = vmatprep.subr.mxu0 0.0
        %1091 = vmatpush1.msra.mxu0 0.0
        %1092 = vmatprep.subr.mxu0 0.0
        %1093 = vmatpush1.msra.mxu0 0.0
        %1094 = vmatprep.subr.mxu0 0.0
        %1095 = vmatpush1.msra.mxu0 0.0
        %1096 = vmatprep.subr.mxu0 0.0
        %v1097 = vand.u32 %v577, 4294901760
        %1098 = vmatpush1.msra.mxu0 %v1097
        %1099 = vmatprep.subr.mxu0 0.0
        %v1100 = vand.u32 %v576, 4294901760
        %1101 = vmatpush1.msra.mxu0 %v1100
        %1102 = vmatprep.subr.mxu0 0.0
        %v1103 = vand.u32 %v575, 4294901760
        %1104 = vmatpush1.msra.mxu0 %v1103
        %1105 = vmatprep.subr.mxu0 0.0
        %v1106 = vand.u32 %v574, 4294901760
        %1107 = vmatpush1.msra.mxu0 %v1106
        %1108 = vmatprep.subr.mxu0 0.0
        %1109 = vmatpush2.msra.mxu0 0.0
        %1110 = vmatprep.subr.mxu0 0.0
        %1111 = vmatpush2.msra.mxu0 0.0
        %1112 = vmatprep.subr.mxu0 0.0
        %1113 = vmatpush2.msra.mxu0 0.0
        %1114 = vmatprep.subr.mxu0 0.0
        %1115 = vmatpush2.msra.mxu0 0.0
        %1116 = vmatprep.subr.mxu0 0.0
        %1117 = vmatpush2.msra.mxu0 0.0
        %1118 = vmatprep.subr.mxu0 0.0
        %1119 = vmatpush2.msra.mxu0 0.0
        %1120 = vmatprep.subr.mxu0 0.0
        %1121 = vmatpush2.msra.mxu0 0.0
        %1122 = vmatprep.subr.mxu0 0.0
        %1123 = vmatpush2.msra.mxu0 0.0
        %1124 = vmatprep.subr.mxu0 0.0
        %1125 = vmatpush2.msra.mxu0 0.0
        %1126 = vmatprep.subr.mxu0 0.0
        %1127 = vmatpush2.msra.mxu0 0.0
        %1128 = vmatprep.subr.mxu0 0.0
        %1129 = vmatpush2.msra.mxu0 0.0
        %1130 = vmatprep.subr.mxu0 0.0
        %1131 = vmatpush2.msra.mxu0 0.0
        %1132 = vmatprep.subr.mxu0 0.0
        %1133 = vmatpush2.msra.mxu0 0.0
        %1134 = vmatprep.subr.mxu0 0.0
        %1135 = vmatpush2.msra.mxu0 0.0
        %1136 = vmatprep.subr.mxu0 0.0
        %1137 = vmatpush2.msra.mxu0 0.0
        %1138 = vmatprep.subr.mxu0 0.0
        %1139 = vmatpush2.msra.mxu0 0.0
        %1140 = vmatprep.mubr.f32.mxu0 0.0
        %v1141 = vand.u32 %v580, 4294901760
        %1142 = vmatmul.mubr.f32.gmra.mxu0 %v1141
        %v1143 = vpop.f32.mrf.mxu0
        %v1144 = vadd.f32 %v1057, %v1143
        %v1145 = vpop.f32.mrf.mxu0
        %1146 = vmatprep.mubr.f32.mxu0 0.0
        %v1147 = vand.u32 %v583, 4294901760
        %1148 = vmatmul.mubr.f32.gmra.mxu0 %v1147
        %v1149 = vpop.f32.mrf.mxu0
        %v1150 = vadd.f32 %v1063, %v1149
        %v1151 = vpop.f32.mrf.mxu0
        %1152 = vmatprep.mubr.f32.mxu0 0.0
        %v1153 = vand.u32 %v586, 4294901760
        %1154 = vmatmul.mubr.f32.gmra.mxu0 %v1153
        %v1155 = vpop.f32.mrf.mxu0
        %v1156 = vadd.f32 %v1069, %v1155
        %v1157 = vpop.f32.mrf.mxu0
        %1158 = vdwg.mxu0
        %v1159 = vld [vmem:[#allocation4] sm:$0xff]
        %1160 = vmatprep.subr.mxu0 0.0
        %1161 = vmatpush1.xpose.msra.mxu0 0.0
        %1162 = vmatprep.subr.mxu0 0.0
        %1163 = vmatpush1.xpose.msra.mxu0 0.0
        %1164 = vmatprep.subr.mxu0 0.0
        %1165 = vmatpush1.xpose.msra.mxu0 0.0
        %1166 = vmatprep.subr.mxu0 0.0
        %1167 = vmatpush1.xpose.msra.mxu0 0.0
        %1168 = vmatprep.subr.mxu0 0.0
        %1169 = vmatpush1.xpose.msra.mxu0 0.0
        %1170 = vmatprep.subr.mxu0 0.0
        %1171 = vmatpush1.xpose.msra.mxu0 0.0
        %1172 = vmatprep.subr.mxu0 0.0
        %1173 = vmatpush1.xpose.msra.mxu0 0.0
        %1174 = vmatprep.subr.mxu0 0.0
        %1175 = vmatpush1.xpose.msra.mxu0 0.0
        %1176 = vmatprep.subr.mxu0 0.0
        %1177 = vmatpush1.xpose.msra.mxu0 0.0
        %1178 = vmatprep.subr.mxu0 0.0
        %1179 = vmatpush1.xpose.msra.mxu0 0.0
        %1180 = vmatprep.subr.mxu0 0.0
        %1181 = vmatpush1.xpose.msra.mxu0 0.0
        %1182 = vmatprep.subr.mxu0 0.0
        %1183 = vmatpush1.xpose.msra.mxu0 0.0
        %1184 = vmatprep.subr.mxu0 0.0
        %1185 = vmatpush1.xpose.msra.mxu0 0.0
        %1186 = vmatprep.subr.mxu0 0.0
        %v1187 = vand.u32 %v1156, 4294901760
        %1188 = vmatpush1.xpose.msra.mxu0 %v1187
        %1189 = vmatprep.subr.mxu0 0.0
        %v1190 = vand.u32 %v1150, 4294901760
        %1191 = vmatpush1.xpose.msra.mxu0 %v1190
        %1192 = vmatprep.subr.mxu0 0.0
        %v1193 = vand.u32 %v1144, 4294901760
        %1194 = vmatpush1.xpose.msra.mxu0 %v1193
        %1195 = vmatprep.subr.mxu0 0.0
        %1196 = vmatpush2.xpose.msra.mxu0 0.0
        %1197 = vmatprep.subr.mxu0 0.0
        %1198 = vmatpush2.xpose.msra.mxu0 0.0
        %1199 = vmatprep.subr.mxu0 0.0
        %1200 = vmatpush2.xpose.msra.mxu0 0.0
        %1201 = vmatprep.subr.mxu0 0.0
        %1202 = vmatpush2.xpose.msra.mxu0 0.0
        %1203 = vmatprep.subr.mxu0 0.0
        %1204 = vmatpush2.xpose.msra.mxu0 0.0
        %1205 = vmatprep.subr.mxu0 0.0
        %1206 = vmatpush2.xpose.msra.mxu0 0.0
        %1207 = vmatprep.subr.mxu0 0.0
        %1208 = vmatpush2.xpose.msra.mxu0 0.0
        %1209 = vmatprep.subr.mxu0 0.0
        %1210 = vmatpush2.xpose.msra.mxu0 0.0
        %1211 = vmatprep.subr.mxu0 0.0
        %1212 = vmatpush2.xpose.msra.mxu0 0.0
        %1213 = vmatprep.subr.mxu0 0.0
        %1214 = vmatpush2.xpose.msra.mxu0 0.0
        %1215 = vmatprep.subr.mxu0 0.0
        %1216 = vmatpush2.xpose.msra.mxu0 0.0
        %1217 = vmatprep.subr.mxu0 0.0
        %1218 = vmatpush2.xpose.msra.mxu0 0.0
        %1219 = vmatprep.subr.mxu0 0.0
        %1220 = vmatpush2.xpose.msra.mxu0 0.0
        %1221 = vmatprep.subr.mxu0 0.0
        %1222 = vmatpush2.xpose.msra.mxu0 0.0
        %1223 = vmatprep.subr.mxu0 0.0
        %1224 = vmatpush2.xpose.msra.mxu0 0.0
        %1225 = vmatprep.subr.mxu0 0.0
        %1226 = vmatpush2.xpose.msra.mxu0 0.0
        %1227 = vmatprep.mubr.f32.mxu0 0.0
        %v1228 = vand.u32 %v1159, 4294901760
        %v1229 = vsub.f32 %v1159, %v1228
        %v1230 = vand.u32 %v1229, 4294901760
        %v1231 = vsub.f32 %v1229, %v1230
        %v1232 = vand.u32 %v1231, 4294901760
        %1233 = vmatmul.mubr.f32.gmra.mxu0 %v1232
        %v1234 = vpop.f32.mrf.mxu0
        %v1235 = vadd.f32 0.0, %v1234
        %v1236 = vpop.f32.mrf.mxu0
        %1237 = vdwg.mxu0
        %1238 = vmatprep.subr.mxu0 0.0
        %1239 = vmatpush1.xpose.msra.mxu0 0.0
        %1240 = vmatprep.subr.mxu0 0.0
        %1241 = vmatpush1.xpose.msra.mxu0 0.0
        %1242 = vmatprep.subr.mxu0 0.0
        %1243 = vmatpush1.xpose.msra.mxu0 0.0
        %1244 = vmatprep.subr.mxu0 0.0
        %1245 = vmatpush1.xpose.msra.mxu0 0.0
        %1246 = vmatprep.subr.mxu0 0.0
        %1247 = vmatpush1.xpose.msra.mxu0 0.0
        %1248 = vmatprep.subr.mxu0 0.0
        %1249 = vmatpush1.xpose.msra.mxu0 0.0
        %1250 = vmatprep.subr.mxu0 0.0
        %1251 = vmatpush1.xpose.msra.mxu0 0.0
        %1252 = vmatprep.subr.mxu0 0.0
        %1253 = vmatpush1.xpose.msra.mxu0 0.0
        %1254 = vmatprep.subr.mxu0 0.0
        %1255 = vmatpush1.xpose.msra.mxu0 0.0
        %1256 = vmatprep.subr.mxu0 0.0
        %1257 = vmatpush1.xpose.msra.mxu0 0.0
        %1258 = vmatprep.subr.mxu0 0.0
        %1259 = vmatpush1.xpose.msra.mxu0 0.0
        %1260 = vmatprep.subr.mxu0 0.0
        %1261 = vmatpush1.xpose.msra.mxu0 0.0
        %1262 = vmatprep.subr.mxu0 0.0
        %1263 = vmatpush1.xpose.msra.mxu0 0.0
        %1264 = vmatprep.subr.mxu0 0.0
        %v1265 = vand.u32 %v1156, 4294901760
        %v1266 = vsub.f32 %v1156, %v1265
        %v1267 = vand.u32 %v1266, 4294901760
        %v1268 = vsub.f32 %v1266, %v1267
        %v1269 = vand.u32 %v1268, 4294901760
        %1270 = vmatpush1.xpose.msra.mxu0 %v1269
        %1271 = vmatprep.subr.mxu0 0.0
        %v1272 = vand.u32 %v1150, 4294901760
        %v1273 = vsub.f32 %v1150, %v1272
        %v1274 = vand.u32 %v1273, 4294901760
        %v1275 = vsub.f32 %v1273, %v1274
        %v1276 = vand.u32 %v1275, 4294901760
        %1277 = vmatpush1.xpose.msra.mxu0 %v1276
        %1278 = vmatprep.subr.mxu0 0.0
        %v1279 = vand.u32 %v1144, 4294901760
        %v1280 = vsub.f32 %v1144, %v1279
        %v1281 = vand.u32 %v1280, 4294901760
        %v1282 = vsub.f32 %v1280, %v1281
        %v1283 = vand.u32 %v1282, 4294901760
        %1284 = vmatpush1.xpose.msra.mxu0 %v1283
        %1285 = vmatprep.subr.mxu0 0.0
        %1286 = vmatpush2.xpose.msra.mxu0 0.0
        %1287 = vmatprep.subr.mxu0 0.0
        %1288 = vmatpush2.xpose.msra.mxu0 0.0
        %1289 = vmatprep.subr.mxu0 0.0
        %1290 = vmatpush2.xpose.msra.mxu0 0.0
        %1291 = vmatprep.subr.mxu0 0.0
        %1292 = vmatpush2.xpose.msra.mxu0 0.0
        %1293 = vmatprep.subr.mxu0 0.0
        %1294 = vmatpush2.xpose.msra.mxu0 0.0
        %1295 = vmatprep.subr.mxu0 0.0
        %1296 = vmatpush2.xpose.msra.mxu0 0.0
        %1297 = vmatprep.subr.mxu0 0.0
        %1298 = vmatpush2.xpose.msra.mxu0 0.0
        %1299 = vmatprep.subr.mxu0 0.0
        %1300 = vmatpush2.xpose.msra.mxu0 0.0
        %1301 = vmatprep.subr.mxu0 0.0
        %1302 = vmatpush2.xpose.msra.mxu0 0.0
        %1303 = vmatprep.subr.mxu0 0.0
        %1304 = vmatpush2.xpose.msra.mxu0 0.0
        %1305 = vmatprep.subr.mxu0 0.0
        %1306 = vmatpush2.xpose.msra.mxu0 0.0
        %1307 = vmatprep.subr.mxu0 0.0
        %1308 = vmatpush2.xpose.msra.mxu0 0.0
        %1309 = vmatprep.subr.mxu0 0.0
        %1310 = vmatpush2.xpose.msra.mxu0 0.0
        %1311 = vmatprep.subr.mxu0 0.0
        %1312 = vmatpush2.xpose.msra.mxu0 0.0
        %1313 = vmatprep.subr.mxu0 0.0
        %1314 = vmatpush2.xpose.msra.mxu0 0.0
        %1315 = vmatprep.subr.mxu0 0.0
        %1316 = vmatpush2.xpose.msra.mxu0 0.0
        %1317 = vmatprep.mubr.f32.mxu0 0.0
        %v1318 = vand.u32 %v1159, 4294901760
        %1319 = vmatmul.mubr.f32.gmra.mxu0 %v1318
        %v1320 = vpop.f32.mrf.mxu0
        %v1321 = vadd.f32 %v1235, %v1320
        %v1322 = vpop.f32.mrf.mxu0
        %1323 = vdwg.mxu0
        %1324 = vmatprep.subr.mxu0 0.0
        %1325 = vmatpush1.xpose.msra.mxu0 0.0
        %1326 = vmatprep.subr.mxu0 0.0
        %1327 = vmatpush1.xpose.msra.mxu0 0.0
        %1328 = vmatprep.subr.mxu0 0.0
        %1329 = vmatpush1.xpose.msra.mxu0 0.0
        %1330 = vmatprep.subr.mxu0 0.0
        %1331 = vmatpush1.xpose.msra.mxu0 0.0
        %1332 = vmatprep.subr.mxu0 0.0
        %1333 = vmatpush1.xpose.msra.mxu0 0.0
        %1334 = vmatprep.subr.mxu0 0.0
        %1335 = vmatpush1.xpose.msra.mxu0 0.0
        %1336 = vmatprep.subr.mxu0 0.0
        %1337 = vmatpush1.xpose.msra.mxu0 0.0
        %1338 = vmatprep.subr.mxu0 0.0
        %1339 = vmatpush1.xpose.msra.mxu0 0.0
        %1340 = vmatprep.subr.mxu0 0.0
        %1341 = vmatpush1.xpose.msra.mxu0 0.0
        %1342 = vmatprep.subr.mxu0 0.0
        %1343 = vmatpush1.xpose.msra.mxu0 0.0
        %1344 = vmatprep.subr.mxu0 0.0
        %1345 = vmatpush1.xpose.msra.mxu0 0.0
        %1346 = vmatprep.subr.mxu0 0.0
        %1347 = vmatpush1.xpose.msra.mxu0 0.0
        %1348 = vmatprep.subr.mxu0 0.0
        %1349 = vmatpush1.xpose.msra.mxu0 0.0
        %1350 = vmatprep.subr.mxu0 0.0
        %v1351 = vand.u32 %v1156, 4294901760
        %v1352 = vsub.f32 %v1156, %v1351
        %1353 = vmatpush1.xpose.msra.mxu0 %v1352
        %1354 = vmatprep.subr.mxu0 0.0
        %v1355 = vand.u32 %v1150, 4294901760
        %v1356 = vsub.f32 %v1150, %v1355
        %1357 = vmatpush1.xpose.msra.mxu0 %v1356
        %1358 = vmatprep.subr.mxu0 0.0
        %v1359 = vand.u32 %v1144, 4294901760
        %v1360 = vsub.f32 %v1144, %v1359
        %1361 = vmatpush1.xpose.msra.mxu0 %v1360
        %1362 = vmatprep.subr.mxu0 0.0
        %1363 = vmatpush2.xpose.msra.mxu0 0.0
        %1364 = vmatprep.subr.mxu0 0.0
        %1365 = vmatpush2.xpose.msra.mxu0 0.0
        %1366 = vmatprep.subr.mxu0 0.0
        %1367 = vmatpush2.xpose.msra.mxu0 0.0
        %1368 = vmatprep.subr.mxu0 0.0
        %1369 = vmatpush2.xpose.msra.mxu0 0.0
        %1370 = vmatprep.subr.mxu0 0.0
        %1371 = vmatpush2.xpose.msra.mxu0 0.0
        %1372 = vmatprep.subr.mxu0 0.0
        %1373 = vmatpush2.xpose.msra.mxu0 0.0
        %1374 = vmatprep.subr.mxu0 0.0
        %1375 = vmatpush2.xpose.msra.mxu0 0.0
        %1376 = vmatprep.subr.mxu0 0.0
        %1377 = vmatpush2.xpose.msra.mxu0 0.0
        %1378 = vmatprep.subr.mxu0 0.0
        %1379 = vmatpush2.xpose.msra.mxu0 0.0
        %1380 = vmatprep.subr.mxu0 0.0
        %1381 = vmatpush2.xpose.msra.mxu0 0.0
        %1382 = vmatprep.subr.mxu0 0.0
        %1383 = vmatpush2.xpose.msra.mxu0 0.0
        %1384 = vmatprep.subr.mxu0 0.0
        %1385 = vmatpush2.xpose.msra.mxu0 0.0
        %1386 = vmatprep.subr.mxu0 0.0
        %1387 = vmatpush2.xpose.msra.mxu0 0.0
        %1388 = vmatprep.subr.mxu0 0.0
        %1389 = vmatpush2.xpose.msra.mxu0 0.0
        %1390 = vmatprep.subr.mxu0 0.0
        %1391 = vmatpush2.xpose.msra.mxu0 0.0
        %1392 = vmatprep.subr.mxu0 0.0
        %1393 = vmatpush2.xpose.msra.mxu0 0.0
        %1394 = vmatprep.mubr.f32.mxu0 0.0
        %v1395 = vand.u32 %v1159, 4294901760
        %v1396 = vsub.f32 %v1159, %v1395
        %1397 = vmatmul.mubr.f32.gmra.mxu0 %v1396
        %v1398 = vpop.f32.mrf.mxu0
        %v1399 = vadd.f32 %v1321, %v1398
        %v1400 = vpop.f32.mrf.mxu0
        %1401 = vdwg.mxu0
        %1402 = vmatprep.subr.mxu0 0.0
        %1403 = vmatpush1.xpose.msra.mxu0 0.0
        %1404 = vmatprep.subr.mxu0 0.0
        %1405 = vmatpush1.xpose.msra.mxu0 0.0
        %1406 = vmatprep.subr.mxu0 0.0
        %1407 = vmatpush1.xpose.msra.mxu0 0.0
        %1408 = vmatprep.subr.mxu0 0.0
        %1409 = vmatpush1.xpose.msra.mxu0 0.0
        %1410 = vmatprep.subr.mxu0 0.0
        %1411 = vmatpush1.xpose.msra.mxu0 0.0
        %1412 = vmatprep.subr.mxu0 0.0
        %1413 = vmatpush1.xpose.msra.mxu0 0.0
        %1414 = vmatprep.subr.mxu0 0.0
        %1415 = vmatpush1.xpose.msra.mxu0 0.0
        %1416 = vmatprep.subr.mxu0 0.0
        %1417 = vmatpush1.xpose.msra.mxu0 0.0
        %1418 = vmatprep.subr.mxu0 0.0
        %1419 = vmatpush1.xpose.msra.mxu0 0.0
        %1420 = vmatprep.subr.mxu0 0.0
        %1421 = vmatpush1.xpose.msra.mxu0 0.0
        %1422 = vmatprep.subr.mxu0 0.0
        %1423 = vmatpush1.xpose.msra.mxu0 0.0
        %1424 = vmatprep.subr.mxu0 0.0
        %1425 = vmatpush1.xpose.msra.mxu0 0.0
        %1426 = vmatprep.subr.mxu0 0.0
        %1427 = vmatpush1.xpose.msra.mxu0 0.0
        %1428 = vmatprep.subr.mxu0 0.0
        %v1429 = vand.u32 %v1156, 4294901760
        %1430 = vmatpush1.xpose.msra.mxu0 %v1429
        %1431 = vmatprep.subr.mxu0 0.0
        %v1432 = vand.u32 %v1150, 4294901760
        %1433 = vmatpush1.xpose.msra.mxu0 %v1432
        %1434 = vmatprep.subr.mxu0 0.0
        %v1435 = vand.u32 %v1144, 4294901760
        %1436 = vmatpush1.xpose.msra.mxu0 %v1435
        %1437 = vmatprep.subr.mxu0 0.0
        %1438 = vmatpush2.xpose.msra.mxu0 0.0
        %1439 = vmatprep.subr.mxu0 0.0
        %1440 = vmatpush2.xpose.msra.mxu0 0.0
        %1441 = vmatprep.subr.mxu0 0.0
        %1442 = vmatpush2.xpose.msra.mxu0 0.0
        %1443 = vmatprep.subr.mxu0 0.0
        %1444 = vmatpush2.xpose.msra.mxu0 0.0
        %1445 = vmatprep.subr.mxu0 0.0
        %1446 = vmatpush2.xpose.msra.mxu0 0.0
        %1447 = vmatprep.subr.mxu0 0.0
        %1448 = vmatpush2.xpose.msra.mxu0 0.0
        %1449 = vmatprep.subr.mxu0 0.0
        %1450 = vmatpush2.xpose.msra.mxu0 0.0
        %1451 = vmatprep.subr.mxu0 0.0
        %1452 = vmatpush2.xpose.msra.mxu0 0.0
        %1453 = vmatprep.subr.mxu0 0.0
        %1454 = vmatpush2.xpose.msra.mxu0 0.0
        %1455 = vmatprep.subr.mxu0 0.0
        %1456 = vmatpush2.xpose.msra.mxu0 0.0
        %1457 = vmatprep.subr.mxu0 0.0
        %1458 = vmatpush2.xpose.msra.mxu0 0.0
        %1459 = vmatprep.subr.mxu0 0.0
        %1460 = vmatpush2.xpose.msra.mxu0 0.0
        %1461 = vmatprep.subr.mxu0 0.0
        %1462 = vmatpush2.xpose.msra.mxu0 0.0
        %1463 = vmatprep.subr.mxu0 0.0
        %1464 = vmatpush2.xpose.msra.mxu0 0.0
        %1465 = vmatprep.subr.mxu0 0.0
        %1466 = vmatpush2.xpose.msra.mxu0 0.0
        %1467 = vmatprep.subr.mxu0 0.0
        %1468 = vmatpush2.xpose.msra.mxu0 0.0
        %1469 = vmatprep.mubr.f32.mxu0 0.0
        %v1470 = vand.u32 %v1159, 4294901760
        %v1471 = vsub.f32 %v1159, %v1470
        %v1472 = vand.u32 %v1471, 4294901760
        %1473 = vmatmul.mubr.f32.gmra.mxu0 %v1472
        %v1474 = vpop.f32.mrf.mxu0
        %v1475 = vadd.f32 %v1399, %v1474
        %v1476 = vpop.f32.mrf.mxu0
        %1477 = vdwg.mxu0
        %1478 = vmatprep.subr.mxu0 0.0
        %1479 = vmatpush1.xpose.msra.mxu0 0.0
        %1480 = vmatprep.subr.mxu0 0.0
        %1481 = vmatpush1.xpose.msra.mxu0 0.0
        %1482 = vmatprep.subr.mxu0 0.0
        %1483 = vmatpush1.xpose.msra.mxu0 0.0
        %1484 = vmatprep.subr.mxu0 0.0
        %1485 = vmatpush1.xpose.msra.mxu0 0.0
        %1486 = vmatprep.subr.mxu0 0.0
        %1487 = vmatpush1.xpose.msra.mxu0 0.0
        %1488 = vmatprep.subr.mxu0 0.0
        %1489 = vmatpush1.xpose.msra.mxu0 0.0
        %1490 = vmatprep.subr.mxu0 0.0
        %1491 = vmatpush1.xpose.msra.mxu0 0.0
        %1492 = vmatprep.subr.mxu0 0.0
        %1493 = vmatpush1.xpose.msra.mxu0 0.0
        %1494 = vmatprep.subr.mxu0 0.0
        %1495 = vmatpush1.xpose.msra.mxu0 0.0
        %1496 = vmatprep.subr.mxu0 0.0
        %1497 = vmatpush1.xpose.msra.mxu0 0.0
        %1498 = vmatprep.subr.mxu0 0.0
        %1499 = vmatpush1.xpose.msra.mxu0 0.0
        %1500 = vmatprep.subr.mxu0 0.0
        %1501 = vmatpush1.xpose.msra.mxu0 0.0
        %1502 = vmatprep.subr.mxu0 0.0
        %1503 = vmatpush1.xpose.msra.mxu0 0.0
        %1504 = vmatprep.subr.mxu0 0.0
        %v1505 = vand.u32 %v1156, 4294901760
        %v1506 = vsub.f32 %v1156, %v1505
        %v1507 = vand.u32 %v1506, 4294901760
        %1508 = vmatpush1.xpose.msra.mxu0 %v1507
        %1509 = vmatprep.subr.mxu0 0.0
        %v1510 = vand.u32 %v1150, 4294901760
        %v1511 = vsub.f32 %v1150, %v1510
        %v1512 = vand.u32 %v1511, 4294901760
        %1513 = vmatpush1.xpose.msra.mxu0 %v1512
        %1514 = vmatprep.subr.mxu0 0.0
        %v1515 = vand.u32 %v1144, 4294901760
        %v1516 = vsub.f32 %v1144, %v1515
        %v1517 = vand.u32 %v1516, 4294901760
        %1518 = vmatpush1.xpose.msra.mxu0 %v1517
        %1519 = vmatprep.subr.mxu0 0.0
        %1520 = vmatpush2.xpose.msra.mxu0 0.0
        %1521 = vmatprep.subr.mxu0 0.0
        %1522 = vmatpush2.xpose.msra.mxu0 0.0
        %1523 = vmatprep.subr.mxu0 0.0
        %1524 = vmatpush2.xpose.msra.mxu0 0.0
        %1525 = vmatprep.subr.mxu0 0.0
        %1526 = vmatpush2.xpose.msra.mxu0 0.0
        %1527 = vmatprep.subr.mxu0 0.0
        %1528 = vmatpush2.xpose.msra.mxu0 0.0
        %1529 = vmatprep.subr.mxu0 0.0
        %1530 = vmatpush2.xpose.msra.mxu0 0.0
        %1531 = vmatprep.subr.mxu0 0.0
        %1532 = vmatpush2.xpose.msra.mxu0 0.0
        %1533 = vmatprep.subr.mxu0 0.0
        %1534 = vmatpush2.xpose.msra.mxu0 0.0
        %1535 = vmatprep.subr.mxu0 0.0
        %1536 = vmatpush2.xpose.msra.mxu0 0.0
        %1537 = vmatprep.subr.mxu0 0.0
        %1538 = vmatpush2.xpose.msra.mxu0 0.0
        %1539 = vmatprep.subr.mxu0 0.0
        %1540 = vmatpush2.xpose.msra.mxu0 0.0
        %1541 = vmatprep.subr.mxu0 0.0
        %1542 = vmatpush2.xpose.msra.mxu0 0.0
        %1543 = vmatprep.subr.mxu0 0.0
        %1544 = vmatpush2.xpose.msra.mxu0 0.0
        %1545 = vmatprep.subr.mxu0 0.0
        %1546 = vmatpush2.xpose.msra.mxu0 0.0
        %1547 = vmatprep.subr.mxu0 0.0
        %1548 = vmatpush2.xpose.msra.mxu0 0.0
        %1549 = vmatprep.subr.mxu0 0.0
        %1550 = vmatpush2.xpose.msra.mxu0 0.0
        %1551 = vmatprep.mubr.f32.mxu0 0.0
        %v1552 = vand.u32 %v1159, 4294901760
        %1553 = vmatmul.mubr.f32.gmra.mxu0 %v1552
        %v1554 = vpop.f32.mrf.mxu0
        %v1555 = vadd.f32 %v1475, %v1554
        %v1556 = vpop.f32.mrf.mxu0
        %1557 = vdwg.mxu0
        %1558 = vmatprep.subr.mxu0 0.0
        %1559 = vmatpush1.xpose.msra.mxu0 0.0
        %1560 = vmatprep.subr.mxu0 0.0
        %1561 = vmatpush1.xpose.msra.mxu0 0.0
        %1562 = vmatprep.subr.mxu0 0.0
        %1563 = vmatpush1.xpose.msra.mxu0 0.0
        %1564 = vmatprep.subr.mxu0 0.0
        %1565 = vmatpush1.xpose.msra.mxu0 0.0
        %1566 = vmatprep.subr.mxu0 0.0
        %1567 = vmatpush1.xpose.msra.mxu0 0.0
        %1568 = vmatprep.subr.mxu0 0.0
        %1569 = vmatpush1.xpose.msra.mxu0 0.0
        %1570 = vmatprep.subr.mxu0 0.0
        %1571 = vmatpush1.xpose.msra.mxu0 0.0
        %1572 = vmatprep.subr.mxu0 0.0
        %1573 = vmatpush1.xpose.msra.mxu0 0.0
        %1574 = vmatprep.subr.mxu0 0.0
        %1575 = vmatpush1.xpose.msra.mxu0 0.0
        %1576 = vmatprep.subr.mxu0 0.0
        %1577 = vmatpush1.xpose.msra.mxu0 0.0
        %1578 = vmatprep.subr.mxu0 0.0
        %1579 = vmatpush1.xpose.msra.mxu0 0.0
        %1580 = vmatprep.subr.mxu0 0.0
        %1581 = vmatpush1.xpose.msra.mxu0 0.0
        %1582 = vmatprep.subr.mxu0 0.0
        %1583 = vmatpush1.xpose.msra.mxu0 0.0
        %1584 = vmatprep.subr.mxu0 0.0
        %v1585 = vand.u32 %v1156, 4294901760
        %1586 = vmatpush1.xpose.msra.mxu0 %v1585
        %1587 = vmatprep.subr.mxu0 0.0
        %v1588 = vand.u32 %v1150, 4294901760
        %1589 = vmatpush1.xpose.msra.mxu0 %v1588
        %1590 = vmatprep.subr.mxu0 0.0
        %v1591 = vand.u32 %v1144, 4294901760
        %1592 = vmatpush1.xpose.msra.mxu0 %v1591
        %1593 = vmatprep.subr.mxu0 0.0
        %1594 = vmatpush2.xpose.msra.mxu0 0.0
        %1595 = vmatprep.subr.mxu0 0.0
        %1596 = vmatpush2.xpose.msra.mxu0 0.0
        %1597 = vmatprep.subr.mxu0 0.0
        %1598 = vmatpush2.xpose.msra.mxu0 0.0
        %1599 = vmatprep.subr.mxu0 0.0
        %1600 = vmatpush2.xpose.msra.mxu0 0.0
        %1601 = vmatprep.subr.mxu0 0.0
        %1602 = vmatpush2.xpose.msra.mxu0 0.0
        %1603 = vmatprep.subr.mxu0 0.0
        %1604 = vmatpush2.xpose.msra.mxu0 0.0
        %1605 = vmatprep.subr.mxu0 0.0
        %1606 = vmatpush2.xpose.msra.mxu0 0.0
        %1607 = vmatprep.subr.mxu0 0.0
        %1608 = vmatpush2.xpose.msra.mxu0 0.0
        %1609 = vmatprep.subr.mxu0 0.0
        %1610 = vmatpush2.xpose.msra.mxu0 0.0
        %1611 = vmatprep.subr.mxu0 0.0
        %1612 = vmatpush2.xpose.msra.mxu0 0.0
        %1613 = vmatprep.subr.mxu0 0.0
        %1614 = vmatpush2.xpose.msra.mxu0 0.0
        %1615 = vmatprep.subr.mxu0 0.0
        %1616 = vmatpush2.xpose.msra.mxu0 0.0
        %1617 = vmatprep.subr.mxu0 0.0
        %1618 = vmatpush2.xpose.msra.mxu0 0.0
        %1619 = vmatprep.subr.mxu0 0.0
        %1620 = vmatpush2.xpose.msra.mxu0 0.0
        %1621 = vmatprep.subr.mxu0 0.0
        %1622 = vmatpush2.xpose.msra.mxu0 0.0
        %1623 = vmatprep.subr.mxu0 0.0
        %1624 = vmatpush2.xpose.msra.mxu0 0.0
        %1625 = vmatprep.mubr.f32.mxu0 0.0
        %v1626 = vand.u32 %v1159, 4294901760
        %1627 = vmatmul.mubr.f32.gmra.mxu0 %v1626
        %v1628 = vpop.f32.mrf.mxu0
        %v1629 = vadd.f32 %v1555, %v1628
        %v1630 = vpop.f32.mrf.mxu0
        %1631 = vdwg.mxu0
        %v1632 = vld [vmem:[#allocation6] sm:$0xff]
        %1633 = vmatprep.subr.mxu0 0.0
        %1634 = vmatpush1.xpose.msra.mxu0 0.0
        %1635 = vmatprep.subr.mxu0 0.0
        %1636 = vmatpush1.xpose.msra.mxu0 0.0
        %1637 = vmatprep.subr.mxu0 0.0
        %1638 = vmatpush1.xpose.msra.mxu0 0.0
        %1639 = vmatprep.subr.mxu0 0.0
        %1640 = vmatpush1.xpose.msra.mxu0 0.0
        %1641 = vmatprep.subr.mxu0 0.0
        %1642 = vmatpush1.xpose.msra.mxu0 0.0
        %1643 = vmatprep.subr.mxu0 0.0
        %1644 = vmatpush1.xpose.msra.mxu0 0.0
        %1645 = vmatprep.subr.mxu0 0.0
        %1646 = vmatpush1.xpose.msra.mxu0 0.0
        %1647 = vmatprep.subr.mxu0 0.0
        %1648 = vmatpush1.xpose.msra.mxu0 0.0
        %1649 = vmatprep.subr.mxu0 0.0
        %1650 = vmatpush1.xpose.msra.mxu0 0.0
        %1651 = vmatprep.subr.mxu0 0.0
        %1652 = vmatpush1.xpose.msra.mxu0 0.0
        %1653 = vmatprep.subr.mxu0 0.0
        %1654 = vmatpush1.xpose.msra.mxu0 0.0
        %1655 = vmatprep.subr.mxu0 0.0
        %1656 = vmatpush1.xpose.msra.mxu0 0.0
        %1657 = vmatprep.subr.mxu0 0.0
        %1658 = vmatpush1.xpose.msra.mxu0 0.0
        %1659 = vmatprep.subr.mxu0 0.0
        %1660 = vmatpush1.xpose.msra.mxu0 0.0
        %1661 = vmatprep.subr.mxu0 0.0
        %1662 = vmatpush1.xpose.msra.mxu0 0.0
        %1663 = vmatprep.subr.mxu0 0.0
        %v1664 = vand.u32 %v1632, 4294901760
        %1665 = vmatpush1.xpose.msra.mxu0 %v1664
        %1666 = vmatprep.subr.mxu0 0.0
        %1667 = vmatpush2.xpose.msra.mxu0 0.0
        %1668 = vmatprep.subr.mxu0 0.0
        %1669 = vmatpush2.xpose.msra.mxu0 0.0
        %1670 = vmatprep.subr.mxu0 0.0
        %1671 = vmatpush2.xpose.msra.mxu0 0.0
        %1672 = vmatprep.subr.mxu0 0.0
        %1673 = vmatpush2.xpose.msra.mxu0 0.0
        %1674 = vmatprep.subr.mxu0 0.0
        %1675 = vmatpush2.xpose.msra.mxu0 0.0
        %1676 = vmatprep.subr.mxu0 0.0
        %1677 = vmatpush2.xpose.msra.mxu0 0.0
        %1678 = vmatprep.subr.mxu0 0.0
        %1679 = vmatpush2.xpose.msra.mxu0 0.0
        %1680 = vmatprep.subr.mxu0 0.0
        %1681 = vmatpush2.xpose.msra.mxu0 0.0
        %1682 = vmatprep.subr.mxu0 0.0
        %1683 = vmatpush2.xpose.msra.mxu0 0.0
        %1684 = vmatprep.subr.mxu0 0.0
        %1685 = vmatpush2.xpose.msra.mxu0 0.0
        %1686 = vmatprep.subr.mxu0 0.0
        %1687 = vmatpush2.xpose.msra.mxu0 0.0
        %1688 = vmatprep.subr.mxu0 0.0
        %1689 = vmatpush2.xpose.msra.mxu0 0.0
        %1690 = vmatprep.subr.mxu0 0.0
        %1691 = vmatpush2.xpose.msra.mxu0 0.0
        %1692 = vmatprep.subr.mxu0 0.0
        %1693 = vmatpush2.xpose.msra.mxu0 0.0
        %1694 = vmatprep.subr.mxu0 0.0
        %1695 = vmatpush2.xpose.msra.mxu0 0.0
        %1696 = vmatprep.subr.mxu0 0.0
        %1697 = vmatpush2.xpose.msra.mxu0 0.0
        %1698 = vmatprep.mubr.f32.mxu0 0.0
        %v1699 = vand.u32 %v1144, 4294901760
        %v1700 = vsub.f32 %v1144, %v1699
        %v1701 = vand.u32 %v1700, 4294901760
        %v1702 = vsub.f32 %v1700, %v1701
        %v1703 = vand.u32 %v1702, 4294901760
        %1704 = vmatmul.mubr.f32.gmra.mxu0 %v1703
        %v1705 = vpop.f32.mrf.mxu0
        %v1706 = vadd.f32 0.0, %v1705
        %v1707 = vpop.f32.mrf.mxu0
        %1708 = vmatprep.mubr.f32.mxu0 0.0
        %v1709 = vand.u32 %v1150, 4294901760
        %v1710 = vsub.f32 %v1150, %v1709
        %v1711 = vand.u32 %v1710, 4294901760
        %v1712 = vsub.f32 %v1710, %v1711
        %v1713 = vand.u32 %v1712, 4294901760
        %1714 = vmatmul.mubr.f32.gmra.mxu0 %v1713
        %v1715 = vpop.f32.mrf.mxu0
        %v1716 = vadd.f32 0.0, %v1715
        %v1717 = vpop.f32.mrf.mxu0
        %1718 = vmatprep.mubr.f32.mxu0 0.0
        %v1719 = vand.u32 %v1156, 4294901760
        %v1720 = vsub.f32 %v1156, %v1719
        %v1721 = vand.u32 %v1720, 4294901760
        %v1722 = vsub.f32 %v1720, %v1721
        %v1723 = vand.u32 %v1722, 4294901760
        %1724 = vmatmul.mubr.f32.gmra.mxu0 %v1723
        %v1725 = vpop.f32.mrf.mxu0
        %v1726 = vadd.f32 0.0, %v1725
        %v1727 = vpop.f32.mrf.mxu0
        %1728 = vdwg.mxu0
        %1729 = vmatprep.subr.mxu0 0.0
        %1730 = vmatpush1.xpose.msra.mxu0 0.0
        %1731 = vmatprep.subr.mxu0 0.0
        %1732 = vmatpush1.xpose.msra.mxu0 0.0
        %1733 = vmatprep.subr.mxu0 0.0
        %1734 = vmatpush1.xpose.msra.mxu0 0.0
        %1735 = vmatprep.subr.mxu0 0.0
        %1736 = vmatpush1.xpose.msra.mxu0 0.0
        %1737 = vmatprep.subr.mxu0 0.0
        %1738 = vmatpush1.xpose.msra.mxu0 0.0
        %1739 = vmatprep.subr.mxu0 0.0
        %1740 = vmatpush1.xpose.msra.mxu0 0.0
        %1741 = vmatprep.subr.mxu0 0.0
        %1742 = vmatpush1.xpose.msra.mxu0 0.0
        %1743 = vmatprep.subr.mxu0 0.0
        %1744 = vmatpush1.xpose.msra.mxu0 0.0
        %1745 = vmatprep.subr.mxu0 0.0
        %1746 = vmatpush1.xpose.msra.mxu0 0.0
        %1747 = vmatprep.subr.mxu0 0.0
        %1748 = vmatpush1.xpose.msra.mxu0 0.0
        %1749 = vmatprep.subr.mxu0 0.0
        %1750 = vmatpush1.xpose.msra.mxu0 0.0
        %1751 = vmatprep.subr.mxu0 0.0
        %1752 = vmatpush1.xpose.msra.mxu0 0.0
        %1753 = vmatprep.subr.mxu0 0.0
        %1754 = vmatpush1.xpose.msra.mxu0 0.0
        %1755 = vmatprep.subr.mxu0 0.0
        %1756 = vmatpush1.xpose.msra.mxu0 0.0
        %1757 = vmatprep.subr.mxu0 0.0
        %1758 = vmatpush1.xpose.msra.mxu0 0.0
        %1759 = vmatprep.subr.mxu0 0.0
        %v1760 = vand.u32 %v1632, 4294901760
        %v1761 = vsub.f32 %v1632, %v1760
        %v1762 = vand.u32 %v1761, 4294901760
        %v1763 = vsub.f32 %v1761, %v1762
        %v1764 = vand.u32 %v1763, 4294901760
        %1765 = vmatpush1.xpose.msra.mxu0 %v1764
        %1766 = vmatprep.subr.mxu0 0.0
        %1767 = vmatpush2.xpose.msra.mxu0 0.0
        %1768 = vmatprep.subr.mxu0 0.0
        %1769 = vmatpush2.xpose.msra.mxu0 0.0
        %1770 = vmatprep.subr.mxu0 0.0
        %1771 = vmatpush2.xpose.msra.mxu0 0.0
        %1772 = vmatprep.subr.mxu0 0.0
        %1773 = vmatpush2.xpose.msra.mxu0 0.0
        %1774 = vmatprep.subr.mxu0 0.0
        %1775 = vmatpush2.xpose.msra.mxu0 0.0
        %1776 = vmatprep.subr.mxu0 0.0
        %1777 = vmatpush2.xpose.msra.mxu0 0.0
        %1778 = vmatprep.subr.mxu0 0.0
        %1779 = vmatpush2.xpose.msra.mxu0 0.0
        %1780 = vmatprep.subr.mxu0 0.0
        %1781 = vmatpush2.xpose.msra.mxu0 0.0
        %1782 = vmatprep.subr.mxu0 0.0
        %1783 = vmatpush2.xpose.msra.mxu0 0.0
        %1784 = vmatprep.subr.mxu0 0.0
        %1785 = vmatpush2.xpose.msra.mxu0 0.0
        %1786 = vmatprep.subr.mxu0 0.0
        %1787 = vmatpush2.xpose.msra.mxu0 0.0
        %1788 = vmatprep.subr.mxu0 0.0
        %1789 = vmatpush2.xpose.msra.mxu0 0.0
        %1790 = vmatprep.subr.mxu0 0.0
        %1791 = vmatpush2.xpose.msra.mxu0 0.0
        %1792 = vmatprep.subr.mxu0 0.0
        %1793 = vmatpush2.xpose.msra.mxu0 0.0
        %1794 = vmatprep.subr.mxu0 0.0
        %1795 = vmatpush2.xpose.msra.mxu0 0.0
        %1796 = vmatprep.subr.mxu0 0.0
        %1797 = vmatpush2.xpose.msra.mxu0 0.0
        %1798 = vmatprep.mubr.f32.mxu0 0.0
        %v1799 = vand.u32 %v1144, 4294901760
        %1800 = vmatmul.mubr.f32.gmra.mxu0 %v1799
        %v1801 = vpop.f32.mrf.mxu0
        %v1802 = vadd.f32 %v1706, %v1801
        %v1803 = vpop.f32.mrf.mxu0
        %1804 = vmatprep.mubr.f32.mxu0 0.0
        %v1805 = vand.u32 %v1150, 4294901760
        %1806 = vmatmul.mubr.f32.gmra.mxu0 %v1805
        %v1807 = vpop.f32.mrf.mxu0
        %v1808 = vadd.f32 %v1716, %v1807
        %v1809 = vpop.f32.mrf.mxu0
        %1810 = vmatprep.mubr.f32.mxu0 0.0
        %v1811 = vand.u32 %v1156, 4294901760
        %1812 = vmatmul.mubr.f32.gmra.mxu0 %v1811
        %v1813 = vpop.f32.mrf.mxu0
        %v1814 = vadd.f32 %v1726, %v1813
        %v1815 = vpop.f32.mrf.mxu0
        %1816 = vdwg.mxu0
        %1817 = vmatprep.subr.mxu0 0.0
        %1818 = vmatpush1.xpose.msra.mxu0 0.0
        %1819 = vmatprep.subr.mxu0 0.0
        %1820 = vmatpush1.xpose.msra.mxu0 0.0
        %1821 = vmatprep.subr.mxu0 0.0
        %1822 = vmatpush1.xpose.msra.mxu0 0.0
        %1823 = vmatprep.subr.mxu0 0.0
        %1824 = vmatpush1.xpose.msra.mxu0 0.0
        %1825 = vmatprep.subr.mxu0 0.0
        %1826 = vmatpush1.xpose.msra.mxu0 0.0
        %1827 = vmatprep.subr.mxu0 0.0
        %1828 = vmatpush1.xpose.msra.mxu0 0.0
        %1829 = vmatprep.subr.mxu0 0.0
        %1830 = vmatpush1.xpose.msra.mxu0 0.0
        %1831 = vmatprep.subr.mxu0 0.0
        %1832 = vmatpush1.xpose.msra.mxu0 0.0
        %1833 = vmatprep.subr.mxu0 0.0
        %1834 = vmatpush1.xpose.msra.mxu0 0.0
        %1835 = vmatprep.subr.mxu0 0.0
        %1836 = vmatpush1.xpose.msra.mxu0 0.0
        %1837 = vmatprep.subr.mxu0 0.0
        %1838 = vmatpush1.xpose.msra.mxu0 0.0
        %1839 = vmatprep.subr.mxu0 0.0
        %1840 = vmatpush1.xpose.msra.mxu0 0.0
        %1841 = vmatprep.subr.mxu0 0.0
        %1842 = vmatpush1.xpose.msra.mxu0 0.0
        %1843 = vmatprep.subr.mxu0 0.0
        %1844 = vmatpush1.xpose.msra.mxu0 0.0
        %1845 = vmatprep.subr.mxu0 0.0
        %1846 = vmatpush1.xpose.msra.mxu0 0.0
        %1847 = vmatprep.subr.mxu0 0.0
        %v1848 = vand.u32 %v1632, 4294901760
        %v1849 = vsub.f32 %v1632, %v1848
        %1850 = vmatpush1.xpose.msra.mxu0 %v1849
        %1851 = vmatprep.subr.mxu0 0.0
        %1852 = vmatpush2.xpose.msra.mxu0 0.0
        %1853 = vmatprep.subr.mxu0 0.0
        %1854 = vmatpush2.xpose.msra.mxu0 0.0
        %1855 = vmatprep.subr.mxu0 0.0
        %1856 = vmatpush2.xpose.msra.mxu0 0.0
        %1857 = vmatprep.subr.mxu0 0.0
        %1858 = vmatpush2.xpose.msra.mxu0 0.0
        %1859 = vmatprep.subr.mxu0 0.0
        %1860 = vmatpush2.xpose.msra.mxu0 0.0
        %1861 = vmatprep.subr.mxu0 0.0
        %1862 = vmatpush2.xpose.msra.mxu0 0.0
        %1863 = vmatprep.subr.mxu0 0.0
        %1864 = vmatpush2.xpose.msra.mxu0 0.0
        %1865 = vmatprep.subr.mxu0 0.0
        %1866 = vmatpush2.xpose.msra.mxu0 0.0
        %1867 = vmatprep.subr.mxu0 0.0
        %1868 = vmatpush2.xpose.msra.mxu0 0.0
        %1869 = vmatprep.subr.mxu0 0.0
        %1870 = vmatpush2.xpose.msra.mxu0 0.0
        %1871 = vmatprep.subr.mxu0 0.0
        %1872 = vmatpush2.xpose.msra.mxu0 0.0
        %1873 = vmatprep.subr.mxu0 0.0
        %1874 = vmatpush2.xpose.msra.mxu0 0.0
        %1875 = vmatprep.subr.mxu0 0.0
        %1876 = vmatpush2.xpose.msra.mxu0 0.0
        %1877 = vmatprep.subr.mxu0 0.0
        %1878 = vmatpush2.xpose.msra.mxu0 0.0
        %1879 = vmatprep.subr.mxu0 0.0
        %1880 = vmatpush2.xpose.msra.mxu0 0.0
        %1881 = vmatprep.subr.mxu0 0.0
        %1882 = vmatpush2.xpose.msra.mxu0 0.0
        %1883 = vmatprep.mubr.f32.mxu0 0.0
        %v1884 = vand.u32 %v1144, 4294901760
        %v1885 = vsub.f32 %v1144, %v1884
        %1886 = vmatmul.mubr.f32.gmra.mxu0 %v1885
        %v1887 = vpop.f32.mrf.mxu0
        %v1888 = vadd.f32 %v1802, %v1887
        %v1889 = vpop.f32.mrf.mxu0
        %1890 = vmatprep.mubr.f32.mxu0 0.0
        %v1891 = vand.u32 %v1150, 4294901760
        %v1892 = vsub.f32 %v1150, %v1891
        %1893 = vmatmul.mubr.f32.gmra.mxu0 %v1892
        %v1894 = vpop.f32.mrf.mxu0
        %v1895 = vadd.f32 %v1808, %v1894
        %v1896 = vpop.f32.mrf.mxu0
        %1897 = vmatprep.mubr.f32.mxu0 0.0
        %v1898 = vand.u32 %v1156, 4294901760
        %v1899 = vsub.f32 %v1156, %v1898
        %1900 = vmatmul.mubr.f32.gmra.mxu0 %v1899
        %v1901 = vpop.f32.mrf.mxu0
        %v1902 = vadd.f32 %v1814, %v1901
        %v1903 = vpop.f32.mrf.mxu0
        %1904 = vdwg.mxu0
        %1905 = vmatprep.subr.mxu0 0.0
        %1906 = vmatpush1.xpose.msra.mxu0 0.0
        %1907 = vmatprep.subr.mxu0 0.0
        %1908 = vmatpush1.xpose.msra.mxu0 0.0
        %1909 = vmatprep.subr.mxu0 0.0
        %1910 = vmatpush1.xpose.msra.mxu0 0.0
        %1911 = vmatprep.subr.mxu0 0.0
        %1912 = vmatpush1.xpose.msra.mxu0 0.0
        %1913 = vmatprep.subr.mxu0 0.0
        %1914 = vmatpush1.xpose.msra.mxu0 0.0
        %1915 = vmatprep.subr.mxu0 0.0
        %1916 = vmatpush1.xpose.msra.mxu0 0.0
        %1917 = vmatprep.subr.mxu0 0.0
        %1918 = vmatpush1.xpose.msra.mxu0 0.0
        %1919 = vmatprep.subr.mxu0 0.0
        %1920 = vmatpush1.xpose.msra.mxu0 0.0
        %1921 = vmatprep.subr.mxu0 0.0
        %1922 = vmatpush1.xpose.msra.mxu0 0.0
        %1923 = vmatprep.subr.mxu0 0.0
        %1924 = vmatpush1.xpose.msra.mxu0 0.0
        %1925 = vmatprep.subr.mxu0 0.0
        %1926 = vmatpush1.xpose.msra.mxu0 0.0
        %1927 = vmatprep.subr.mxu0 0.0
        %1928 = vmatpush1.xpose.msra.mxu0 0.0
        %1929 = vmatprep.subr.mxu0 0.0
        %1930 = vmatpush1.xpose.msra.mxu0 0.0
        %1931 = vmatprep.subr.mxu0 0.0
        %1932 = vmatpush1.xpose.msra.mxu0 0.0
        %1933 = vmatprep.subr.mxu0 0.0
        %1934 = vmatpush1.xpose.msra.mxu0 0.0
        %1935 = vmatprep.subr.mxu0 0.0
        %v1936 = vand.u32 %v1632, 4294901760
        %1937 = vmatpush1.xpose.msra.mxu0 %v1936
        %1938 = vmatprep.subr.mxu0 0.0
        %1939 = vmatpush2.xpose.msra.mxu0 0.0
        %1940 = vmatprep.subr.mxu0 0.0
        %1941 = vmatpush2.xpose.msra.mxu0 0.0
        %1942 = vmatprep.subr.mxu0 0.0
        %1943 = vmatpush2.xpose.msra.mxu0 0.0
        %1944 = vmatprep.subr.mxu0 0.0
        %1945 = vmatpush2.xpose.msra.mxu0 0.0
        %1946 = vmatprep.subr.mxu0 0.0
        %1947 = vmatpush2.xpose.msra.mxu0 0.0
        %1948 = vmatprep.subr.mxu0 0.0
        %1949 = vmatpush2.xpose.msra.mxu0 0.0
        %1950 = vmatprep.subr.mxu0 0.0
        %1951 = vmatpush2.xpose.msra.mxu0 0.0
        %1952 = vmatprep.subr.mxu0 0.0
        %1953 = vmatpush2.xpose.msra.mxu0 0.0
        %1954 = vmatprep.subr.mxu0 0.0
        %1955 = vmatpush2.xpose.msra.mxu0 0.0
        %1956 = vmatprep.subr.mxu0 0.0
        %1957 = vmatpush2.xpose.msra.mxu0 0.0
        %1958 = vmatprep.subr.mxu0 0.0
        %1959 = vmatpush2.xpose.msra.mxu0 0.0
        %1960 = vmatprep.subr.mxu0 0.0
        %1961 = vmatpush2.xpose.msra.mxu0 0.0
        %1962 = vmatprep.subr.mxu0 0.0
        %1963 = vmatpush2.xpose.msra.mxu0 0.0
        %1964 = vmatprep.subr.mxu0 0.0
        %1965 = vmatpush2.xpose.msra.mxu0 0.0
        %1966 = vmatprep.subr.mxu0 0.0
        %1967 = vmatpush2.xpose.msra.mxu0 0.0
        %1968 = vmatprep.subr.mxu0 0.0
        %1969 = vmatpush2.xpose.msra.mxu0 0.0
        %1970 = vmatprep.mubr.f32.mxu0 0.0
        %v1971 = vand.u32 %v1144, 4294901760
        %v1972 = vsub.f32 %v1144, %v1971
        %v1973 = vand.u32 %v1972, 4294901760
        %1974 = vmatmul.mubr.f32.gmra.mxu0 %v1973
        %v1975 = vpop.f32.mrf.mxu0
        %v1976 = vadd.f32 %v1888, %v1975
        %v1977 = vpop.f32.mrf.mxu0
        %1978 = vmatprep.mubr.f32.mxu0 0.0
        %v1979 = vand.u32 %v1150, 4294901760
        %v1980 = vsub.f32 %v1150, %v1979
        %v1981 = vand.u32 %v1980, 4294901760
        %1982 = vmatmul.mubr.f32.gmra.mxu0 %v1981
        %v1983 = vpop.f32.mrf.mxu0
        %v1984 = vadd.f32 %v1895, %v1983
        %v1985 = vpop.f32.mrf.mxu0
        %1986 = vmatprep.mubr.f32.mxu0 0.0
        %v1987 = vand.u32 %v1156, 4294901760
        %v1988 = vsub.f32 %v1156, %v1987
        %v1989 = vand.u32 %v1988, 4294901760
        %1990 = vmatmul.mubr.f32.gmra.mxu0 %v1989
        %v1991 = vpop.f32.mrf.mxu0
        %v1992 = vadd.f32 %v1902, %v1991
        %v1993 = vpop.f32.mrf.mxu0
        %1994 = vdwg.mxu0
        %1995 = vmatprep.subr.mxu0 0.0
        %1996 = vmatpush1.xpose.msra.mxu0 0.0
        %1997 = vmatprep.subr.mxu0 0.0
        %1998 = vmatpush1.xpose.msra.mxu0 0.0
        %1999 = vmatprep.subr.mxu0 0.0
        %2000 = vmatpush1.xpose.msra.mxu0 0.0
        %2001 = vmatprep.subr.mxu0 0.0
        %2002 = vmatpush1.xpose.msra.mxu0 0.0
        %2003 = vmatprep.subr.mxu0 0.0
        %2004 = vmatpush1.xpose.msra.mxu0 0.0
        %2005 = vmatprep.subr.mxu0 0.0
        %2006 = vmatpush1.xpose.msra.mxu0 0.0
        %2007 = vmatprep.subr.mxu0 0.0
        %2008 = vmatpush1.xpose.msra.mxu0 0.0
        %2009 = vmatprep.subr.mxu0 0.0
        %2010 = vmatpush1.xpose.msra.mxu0 0.0
        %2011 = vmatprep.subr.mxu0 0.0
        %2012 = vmatpush1.xpose.msra.mxu0 0.0
        %2013 = vmatprep.subr.mxu0 0.0
        %2014 = vmatpush1.xpose.msra.mxu0 0.0
        %2015 = vmatprep.subr.mxu0 0.0
        %2016 = vmatpush1.xpose.msra.mxu0 0.0
        %2017 = vmatprep.subr.mxu0 0.0
        %2018 = vmatpush1.xpose.msra.mxu0 0.0
        %2019 = vmatprep.subr.mxu0 0.0
        %2020 = vmatpush1.xpose.msra.mxu0 0.0
        %2021 = vmatprep.subr.mxu0 0.0
        %2022 = vmatpush1.xpose.msra.mxu0 0.0
        %2023 = vmatprep.subr.mxu0 0.0
        %2024 = vmatpush1.xpose.msra.mxu0 0.0
        %2025 = vmatprep.subr.mxu0 0.0
        %v2026 = vand.u32 %v1632, 4294901760
        %v2027 = vsub.f32 %v1632, %v2026
        %v2028 = vand.u32 %v2027, 4294901760
        %2029 = vmatpush1.xpose.msra.mxu0 %v2028
        %2030 = vmatprep.subr.mxu0 0.0
        %2031 = vmatpush2.xpose.msra.mxu0 0.0
        %2032 = vmatprep.subr.mxu0 0.0
        %2033 = vmatpush2.xpose.msra.mxu0 0.0
        %2034 = vmatprep.subr.mxu0 0.0
        %2035 = vmatpush2.xpose.msra.mxu0 0.0
        %2036 = vmatprep.subr.mxu0 0.0
        %2037 = vmatpush2.xpose.msra.mxu0 0.0
        %2038 = vmatprep.subr.mxu0 0.0
        %2039 = vmatpush2.xpose.msra.mxu0 0.0
        %2040 = vmatprep.subr.mxu0 0.0
        %2041 = vmatpush2.xpose.msra.mxu0 0.0
        %2042 = vmatprep.subr.mxu0 0.0
        %2043 = vmatpush2.xpose.msra.mxu0 0.0
        %2044 = vmatprep.subr.mxu0 0.0
        %2045 = vmatpush2.xpose.msra.mxu0 0.0
        %2046 = vmatprep.subr.mxu0 0.0
        %2047 = vmatpush2.xpose.msra.mxu0 0.0
        %2048 = vmatprep.subr.mxu0 0.0
        %2049 = vmatpush2.xpose.msra.mxu0 0.0
        %2050 = vmatprep.subr.mxu0 0.0
        %2051 = vmatpush2.xpose.msra.mxu0 0.0
        %2052 = vmatprep.subr.mxu0 0.0
        %2053 = vmatpush2.xpose.msra.mxu0 0.0
        %2054 = vmatprep.subr.mxu0 0.0
        %2055 = vmatpush2.xpose.msra.mxu0 0.0
        %2056 = vmatprep.subr.mxu0 0.0
        %2057 = vmatpush2.xpose.msra.mxu0 0.0
        %2058 = vmatprep.subr.mxu0 0.0
        %2059 = vmatpush2.xpose.msra.mxu0 0.0
        %2060 = vmatprep.subr.mxu0 0.0
        %2061 = vmatpush2.xpose.msra.mxu0 0.0
        %2062 = vmatprep.mubr.f32.mxu0 0.0
        %v2063 = vand.u32 %v1144, 4294901760
        %2064 = vmatmul.mubr.f32.gmra.mxu0 %v2063
        %v2065 = vpop.f32.mrf.mxu0
        %v2066 = vadd.f32 %v1976, %v2065
        %v2067 = vpop.f32.mrf.mxu0
        %2068 = vmatprep.mubr.f32.mxu0 0.0
        %v2069 = vand.u32 %v1150, 4294901760
        %2070 = vmatmul.mubr.f32.gmra.mxu0 %v2069
        %v2071 = vpop.f32.mrf.mxu0
        %v2072 = vadd.f32 %v1984, %v2071
        %v2073 = vpop.f32.mrf.mxu0
        %2074 = vmatprep.mubr.f32.mxu0 0.0
        %v2075 = vand.u32 %v1156, 4294901760
        %2076 = vmatmul.mubr.f32.gmra.mxu0 %v2075
        %v2077 = vpop.f32.mrf.mxu0
        %v2078 = vadd.f32 %v1992, %v2077
        %v2079 = vpop.f32.mrf.mxu0
        %2080 = vdwg.mxu0
        %2081 = vmatprep.subr.mxu0 0.0
        %2082 = vmatpush1.xpose.msra.mxu0 0.0
        %2083 = vmatprep.subr.mxu0 0.0
        %2084 = vmatpush1.xpose.msra.mxu0 0.0
        %2085 = vmatprep.subr.mxu0 0.0
        %2086 = vmatpush1.xpose.msra.mxu0 0.0
        %2087 = vmatprep.subr.mxu0 0.0
        %2088 = vmatpush1.xpose.msra.mxu0 0.0
        %2089 = vmatprep.subr.mxu0 0.0
        %2090 = vmatpush1.xpose.msra.mxu0 0.0
        %2091 = vmatprep.subr.mxu0 0.0
        %2092 = vmatpush1.xpose.msra.mxu0 0.0
        %2093 = vmatprep.subr.mxu0 0.0
        %2094 = vmatpush1.xpose.msra.mxu0 0.0
        %2095 = vmatprep.subr.mxu0 0.0
        %2096 = vmatpush1.xpose.msra.mxu0 0.0
        %2097 = vmatprep.subr.mxu0 0.0
        %2098 = vmatpush1.xpose.msra.mxu0 0.0
        %2099 = vmatprep.subr.mxu0 0.0
        %2100 = vmatpush1.xpose.msra.mxu0 0.0
        %2101 = vmatprep.subr.mxu0 0.0
        %2102 = vmatpush1.xpose.msra.mxu0 0.0
        %2103 = vmatprep.subr.mxu0 0.0
        %2104 = vmatpush1.xpose.msra.mxu0 0.0
        %2105 = vmatprep.subr.mxu0 0.0
        %2106 = vmatpush1.xpose.msra.mxu0 0.0
        %2107 = vmatprep.subr.mxu0 0.0
        %2108 = vmatpush1.xpose.msra.mxu0 0.0
        %2109 = vmatprep.subr.mxu0 0.0
        %2110 = vmatpush1.xpose.msra.mxu0 0.0
        %2111 = vmatprep.subr.mxu0 0.0
        %v2112 = vand.u32 %v1632, 4294901760
        %2113 = vmatpush1.xpose.msra.mxu0 %v2112
        %2114 = vmatprep.subr.mxu0 0.0
        %2115 = vmatpush2.xpose.msra.mxu0 0.0
        %2116 = vmatprep.subr.mxu0 0.0
        %2117 = vmatpush2.xpose.msra.mxu0 0.0
        %2118 = vmatprep.subr.mxu0 0.0
        %2119 = vmatpush2.xpose.msra.mxu0 0.0
        %2120 = vmatprep.subr.mxu0 0.0
        %2121 = vmatpush2.xpose.msra.mxu0 0.0
        %2122 = vmatprep.subr.mxu0 0.0
        %2123 = vmatpush2.xpose.msra.mxu0 0.0
        %2124 = vmatprep.subr.mxu0 0.0
        %2125 = vmatpush2.xpose.msra.mxu0 0.0
        %2126 = vmatprep.subr.mxu0 0.0
        %2127 = vmatpush2.xpose.msra.mxu0 0.0
        %2128 = vmatprep.subr.mxu0 0.0
        %2129 = vmatpush2.xpose.msra.mxu0 0.0
        %2130 = vmatprep.subr.mxu0 0.0
        %2131 = vmatpush2.xpose.msra.mxu0 0.0
        %2132 = vmatprep.subr.mxu0 0.0
        %2133 = vmatpush2.xpose.msra.mxu0 0.0
        %2134 = vmatprep.subr.mxu0 0.0
        %2135 = vmatpush2.xpose.msra.mxu0 0.0
        %2136 = vmatprep.subr.mxu0 0.0
        %2137 = vmatpush2.xpose.msra.mxu0 0.0
        %2138 = vmatprep.subr.mxu0 0.0
        %2139 = vmatpush2.xpose.msra.mxu0 0.0
        %2140 = vmatprep.subr.mxu0 0.0
        %2141 = vmatpush2.xpose.msra.mxu0 0.0
        %2142 = vmatprep.subr.mxu0 0.0
        %2143 = vmatpush2.xpose.msra.mxu0 0.0
        %2144 = vmatprep.subr.mxu0 0.0
        %2145 = vmatpush2.xpose.msra.mxu0 0.0
        %2146 = vmatprep.mubr.f32.mxu0 0.0
        %v2147 = vand.u32 %v1144, 4294901760
        %2148 = vmatmul.mubr.f32.gmra.mxu0 %v2147
        %v2149 = vpop.f32.mrf.mxu0
        %v2150 = vadd.f32 %v2066, %v2149
        %v2151 = vpop.f32.mrf.mxu0
        %2152 = vmatprep.mubr.f32.mxu0 0.0
        %v2153 = vand.u32 %v1150, 4294901760
        %2154 = vmatmul.mubr.f32.gmra.mxu0 %v2153
        %v2155 = vpop.f32.mrf.mxu0
        %v2156 = vadd.f32 %v2072, %v2155
        %v2157 = vpop.f32.mrf.mxu0
        %2158 = vmatprep.mubr.f32.mxu0 0.0
        %v2159 = vand.u32 %v1156, 4294901760
        %2160 = vmatmul.mubr.f32.gmra.mxu0 %v2159
        %v2161 = vpop.f32.mrf.mxu0
        %v2162 = vadd.f32 %v2078, %v2161
        %v2163 = vpop.f32.mrf.mxu0
        %2164 = vdwg.mxu0
        %v2165 = vld [vmem:[#allocation7] sm:$0x1]
        %v2166 = vld [vmem:[#allocation10] sm:$0x1]
        %v2167 = vld [vmem:[%s557] sm:$0xff]
        %v2168 = vld [vmem:[%s557 + $0x8] sm:$0xff]
        %v2169 = vld [vmem:[%s557 + $0x10] sm:$0xff]
        %v2170 = vlaneseq
        %v2171 = vand.u32 %v2170, 127
        %v2172 = vld [vmem:[%s552] sm:$0xff]
        %v2173 = vld [vmem:[%s552 + $0x8] sm:$0xff]
        %v2174 = vld [vmem:[%s552 + $0x10] sm:$0xff]
        %vm2175 = vcmp.gt.f32.partialorder %v2172, 0.0
        %vm2176 = vcmp.gt.f32.partialorder %v2173, 0.0
        %vm2177 = vcmp.gt.f32.partialorder %v2174, 0.0
        %2179 = vset.pattern.permute.xlu0 0
        %2180 = vperm.xlu0 %2179, %v2150
        %v2181 = vpop.permute.xlu0 %2180
        %2184 = vset.pattern.permute.xlu0 0
        %2185 = vperm.xlu0 %2184, %v2156
        %v2186 = vpop.permute.xlu0 %2185
        %2189 = vset.pattern.permute.xlu0 0
        %2190 = vperm.xlu0 %2189, %v2162
        %v2191 = vpop.permute.xlu0 %2190
        %v2193 = vlaneseq
        %v2194 = vshrl.u32 %v2193, 7
        %v2195 = vsub.s32 0, %v2194
        %v2196 = vrot.slane %v1629, %v2195
        %v2197 = vadd.f32 %v2181, %v2196
        %v2198 = vadd.f32 %v2186, %v2196
        %v2199 = vadd.f32 %v2191, %v2196
        %vm2200 = vcmp.gt.f32.partialorder %v2197, 0.0
        %vm2201 = vcmp.gt.f32.partialorder %v2198, 0.0
        %vm2202 = vcmp.gt.f32.partialorder %v2199, 0.0
        %v2203 = vmul.f32 %v2197, 0.2
        %v2204 = vmul.f32 %v2198, 0.2
        %v2205 = vmul.f32 %v2199, 0.2
        %v2206 = vsel %vm2200, %v2197, %v2203
        %v2207 = vsel %vm2201, %v2198, %v2204
        %v2208 = vsel %vm2202, %v2199, %v2205
        %v2209 = vsel %vm2175, %v2206, -1e+30
        %v2210 = vsel %vm2176, %v2207, -1e+30
        %v2211 = vsel %vm2177, %v2208, -1e+30
        %vm2212 = vcmask 195584
        %v2213 = vsel %vm2212, %v2209, -inf
        %2214 = vmax.xlane.f32.xlu0 %v2213
        %v2215 = vpop.xlane.xlu0 %2214
        %v2216 = vsel %vm2212, %v2210, -inf
        %2217 = vmax.xlane.f32.xlu0 %v2216
        %v2218 = vpop.xlane.xlu0 %2217
        %v2219 = vsel %vm2212, %v2211, -inf
        %2220 = vmax.xlane.f32.xlu0 %v2219
        %v2221 = vpop.xlane.xlu0 %2220
        %v2222 = vsub.f32 %v2209, %v2215
        %v2223 = vsub.f32 %v2210, %v2218
        %v2224 = vsub.f32 %v2211, %v2221
        %v2225 = vmul.f32 %v2222, 1.442695
        %v2226 = vpow.pop %v2225
        %v2227 = vmul.f32 %v2223, 1.442695
        %v2228 = vpow.pop %v2227
        %v2229 = vmul.f32 %v2224, 1.442695
        %v2230 = vpow.pop %v2229
        %v2231 = vsel %vm2175, %v2226, 0.0
        %v2232 = vsel %vm2176, %v2228, 0.0
        %v2233 = vsel %vm2177, %v2230, 0.0
        %v2234 = vsel %vm2212, %v2231, 0.0
        %2235 = vadd.xlane.f32.xlu0 %v2234
        %v2236 = vpop.xlane.xlu0 %2235
        %v2237 = vsel %vm2212, %v2232, 0.0
        %2238 = vadd.xlane.f32.xlu0 %v2237
        %v2239 = vpop.xlane.xlu0 %2238
        %v2240 = vsel %vm2212, %v2233, 0.0
        %2241 = vadd.xlane.f32.xlu0 %v2240
        %v2242 = vpop.xlane.xlu0 %2241
        %v2243 = vmax.f32 %v2236, 1e-09
        %v2244 = vmax.f32 %v2239, 1e-09
        %v2245 = vmax.f32 %v2242, 1e-09
        %v2246 = vrcp.pop %v2243
        %v2247 = vrcp.pop %v2244
        %v2248 = vrcp.pop %v2245
        %v2249 = vmul.f32 %v2231, %v2246
        %v2250 = vmul.f32 %v2232, %v2247
        %v2251 = vmul.f32 %v2233, %v2248
        %vm2252 = vcmp.ge.s32.totalorder %v2171, 0
        %vm2253 = vcmp.lt.s32.totalorder %v2171, 16
        %vm2254 = vmand %vm2252, %vm2253
        %v2255 = vsel %vm2254, 1, 0
        %vm2256 = vcmp.eq.s32.totalorder %v2255, 1
        %v2257 = vsel %vm2256, %v1144, 0.0
        %v2258 = vsel %vm2256, %v1150, 0.0
        %v2259 = vsel %vm2256, %v1156, 0.0
        %2260 = vset.pattern.permute.xlu0 1
        %2261 = vperm.xlu0 %2260, %v2150
        %v2262 = vpop.permute.xlu0 %2261
        %2264 = vset.pattern.permute.xlu0 1
        %2265 = vperm.xlu0 %2264, %v2156
        %v2266 = vpop.permute.xlu0 %2265
        %2268 = vset.pattern.permute.xlu0 1
        %2269 = vperm.xlu0 %2268, %v2162
        %v2270 = vpop.permute.xlu0 %2269
        %v2272 = vlaneseq
        %v2273 = vshrl.u32 %v2272, 7
        %v2274 = vsub.s32 1, %v2273
        %v2275 = vrot.slane %v1629, %v2274
        %v2276 = vadd.f32 %v2262, %v2275
        %v2277 = vadd.f32 %v2266, %v2275
        %v2278 = vadd.f32 %v2270, %v2275
        %vm2279 = vcmp.gt.f32.partialorder %v2276, 0.0
        %vm2280 = vcmp.gt.f32.partialorder %v2277, 0.0
        %vm2281 = vcmp.gt.f32.partialorder %v2278, 0.0
        %v2282 = vmul.f32 %v2276, 0.2
        %v2283 = vmul.f32 %v2277, 0.2
        %v2284 = vmul.f32 %v2278, 0.2
        %v2285 = vsel %vm2279, %v2276, %v2282
        %v2286 = vsel %vm2280, %v2277, %v2283
        %v2287 = vsel %vm2281, %v2278, %v2284
        %v2288 = vsel %vm2175, %v2285, -1e+30
        %v2289 = vsel %vm2176, %v2286, -1e+30
        %v2290 = vsel %vm2177, %v2287, -1e+30
        %v2291 = vsel %vm2212, %v2288, -inf
        %2292 = vmax.xlane.f32.xlu0 %v2291
        %v2293 = vpop.xlane.xlu0 %2292
        %v2294 = vsel %vm2212, %v2289, -inf
        %2295 = vmax.xlane.f32.xlu0 %v2294
        %v2296 = vpop.xlane.xlu0 %2295
        %v2297 = vsel %vm2212, %v2290, -inf
        %2298 = vmax.xlane.f32.xlu0 %v2297
        %v2299 = vpop.xlane.xlu0 %2298
        %v2300 = vsub.f32 %v2288, %v2293
        %v2301 = vsub.f32 %v2289, %v2296
        %v2302 = vsub.f32 %v2290, %v2299
        %v2303 = vmul.f32 %v2300, 1.442695
        %v2304 = vpow.pop %v2303
        %v2305 = vmul.f32 %v2301, 1.442695
        %v2306 = vpow.pop %v2305
        %v2307 = vmul.f32 %v2302, 1.442695
        %v2308 = vpow.pop %v2307
        %v2309 = vsel %vm2175, %v2304, 0.0
        %v2310 = vsel %vm2176, %v2306, 0.0
        %v2311 = vsel %vm2177, %v2308, 0.0
        %v2312 = vsel %vm2212, %v2309, 0.0
        %2313 = vadd.xlane.f32.xlu0 %v2312
        %v2314 = vpop.xlane.xlu0 %2313
        %v2315 = vsel %vm2212, %v2310, 0.0
        %2316 = vadd.xlane.f32.xlu0 %v2315
        %v2317 = vpop.xlane.xlu0 %2316
        %v2318 = vsel %vm2212, %v2311, 0.0
        %2319 = vadd.xlane.f32.xlu0 %v2318
        %v2320 = vpop.xlane.xlu0 %2319
        %v2321 = vmax.f32 %v2314, 1e-09
        %v2322 = vmax.f32 %v2317, 1e-09
        %v2323 = vmax.f32 %v2320, 1e-09
        %v2324 = vrcp.pop %v2321
        %v2325 = vrcp.pop %v2322
        %v2326 = vrcp.pop %v2323
        %v2327 = vmul.f32 %v2309, %v2324
        %v2328 = vmul.f32 %v2310, %v2325
        %v2329 = vmul.f32 %v2311, %v2326
        %vm2330 = vcmp.ge.s32.totalorder %v2171, 16
        %vm2331 = vcmp.lt.s32.totalorder %v2171, 32
        %vm2332 = vmand %vm2330, %vm2331
        %v2333 = vsel %vm2332, 1, 0
        %vm2334 = vcmp.eq.s32.totalorder %v2333, 1
        %v2335 = vsel %vm2334, %v1144, 0.0
        %v2336 = vsel %vm2334, %v1150, 0.0
        %v2337 = vsel %vm2334, %v1156, 0.0
        %v2339 = vsel %vm2212, %v2327, 0
        %v2342 = vsel %vm2212, %v2328, 0
        %v2345 = vsel %vm2212, %v2329, 0
        %2347 = vmatprep.subr.mxu0 0.0
        %2348 = vmatpush1.msra.mxu0 0.0
        %2349 = vmatprep.subr.mxu0 0.0
        %2350 = vmatpush1.msra.mxu0 0.0
        %2351 = vmatprep.subr.mxu0 0.0
        %2352 = vmatpush1.msra.mxu0 0.0
        %2353 = vmatprep.subr.mxu0 0.0
        %2354 = vmatpush1.msra.mxu0 0.0
        %2355 = vmatprep.subr.mxu0 0.0
        %2356 = vmatpush1.msra.mxu0 0.0
        %2357 = vmatprep.subr.mxu0 0.0
        %2358 = vmatpush1.msra.mxu0 0.0
        %2359 = vmatprep.subr.mxu0 0.0
        %2360 = vmatpush1.msra.mxu0 0.0
        %2361 = vmatprep.subr.mxu0 0.0
        %2362 = vmatpush1.msra.mxu0 0.0
        %2363 = vmatprep.subr.mxu0 0.0
        %2364 = vmatpush1.msra.mxu0 0.0
        %2365 = vmatprep.subr.mxu0 0.0
        %2366 = vmatpush1.msra.mxu0 0.0
        %2367 = vmatprep.subr.mxu0 0.0
        %2368 = vmatpush1.msra.mxu0 0.0
        %2369 = vmatprep.subr.mxu0 0.0
        %2370 = vmatpush1.msra.mxu0 0.0
        %2371 = vmatprep.subr.mxu0 0.0
        %2372 = vmatpush1.msra.mxu0 0.0
        %2373 = vmatprep.subr.mxu0 0.0
        %v2374 = vand.u32 %v2337, 4294901760
        %2375 = vmatpush1.msra.mxu0 %v2374
        %2376 = vmatprep.subr.mxu0 0.0
        %v2377 = vand.u32 %v2336, 4294901760
        %2378 = vmatpush1.msra.mxu0 %v2377
        %2379 = vmatprep.subr.mxu0 0.0
        %v2380 = vand.u32 %v2335, 4294901760
        %2381 = vmatpush1.msra.mxu0 %v2380
        %2382 = vmatprep.subr.mxu0 0.0
        %2383 = vmatpush2.msra.mxu0 0.0
        %2384 = vmatprep.subr.mxu0 0.0
        %2385 = vmatpush2.msra.mxu0 0.0
        %2386 = vmatprep.subr.mxu0 0.0
        %2387 = vmatpush2.msra.mxu0 0.0
        %2388 = vmatprep.subr.mxu0 0.0
        %2389 = vmatpush2.msra.mxu0 0.0
        %2390 = vmatprep.subr.mxu0 0.0
        %2391 = vmatpush2.msra.mxu0 0.0
        %2392 = vmatprep.subr.mxu0 0.0
        %2393 = vmatpush2.msra.mxu0 0.0
        %2394 = vmatprep.subr.mxu0 0.0
        %2395 = vmatpush2.msra.mxu0 0.0
        %2396 = vmatprep.subr.mxu0 0.0
        %2397 = vmatpush2.msra.mxu0 0.0
        %2398 = vmatprep.subr.mxu0 0.0
        %2399 = vmatpush2.msra.mxu0 0.0
        %2400 = vmatprep.subr.mxu0 0.0
        %2401 = vmatpush2.msra.mxu0 0.0
        %2402 = vmatprep.subr.mxu0 0.0
        %2403 = vmatpush2.msra.mxu0 0.0
        %2404 = vmatprep.subr.mxu0 0.0
        %2405 = vmatpush2.msra.mxu0 0.0
        %2406 = vmatprep.subr.mxu0 0.0
        %2407 = vmatpush2.msra.mxu0 0.0
        %2408 = vmatprep.subr.mxu0 0.0
        %2409 = vmatpush2.msra.mxu0 0.0
        %2410 = vmatprep.subr.mxu0 0.0
        %2411 = vmatpush2.msra.mxu0 0.0
        %2412 = vmatprep.subr.mxu0 0.0
        %2413 = vmatpush2.msra.mxu0 0.0
        %2414 = vmatprep.mubr.f32.mxu0 0.0
        %v2415 = vand.u32 %v2339, 4294901760
        %v2416 = vsub.f32 %v2339, %v2415
        %v2417 = vand.u32 %v2416, 4294901760
        %v2418 = vsub.f32 %v2416, %v2417
        %v2419 = vand.u32 %v2418, 4294901760
        %2420 = vmatmul.mubr.f32.gmra.mxu0 %v2419
        %v2421 = vpop.f32.mrf.mxu0
        %v2422 = vadd.f32 0.0, %v2421
        %v2423 = vpop.f32.mrf.mxu0
        %2424 = vmatprep.mubr.f32.mxu0 0.0
        %v2425 = vand.u32 %v2342, 4294901760
        %v2426 = vsub.f32 %v2342, %v2425
        %v2427 = vand.u32 %v2426, 4294901760
        %v2428 = vsub.f32 %v2426, %v2427
        %v2429 = vand.u32 %v2428, 4294901760
        %2430 = vmatmul.mubr.f32.gmra.mxu0 %v2429
        %v2431 = vpop.f32.mrf.mxu0
        %v2432 = vadd.f32 0.0, %v2431
        %v2433 = vpop.f32.mrf.mxu0
        %2434 = vmatprep.mubr.f32.mxu0 0.0
        %v2435 = vand.u32 %v2345, 4294901760
        %v2436 = vsub.f32 %v2345, %v2435
        %v2437 = vand.u32 %v2436, 4294901760
        %v2438 = vsub.f32 %v2436, %v2437
        %v2439 = vand.u32 %v2438, 4294901760
        %2440 = vmatmul.mubr.f32.gmra.mxu0 %v2439
        %v2441 = vpop.f32.mrf.mxu0
        %v2442 = vadd.f32 0.0, %v2441
        %v2443 = vpop.f32.mrf.mxu0
        %2444 = vdwg.mxu0
        %2445 = vmatprep.subr.mxu0 0.0
        %2446 = vmatpush1.msra.mxu0 0.0
        %2447 = vmatprep.subr.mxu0 0.0
        %2448 = vmatpush1.msra.mxu0 0.0
        %2449 = vmatprep.subr.mxu0 0.0
        %2450 = vmatpush1.msra.mxu0 0.0
        %2451 = vmatprep.subr.mxu0 0.0
        %2452 = vmatpush1.msra.mxu0 0.0
        %2453 = vmatprep.subr.mxu0 0.0
        %2454 = vmatpush1.msra.mxu0 0.0
        %2455 = vmatprep.subr.mxu0 0.0
        %2456 = vmatpush1.msra.mxu0 0.0
        %2457 = vmatprep.subr.mxu0 0.0
        %2458 = vmatpush1.msra.mxu0 0.0
        %2459 = vmatprep.subr.mxu0 0.0
        %2460 = vmatpush1.msra.mxu0 0.0
        %2461 = vmatprep.subr.mxu0 0.0
        %2462 = vmatpush1.msra.mxu0 0.0
        %2463 = vmatprep.subr.mxu0 0.0
        %2464 = vmatpush1.msra.mxu0 0.0
        %2465 = vmatprep.subr.mxu0 0.0
        %2466 = vmatpush1.msra.mxu0 0.0
        %2467 = vmatprep.subr.mxu0 0.0
        %2468 = vmatpush1.msra.mxu0 0.0
        %2469 = vmatprep.subr.mxu0 0.0
        %2470 = vmatpush1.msra.mxu0 0.0
        %2471 = vmatprep.subr.mxu0 0.0
        %v2472 = vand.u32 %v2337, 4294901760
        %v2473 = vsub.f32 %v2337, %v2472
        %v2474 = vand.u32 %v2473, 4294901760
        %v2475 = vsub.f32 %v2473, %v2474
        %v2476 = vand.u32 %v2475, 4294901760
        %2477 = vmatpush1.msra.mxu0 %v2476
        %2478 = vmatprep.subr.mxu0 0.0
        %v2479 = vand.u32 %v2336, 4294901760
        %v2480 = vsub.f32 %v2336, %v2479
        %v2481 = vand.u32 %v2480, 4294901760
        %v2482 = vsub.f32 %v2480, %v2481
        %v2483 = vand.u32 %v2482, 4294901760
        %2484 = vmatpush1.msra.mxu0 %v2483
        %2485 = vmatprep.subr.mxu0 0.0
        %v2486 = vand.u32 %v2335, 4294901760
        %v2487 = vsub.f32 %v2335, %v2486
        %v2488 = vand.u32 %v2487, 4294901760
        %v2489 = vsub.f32 %v2487, %v2488
        %v2490 = vand.u32 %v2489, 4294901760
        %2491 = vmatpush1.msra.mxu0 %v2490
        %2492 = vmatprep.subr.mxu0 0.0
        %2493 = vmatpush2.msra.mxu0 0.0
        %2494 = vmatprep.subr.mxu0 0.0
        %2495 = vmatpush2.msra.mxu0 0.0
        %2496 = vmatprep.subr.mxu0 0.0
        %2497 = vmatpush2.msra.mxu0 0.0
        %2498 = vmatprep.subr.mxu0 0.0
        %2499 = vmatpush2.msra.mxu0 0.0
        %2500 = vmatprep.subr.mxu0 0.0
        %2501 = vmatpush2.msra.mxu0 0.0
        %2502 = vmatprep.subr.mxu0 0.0
        %2503 = vmatpush2.msra.mxu0 0.0
        %2504 = vmatprep.subr.mxu0 0.0
        %2505 = vmatpush2.msra.mxu0 0.0
        %2506 = vmatprep.subr.mxu0 0.0
        %2507 = vmatpush2.msra.mxu0 0.0
        %2508 = vmatprep.subr.mxu0 0.0
        %2509 = vmatpush2.msra.mxu0 0.0
        %2510 = vmatprep.subr.mxu0 0.0
        %2511 = vmatpush2.msra.mxu0 0.0
        %2512 = vmatprep.subr.mxu0 0.0
        %2513 = vmatpush2.msra.mxu0 0.0
        %2514 = vmatprep.subr.mxu0 0.0
        %2515 = vmatpush2.msra.mxu0 0.0
        %2516 = vmatprep.subr.mxu0 0.0
        %2517 = vmatpush2.msra.mxu0 0.0
        %2518 = vmatprep.subr.mxu0 0.0
        %2519 = vmatpush2.msra.mxu0 0.0
        %2520 = vmatprep.subr.mxu0 0.0
        %2521 = vmatpush2.msra.mxu0 0.0
        %2522 = vmatprep.subr.mxu0 0.0
        %2523 = vmatpush2.msra.mxu0 0.0
        %2524 = vmatprep.mubr.f32.mxu0 0.0
        %v2525 = vand.u32 %v2339, 4294901760
        %2526 = vmatmul.mubr.f32.gmra.mxu0 %v2525
        %v2527 = vpop.f32.mrf.mxu0
        %v2528 = vadd.f32 %v2422, %v2527
        %v2529 = vpop.f32.mrf.mxu0
        %2530 = vmatprep.mubr.f32.mxu0 0.0
        %v2531 = vand.u32 %v2342, 4294901760
        %2532 = vmatmul.mubr.f32.gmra.mxu0 %v2531
        %v2533 = vpop.f32.mrf.mxu0
        %v2534 = vadd.f32 %v2432, %v2533
        %v2535 = vpop.f32.mrf.mxu0
        %2536 = vmatprep.mubr.f32.mxu0 0.0
        %v2537 = vand.u32 %v2345, 4294901760
        %2538 = vmatmul.mubr.f32.gmra.mxu0 %v2537
        %v2539 = vpop.f32.mrf.mxu0
        %v2540 = vadd.f32 %v2442, %v2539
        %v2541 = vpop.f32.mrf.mxu0
        %2542 = vdwg.mxu0
        %2543 = vmatprep.subr.mxu0 0.0
        %2544 = vmatpush1.msra.mxu0 0.0
        %2545 = vmatprep.subr.mxu0 0.0
        %2546 = vmatpush1.msra.mxu0 0.0
        %2547 = vmatprep.subr.mxu0 0.0
        %2548 = vmatpush1.msra.mxu0 0.0
        %2549 = vmatprep.subr.mxu0 0.0
        %2550 = vmatpush1.msra.mxu0 0.0
        %2551 = vmatprep.subr.mxu0 0.0
        %2552 = vmatpush1.msra.mxu0 0.0
        %2553 = vmatprep.subr.mxu0 0.0
        %2554 = vmatpush1.msra.mxu0 0.0
        %2555 = vmatprep.subr.mxu0 0.0
        %2556 = vmatpush1.msra.mxu0 0.0
        %2557 = vmatprep.subr.mxu0 0.0
        %2558 = vmatpush1.msra.mxu0 0.0
        %2559 = vmatprep.subr.mxu0 0.0
        %2560 = vmatpush1.msra.mxu0 0.0
        %2561 = vmatprep.subr.mxu0 0.0
        %2562 = vmatpush1.msra.mxu0 0.0
        %2563 = vmatprep.subr.mxu0 0.0
        %2564 = vmatpush1.msra.mxu0 0.0
        %2565 = vmatprep.subr.mxu0 0.0
        %2566 = vmatpush1.msra.mxu0 0.0
        %2567 = vmatprep.subr.mxu0 0.0
        %2568 = vmatpush1.msra.mxu0 0.0
        %2569 = vmatprep.subr.mxu0 0.0
        %v2570 = vand.u32 %v2337, 4294901760
        %v2571 = vsub.f32 %v2337, %v2570
        %2572 = vmatpush1.msra.mxu0 %v2571
        %2573 = vmatprep.subr.mxu0 0.0
        %v2574 = vand.u32 %v2336, 4294901760
        %v2575 = vsub.f32 %v2336, %v2574
        %2576 = vmatpush1.msra.mxu0 %v2575
        %2577 = vmatprep.subr.mxu0 0.0
        %v2578 = vand.u32 %v2335, 4294901760
        %v2579 = vsub.f32 %v2335, %v2578
        %2580 = vmatpush1.msra.mxu0 %v2579
        %2581 = vmatprep.subr.mxu0 0.0
        %2582 = vmatpush2.msra.mxu0 0.0
        %2583 = vmatprep.subr.mxu0 0.0
        %2584 = vmatpush2.msra.mxu0 0.0
        %2585 = vmatprep.subr.mxu0 0.0
        %2586 = vmatpush2.msra.mxu0 0.0
        %2587 = vmatprep.subr.mxu0 0.0
        %2588 = vmatpush2.msra.mxu0 0.0
        %2589 = vmatprep.subr.mxu0 0.0
        %2590 = vmatpush2.msra.mxu0 0.0
        %2591 = vmatprep.subr.mxu0 0.0
        %2592 = vmatpush2.msra.mxu0 0.0
        %2593 = vmatprep.subr.mxu0 0.0
        %2594 = vmatpush2.msra.mxu0 0.0
        %2595 = vmatprep.subr.mxu0 0.0
        %2596 = vmatpush2.msra.mxu0 0.0
        %2597 = vmatprep.subr.mxu0 0.0
        %2598 = vmatpush2.msra.mxu0 0.0
        %2599 = vmatprep.subr.mxu0 0.0
        %2600 = vmatpush2.msra.mxu0 0.0
        %2601 = vmatprep.subr.mxu0 0.0
        %2602 = vmatpush2.msra.mxu0 0.0
        %2603 = vmatprep.subr.mxu0 0.0
        %2604 = vmatpush2.msra.mxu0 0.0
        %2605 = vmatprep.subr.mxu0 0.0
        %2606 = vmatpush2.msra.mxu0 0.0
        %2607 = vmatprep.subr.mxu0 0.0
        %2608 = vmatpush2.msra.mxu0 0.0
        %2609 = vmatprep.subr.mxu0 0.0
        %2610 = vmatpush2.msra.mxu0 0.0
        %2611 = vmatprep.subr.mxu0 0.0
        %2612 = vmatpush2.msra.mxu0 0.0
        %2613 = vmatprep.mubr.f32.mxu0 0.0
        %v2614 = vand.u32 %v2339, 4294901760
        %v2615 = vsub.f32 %v2339, %v2614
        %2616 = vmatmul.mubr.f32.gmra.mxu0 %v2615
        %v2617 = vpop.f32.mrf.mxu0
        %v2618 = vadd.f32 %v2528, %v2617
        %v2619 = vpop.f32.mrf.mxu0
        %2620 = vmatprep.mubr.f32.mxu0 0.0
        %v2621 = vand.u32 %v2342, 4294901760
        %v2622 = vsub.f32 %v2342, %v2621
        %2623 = vmatmul.mubr.f32.gmra.mxu0 %v2622
        %v2624 = vpop.f32.mrf.mxu0
        %v2625 = vadd.f32 %v2534, %v2624
        %v2626 = vpop.f32.mrf.mxu0
        %2627 = vmatprep.mubr.f32.mxu0 0.0
        %v2628 = vand.u32 %v2345, 4294901760
        %v2629 = vsub.f32 %v2345, %v2628
        %2630 = vmatmul.mubr.f32.gmra.mxu0 %v2629
        %v2631 = vpop.f32.mrf.mxu0
        %v2632 = vadd.f32 %v2540, %v2631
        %v2633 = vpop.f32.mrf.mxu0
        %2634 = vdwg.mxu0
        %2635 = vmatprep.subr.mxu0 0.0
        %2636 = vmatpush1.msra.mxu0 0.0
        %2637 = vmatprep.subr.mxu0 0.0
        %2638 = vmatpush1.msra.mxu0 0.0
        %2639 = vmatprep.subr.mxu0 0.0
        %2640 = vmatpush1.msra.mxu0 0.0
        %2641 = vmatprep.subr.mxu0 0.0
        %2642 = vmatpush1.msra.mxu0 0.0
        %2643 = vmatprep.subr.mxu0 0.0
        %2644 = vmatpush1.msra.mxu0 0.0
        %2645 = vmatprep.subr.mxu0 0.0
        %2646 = vmatpush1.msra.mxu0 0.0
        %2647 = vmatprep.subr.mxu0 0.0
        %2648 = vmatpush1.msra.mxu0 0.0
        %2649 = vmatprep.subr.mxu0 0.0
        %2650 = vmatpush1.msra.mxu0 0.0
        %2651 = vmatprep.subr.mxu0 0.0
        %2652 = vmatpush1.msra.mxu0 0.0
        %2653 = vmatprep.subr.mxu0 0.0
        %2654 = vmatpush1.msra.mxu0 0.0
        %2655 = vmatprep.subr.mxu0 0.0
        %2656 = vmatpush1.msra.mxu0 0.0
        %2657 = vmatprep.subr.mxu0 0.0
        %2658 = vmatpush1.msra.mxu0 0.0
        %2659 = vmatprep.subr.mxu0 0.0
        %2660 = vmatpush1.msra.mxu0 0.0
        %2661 = vmatprep.subr.mxu0 0.0
        %v2662 = vand.u32 %v2337, 4294901760
        %2663 = vmatpush1.msra.mxu0 %v2662
        %2664 = vmatprep.subr.mxu0 0.0
        %v2665 = vand.u32 %v2336, 4294901760
        %2666 = vmatpush1.msra.mxu0 %v2665
        %2667 = vmatprep.subr.mxu0 0.0
        %v2668 = vand.u32 %v2335, 4294901760
        %2669 = vmatpush1.msra.mxu0 %v2668
        %2670 = vmatprep.subr.mxu0 0.0
        %2671 = vmatpush2.msra.mxu0 0.0
        %2672 = vmatprep.subr.mxu0 0.0
        %2673 = vmatpush2.msra.mxu0 0.0
        %2674 = vmatprep.subr.mxu0 0.0
        %2675 = vmatpush2.msra.mxu0 0.0
        %2676 = vmatprep.subr.mxu0 0.0
        %2677 = vmatpush2.msra.mxu0 0.0
        %2678 = vmatprep.subr.mxu0 0.0
        %2679 = vmatpush2.msra.mxu0 0.0
        %2680 = vmatprep.subr.mxu0 0.0
        %2681 = vmatpush2.msra.mxu0 0.0
        %2682 = vmatprep.subr.mxu0 0.0
        %2683 = vmatpush2.msra.mxu0 0.0
        %2684 = vmatprep.subr.mxu0 0.0
        %2685 = vmatpush2.msra.mxu0 0.0
        %2686 = vmatprep.subr.mxu0 0.0
        %2687 = vmatpush2.msra.mxu0 0.0
        %2688 = vmatprep.subr.mxu0 0.0
        %2689 = vmatpush2.msra.mxu0 0.0
        %2690 = vmatprep.subr.mxu0 0.0
        %2691 = vmatpush2.msra.mxu0 0.0
        %2692 = vmatprep.subr.mxu0 0.0
        %2693 = vmatpush2.msra.mxu0 0.0
        %2694 = vmatprep.subr.mxu0 0.0
        %2695 = vmatpush2.msra.mxu0 0.0
        %2696 = vmatprep.subr.mxu0 0.0
        %2697 = vmatpush2.msra.mxu0 0.0
        %2698 = vmatprep.subr.mxu0 0.0
        %2699 = vmatpush2.msra.mxu0 0.0
        %2700 = vmatprep.subr.mxu0 0.0
        %2701 = vmatpush2.msra.mxu0 0.0
        %2702 = vmatprep.mubr.f32.mxu0 0.0
        %v2703 = vand.u32 %v2339, 4294901760
        %v2704 = vsub.f32 %v2339, %v2703
        %v2705 = vand.u32 %v2704, 4294901760
        %2706 = vmatmul.mubr.f32.gmra.mxu0 %v2705
        %v2707 = vpop.f32.mrf.mxu0
        %v2708 = vadd.f32 %v2618, %v2707
        %v2709 = vpop.f32.mrf.mxu0
        %2710 = vmatprep.mubr.f32.mxu0 0.0
        %v2711 = vand.u32 %v2342, 4294901760
        %v2712 = vsub.f32 %v2342, %v2711
        %v2713 = vand.u32 %v2712, 4294901760
        %2714 = vmatmul.mubr.f32.gmra.mxu0 %v2713
        %v2715 = vpop.f32.mrf.mxu0
        %v2716 = vadd.f32 %v2625, %v2715
        %v2717 = vpop.f32.mrf.mxu0
        %2718 = vmatprep.mubr.f32.mxu0 0.0
        %v2719 = vand.u32 %v2345, 4294901760
        %v2720 = vsub.f32 %v2345, %v2719
        %v2721 = vand.u32 %v2720, 4294901760
        %2722 = vmatmul.mubr.f32.gmra.mxu0 %v2721
        %v2723 = vpop.f32.mrf.mxu0
        %v2724 = vadd.f32 %v2632, %v2723
        %v2725 = vpop.f32.mrf.mxu0
        %2726 = vdwg.mxu0
        %2727 = vmatprep.subr.mxu0 0.0
        %2728 = vmatpush1.msra.mxu0 0.0
        %2729 = vmatprep.subr.mxu0 0.0
        %2730 = vmatpush1.msra.mxu0 0.0
        %2731 = vmatprep.subr.mxu0 0.0
        %2732 = vmatpush1.msra.mxu0 0.0
        %2733 = vmatprep.subr.mxu0 0.0
        %2734 = vmatpush1.msra.mxu0 0.0
        %2735 = vmatprep.subr.mxu0 0.0
        %2736 = vmatpush1.msra.mxu0 0.0
        %2737 = vmatprep.subr.mxu0 0.0
        %2738 = vmatpush1.msra.mxu0 0.0
        %2739 = vmatprep.subr.mxu0 0.0
        %2740 = vmatpush1.msra.mxu0 0.0
        %2741 = vmatprep.subr.mxu0 0.0
        %2742 = vmatpush1.msra.mxu0 0.0
        %2743 = vmatprep.subr.mxu0 0.0
        %2744 = vmatpush1.msra.mxu0 0.0
        %2745 = vmatprep.subr.mxu0 0.0
        %2746 = vmatpush1.msra.mxu0 0.0
        %2747 = vmatprep.subr.mxu0 0.0
        %2748 = vmatpush1.msra.mxu0 0.0
        %2749 = vmatprep.subr.mxu0 0.0
        %2750 = vmatpush1.msra.mxu0 0.0
        %2751 = vmatprep.subr.mxu0 0.0
        %2752 = vmatpush1.msra.mxu0 0.0
        %2753 = vmatprep.subr.mxu0 0.0
        %v2754 = vand.u32 %v2337, 4294901760
        %v2755 = vsub.f32 %v2337, %v2754
        %v2756 = vand.u32 %v2755, 4294901760
        %2757 = vmatpush1.msra.mxu0 %v2756
        %2758 = vmatprep.subr.mxu0 0.0
        %v2759 = vand.u32 %v2336, 4294901760
        %v2760 = vsub.f32 %v2336, %v2759
        %v2761 = vand.u32 %v2760, 4294901760
        %2762 = vmatpush1.msra.mxu0 %v2761
        %2763 = vmatprep.subr.mxu0 0.0
        %v2764 = vand.u32 %v2335, 4294901760
        %v2765 = vsub.f32 %v2335, %v2764
        %v2766 = vand.u32 %v2765, 4294901760
        %2767 = vmatpush1.msra.mxu0 %v2766
        %2768 = vmatprep.subr.mxu0 0.0
        %2769 = vmatpush2.msra.mxu0 0.0
        %2770 = vmatprep.subr.mxu0 0.0
        %2771 = vmatpush2.msra.mxu0 0.0
        %2772 = vmatprep.subr.mxu0 0.0
        %2773 = vmatpush2.msra.mxu0 0.0
        %2774 = vmatprep.subr.mxu0 0.0
        %2775 = vmatpush2.msra.mxu0 0.0
        %2776 = vmatprep.subr.mxu0 0.0
        %2777 = vmatpush2.msra.mxu0 0.0
        %2778 = vmatprep.subr.mxu0 0.0
        %2779 = vmatpush2.msra.mxu0 0.0
        %2780 = vmatprep.subr.mxu0 0.0
        %2781 = vmatpush2.msra.mxu0 0.0
        %2782 = vmatprep.subr.mxu0 0.0
        %2783 = vmatpush2.msra.mxu0 0.0
        %2784 = vmatprep.subr.mxu0 0.0
        %2785 = vmatpush2.msra.mxu0 0.0
        %2786 = vmatprep.subr.mxu0 0.0
        %2787 = vmatpush2.msra.mxu0 0.0
        %2788 = vmatprep.subr.mxu0 0.0
        %2789 = vmatpush2.msra.mxu0 0.0
        %2790 = vmatprep.subr.mxu0 0.0
        %2791 = vmatpush2.msra.mxu0 0.0
        %2792 = vmatprep.subr.mxu0 0.0
        %2793 = vmatpush2.msra.mxu0 0.0
        %2794 = vmatprep.subr.mxu0 0.0
        %2795 = vmatpush2.msra.mxu0 0.0
        %2796 = vmatprep.subr.mxu0 0.0
        %2797 = vmatpush2.msra.mxu0 0.0
        %2798 = vmatprep.subr.mxu0 0.0
        %2799 = vmatpush2.msra.mxu0 0.0
        %2800 = vmatprep.mubr.f32.mxu0 0.0
        %v2801 = vand.u32 %v2339, 4294901760
        %2802 = vmatmul.mubr.f32.gmra.mxu0 %v2801
        %v2803 = vpop.f32.mrf.mxu0
        %v2804 = vadd.f32 %v2708, %v2803
        %v2805 = vpop.f32.mrf.mxu0
        %2806 = vmatprep.mubr.f32.mxu0 0.0
        %v2807 = vand.u32 %v2342, 4294901760
        %2808 = vmatmul.mubr.f32.gmra.mxu0 %v2807
        %v2809 = vpop.f32.mrf.mxu0
        %v2810 = vadd.f32 %v2716, %v2809
        %v2811 = vpop.f32.mrf.mxu0
        %2812 = vmatprep.mubr.f32.mxu0 0.0
        %v2813 = vand.u32 %v2345, 4294901760
        %2814 = vmatmul.mubr.f32.gmra.mxu0 %v2813
        %v2815 = vpop.f32.mrf.mxu0
        %v2816 = vadd.f32 %v2724, %v2815
        %v2817 = vpop.f32.mrf.mxu0
        %2818 = vdwg.mxu0
        %2819 = vmatprep.subr.mxu0 0.0
        %2820 = vmatpush1.msra.mxu0 0.0
        %2821 = vmatprep.subr.mxu0 0.0
        %2822 = vmatpush1.msra.mxu0 0.0
        %2823 = vmatprep.subr.mxu0 0.0
        %2824 = vmatpush1.msra.mxu0 0.0
        %2825 = vmatprep.subr.mxu0 0.0
        %2826 = vmatpush1.msra.mxu0 0.0
        %2827 = vmatprep.subr.mxu0 0.0
        %2828 = vmatpush1.msra.mxu0 0.0
        %2829 = vmatprep.subr.mxu0 0.0
        %2830 = vmatpush1.msra.mxu0 0.0
        %2831 = vmatprep.subr.mxu0 0.0
        %2832 = vmatpush1.msra.mxu0 0.0
        %2833 = vmatprep.subr.mxu0 0.0
        %2834 = vmatpush1.msra.mxu0 0.0
        %2835 = vmatprep.subr.mxu0 0.0
        %2836 = vmatpush1.msra.mxu0 0.0
        %2837 = vmatprep.subr.mxu0 0.0
        %2838 = vmatpush1.msra.mxu0 0.0
        %2839 = vmatprep.subr.mxu0 0.0
        %2840 = vmatpush1.msra.mxu0 0.0
        %2841 = vmatprep.subr.mxu0 0.0
        %2842 = vmatpush1.msra.mxu0 0.0
        %2843 = vmatprep.subr.mxu0 0.0
        %2844 = vmatpush1.msra.mxu0 0.0
        %2845 = vmatprep.subr.mxu0 0.0
        %v2846 = vand.u32 %v2337, 4294901760
        %2847 = vmatpush1.msra.mxu0 %v2846
        %2848 = vmatprep.subr.mxu0 0.0
        %v2849 = vand.u32 %v2336, 4294901760
        %2850 = vmatpush1.msra.mxu0 %v2849
        %2851 = vmatprep.subr.mxu0 0.0
        %v2852 = vand.u32 %v2335, 4294901760
        %2853 = vmatpush1.msra.mxu0 %v2852
        %2854 = vmatprep.subr.mxu0 0.0
        %2855 = vmatpush2.msra.mxu0 0.0
        %2856 = vmatprep.subr.mxu0 0.0
        %2857 = vmatpush2.msra.mxu0 0.0
        %2858 = vmatprep.subr.mxu0 0.0
        %2859 = vmatpush2.msra.mxu0 0.0
        %2860 = vmatprep.subr.mxu0 0.0
        %2861 = vmatpush2.msra.mxu0 0.0
        %2862 = vmatprep.subr.mxu0 0.0
        %2863 = vmatpush2.msra.mxu0 0.0
        %2864 = vmatprep.subr.mxu0 0.0
        %2865 = vmatpush2.msra.mxu0 0.0
        %2866 = vmatprep.subr.mxu0 0.0
        %2867 = vmatpush2.msra.mxu0 0.0
        %2868 = vmatprep.subr.mxu0 0.0
        %2869 = vmatpush2.msra.mxu0 0.0
        %2870 = vmatprep.subr.mxu0 0.0
        %2871 = vmatpush2.msra.mxu0 0.0
        %2872 = vmatprep.subr.mxu0 0.0
        %2873 = vmatpush2.msra.mxu0 0.0
        %2874 = vmatprep.subr.mxu0 0.0
        %2875 = vmatpush2.msra.mxu0 0.0
        %2876 = vmatprep.subr.mxu0 0.0
        %2877 = vmatpush2.msra.mxu0 0.0
        %2878 = vmatprep.subr.mxu0 0.0
        %2879 = vmatpush2.msra.mxu0 0.0
        %2880 = vmatprep.subr.mxu0 0.0
        %2881 = vmatpush2.msra.mxu0 0.0
        %2882 = vmatprep.subr.mxu0 0.0
        %2883 = vmatpush2.msra.mxu0 0.0
        %2884 = vmatprep.subr.mxu0 0.0
        %2885 = vmatpush2.msra.mxu0 0.0
        %2886 = vmatprep.mubr.f32.mxu0 0.0
        %v2887 = vand.u32 %v2339, 4294901760
        %2888 = vmatmul.mubr.f32.gmra.mxu0 %v2887
        %v2889 = vpop.f32.mrf.mxu0
        %v2890 = vadd.f32 %v2804, %v2889
        %v2891 = vpop.f32.mrf.mxu0
        %2892 = vmatprep.mubr.f32.mxu0 0.0
        %v2893 = vand.u32 %v2342, 4294901760
        %2894 = vmatmul.mubr.f32.gmra.mxu0 %v2893
        %v2895 = vpop.f32.mrf.mxu0
        %v2896 = vadd.f32 %v2810, %v2895
        %v2897 = vpop.f32.mrf.mxu0
        %2898 = vmatprep.mubr.f32.mxu0 0.0
        %v2899 = vand.u32 %v2345, 4294901760
        %2900 = vmatmul.mubr.f32.gmra.mxu0 %v2899
        %v2901 = vpop.f32.mrf.mxu0
        %v2902 = vadd.f32 %v2816, %v2901
        %v2903 = vpop.f32.mrf.mxu0
        %2904 = vdwg.mxu0
        %v2906 = vsel %vm2212, %v2249, 0
        %v2909 = vsel %vm2212, %v2250, 0
        %v2912 = vsel %vm2212, %v2251, 0
        %2914 = vmatprep.subr.mxu0 0.0
        %2915 = vmatpush1.msra.mxu0 0.0
        %2916 = vmatprep.subr.mxu0 0.0
        %2917 = vmatpush1.msra.mxu0 0.0
        %2918 = vmatprep.subr.mxu0 0.0
        %2919 = vmatpush1.msra.mxu0 0.0
        %2920 = vmatprep.subr.mxu0 0.0
        %2921 = vmatpush1.msra.mxu0 0.0
        %2922 = vmatprep.subr.mxu0 0.0
        %2923 = vmatpush1.msra.mxu0 0.0
        %2924 = vmatprep.subr.mxu0 0.0
        %2925 = vmatpush1.msra.mxu0 0.0
        %2926 = vmatprep.subr.mxu0 0.0
        %2927 = vmatpush1.msra.mxu0 0.0
        %2928 = vmatprep.subr.mxu0 0.0
        %2929 = vmatpush1.msra.mxu0 0.0
        %2930 = vmatprep.subr.mxu0 0.0
        %2931 = vmatpush1.msra.mxu0 0.0
        %2932 = vmatprep.subr.mxu0 0.0
        %2933 = vmatpush1.msra.mxu0 0.0
        %2934 = vmatprep.subr.mxu0 0.0
        %2935 = vmatpush1.msra.mxu0 0.0
        %2936 = vmatprep.subr.mxu0 0.0
        %2937 = vmatpush1.msra.mxu0 0.0
        %2938 = vmatprep.subr.mxu0 0.0
        %2939 = vmatpush1.msra.mxu0 0.0
        %2940 = vmatprep.subr.mxu0 0.0
        %v2941 = vand.u32 %v2259, 4294901760
        %2942 = vmatpush1.msra.mxu0 %v2941
        %2943 = vmatprep.subr.mxu0 0.0
        %v2944 = vand.u32 %v2258, 4294901760
        %2945 = vmatpush1.msra.mxu0 %v2944
        %2946 = vmatprep.subr.mxu0 0.0
        %v2947 = vand.u32 %v2257, 4294901760
        %2948 = vmatpush1.msra.mxu0 %v2947
        %2949 = vmatprep.subr.mxu0 0.0
        %2950 = vmatpush2.msra.mxu0 0.0
        %2951 = vmatprep.subr.mxu0 0.0
        %2952 = vmatpush2.msra.mxu0 0.0
        %2953 = vmatprep.subr.mxu0 0.0
        %2954 = vmatpush2.msra.mxu0 0.0
        %2955 = vmatprep.subr.mxu0 0.0
        %2956 = vmatpush2.msra.mxu0 0.0
        %2957 = vmatprep.subr.mxu0 0.0
        %2958 = vmatpush2.msra.mxu0 0.0
        %2959 = vmatprep.subr.mxu0 0.0
        %2960 = vmatpush2.msra.mxu0 0.0
        %2961 = vmatprep.subr.mxu0 0.0
        %2962 = vmatpush2.msra.mxu0 0.0
        %2963 = vmatprep.subr.mxu0 0.0
        %2964 = vmatpush2.msra.mxu0 0.0
        %2965 = vmatprep.subr.mxu0 0.0
        %2966 = vmatpush2.msra.mxu0 0.0
        %2967 = vmatprep.subr.mxu0 0.0
        %2968 = vmatpush2.msra.mxu0 0.0
        %2969 = vmatprep.subr.mxu0 0.0
        %2970 = vmatpush2.msra.mxu0 0.0
        %2971 = vmatprep.subr.mxu0 0.0
        %2972 = vmatpush2.msra.mxu0 0.0
        %2973 = vmatprep.subr.mxu0 0.0
        %2974 = vmatpush2.msra.mxu0 0.0
        %2975 = vmatprep.subr.mxu0 0.0
        %2976 = vmatpush2.msra.mxu0 0.0
        %2977 = vmatprep.subr.mxu0 0.0
        %2978 = vmatpush2.msra.mxu0 0.0
        %2979 = vmatprep.subr.mxu0 0.0
        %2980 = vmatpush2.msra.mxu0 0.0
        %2981 = vmatprep.mubr.f32.mxu0 0.0
        %v2982 = vand.u32 %v2906, 4294901760
        %v2983 = vsub.f32 %v2906, %v2982
        %v2984 = vand.u32 %v2983, 4294901760
        %v2985 = vsub.f32 %v2983, %v2984
        %v2986 = vand.u32 %v2985, 4294901760
        %2987 = vmatmul.mubr.f32.gmra.mxu0 %v2986
        %v2988 = vpop.f32.mrf.mxu0
        %v2989 = vadd.f32 %v2890, %v2988
        %v2990 = vpop.f32.mrf.mxu0
        %2991 = vmatprep.mubr.f32.mxu0 0.0
        %v2992 = vand.u32 %v2909, 4294901760
        %v2993 = vsub.f32 %v2909, %v2992
        %v2994 = vand.u32 %v2993, 4294901760
        %v2995 = vsub.f32 %v2993, %v2994
        %v2996 = vand.u32 %v2995, 4294901760
        %2997 = vmatmul.mubr.f32.gmra.mxu0 %v2996
        %v2998 = vpop.f32.mrf.mxu0
        %v2999 = vadd.f32 %v2896, %v2998
        %v3000 = vpop.f32.mrf.mxu0
        %3001 = vmatprep.mubr.f32.mxu0 0.0
        %v3002 = vand.u32 %v2912, 4294901760
        %v3003 = vsub.f32 %v2912, %v3002
        %v3004 = vand.u32 %v3003, 4294901760
        %v3005 = vsub.f32 %v3003, %v3004
        %v3006 = vand.u32 %v3005, 4294901760
        %3007 = vmatmul.mubr.f32.gmra.mxu0 %v3006
        %v3008 = vpop.f32.mrf.mxu0
        %v3009 = vadd.f32 %v2902, %v3008
        %v3010 = vpop.f32.mrf.mxu0
        %3011 = vdwg.mxu0
        %3012 = vmatprep.subr.mxu0 0.0
        %3013 = vmatpush1.msra.mxu0 0.0
        %3014 = vmatprep.subr.mxu0 0.0
        %3015 = vmatpush1.msra.mxu0 0.0
        %3016 = vmatprep.subr.mxu0 0.0
        %3017 = vmatpush1.msra.mxu0 0.0
        %3018 = vmatprep.subr.mxu0 0.0
        %3019 = vmatpush1.msra.mxu0 0.0
        %3020 = vmatprep.subr.mxu0 0.0
        %3021 = vmatpush1.msra.mxu0 0.0
        %3022 = vmatprep.subr.mxu0 0.0
        %3023 = vmatpush1.msra.mxu0 0.0
        %3024 = vmatprep.subr.mxu0 0.0
        %3025 = vmatpush1.msra.mxu0 0.0
        %3026 = vmatprep.subr.mxu0 0.0
        %3027 = vmatpush1.msra.mxu0 0.0
        %3028 = vmatprep.subr.mxu0 0.0
        %3029 = vmatpush1.msra.mxu0 0.0
        %3030 = vmatprep.subr.mxu0 0.0
        %3031 = vmatpush1.msra.mxu0 0.0
        %3032 = vmatprep.subr.mxu0 0.0
        %3033 = vmatpush1.msra.mxu0 0.0
        %3034 = vmatprep.subr.mxu0 0.0
        %3035 = vmatpush1.msra.mxu0 0.0
        %3036 = vmatprep.subr.mxu0 0.0
        %3037 = vmatpush1.msra.mxu0 0.0
        %3038 = vmatprep.subr.mxu0 0.0
        %v3039 = vand.u32 %v2259, 4294901760
        %v3040 = vsub.f32 %v2259, %v3039
        %v3041 = vand.u32 %v3040, 4294901760
        %v3042 = vsub.f32 %v3040, %v3041
        %v3043 = vand.u32 %v3042, 4294901760
        %3044 = vmatpush1.msra.mxu0 %v3043
        %3045 = vmatprep.subr.mxu0 0.0
        %v3046 = vand.u32 %v2258, 4294901760
        %v3047 = vsub.f32 %v2258, %v3046
        %v3048 = vand.u32 %v3047, 4294901760
        %v3049 = vsub.f32 %v3047, %v3048
        %v3050 = vand.u32 %v3049, 4294901760
        %3051 = vmatpush1.msra.mxu0 %v3050
        %3052 = vmatprep.subr.mxu0 0.0
        %v3053 = vand.u32 %v2257, 4294901760
        %v3054 = vsub.f32 %v2257, %v3053
        %v3055 = vand.u32 %v3054, 4294901760
        %v3056 = vsub.f32 %v3054, %v3055
        %v3057 = vand.u32 %v3056, 4294901760
        %3058 = vmatpush1.msra.mxu0 %v3057
        %3059 = vmatprep.subr.mxu0 0.0
        %3060 = vmatpush2.msra.mxu0 0.0
        %3061 = vmatprep.subr.mxu0 0.0
        %3062 = vmatpush2.msra.mxu0 0.0
        %3063 = vmatprep.subr.mxu0 0.0
        %3064 = vmatpush2.msra.mxu0 0.0
        %3065 = vmatprep.subr.mxu0 0.0
        %3066 = vmatpush2.msra.mxu0 0.0
        %3067 = vmatprep.subr.mxu0 0.0
        %3068 = vmatpush2.msra.mxu0 0.0
        %3069 = vmatprep.subr.mxu0 0.0
        %3070 = vmatpush2.msra.mxu0 0.0
        %3071 = vmatprep.subr.mxu0 0.0
        %3072 = vmatpush2.msra.mxu0 0.0
        %3073 = vmatprep.subr.mxu0 0.0
        %3074 = vmatpush2.msra.mxu0 0.0
        %3075 = vmatprep.subr.mxu0 0.0
        %3076 = vmatpush2.msra.mxu0 0.0
        %3077 = vmatprep.subr.mxu0 0.0
        %3078 = vmatpush2.msra.mxu0 0.0
        %3079 = vmatprep.subr.mxu0 0.0
        %3080 = vmatpush2.msra.mxu0 0.0
        %3081 = vmatprep.subr.mxu0 0.0
        %3082 = vmatpush2.msra.mxu0 0.0
        %3083 = vmatprep.subr.mxu0 0.0
        %3084 = vmatpush2.msra.mxu0 0.0
        %3085 = vmatprep.subr.mxu0 0.0
        %3086 = vmatpush2.msra.mxu0 0.0
        %3087 = vmatprep.subr.mxu0 0.0
        %3088 = vmatpush2.msra.mxu0 0.0
        %3089 = vmatprep.subr.mxu0 0.0
        %3090 = vmatpush2.msra.mxu0 0.0
        %3091 = vmatprep.mubr.f32.mxu0 0.0
        %v3092 = vand.u32 %v2906, 4294901760
        %3093 = vmatmul.mubr.f32.gmra.mxu0 %v3092
        %v3094 = vpop.f32.mrf.mxu0
        %v3095 = vadd.f32 %v2989, %v3094
        %v3096 = vpop.f32.mrf.mxu0
        %3097 = vmatprep.mubr.f32.mxu0 0.0
        %v3098 = vand.u32 %v2909, 4294901760
        %3099 = vmatmul.mubr.f32.gmra.mxu0 %v3098
        %v3100 = vpop.f32.mrf.mxu0
        %v3101 = vadd.f32 %v2999, %v3100
        %v3102 = vpop.f32.mrf.mxu0
        %3103 = vmatprep.mubr.f32.mxu0 0.0
        %v3104 = vand.u32 %v2912, 4294901760
        %3105 = vmatmul.mubr.f32.gmra.mxu0 %v3104
        %v3106 = vpop.f32.mrf.mxu0
        %v3107 = vadd.f32 %v3009, %v3106
        %v3108 = vpop.f32.mrf.mxu0
        %3109 = vdwg.mxu0
        %3110 = vmatprep.subr.mxu0 0.0
        %3111 = vmatpush1.msra.mxu0 0.0
        %3112 = vmatprep.subr.mxu0 0.0
        %3113 = vmatpush1.msra.mxu0 0.0
        %3114 = vmatprep.subr.mxu0 0.0
        %3115 = vmatpush1.msra.mxu0 0.0
        %3116 = vmatprep.subr.mxu0 0.0
        %3117 = vmatpush1.msra.mxu0 0.0
        %3118 = vmatprep.subr.mxu0 0.0
        %3119 = vmatpush1.msra.mxu0 0.0
        %3120 = vmatprep.subr.mxu0 0.0
        %3121 = vmatpush1.msra.mxu0 0.0
        %3122 = vmatprep.subr.mxu0 0.0
        %3123 = vmatpush1.msra.mxu0 0.0
        %3124 = vmatprep.subr.mxu0 0.0
        %3125 = vmatpush1.msra.mxu0 0.0
        %3126 = vmatprep.subr.mxu0 0.0
        %3127 = vmatpush1.msra.mxu0 0.0
        %3128 = vmatprep.subr.mxu0 0.0
        %3129 = vmatpush1.msra.mxu0 0.0
        %3130 = vmatprep.subr.mxu0 0.0
        %3131 = vmatpush1.msra.mxu0 0.0
        %3132 = vmatprep.subr.mxu0 0.0
        %3133 = vmatpush1.msra.mxu0 0.0
        %3134 = vmatprep.subr.mxu0 0.0
        %3135 = vmatpush1.msra.mxu0 0.0
        %3136 = vmatprep.subr.mxu0 0.0
        %v3137 = vand.u32 %v2259, 4294901760
        %v3138 = vsub.f32 %v2259, %v3137
        %3139 = vmatpush1.msra.mxu0 %v3138
        %3140 = vmatprep.subr.mxu0 0.0
        %v3141 = vand.u32 %v2258, 4294901760
        %v3142 = vsub.f32 %v2258, %v3141
        %3143 = vmatpush1.msra.mxu0 %v3142
        %3144 = vmatprep.subr.mxu0 0.0
        %v3145 = vand.u32 %v2257, 4294901760
        %v3146 = vsub.f32 %v2257, %v3145
        %3147 = vmatpush1.msra.mxu0 %v3146
        %3148 = vmatprep.subr.mxu0 0.0
        %3149 = vmatpush2.msra.mxu0 0.0
        %3150 = vmatprep.subr.mxu0 0.0
        %3151 = vmatpush2.msra.mxu0 0.0
        %3152 = vmatprep.subr.mxu0 0.0
        %3153 = vmatpush2.msra.mxu0 0.0
        %3154 = vmatprep.subr.mxu0 0.0
        %3155 = vmatpush2.msra.mxu0 0.0
        %3156 = vmatprep.subr.mxu0 0.0
        %3157 = vmatpush2.msra.mxu0 0.0
        %3158 = vmatprep.subr.mxu0 0.0
        %3159 = vmatpush2.msra.mxu0 0.0
        %3160 = vmatprep.subr.mxu0 0.0
        %3161 = vmatpush2.msra.mxu0 0.0
        %3162 = vmatprep.subr.mxu0 0.0
        %3163 = vmatpush2.msra.mxu0 0.0
        %3164 = vmatprep.subr.mxu0 0.0
        %3165 = vmatpush2.msra.mxu0 0.0
        %3166 = vmatprep.subr.mxu0 0.0
        %3167 = vmatpush2.msra.mxu0 0.0
        %3168 = vmatprep.subr.mxu0 0.0
        %3169 = vmatpush2.msra.mxu0 0.0
        %3170 = vmatprep.subr.mxu0 0.0
        %3171 = vmatpush2.msra.mxu0 0.0
        %3172 = vmatprep.subr.mxu0 0.0
        %3173 = vmatpush2.msra.mxu0 0.0
        %3174 = vmatprep.subr.mxu0 0.0
        %3175 = vmatpush2.msra.mxu0 0.0
        %3176 = vmatprep.subr.mxu0 0.0
        %3177 = vmatpush2.msra.mxu0 0.0
        %3178 = vmatprep.subr.mxu0 0.0
        %3179 = vmatpush2.msra.mxu0 0.0
        %3180 = vmatprep.mubr.f32.mxu0 0.0
        %v3181 = vand.u32 %v2906, 4294901760
        %v3182 = vsub.f32 %v2906, %v3181
        %3183 = vmatmul.mubr.f32.gmra.mxu0 %v3182
        %v3184 = vpop.f32.mrf.mxu0
        %v3185 = vadd.f32 %v3095, %v3184
        %v3186 = vpop.f32.mrf.mxu0
        %3187 = vmatprep.mubr.f32.mxu0 0.0
        %v3188 = vand.u32 %v2909, 4294901760
        %v3189 = vsub.f32 %v2909, %v3188
        %3190 = vmatmul.mubr.f32.gmra.mxu0 %v3189
        %v3191 = vpop.f32.mrf.mxu0
        %v3192 = vadd.f32 %v3101, %v3191
        %v3193 = vpop.f32.mrf.mxu0
        %3194 = vmatprep.mubr.f32.mxu0 0.0
        %v3195 = vand.u32 %v2912, 4294901760
        %v3196 = vsub.f32 %v2912, %v3195
        %3197 = vmatmul.mubr.f32.gmra.mxu0 %v3196
        %v3198 = vpop.f32.mrf.mxu0
        %v3199 = vadd.f32 %v3107, %v3198
        %v3200 = vpop.f32.mrf.mxu0
        %3201 = vdwg.mxu0
        %3202 = vmatprep.subr.mxu0 0.0
        %3203 = vmatpush1.msra.mxu0 0.0
        %3204 = vmatprep.subr.mxu0 0.0
        %3205 = vmatpush1.msra.mxu0 0.0
        %3206 = vmatprep.subr.mxu0 0.0
        %3207 = vmatpush1.msra.mxu0 0.0
        %3208 = vmatprep.subr.mxu0 0.0
        %3209 = vmatpush1.msra.mxu0 0.0
        %3210 = vmatprep.subr.mxu0 0.0
        %3211 = vmatpush1.msra.mxu0 0.0
        %3212 = vmatprep.subr.mxu0 0.0
        %3213 = vmatpush1.msra.mxu0 0.0
        %3214 = vmatprep.subr.mxu0 0.0
        %3215 = vmatpush1.msra.mxu0 0.0
        %3216 = vmatprep.subr.mxu0 0.0
        %3217 = vmatpush1.msra.mxu0 0.0
        %3218 = vmatprep.subr.mxu0 0.0
        %3219 = vmatpush1.msra.mxu0 0.0
        %3220 = vmatprep.subr.mxu0 0.0
        %3221 = vmatpush1.msra.mxu0 0.0
        %3222 = vmatprep.subr.mxu0 0.0
        %3223 = vmatpush1.msra.mxu0 0.0
        %3224 = vmatprep.subr.mxu0 0.0
        %3225 = vmatpush1.msra.mxu0 0.0
        %3226 = vmatprep.subr.mxu0 0.0
        %3227 = vmatpush1.msra.mxu0 0.0
        %3228 = vmatprep.subr.mxu0 0.0
        %v3229 = vand.u32 %v2259, 4294901760
        %3230 = vmatpush1.msra.mxu0 %v3229
        %3231 = vmatprep.subr.mxu0 0.0
        %v3232 = vand.u32 %v2258, 4294901760
        %3233 = vmatpush1.msra.mxu0 %v3232
        %3234 = vmatprep.subr.mxu0 0.0
        %v3235 = vand.u32 %v2257, 4294901760
        %3236 = vmatpush1.msra.mxu0 %v3235
        %3237 = vmatprep.subr.mxu0 0.0
        %3238 = vmatpush2.msra.mxu0 0.0
        %3239 = vmatprep.subr.mxu0 0.0
        %3240 = vmatpush2.msra.mxu0 0.0
        %3241 = vmatprep.subr.mxu0 0.0
        %3242 = vmatpush2.msra.mxu0 0.0
        %3243 = vmatprep.subr.mxu0 0.0
        %3244 = vmatpush2.msra.mxu0 0.0
        %3245 = vmatprep.subr.mxu0 0.0
        %3246 = vmatpush2.msra.mxu0 0.0
        %3247 = vmatprep.subr.mxu0 0.0
        %3248 = vmatpush2.msra.mxu0 0.0
        %3249 = vmatprep.subr.mxu0 0.0
        %3250 = vmatpush2.msra.mxu0 0.0
        %3251 = vmatprep.subr.mxu0 0.0
        %3252 = vmatpush2.msra.mxu0 0.0
        %3253 = vmatprep.subr.mxu0 0.0
        %3254 = vmatpush2.msra.mxu0 0.0
        %3255 = vmatprep.subr.mxu0 0.0
        %3256 = vmatpush2.msra.mxu0 0.0
        %3257 = vmatprep.subr.mxu0 0.0
        %3258 = vmatpush2.msra.mxu0 0.0
        %3259 = vmatprep.subr.mxu0 0.0
        %3260 = vmatpush2.msra.mxu0 0.0
        %3261 = vmatprep.subr.mxu0 0.0
        %3262 = vmatpush2.msra.mxu0 0.0
        %3263 = vmatprep.subr.mxu0 0.0
        %3264 = vmatpush2.msra.mxu0 0.0
        %3265 = vmatprep.subr.mxu0 0.0
        %3266 = vmatpush2.msra.mxu0 0.0
        %3267 = vmatprep.subr.mxu0 0.0
        %3268 = vmatpush2.msra.mxu0 0.0
        %3269 = vmatprep.mubr.f32.mxu0 0.0
        %v3270 = vand.u32 %v2906, 4294901760
        %v3271 = vsub.f32 %v2906, %v3270
        %v3272 = vand.u32 %v3271, 4294901760
        %3273 = vmatmul.mubr.f32.gmra.mxu0 %v3272
        %v3274 = vpop.f32.mrf.mxu0
        %v3275 = vadd.f32 %v3185, %v3274
        %v3276 = vpop.f32.mrf.mxu0
        %3277 = vmatprep.mubr.f32.mxu0 0.0
        %v3278 = vand.u32 %v2909, 4294901760
        %v3279 = vsub.f32 %v2909, %v3278
        %v3280 = vand.u32 %v3279, 4294901760
        %3281 = vmatmul.mubr.f32.gmra.mxu0 %v3280
        %v3282 = vpop.f32.mrf.mxu0
        %v3283 = vadd.f32 %v3192, %v3282
        %v3284 = vpop.f32.mrf.mxu0
        %3285 = vmatprep.mubr.f32.mxu0 0.0
        %v3286 = vand.u32 %v2912, 4294901760
        %v3287 = vsub.f32 %v2912, %v3286
        %v3288 = vand.u32 %v3287, 4294901760
        %3289 = vmatmul.mubr.f32.gmra.mxu0 %v3288
        %v3290 = vpop.f32.mrf.mxu0
        %v3291 = vadd.f32 %v3199, %v3290
        %v3292 = vpop.f32.mrf.mxu0
        %3293 = vdwg.mxu0
        %3294 = vmatprep.subr.mxu0 0.0
        %3295 = vmatpush1.msra.mxu0 0.0
        %3296 = vmatprep.subr.mxu0 0.0
        %3297 = vmatpush1.msra.mxu0 0.0
        %3298 = vmatprep.subr.mxu0 0.0
        %3299 = vmatpush1.msra.mxu0 0.0
        %3300 = vmatprep.subr.mxu0 0.0
        %3301 = vmatpush1.msra.mxu0 0.0
        %3302 = vmatprep.subr.mxu0 0.0
        %3303 = vmatpush1.msra.mxu0 0.0
        %3304 = vmatprep.subr.mxu0 0.0
        %3305 = vmatpush1.msra.mxu0 0.0
        %3306 = vmatprep.subr.mxu0 0.0
        %3307 = vmatpush1.msra.mxu0 0.0
        %3308 = vmatprep.subr.mxu0 0.0
        %3309 = vmatpush1.msra.mxu0 0.0
        %3310 = vmatprep.subr.mxu0 0.0
        %3311 = vmatpush1.msra.mxu0 0.0
        %3312 = vmatprep.subr.mxu0 0.0
        %3313 = vmatpush1.msra.mxu0 0.0
        %3314 = vmatprep.subr.mxu0 0.0
        %3315 = vmatpush1.msra.mxu0 0.0
        %3316 = vmatprep.subr.mxu0 0.0
        %3317 = vmatpush1.msra.mxu0 0.0
        %3318 = vmatprep.subr.mxu0 0.0
        %3319 = vmatpush1.msra.mxu0 0.0
        %3320 = vmatprep.subr.mxu0 0.0
        %v3321 = vand.u32 %v2259, 4294901760
        %v3322 = vsub.f32 %v2259, %v3321
        %v3323 = vand.u32 %v3322, 4294901760
        %3324 = vmatpush1.msra.mxu0 %v3323
        %3325 = vmatprep.subr.mxu0 0.0
        %v3326 = vand.u32 %v2258, 4294901760
        %v3327 = vsub.f32 %v2258, %v3326
        %v3328 = vand.u32 %v3327, 4294901760
        %3329 = vmatpush1.msra.mxu0 %v3328
        %3330 = vmatprep.subr.mxu0 0.0
        %v3331 = vand.u32 %v2257, 4294901760
        %v3332 = vsub.f32 %v2257, %v3331
        %v3333 = vand.u32 %v3332, 4294901760
        %3334 = vmatpush1.msra.mxu0 %v3333
        %3335 = vmatprep.subr.mxu0 0.0
        %3336 = vmatpush2.msra.mxu0 0.0
        %3337 = vmatprep.subr.mxu0 0.0
        %3338 = vmatpush2.msra.mxu0 0.0
        %3339 = vmatprep.subr.mxu0 0.0
        %3340 = vmatpush2.msra.mxu0 0.0
        %3341 = vmatprep.subr.mxu0 0.0
        %3342 = vmatpush2.msra.mxu0 0.0
        %3343 = vmatprep.subr.mxu0 0.0
        %3344 = vmatpush2.msra.mxu0 0.0
        %3345 = vmatprep.subr.mxu0 0.0
        %3346 = vmatpush2.msra.mxu0 0.0
        %3347 = vmatprep.subr.mxu0 0.0
        %3348 = vmatpush2.msra.mxu0 0.0
        %3349 = vmatprep.subr.mxu0 0.0
        %3350 = vmatpush2.msra.mxu0 0.0
        %3351 = vmatprep.subr.mxu0 0.0
        %3352 = vmatpush2.msra.mxu0 0.0
        %3353 = vmatprep.subr.mxu0 0.0
        %3354 = vmatpush2.msra.mxu0 0.0
        %3355 = vmatprep.subr.mxu0 0.0
        %3356 = vmatpush2.msra.mxu0 0.0
        %3357 = vmatprep.subr.mxu0 0.0
        %3358 = vmatpush2.msra.mxu0 0.0
        %3359 = vmatprep.subr.mxu0 0.0
        %3360 = vmatpush2.msra.mxu0 0.0
        %3361 = vmatprep.subr.mxu0 0.0
        %3362 = vmatpush2.msra.mxu0 0.0
        %3363 = vmatprep.subr.mxu0 0.0
        %3364 = vmatpush2.msra.mxu0 0.0
        %3365 = vmatprep.subr.mxu0 0.0
        %3366 = vmatpush2.msra.mxu0 0.0
        %3367 = vmatprep.mubr.f32.mxu0 0.0
        %v3368 = vand.u32 %v2906, 4294901760
        %3369 = vmatmul.mubr.f32.gmra.mxu0 %v3368
        %v3370 = vpop.f32.mrf.mxu0
        %v3371 = vadd.f32 %v3275, %v3370
        %v3372 = vpop.f32.mrf.mxu0
        %3373 = vmatprep.mubr.f32.mxu0 0.0
        %v3374 = vand.u32 %v2909, 4294901760
        %3375 = vmatmul.mubr.f32.gmra.mxu0 %v3374
        %v3376 = vpop.f32.mrf.mxu0
        %v3377 = vadd.f32 %v3283, %v3376
        %v3378 = vpop.f32.mrf.mxu0
        %3379 = vmatprep.mubr.f32.mxu0 0.0
        %v3380 = vand.u32 %v2912, 4294901760
        %3381 = vmatmul.mubr.f32.gmra.mxu0 %v3380
        %v3382 = vpop.f32.mrf.mxu0
        %v3383 = vadd.f32 %v3291, %v3382
        %v3384 = vpop.f32.mrf.mxu0
        %3385 = vdwg.mxu0
        %3386 = vmatprep.subr.mxu0 0.0
        %3387 = vmatpush1.msra.mxu0 0.0
        %3388 = vmatprep.subr.mxu0 0.0
        %3389 = vmatpush1.msra.mxu0 0.0
        %3390 = vmatprep.subr.mxu0 0.0
        %3391 = vmatpush1.msra.mxu0 0.0
        %3392 = vmatprep.subr.mxu0 0.0
        %3393 = vmatpush1.msra.mxu0 0.0
        %3394 = vmatprep.subr.mxu0 0.0
        %3395 = vmatpush1.msra.mxu0 0.0
        %3396 = vmatprep.subr.mxu0 0.0
        %3397 = vmatpush1.msra.mxu0 0.0
        %3398 = vmatprep.subr.mxu0 0.0
        %3399 = vmatpush1.msra.mxu0 0.0
        %3400 = vmatprep.subr.mxu0 0.0
        %3401 = vmatpush1.msra.mxu0 0.0
        %3402 = vmatprep.subr.mxu0 0.0
        %3403 = vmatpush1.msra.mxu0 0.0
        %3404 = vmatprep.subr.mxu0 0.0
        %3405 = vmatpush1.msra.mxu0 0.0
        %3406 = vmatprep.subr.mxu0 0.0
        %3407 = vmatpush1.msra.mxu0 0.0
        %3408 = vmatprep.subr.mxu0 0.0
        %3409 = vmatpush1.msra.mxu0 0.0
        %3410 = vmatprep.subr.mxu0 0.0
        %3411 = vmatpush1.msra.mxu0 0.0
        %3412 = vmatprep.subr.mxu0 0.0
        %v3413 = vand.u32 %v2259, 4294901760
        %3414 = vmatpush1.msra.mxu0 %v3413
        %3415 = vmatprep.subr.mxu0 0.0
        %v3416 = vand.u32 %v2258, 4294901760
        %3417 = vmatpush1.msra.mxu0 %v3416
        %3418 = vmatprep.subr.mxu0 0.0
        %v3419 = vand.u32 %v2257, 4294901760
        %3420 = vmatpush1.msra.mxu0 %v3419
        %3421 = vmatprep.subr.mxu0 0.0
        %3422 = vmatpush2.msra.mxu0 0.0
        %3423 = vmatprep.subr.mxu0 0.0
        %3424 = vmatpush2.msra.mxu0 0.0
        %3425 = vmatprep.subr.mxu0 0.0
        %3426 = vmatpush2.msra.mxu0 0.0
        %3427 = vmatprep.subr.mxu0 0.0
        %3428 = vmatpush2.msra.mxu0 0.0
        %3429 = vmatprep.subr.mxu0 0.0
        %3430 = vmatpush2.msra.mxu0 0.0
        %3431 = vmatprep.subr.mxu0 0.0
        %3432 = vmatpush2.msra.mxu0 0.0
        %3433 = vmatprep.subr.mxu0 0.0
        %3434 = vmatpush2.msra.mxu0 0.0
        %3435 = vmatprep.subr.mxu0 0.0
        %3436 = vmatpush2.msra.mxu0 0.0
        %3437 = vmatprep.subr.mxu0 0.0
        %3438 = vmatpush2.msra.mxu0 0.0
        %3439 = vmatprep.subr.mxu0 0.0
        %3440 = vmatpush2.msra.mxu0 0.0
        %3441 = vmatprep.subr.mxu0 0.0
        %3442 = vmatpush2.msra.mxu0 0.0
        %3443 = vmatprep.subr.mxu0 0.0
        %3444 = vmatpush2.msra.mxu0 0.0
        %3445 = vmatprep.subr.mxu0 0.0
        %3446 = vmatpush2.msra.mxu0 0.0
        %3447 = vmatprep.subr.mxu0 0.0
        %3448 = vmatpush2.msra.mxu0 0.0
        %3449 = vmatprep.subr.mxu0 0.0
        %3450 = vmatpush2.msra.mxu0 0.0
        %3451 = vmatprep.subr.mxu0 0.0
        %3452 = vmatpush2.msra.mxu0 0.0
        %3453 = vmatprep.mubr.f32.mxu0 0.0
        %v3454 = vand.u32 %v2906, 4294901760
        %3455 = vmatmul.mubr.f32.gmra.mxu0 %v3454
        %v3456 = vpop.f32.mrf.mxu0
        %v3457 = vadd.f32 %v3371, %v3456
        %v3458 = vpop.f32.mrf.mxu0
        %3459 = vmatprep.mubr.f32.mxu0 0.0
        %v3460 = vand.u32 %v2909, 4294901760
        %3461 = vmatmul.mubr.f32.gmra.mxu0 %v3460
        %v3462 = vpop.f32.mrf.mxu0
        %v3463 = vadd.f32 %v3377, %v3462
        %v3464 = vpop.f32.mrf.mxu0
        %3465 = vmatprep.mubr.f32.mxu0 0.0
        %v3466 = vand.u32 %v2912, 4294901760
        %3467 = vmatmul.mubr.f32.gmra.mxu0 %v3466
        %v3468 = vpop.f32.mrf.mxu0
        %v3469 = vadd.f32 %v3383, %v3468
        %v3470 = vpop.f32.mrf.mxu0
        %3471 = vdwg.mxu0
        %3472 = vset.pattern.permute.xlu0 2
        %3473 = vperm.xlu0 %3472, %v2150
        %v3474 = vpop.permute.xlu0 %3473
        %3476 = vset.pattern.permute.xlu0 2
        %3477 = vperm.xlu0 %3476, %v2156
        %v3478 = vpop.permute.xlu0 %3477
        %3480 = vset.pattern.permute.xlu0 2
        %3481 = vperm.xlu0 %3480, %v2162
        %v3482 = vpop.permute.xlu0 %3481
        %v3484 = vlaneseq
        %v3485 = vshrl.u32 %v3484, 7
        %v3486 = vsub.s32 2, %v3485
        %v3487 = vrot.slane %v1629, %v3486
        %v3488 = vadd.f32 %v3474, %v3487
        %v3489 = vadd.f32 %v3478, %v3487
        %v3490 = vadd.f32 %v3482, %v3487
        %vm3491 = vcmp.gt.f32.partialorder %v3488, 0.0
        %vm3492 = vcmp.gt.f32.partialorder %v3489, 0.0
        %vm3493 = vcmp.gt.f32.partialorder %v3490, 0.0
        %v3494 = vmul.f32 %v3488, 0.2
        %v3495 = vmul.f32 %v3489, 0.2
        %v3496 = vmul.f32 %v3490, 0.2
        %v3497 = vsel %vm3491, %v3488, %v3494
        %v3498 = vsel %vm3492, %v3489, %v3495
        %v3499 = vsel %vm3493, %v3490, %v3496
        %v3500 = vsel %vm2175, %v3497, -1e+30
        %v3501 = vsel %vm2176, %v3498, -1e+30
        %v3502 = vsel %vm2177, %v3499, -1e+30
        %v3503 = vsel %vm2212, %v3500, -inf
        %3504 = vmax.xlane.f32.xlu0 %v3503
        %v3505 = vpop.xlane.xlu0 %3504
        %v3506 = vsel %vm2212, %v3501, -inf
        %3507 = vmax.xlane.f32.xlu0 %v3506
        %v3508 = vpop.xlane.xlu0 %3507
        %v3509 = vsel %vm2212, %v3502, -inf
        %3510 = vmax.xlane.f32.xlu0 %v3509
        %v3511 = vpop.xlane.xlu0 %3510
        %v3512 = vsub.f32 %v3500, %v3505
        %v3513 = vsub.f32 %v3501, %v3508
        %v3514 = vsub.f32 %v3502, %v3511
        %v3515 = vmul.f32 %v3512, 1.442695
        %v3516 = vpow.pop %v3515
        %v3517 = vmul.f32 %v3513, 1.442695
        %v3518 = vpow.pop %v3517
        %v3519 = vmul.f32 %v3514, 1.442695
        %v3520 = vpow.pop %v3519
        %v3521 = vsel %vm2175, %v3516, 0.0
        %v3522 = vsel %vm2176, %v3518, 0.0
        %v3523 = vsel %vm2177, %v3520, 0.0
        %v3524 = vsel %vm2212, %v3521, 0.0
        %3525 = vadd.xlane.f32.xlu0 %v3524
        %v3526 = vpop.xlane.xlu0 %3525
        %v3527 = vsel %vm2212, %v3522, 0.0
        %3528 = vadd.xlane.f32.xlu0 %v3527
        %v3529 = vpop.xlane.xlu0 %3528
        %v3530 = vsel %vm2212, %v3523, 0.0
        %3531 = vadd.xlane.f32.xlu0 %v3530
        %v3532 = vpop.xlane.xlu0 %3531
        %v3533 = vmax.f32 %v3526, 1e-09
        %v3534 = vmax.f32 %v3529, 1e-09
        %v3535 = vmax.f32 %v3532, 1e-09
        %v3536 = vrcp.pop %v3533
        %v3537 = vrcp.pop %v3534
        %v3538 = vrcp.pop %v3535
        %v3539 = vmul.f32 %v3521, %v3536
        %v3540 = vmul.f32 %v3522, %v3537
        %v3541 = vmul.f32 %v3523, %v3538
        %vm3542 = vcmp.ge.s32.totalorder %v2171, 32
        %vm3543 = vcmp.lt.s32.totalorder %v2171, 48
        %vm3544 = vmand %vm3542, %vm3543
        %v3545 = vsel %vm3544, 1, 0
        %vm3546 = vcmp.eq.s32.totalorder %v3545, 1
        %v3547 = vsel %vm3546, %v1144, 0.0
        %v3548 = vsel %vm3546, %v1150, 0.0
        %v3549 = vsel %vm3546, %v1156, 0.0
        %v3551 = vsel %vm2212, %v3539, 0
        %v3554 = vsel %vm2212, %v3540, 0
        %v3557 = vsel %vm2212, %v3541, 0
        %3559 = vmatprep.subr.mxu0 0.0
        %3560 = vmatpush1.msra.mxu0 0.0
        %3561 = vmatprep.subr.mxu0 0.0
        %3562 = vmatpush1.msra.mxu0 0.0
        %3563 = vmatprep.subr.mxu0 0.0
        %3564 = vmatpush1.msra.mxu0 0.0
        %3565 = vmatprep.subr.mxu0 0.0
        %3566 = vmatpush1.msra.mxu0 0.0
        %3567 = vmatprep.subr.mxu0 0.0
        %3568 = vmatpush1.msra.mxu0 0.0
        %3569 = vmatprep.subr.mxu0 0.0
        %3570 = vmatpush1.msra.mxu0 0.0
        %3571 = vmatprep.subr.mxu0 0.0
        %3572 = vmatpush1.msra.mxu0 0.0
        %3573 = vmatprep.subr.mxu0 0.0
        %3574 = vmatpush1.msra.mxu0 0.0
        %3575 = vmatprep.subr.mxu0 0.0
        %3576 = vmatpush1.msra.mxu0 0.0
        %3577 = vmatprep.subr.mxu0 0.0
        %3578 = vmatpush1.msra.mxu0 0.0
        %3579 = vmatprep.subr.mxu0 0.0
        %3580 = vmatpush1.msra.mxu0 0.0
        %3581 = vmatprep.subr.mxu0 0.0
        %3582 = vmatpush1.msra.mxu0 0.0
        %3583 = vmatprep.subr.mxu0 0.0
        %3584 = vmatpush1.msra.mxu0 0.0
        %3585 = vmatprep.subr.mxu0 0.0
        %v3586 = vand.u32 %v3549, 4294901760
        %3587 = vmatpush1.msra.mxu0 %v3586
        %3588 = vmatprep.subr.mxu0 0.0
        %v3589 = vand.u32 %v3548, 4294901760
        %3590 = vmatpush1.msra.mxu0 %v3589
        %3591 = vmatprep.subr.mxu0 0.0
        %v3592 = vand.u32 %v3547, 4294901760
        %3593 = vmatpush1.msra.mxu0 %v3592
        %3594 = vmatprep.subr.mxu0 0.0
        %3595 = vmatpush2.msra.mxu0 0.0
        %3596 = vmatprep.subr.mxu0 0.0
        %3597 = vmatpush2.msra.mxu0 0.0
        %3598 = vmatprep.subr.mxu0 0.0
        %3599 = vmatpush2.msra.mxu0 0.0
        %3600 = vmatprep.subr.mxu0 0.0
        %3601 = vmatpush2.msra.mxu0 0.0
        %3602 = vmatprep.subr.mxu0 0.0
        %3603 = vmatpush2.msra.mxu0 0.0
        %3604 = vmatprep.subr.mxu0 0.0
        %3605 = vmatpush2.msra.mxu0 0.0
        %3606 = vmatprep.subr.mxu0 0.0
        %3607 = vmatpush2.msra.mxu0 0.0
        %3608 = vmatprep.subr.mxu0 0.0
        %3609 = vmatpush2.msra.mxu0 0.0
        %3610 = vmatprep.subr.mxu0 0.0
        %3611 = vmatpush2.msra.mxu0 0.0
        %3612 = vmatprep.subr.mxu0 0.0
        %3613 = vmatpush2.msra.mxu0 0.0
        %3614 = vmatprep.subr.mxu0 0.0
        %3615 = vmatpush2.msra.mxu0 0.0
        %3616 = vmatprep.subr.mxu0 0.0
        %3617 = vmatpush2.msra.mxu0 0.0
        %3618 = vmatprep.subr.mxu0 0.0
        %3619 = vmatpush2.msra.mxu0 0.0
        %3620 = vmatprep.subr.mxu0 0.0
        %3621 = vmatpush2.msra.mxu0 0.0
        %3622 = vmatprep.subr.mxu0 0.0
        %3623 = vmatpush2.msra.mxu0 0.0
        %3624 = vmatprep.subr.mxu0 0.0
        %3625 = vmatpush2.msra.mxu0 0.0
        %3626 = vmatprep.mubr.f32.mxu0 0.0
        %v3627 = vand.u32 %v3551, 4294901760
        %v3628 = vsub.f32 %v3551, %v3627
        %v3629 = vand.u32 %v3628, 4294901760
        %v3630 = vsub.f32 %v3628, %v3629
        %v3631 = vand.u32 %v3630, 4294901760
        %3632 = vmatmul.mubr.f32.gmra.mxu0 %v3631
        %v3633 = vpop.f32.mrf.mxu0
        %v3634 = vadd.f32 0.0, %v3633
        %v3635 = vpop.f32.mrf.mxu0
        %3636 = vmatprep.mubr.f32.mxu0 0.0
        %v3637 = vand.u32 %v3554, 4294901760
        %v3638 = vsub.f32 %v3554, %v3637
        %v3639 = vand.u32 %v3638, 4294901760
        %v3640 = vsub.f32 %v3638, %v3639
        %v3641 = vand.u32 %v3640, 4294901760
        %3642 = vmatmul.mubr.f32.gmra.mxu0 %v3641
        %v3643 = vpop.f32.mrf.mxu0
        %v3644 = vadd.f32 0.0, %v3643
        %v3645 = vpop.f32.mrf.mxu0
        %3646 = vmatprep.mubr.f32.mxu0 0.0
        %v3647 = vand.u32 %v3557, 4294901760
        %v3648 = vsub.f32 %v3557, %v3647
        %v3649 = vand.u32 %v3648, 4294901760
        %v3650 = vsub.f32 %v3648, %v3649
        %v3651 = vand.u32 %v3650, 4294901760
        %3652 = vmatmul.mubr.f32.gmra.mxu0 %v3651
        %v3653 = vpop.f32.mrf.mxu0
        %v3654 = vadd.f32 0.0, %v3653
        %v3655 = vpop.f32.mrf.mxu0
        %3656 = vdwg.mxu0
        %3657 = vmatprep.subr.mxu0 0.0
        %3658 = vmatpush1.msra.mxu0 0.0
        %3659 = vmatprep.subr.mxu0 0.0
        %3660 = vmatpush1.msra.mxu0 0.0
        %3661 = vmatprep.subr.mxu0 0.0
        %3662 = vmatpush1.msra.mxu0 0.0
        %3663 = vmatprep.subr.mxu0 0.0
        %3664 = vmatpush1.msra.mxu0 0.0
        %3665 = vmatprep.subr.mxu0 0.0
        %3666 = vmatpush1.msra.mxu0 0.0
        %3667 = vmatprep.subr.mxu0 0.0
        %3668 = vmatpush1.msra.mxu0 0.0
        %3669 = vmatprep.subr.mxu0 0.0
        %3670 = vmatpush1.msra.mxu0 0.0
        %3671 = vmatprep.subr.mxu0 0.0
        %3672 = vmatpush1.msra.mxu0 0.0
        %3673 = vmatprep.subr.mxu0 0.0
        %3674 = vmatpush1.msra.mxu0 0.0
        %3675 = vmatprep.subr.mxu0 0.0
        %3676 = vmatpush1.msra.mxu0 0.0
        %3677 = vmatprep.subr.mxu0 0.0
        %3678 = vmatpush1.msra.mxu0 0.0
        %3679 = vmatprep.subr.mxu0 0.0
        %3680 = vmatpush1.msra.mxu0 0.0
        %3681 = vmatprep.subr.mxu0 0.0
        %3682 = vmatpush1.msra.mxu0 0.0
        %3683 = vmatprep.subr.mxu0 0.0
        %v3684 = vand.u32 %v3549, 4294901760
        %v3685 = vsub.f32 %v3549, %v3684
        %v3686 = vand.u32 %v3685, 4294901760
        %v3687 = vsub.f32 %v3685, %v3686
        %v3688 = vand.u32 %v3687, 4294901760
        %3689 = vmatpush1.msra.mxu0 %v3688
        %3690 = vmatprep.subr.mxu0 0.0
        %v3691 = vand.u32 %v3548, 4294901760
        %v3692 = vsub.f32 %v3548, %v3691
        %v3693 = vand.u32 %v3692, 4294901760
        %v3694 = vsub.f32 %v3692, %v3693
        %v3695 = vand.u32 %v3694, 4294901760
        %3696 = vmatpush1.msra.mxu0 %v3695
        %3697 = vmatprep.subr.mxu0 0.0
        %v3698 = vand.u32 %v3547, 4294901760
        %v3699 = vsub.f32 %v3547, %v3698
        %v3700 = vand.u32 %v3699, 4294901760
        %v3701 = vsub.f32 %v3699, %v3700
        %v3702 = vand.u32 %v3701, 4294901760
        %3703 = vmatpush1.msra.mxu0 %v3702
        %3704 = vmatprep.subr.mxu0 0.0
        %3705 = vmatpush2.msra.mxu0 0.0
        %3706 = vmatprep.subr.mxu0 0.0
        %3707 = vmatpush2.msra.mxu0 0.0
        %3708 = vmatprep.subr.mxu0 0.0
        %3709 = vmatpush2.msra.mxu0 0.0
        %3710 = vmatprep.subr.mxu0 0.0
        %3711 = vmatpush2.msra.mxu0 0.0
        %3712 = vmatprep.subr.mxu0 0.0
        %3713 = vmatpush2.msra.mxu0 0.0
        %3714 = vmatprep.subr.mxu0 0.0
        %3715 = vmatpush2.msra.mxu0 0.0
        %3716 = vmatprep.subr.mxu0 0.0
        %3717 = vmatpush2.msra.mxu0 0.0
        %3718 = vmatprep.subr.mxu0 0.0
        %3719 = vmatpush2.msra.mxu0 0.0
        %3720 = vmatprep.subr.mxu0 0.0
        %3721 = vmatpush2.msra.mxu0 0.0
        %3722 = vmatprep.subr.mxu0 0.0
        %3723 = vmatpush2.msra.mxu0 0.0
        %3724 = vmatprep.subr.mxu0 0.0
        %3725 = vmatpush2.msra.mxu0 0.0
        %3726 = vmatprep.subr.mxu0 0.0
        %3727 = vmatpush2.msra.mxu0 0.0
        %3728 = vmatprep.subr.mxu0 0.0
        %3729 = vmatpush2.msra.mxu0 0.0
        %3730 = vmatprep.subr.mxu0 0.0
        %3731 = vmatpush2.msra.mxu0 0.0
        %3732 = vmatprep.subr.mxu0 0.0
        %3733 = vmatpush2.msra.mxu0 0.0
        %3734 = vmatprep.subr.mxu0 0.0
        %3735 = vmatpush2.msra.mxu0 0.0
        %3736 = vmatprep.mubr.f32.mxu0 0.0
        %v3737 = vand.u32 %v3551, 4294901760
        %3738 = vmatmul.mubr.f32.gmra.mxu0 %v3737
        %v3739 = vpop.f32.mrf.mxu0
        %v3740 = vadd.f32 %v3634, %v3739
        %v3741 = vpop.f32.mrf.mxu0
        %3742 = vmatprep.mubr.f32.mxu0 0.0
        %v3743 = vand.u32 %v3554, 4294901760
        %3744 = vmatmul.mubr.f32.gmra.mxu0 %v3743
        %v3745 = vpop.f32.mrf.mxu0
        %v3746 = vadd.f32 %v3644, %v3745
        %v3747 = vpop.f32.mrf.mxu0
        %3748 = vmatprep.mubr.f32.mxu0 0.0
        %v3749 = vand.u32 %v3557, 4294901760
        %3750 = vmatmul.mubr.f32.gmra.mxu0 %v3749
        %v3751 = vpop.f32.mrf.mxu0
        %v3752 = vadd.f32 %v3654, %v3751
        %v3753 = vpop.f32.mrf.mxu0
        %3754 = vdwg.mxu0
        %3755 = vmatprep.subr.mxu0 0.0
        %3756 = vmatpush1.msra.mxu0 0.0
        %3757 = vmatprep.subr.mxu0 0.0
        %3758 = vmatpush1.msra.mxu0 0.0
        %3759 = vmatprep.subr.mxu0 0.0
        %3760 = vmatpush1.msra.mxu0 0.0
        %3761 = vmatprep.subr.mxu0 0.0
        %3762 = vmatpush1.msra.mxu0 0.0
        %3763 = vmatprep.subr.mxu0 0.0
        %3764 = vmatpush1.msra.mxu0 0.0
        %3765 = vmatprep.subr.mxu0 0.0
        %3766 = vmatpush1.msra.mxu0 0.0
        %3767 = vmatprep.subr.mxu0 0.0
        %3768 = vmatpush1.msra.mxu0 0.0
        %3769 = vmatprep.subr.mxu0 0.0
        %3770 = vmatpush1.msra.mxu0 0.0
        %3771 = vmatprep.subr.mxu0 0.0
        %3772 = vmatpush1.msra.mxu0 0.0
        %3773 = vmatprep.subr.mxu0 0.0
        %3774 = vmatpush1.msra.mxu0 0.0
        %3775 = vmatprep.subr.mxu0 0.0
        %3776 = vmatpush1.msra.mxu0 0.0
        %3777 = vmatprep.subr.mxu0 0.0
        %3778 = vmatpush1.msra.mxu0 0.0
        %3779 = vmatprep.subr.mxu0 0.0
        %3780 = vmatpush1.msra.mxu0 0.0
        %3781 = vmatprep.subr.mxu0 0.0
        %v3782 = vand.u32 %v3549, 4294901760
        %v3783 = vsub.f32 %v3549, %v3782
        %3784 = vmatpush1.msra.mxu0 %v3783
        %3785 = vmatprep.subr.mxu0 0.0
        %v3786 = vand.u32 %v3548, 4294901760
        %v3787 = vsub.f32 %v3548, %v3786
        %3788 = vmatpush1.msra.mxu0 %v3787
        %3789 = vmatprep.subr.mxu0 0.0
        %v3790 = vand.u32 %v3547, 4294901760
        %v3791 = vsub.f32 %v3547, %v3790
        %3792 = vmatpush1.msra.mxu0 %v3791
        %3793 = vmatprep.subr.mxu0 0.0
        %3794 = vmatpush2.msra.mxu0 0.0
        %3795 = vmatprep.subr.mxu0 0.0
        %3796 = vmatpush2.msra.mxu0 0.0
        %3797 = vmatprep.subr.mxu0 0.0
        %3798 = vmatpush2.msra.mxu0 0.0
        %3799 = vmatprep.subr.mxu0 0.0
        %3800 = vmatpush2.msra.mxu0 0.0
        %3801 = vmatprep.subr.mxu0 0.0
        %3802 = vmatpush2.msra.mxu0 0.0
        %3803 = vmatprep.subr.mxu0 0.0
        %3804 = vmatpush2.msra.mxu0 0.0
        %3805 = vmatprep.subr.mxu0 0.0
        %3806 = vmatpush2.msra.mxu0 0.0
        %3807 = vmatprep.subr.mxu0 0.0
        %3808 = vmatpush2.msra.mxu0 0.0
        %3809 = vmatprep.subr.mxu0 0.0
        %3810 = vmatpush2.msra.mxu0 0.0
        %3811 = vmatprep.subr.mxu0 0.0
        %3812 = vmatpush2.msra.mxu0 0.0
        %3813 = vmatprep.subr.mxu0 0.0
        %3814 = vmatpush2.msra.mxu0 0.0
        %3815 = vmatprep.subr.mxu0 0.0
        %3816 = vmatpush2.msra.mxu0 0.0
        %3817 = vmatprep.subr.mxu0 0.0
        %3818 = vmatpush2.msra.mxu0 0.0
        %3819 = vmatprep.subr.mxu0 0.0
        %3820 = vmatpush2.msra.mxu0 0.0
        %3821 = vmatprep.subr.mxu0 0.0
        %3822 = vmatpush2.msra.mxu0 0.0
        %3823 = vmatprep.subr.mxu0 0.0
        %3824 = vmatpush2.msra.mxu0 0.0
        %3825 = vmatprep.mubr.f32.mxu0 0.0
        %v3826 = vand.u32 %v3551, 4294901760
        %v3827 = vsub.f32 %v3551, %v3826
        %3828 = vmatmul.mubr.f32.gmra.mxu0 %v3827
        %v3829 = vpop.f32.mrf.mxu0
        %v3830 = vadd.f32 %v3740, %v3829
        %v3831 = vpop.f32.mrf.mxu0
        %3832 = vmatprep.mubr.f32.mxu0 0.0
        %v3833 = vand.u32 %v3554, 4294901760
        %v3834 = vsub.f32 %v3554, %v3833
        %3835 = vmatmul.mubr.f32.gmra.mxu0 %v3834
        %v3836 = vpop.f32.mrf.mxu0
        %v3837 = vadd.f32 %v3746, %v3836
        %v3838 = vpop.f32.mrf.mxu0
        %3839 = vmatprep.mubr.f32.mxu0 0.0
        %v3840 = vand.u32 %v3557, 4294901760
        %v3841 = vsub.f32 %v3557, %v3840
        %3842 = vmatmul.mubr.f32.gmra.mxu0 %v3841
        %v3843 = vpop.f32.mrf.mxu0
        %v3844 = vadd.f32 %v3752, %v3843
        %v3845 = vpop.f32.mrf.mxu0
        %3846 = vdwg.mxu0
        %3847 = vmatprep.subr.mxu0 0.0
        %3848 = vmatpush1.msra.mxu0 0.0
        %3849 = vmatprep.subr.mxu0 0.0
        %3850 = vmatpush1.msra.mxu0 0.0
        %3851 = vmatprep.subr.mxu0 0.0
        %3852 = vmatpush1.msra.mxu0 0.0
        %3853 = vmatprep.subr.mxu0 0.0
        %3854 = vmatpush1.msra.mxu0 0.0
        %3855 = vmatprep.subr.mxu0 0.0
        %3856 = vmatpush1.msra.mxu0 0.0
        %3857 = vmatprep.subr.mxu0 0.0
        %3858 = vmatpush1.msra.mxu0 0.0
        %3859 = vmatprep.subr.mxu0 0.0
        %3860 = vmatpush1.msra.mxu0 0.0
        %3861 = vmatprep.subr.mxu0 0.0
        %3862 = vmatpush1.msra.mxu0 0.0
        %3863 = vmatprep.subr.mxu0 0.0
        %3864 = vmatpush1.msra.mxu0 0.0
        %3865 = vmatprep.subr.mxu0 0.0
        %3866 = vmatpush1.msra.mxu0 0.0
        %3867 = vmatprep.subr.mxu0 0.0
        %3868 = vmatpush1.msra.mxu0 0.0
        %3869 = vmatprep.subr.mxu0 0.0
        %3870 = vmatpush1.msra.mxu0 0.0
        %3871 = vmatprep.subr.mxu0 0.0
        %3872 = vmatpush1.msra.mxu0 0.0
        %3873 = vmatprep.subr.mxu0 0.0
        %v3874 = vand.u32 %v3549, 4294901760
        %3875 = vmatpush1.msra.mxu0 %v3874
        %3876 = vmatprep.subr.mxu0 0.0
        %v3877 = vand.u32 %v3548, 4294901760
        %3878 = vmatpush1.msra.mxu0 %v3877
        %3879 = vmatprep.subr.mxu0 0.0
        %v3880 = vand.u32 %v3547, 4294901760
        %3881 = vmatpush1.msra.mxu0 %v3880
        %3882 = vmatprep.subr.mxu0 0.0
        %3883 = vmatpush2.msra.mxu0 0.0
        %3884 = vmatprep.subr.mxu0 0.0
        %3885 = vmatpush2.msra.mxu0 0.0
        %3886 = vmatprep.subr.mxu0 0.0
        %3887 = vmatpush2.msra.mxu0 0.0
        %3888 = vmatprep.subr.mxu0 0.0
        %3889 = vmatpush2.msra.mxu0 0.0
        %3890 = vmatprep.subr.mxu0 0.0
        %3891 = vmatpush2.msra.mxu0 0.0
        %3892 = vmatprep.subr.mxu0 0.0
        %3893 = vmatpush2.msra.mxu0 0.0
        %3894 = vmatprep.subr.mxu0 0.0
        %3895 = vmatpush2.msra.mxu0 0.0
        %3896 = vmatprep.subr.mxu0 0.0
        %3897 = vmatpush2.msra.mxu0 0.0
        %3898 = vmatprep.subr.mxu0 0.0
        %3899 = vmatpush2.msra.mxu0 0.0
        %3900 = vmatprep.subr.mxu0 0.0
        %3901 = vmatpush2.msra.mxu0 0.0
        %3902 = vmatprep.subr.mxu0 0.0
        %3903 = vmatpush2.msra.mxu0 0.0
        %3904 = vmatprep.subr.mxu0 0.0
        %3905 = vmatpush2.msra.mxu0 0.0
        %3906 = vmatprep.subr.mxu0 0.0
        %3907 = vmatpush2.msra.mxu0 0.0
        %3908 = vmatprep.subr.mxu0 0.0
        %3909 = vmatpush2.msra.mxu0 0.0
        %3910 = vmatprep.subr.mxu0 0.0
        %3911 = vmatpush2.msra.mxu0 0.0
        %3912 = vmatprep.subr.mxu0 0.0
        %3913 = vmatpush2.msra.mxu0 0.0
        %3914 = vmatprep.mubr.f32.mxu0 0.0
        %v3915 = vand.u32 %v3551, 4294901760
        %v3916 = vsub.f32 %v3551, %v3915
        %v3917 = vand.u32 %v3916, 4294901760
        %3918 = vmatmul.mubr.f32.gmra.mxu0 %v3917
        %v3919 = vpop.f32.mrf.mxu0
        %v3920 = vadd.f32 %v3830, %v3919
        %v3921 = vpop.f32.mrf.mxu0
        %3922 = vmatprep.mubr.f32.mxu0 0.0
        %v3923 = vand.u32 %v3554, 4294901760
        %v3924 = vsub.f32 %v3554, %v3923
        %v3925 = vand.u32 %v3924, 4294901760
        %3926 = vmatmul.mubr.f32.gmra.mxu0 %v3925
        %v3927 = vpop.f32.mrf.mxu0
        %v3928 = vadd.f32 %v3837, %v3927
        %v3929 = vpop.f32.mrf.mxu0
        %3930 = vmatprep.mubr.f32.mxu0 0.0
        %v3931 = vand.u32 %v3557, 4294901760
        %v3932 = vsub.f32 %v3557, %v3931
        %v3933 = vand.u32 %v3932, 4294901760
        %3934 = vmatmul.mubr.f32.gmra.mxu0 %v3933
        %v3935 = vpop.f32.mrf.mxu0
        %v3936 = vadd.f32 %v3844, %v3935
        %v3937 = vpop.f32.mrf.mxu0
        %3938 = vdwg.mxu0
        %3939 = vmatprep.subr.mxu0 0.0
        %3940 = vmatpush1.msra.mxu0 0.0
        %3941 = vmatprep.subr.mxu0 0.0
        %3942 = vmatpush1.msra.mxu0 0.0
        %3943 = vmatprep.subr.mxu0 0.0
        %3944 = vmatpush1.msra.mxu0 0.0
        %3945 = vmatprep.subr.mxu0 0.0
        %3946 = vmatpush1.msra.mxu0 0.0
        %3947 = vmatprep.subr.mxu0 0.0
        %3948 = vmatpush1.msra.mxu0 0.0
        %3949 = vmatprep.subr.mxu0 0.0
        %3950 = vmatpush1.msra.mxu0 0.0
        %3951 = vmatprep.subr.mxu0 0.0
        %3952 = vmatpush1.msra.mxu0 0.0
        %3953 = vmatprep.subr.mxu0 0.0
        %3954 = vmatpush1.msra.mxu0 0.0
        %3955 = vmatprep.subr.mxu0 0.0
        %3956 = vmatpush1.msra.mxu0 0.0
        %3957 = vmatprep.subr.mxu0 0.0
        %3958 = vmatpush1.msra.mxu0 0.0
        %3959 = vmatprep.subr.mxu0 0.0
        %3960 = vmatpush1.msra.mxu0 0.0
        %3961 = vmatprep.subr.mxu0 0.0
        %3962 = vmatpush1.msra.mxu0 0.0
        %3963 = vmatprep.subr.mxu0 0.0
        %3964 = vmatpush1.msra.mxu0 0.0
        %3965 = vmatprep.subr.mxu0 0.0
        %v3966 = vand.u32 %v3549, 4294901760
        %v3967 = vsub.f32 %v3549, %v3966
        %v3968 = vand.u32 %v3967, 4294901760
        %3969 = vmatpush1.msra.mxu0 %v3968
        %3970 = vmatprep.subr.mxu0 0.0
        %v3971 = vand.u32 %v3548, 4294901760
        %v3972 = vsub.f32 %v3548, %v3971
        %v3973 = vand.u32 %v3972, 4294901760
        %3974 = vmatpush1.msra.mxu0 %v3973
        %3975 = vmatprep.subr.mxu0 0.0
        %v3976 = vand.u32 %v3547, 4294901760
        %v3977 = vsub.f32 %v3547, %v3976
        %v3978 = vand.u32 %v3977, 4294901760
        %3979 = vmatpush1.msra.mxu0 %v3978
        %3980 = vmatprep.subr.mxu0 0.0
        %3981 = vmatpush2.msra.mxu0 0.0
        %3982 = vmatprep.subr.mxu0 0.0
        %3983 = vmatpush2.msra.mxu0 0.0
        %3984 = vmatprep.subr.mxu0 0.0
        %3985 = vmatpush2.msra.mxu0 0.0
        %3986 = vmatprep.subr.mxu0 0.0
        %3987 = vmatpush2.msra.mxu0 0.0
        %3988 = vmatprep.subr.mxu0 0.0
        %3989 = vmatpush2.msra.mxu0 0.0
        %3990 = vmatprep.subr.mxu0 0.0
        %3991 = vmatpush2.msra.mxu0 0.0
        %3992 = vmatprep.subr.mxu0 0.0
        %3993 = vmatpush2.msra.mxu0 0.0
        %3994 = vmatprep.subr.mxu0 0.0
        %3995 = vmatpush2.msra.mxu0 0.0
        %3996 = vmatprep.subr.mxu0 0.0
        %3997 = vmatpush2.msra.mxu0 0.0
        %3998 = vmatprep.subr.mxu0 0.0
        %3999 = vmatpush2.msra.mxu0 0.0
        %4000 = vmatprep.subr.mxu0 0.0
        %4001 = vmatpush2.msra.mxu0 0.0
        %4002 = vmatprep.subr.mxu0 0.0
        %4003 = vmatpush2.msra.mxu0 0.0
        %4004 = vmatprep.subr.mxu0 0.0
        %4005 = vmatpush2.msra.mxu0 0.0
        %4006 = vmatprep.subr.mxu0 0.0
        %4007 = vmatpush2.msra.mxu0 0.0
        %4008 = vmatprep.subr.mxu0 0.0
        %4009 = vmatpush2.msra.mxu0 0.0
        %4010 = vmatprep.subr.mxu0 0.0
        %4011 = vmatpush2.msra.mxu0 0.0
        %4012 = vmatprep.mubr.f32.mxu0 0.0
        %v4013 = vand.u32 %v3551, 4294901760
        %4014 = vmatmul.mubr.f32.gmra.mxu0 %v4013
        %v4015 = vpop.f32.mrf.mxu0
        %v4016 = vadd.f32 %v3920, %v4015
        %v4017 = vpop.f32.mrf.mxu0
        %4018 = vmatprep.mubr.f32.mxu0 0.0
        %v4019 = vand.u32 %v3554, 4294901760
        %4020 = vmatmul.mubr.f32.gmra.mxu0 %v4019
        %v4021 = vpop.f32.mrf.mxu0
        %v4022 = vadd.f32 %v3928, %v4021
        %v4023 = vpop.f32.mrf.mxu0
        %4024 = vmatprep.mubr.f32.mxu0 0.0
        %v4025 = vand.u32 %v3557, 4294901760
        %4026 = vmatmul.mubr.f32.gmra.mxu0 %v4025
        %v4027 = vpop.f32.mrf.mxu0
        %v4028 = vadd.f32 %v3936, %v4027
        %v4029 = vpop.f32.mrf.mxu0
        %4030 = vdwg.mxu0
        %4031 = vmatprep.subr.mxu0 0.0
        %4032 = vmatpush1.msra.mxu0 0.0
        %4033 = vmatprep.subr.mxu0 0.0
        %4034 = vmatpush1.msra.mxu0 0.0
        %4035 = vmatprep.subr.mxu0 0.0
        %4036 = vmatpush1.msra.mxu0 0.0
        %4037 = vmatprep.subr.mxu0 0.0
        %4038 = vmatpush1.msra.mxu0 0.0
        %4039 = vmatprep.subr.mxu0 0.0
        %4040 = vmatpush1.msra.mxu0 0.0
        %4041 = vmatprep.subr.mxu0 0.0
        %4042 = vmatpush1.msra.mxu0 0.0
        %4043 = vmatprep.subr.mxu0 0.0
        %4044 = vmatpush1.msra.mxu0 0.0
        %4045 = vmatprep.subr.mxu0 0.0
        %4046 = vmatpush1.msra.mxu0 0.0
        %4047 = vmatprep.subr.mxu0 0.0
        %4048 = vmatpush1.msra.mxu0 0.0
        %4049 = vmatprep.subr.mxu0 0.0
        %4050 = vmatpush1.msra.mxu0 0.0
        %4051 = vmatprep.subr.mxu0 0.0
        %4052 = vmatpush1.msra.mxu0 0.0
        %4053 = vmatprep.subr.mxu0 0.0
        %4054 = vmatpush1.msra.mxu0 0.0
        %4055 = vmatprep.subr.mxu0 0.0
        %4056 = vmatpush1.msra.mxu0 0.0
        %4057 = vmatprep.subr.mxu0 0.0
        %v4058 = vand.u32 %v3549, 4294901760
        %4059 = vmatpush1.msra.mxu0 %v4058
        %4060 = vmatprep.subr.mxu0 0.0
        %v4061 = vand.u32 %v3548, 4294901760
        %4062 = vmatpush1.msra.mxu0 %v4061
        %4063 = vmatprep.subr.mxu0 0.0
        %v4064 = vand.u32 %v3547, 4294901760
        %4065 = vmatpush1.msra.mxu0 %v4064
        %4066 = vmatprep.subr.mxu0 0.0
        %4067 = vmatpush2.msra.mxu0 0.0
        %4068 = vmatprep.subr.mxu0 0.0
        %4069 = vmatpush2.msra.mxu0 0.0
        %4070 = vmatprep.subr.mxu0 0.0
        %4071 = vmatpush2.msra.mxu0 0.0
        %4072 = vmatprep.subr.mxu0 0.0
        %4073 = vmatpush2.msra.mxu0 0.0
        %4074 = vmatprep.subr.mxu0 0.0
        %4075 = vmatpush2.msra.mxu0 0.0
        %4076 = vmatprep.subr.mxu0 0.0
        %4077 = vmatpush2.msra.mxu0 0.0
        %4078 = vmatprep.subr.mxu0 0.0
        %4079 = vmatpush2.msra.mxu0 0.0
        %4080 = vmatprep.subr.mxu0 0.0
        %4081 = vmatpush2.msra.mxu0 0.0
        %4082 = vmatprep.subr.mxu0 0.0
        %4083 = vmatpush2.msra.mxu0 0.0
        %4084 = vmatprep.subr.mxu0 0.0
        %4085 = vmatpush2.msra.mxu0 0.0
        %4086 = vmatprep.subr.mxu0 0.0
        %4087 = vmatpush2.msra.mxu0 0.0
        %4088 = vmatprep.subr.mxu0 0.0
        %4089 = vmatpush2.msra.mxu0 0.0
        %4090 = vmatprep.subr.mxu0 0.0
        %4091 = vmatpush2.msra.mxu0 0.0
        %4092 = vmatprep.subr.mxu0 0.0
        %4093 = vmatpush2.msra.mxu0 0.0
        %4094 = vmatprep.subr.mxu0 0.0
        %4095 = vmatpush2.msra.mxu0 0.0
        %4096 = vmatprep.subr.mxu0 0.0
        %4097 = vmatpush2.msra.mxu0 0.0
        %4098 = vmatprep.mubr.f32.mxu0 0.0
        %v4099 = vand.u32 %v3551, 4294901760
        %4100 = vmatmul.mubr.f32.gmra.mxu0 %v4099
        %v4101 = vpop.f32.mrf.mxu0
        %v4102 = vadd.f32 %v4016, %v4101
        %v4103 = vpop.f32.mrf.mxu0
        %4104 = vmatprep.mubr.f32.mxu0 0.0
        %v4105 = vand.u32 %v3554, 4294901760
        %4106 = vmatmul.mubr.f32.gmra.mxu0 %v4105
        %v4107 = vpop.f32.mrf.mxu0
        %v4108 = vadd.f32 %v4022, %v4107
        %v4109 = vpop.f32.mrf.mxu0
        %4110 = vmatprep.mubr.f32.mxu0 0.0
        %v4111 = vand.u32 %v3557, 4294901760
        %4112 = vmatmul.mubr.f32.gmra.mxu0 %v4111
        %v4113 = vpop.f32.mrf.mxu0
        %v4114 = vadd.f32 %v4028, %v4113
        %v4115 = vpop.f32.mrf.mxu0
        %4116 = vdwg.mxu0
        %v4117 = vadd.f32 %v3457, %v4102
        %v4118 = vadd.f32 %v3463, %v4108
        %v4119 = vadd.f32 %v3469, %v4114
        %4120 = vset.pattern.permute.xlu0 3
        %4121 = vperm.xlu0 %4120, %v2150
        %v4122 = vpop.permute.xlu0 %4121
        %4124 = vset.pattern.permute.xlu0 3
        %4125 = vperm.xlu0 %4124, %v2156
        %v4126 = vpop.permute.xlu0 %4125
        %4128 = vset.pattern.permute.xlu0 3
        %4129 = vperm.xlu0 %4128, %v2162
        %v4130 = vpop.permute.xlu0 %4129
        %v4132 = vlaneseq
        %v4133 = vshrl.u32 %v4132, 7
        %v4134 = vsub.s32 3, %v4133
        %v4135 = vrot.slane %v1629, %v4134
        %v4136 = vadd.f32 %v4122, %v4135
        %v4137 = vadd.f32 %v4126, %v4135
        %v4138 = vadd.f32 %v4130, %v4135
        %vm4139 = vcmp.gt.f32.partialorder %v4136, 0.0
        %vm4140 = vcmp.gt.f32.partialorder %v4137, 0.0
        %vm4141 = vcmp.gt.f32.partialorder %v4138, 0.0
        %v4142 = vmul.f32 %v4136, 0.2
        %v4143 = vmul.f32 %v4137, 0.2
        %v4144 = vmul.f32 %v4138, 0.2
        %v4145 = vsel %vm4139, %v4136, %v4142
        %v4146 = vsel %vm4140, %v4137, %v4143
        %v4147 = vsel %vm4141, %v4138, %v4144
        %v4148 = vsel %vm2175, %v4145, -1e+30
        %v4149 = vsel %vm2176, %v4146, -1e+30
        %v4150 = vsel %vm2177, %v4147, -1e+30
        %v4151 = vsel %vm2212, %v4148, -inf
        %4152 = vmax.xlane.f32.xlu0 %v4151
        %v4153 = vpop.xlane.xlu0 %4152
        %v4154 = vsel %vm2212, %v4149, -inf
        %4155 = vmax.xlane.f32.xlu0 %v4154
        %v4156 = vpop.xlane.xlu0 %4155
        %v4157 = vsel %vm2212, %v4150, -inf
        %4158 = vmax.xlane.f32.xlu0 %v4157
        %v4159 = vpop.xlane.xlu0 %4158
        %v4160 = vsub.f32 %v4148, %v4153
        %v4161 = vsub.f32 %v4149, %v4156
        %v4162 = vsub.f32 %v4150, %v4159
        %v4163 = vmul.f32 %v4160, 1.442695
        %v4164 = vpow.pop %v4163
        %v4165 = vmul.f32 %v4161, 1.442695
        %v4166 = vpow.pop %v4165
        %v4167 = vmul.f32 %v4162, 1.442695
        %v4168 = vpow.pop %v4167
        %v4169 = vsel %vm2175, %v4164, 0.0
        %v4170 = vsel %vm2176, %v4166, 0.0
        %v4171 = vsel %vm2177, %v4168, 0.0
        %v4172 = vsel %vm2212, %v4169, 0.0
        %4173 = vadd.xlane.f32.xlu0 %v4172
        %v4174 = vpop.xlane.xlu0 %4173
        %v4175 = vsel %vm2212, %v4170, 0.0
        %4176 = vadd.xlane.f32.xlu0 %v4175
        %v4177 = vpop.xlane.xlu0 %4176
        %v4178 = vsel %vm2212, %v4171, 0.0
        %4179 = vadd.xlane.f32.xlu0 %v4178
        %v4180 = vpop.xlane.xlu0 %4179
        %v4181 = vmax.f32 %v4174, 1e-09
        %v4182 = vmax.f32 %v4177, 1e-09
        %v4183 = vmax.f32 %v4180, 1e-09
        %v4184 = vrcp.pop %v4181
        %v4185 = vrcp.pop %v4182
        %v4186 = vrcp.pop %v4183
        %v4187 = vmul.f32 %v4169, %v4184
        %v4188 = vmul.f32 %v4170, %v4185
        %v4189 = vmul.f32 %v4171, %v4186
        %vm4190 = vcmp.ge.s32.totalorder %v2171, 48
        %vm4191 = vcmp.lt.s32.totalorder %v2171, 64
        %vm4192 = vmand %vm4190, %vm4191
        %v4193 = vsel %vm4192, 1, 0
        %vm4194 = vcmp.eq.s32.totalorder %v4193, 1
        %v4195 = vsel %vm4194, %v1144, 0.0
        %v4196 = vsel %vm4194, %v1150, 0.0
        %v4197 = vsel %vm4194, %v1156, 0.0
        %v4199 = vsel %vm2212, %v4187, 0
        %v4202 = vsel %vm2212, %v4188, 0
        %v4205 = vsel %vm2212, %v4189, 0
        %4207 = vmatprep.subr.mxu0 0.0
        %4208 = vmatpush1.msra.mxu0 0.0
        %4209 = vmatprep.subr.mxu0 0.0
        %4210 = vmatpush1.msra.mxu0 0.0
        %4211 = vmatprep.subr.mxu0 0.0
        %4212 = vmatpush1.msra.mxu0 0.0
        %4213 = vmatprep.subr.mxu0 0.0
        %4214 = vmatpush1.msra.mxu0 0.0
        %4215 = vmatprep.subr.mxu0 0.0
        %4216 = vmatpush1.msra.mxu0 0.0
        %4217 = vmatprep.subr.mxu0 0.0
        %4218 = vmatpush1.msra.mxu0 0.0
        %4219 = vmatprep.subr.mxu0 0.0
        %4220 = vmatpush1.msra.mxu0 0.0
        %4221 = vmatprep.subr.mxu0 0.0
        %4222 = vmatpush1.msra.mxu0 0.0
        %4223 = vmatprep.subr.mxu0 0.0
        %4224 = vmatpush1.msra.mxu0 0.0
        %4225 = vmatprep.subr.mxu0 0.0
        %4226 = vmatpush1.msra.mxu0 0.0
        %4227 = vmatprep.subr.mxu0 0.0
        %4228 = vmatpush1.msra.mxu0 0.0
        %4229 = vmatprep.subr.mxu0 0.0
        %4230 = vmatpush1.msra.mxu0 0.0
        %4231 = vmatprep.subr.mxu0 0.0
        %4232 = vmatpush1.msra.mxu0 0.0
        %4233 = vmatprep.subr.mxu0 0.0
        %v4234 = vand.u32 %v4197, 4294901760
        %4235 = vmatpush1.msra.mxu0 %v4234
        %4236 = vmatprep.subr.mxu0 0.0
        %v4237 = vand.u32 %v4196, 4294901760
        %4238 = vmatpush1.msra.mxu0 %v4237
        %4239 = vmatprep.subr.mxu0 0.0
        %v4240 = vand.u32 %v4195, 4294901760
        %4241 = vmatpush1.msra.mxu0 %v4240
        %4242 = vmatprep.subr.mxu0 0.0
        %4243 = vmatpush2.msra.mxu0 0.0
        %4244 = vmatprep.subr.mxu0 0.0
        %4245 = vmatpush2.msra.mxu0 0.0
        %4246 = vmatprep.subr.mxu0 0.0
        %4247 = vmatpush2.msra.mxu0 0.0
        %4248 = vmatprep.subr.mxu0 0.0
        %4249 = vmatpush2.msra.mxu0 0.0
        %4250 = vmatprep.subr.mxu0 0.0
        %4251 = vmatpush2.msra.mxu0 0.0
        %4252 = vmatprep.subr.mxu0 0.0
        %4253 = vmatpush2.msra.mxu0 0.0
        %4254 = vmatprep.subr.mxu0 0.0
        %4255 = vmatpush2.msra.mxu0 0.0
        %4256 = vmatprep.subr.mxu0 0.0
        %4257 = vmatpush2.msra.mxu0 0.0
        %4258 = vmatprep.subr.mxu0 0.0
        %4259 = vmatpush2.msra.mxu0 0.0
        %4260 = vmatprep.subr.mxu0 0.0
        %4261 = vmatpush2.msra.mxu0 0.0
        %4262 = vmatprep.subr.mxu0 0.0
        %4263 = vmatpush2.msra.mxu0 0.0
        %4264 = vmatprep.subr.mxu0 0.0
        %4265 = vmatpush2.msra.mxu0 0.0
        %4266 = vmatprep.subr.mxu0 0.0
        %4267 = vmatpush2.msra.mxu0 0.0
        %4268 = vmatprep.subr.mxu0 0.0
        %4269 = vmatpush2.msra.mxu0 0.0
        %4270 = vmatprep.subr.mxu0 0.0
        %4271 = vmatpush2.msra.mxu0 0.0
        %4272 = vmatprep.subr.mxu0 0.0
        %4273 = vmatpush2.msra.mxu0 0.0
        %4274 = vmatprep.mubr.f32.mxu0 0.0
        %v4275 = vand.u32 %v4199, 4294901760
        %v4276 = vsub.f32 %v4199, %v4275
        %v4277 = vand.u32 %v4276, 4294901760
        %v4278 = vsub.f32 %v4276, %v4277
        %v4279 = vand.u32 %v4278, 4294901760
        %4280 = vmatmul.mubr.f32.gmra.mxu0 %v4279
        %v4281 = vpop.f32.mrf.mxu0
        %v4282 = vadd.f32 0.0, %v4281
        %v4283 = vpop.f32.mrf.mxu0
        %4284 = vmatprep.mubr.f32.mxu0 0.0
        %v4285 = vand.u32 %v4202, 4294901760
        %v4286 = vsub.f32 %v4202, %v4285
        %v4287 = vand.u32 %v4286, 4294901760
        %v4288 = vsub.f32 %v4286, %v4287
        %v4289 = vand.u32 %v4288, 4294901760
        %4290 = vmatmul.mubr.f32.gmra.mxu0 %v4289
        %v4291 = vpop.f32.mrf.mxu0
        %v4292 = vadd.f32 0.0, %v4291
        %v4293 = vpop.f32.mrf.mxu0
        %4294 = vmatprep.mubr.f32.mxu0 0.0
        %v4295 = vand.u32 %v4205, 4294901760
        %v4296 = vsub.f32 %v4205, %v4295
        %v4297 = vand.u32 %v4296, 4294901760
        %v4298 = vsub.f32 %v4296, %v4297
        %v4299 = vand.u32 %v4298, 4294901760
        %4300 = vmatmul.mubr.f32.gmra.mxu0 %v4299
        %v4301 = vpop.f32.mrf.mxu0
        %v4302 = vadd.f32 0.0, %v4301
        %v4303 = vpop.f32.mrf.mxu0
        %4304 = vdwg.mxu0
        %4305 = vmatprep.subr.mxu0 0.0
        %4306 = vmatpush1.msra.mxu0 0.0
        %4307 = vmatprep.subr.mxu0 0.0
        %4308 = vmatpush1.msra.mxu0 0.0
        %4309 = vmatprep.subr.mxu0 0.0
        %4310 = vmatpush1.msra.mxu0 0.0
        %4311 = vmatprep.subr.mxu0 0.0
        %4312 = vmatpush1.msra.mxu0 0.0
        %4313 = vmatprep.subr.mxu0 0.0
        %4314 = vmatpush1.msra.mxu0 0.0
        %4315 = vmatprep.subr.mxu0 0.0
        %4316 = vmatpush1.msra.mxu0 0.0
        %4317 = vmatprep.subr.mxu0 0.0
        %4318 = vmatpush1.msra.mxu0 0.0
        %4319 = vmatprep.subr.mxu0 0.0
        %4320 = vmatpush1.msra.mxu0 0.0
        %4321 = vmatprep.subr.mxu0 0.0
        %4322 = vmatpush1.msra.mxu0 0.0
        %4323 = vmatprep.subr.mxu0 0.0
        %4324 = vmatpush1.msra.mxu0 0.0
        %4325 = vmatprep.subr.mxu0 0.0
        %4326 = vmatpush1.msra.mxu0 0.0
        %4327 = vmatprep.subr.mxu0 0.0
        %4328 = vmatpush1.msra.mxu0 0.0
        %4329 = vmatprep.subr.mxu0 0.0
        %4330 = vmatpush1.msra.mxu0 0.0
        %4331 = vmatprep.subr.mxu0 0.0
        %v4332 = vand.u32 %v4197, 4294901760
        %v4333 = vsub.f32 %v4197, %v4332
        %v4334 = vand.u32 %v4333, 4294901760
        %v4335 = vsub.f32 %v4333, %v4334
        %v4336 = vand.u32 %v4335, 4294901760
        %4337 = vmatpush1.msra.mxu0 %v4336
        %4338 = vmatprep.subr.mxu0 0.0
        %v4339 = vand.u32 %v4196, 4294901760
        %v4340 = vsub.f32 %v4196, %v4339
        %v4341 = vand.u32 %v4340, 4294901760
        %v4342 = vsub.f32 %v4340, %v4341
        %v4343 = vand.u32 %v4342, 4294901760
        %4344 = vmatpush1.msra.mxu0 %v4343
        %4345 = vmatprep.subr.mxu0 0.0
        %v4346 = vand.u32 %v4195, 4294901760
        %v4347 = vsub.f32 %v4195, %v4346
        %v4348 = vand.u32 %v4347, 4294901760
        %v4349 = vsub.f32 %v4347, %v4348
        %v4350 = vand.u32 %v4349, 4294901760
        %4351 = vmatpush1.msra.mxu0 %v4350
        %4352 = vmatprep.subr.mxu0 0.0
        %4353 = vmatpush2.msra.mxu0 0.0
        %4354 = vmatprep.subr.mxu0 0.0
        %4355 = vmatpush2.msra.mxu0 0.0
        %4356 = vmatprep.subr.mxu0 0.0
        %4357 = vmatpush2.msra.mxu0 0.0
        %4358 = vmatprep.subr.mxu0 0.0
        %4359 = vmatpush2.msra.mxu0 0.0
        %4360 = vmatprep.subr.mxu0 0.0
        %4361 = vmatpush2.msra.mxu0 0.0
        %4362 = vmatprep.subr.mxu0 0.0
        %4363 = vmatpush2.msra.mxu0 0.0
        %4364 = vmatprep.subr.mxu0 0.0
        %4365 = vmatpush2.msra.mxu0 0.0
        %4366 = vmatprep.subr.mxu0 0.0
        %4367 = vmatpush2.msra.mxu0 0.0
        %4368 = vmatprep.subr.mxu0 0.0
        %4369 = vmatpush2.msra.mxu0 0.0
        %4370 = vmatprep.subr.mxu0 0.0
        %4371 = vmatpush2.msra.mxu0 0.0
        %4372 = vmatprep.subr.mxu0 0.0
        %4373 = vmatpush2.msra.mxu0 0.0
        %4374 = vmatprep.subr.mxu0 0.0
        %4375 = vmatpush2.msra.mxu0 0.0
        %4376 = vmatprep.subr.mxu0 0.0
        %4377 = vmatpush2.msra.mxu0 0.0
        %4378 = vmatprep.subr.mxu0 0.0
        %4379 = vmatpush2.msra.mxu0 0.0
        %4380 = vmatprep.subr.mxu0 0.0
        %4381 = vmatpush2.msra.mxu0 0.0
        %4382 = vmatprep.subr.mxu0 0.0
        %4383 = vmatpush2.msra.mxu0 0.0
        %4384 = vmatprep.mubr.f32.mxu0 0.0
        %v4385 = vand.u32 %v4199, 4294901760
        %4386 = vmatmul.mubr.f32.gmra.mxu0 %v4385
        %v4387 = vpop.f32.mrf.mxu0
        %v4388 = vadd.f32 %v4282, %v4387
        %v4389 = vpop.f32.mrf.mxu0
        %4390 = vmatprep.mubr.f32.mxu0 0.0
        %v4391 = vand.u32 %v4202, 4294901760
        %4392 = vmatmul.mubr.f32.gmra.mxu0 %v4391
        %v4393 = vpop.f32.mrf.mxu0
        %v4394 = vadd.f32 %v4292, %v4393
        %v4395 = vpop.f32.mrf.mxu0
        %4396 = vmatprep.mubr.f32.mxu0 0.0
        %v4397 = vand.u32 %v4205, 4294901760
        %4398 = vmatmul.mubr.f32.gmra.mxu0 %v4397
        %v4399 = vpop.f32.mrf.mxu0
        %v4400 = vadd.f32 %v4302, %v4399
        %v4401 = vpop.f32.mrf.mxu0
        %4402 = vdwg.mxu0
        %4403 = vmatprep.subr.mxu0 0.0
        %4404 = vmatpush1.msra.mxu0 0.0
        %4405 = vmatprep.subr.mxu0 0.0
        %4406 = vmatpush1.msra.mxu0 0.0
        %4407 = vmatprep.subr.mxu0 0.0
        %4408 = vmatpush1.msra.mxu0 0.0
        %4409 = vmatprep.subr.mxu0 0.0
        %4410 = vmatpush1.msra.mxu0 0.0
        %4411 = vmatprep.subr.mxu0 0.0
        %4412 = vmatpush1.msra.mxu0 0.0
        %4413 = vmatprep.subr.mxu0 0.0
        %4414 = vmatpush1.msra.mxu0 0.0
        %4415 = vmatprep.subr.mxu0 0.0
        %4416 = vmatpush1.msra.mxu0 0.0
        %4417 = vmatprep.subr.mxu0 0.0
        %4418 = vmatpush1.msra.mxu0 0.0
        %4419 = vmatprep.subr.mxu0 0.0
        %4420 = vmatpush1.msra.mxu0 0.0
        %4421 = vmatprep.subr.mxu0 0.0
        %4422 = vmatpush1.msra.mxu0 0.0
        %4423 = vmatprep.subr.mxu0 0.0
        %4424 = vmatpush1.msra.mxu0 0.0
        %4425 = vmatprep.subr.mxu0 0.0
        %4426 = vmatpush1.msra.mxu0 0.0
        %4427 = vmatprep.subr.mxu0 0.0
        %4428 = vmatpush1.msra.mxu0 0.0
        %4429 = vmatprep.subr.mxu0 0.0
        %v4430 = vand.u32 %v4197, 4294901760
        %v4431 = vsub.f32 %v4197, %v4430
        %4432 = vmatpush1.msra.mxu0 %v4431
        %4433 = vmatprep.subr.mxu0 0.0
        %v4434 = vand.u32 %v4196, 4294901760
        %v4435 = vsub.f32 %v4196, %v4434
        %4436 = vmatpush1.msra.mxu0 %v4435
        %4437 = vmatprep.subr.mxu0 0.0
        %v4438 = vand.u32 %v4195, 4294901760
        %v4439 = vsub.f32 %v4195, %v4438
        %4440 = vmatpush1.msra.mxu0 %v4439
        %4441 = vmatprep.subr.mxu0 0.0
        %4442 = vmatpush2.msra.mxu0 0.0
        %4443 = vmatprep.subr.mxu0 0.0
        %4444 = vmatpush2.msra.mxu0 0.0
        %4445 = vmatprep.subr.mxu0 0.0
        %4446 = vmatpush2.msra.mxu0 0.0
        %4447 = vmatprep.subr.mxu0 0.0
        %4448 = vmatpush2.msra.mxu0 0.0
        %4449 = vmatprep.subr.mxu0 0.0
        %4450 = vmatpush2.msra.mxu0 0.0
        %4451 = vmatprep.subr.mxu0 0.0
        %4452 = vmatpush2.msra.mxu0 0.0
        %4453 = vmatprep.subr.mxu0 0.0
        %4454 = vmatpush2.msra.mxu0 0.0
        %4455 = vmatprep.subr.mxu0 0.0
        %4456 = vmatpush2.msra.mxu0 0.0
        %4457 = vmatprep.subr.mxu0 0.0
        %4458 = vmatpush2.msra.mxu0 0.0
        %4459 = vmatprep.subr.mxu0 0.0
        %4460 = vmatpush2.msra.mxu0 0.0
        %4461 = vmatprep.subr.mxu0 0.0
        %4462 = vmatpush2.msra.mxu0 0.0
        %4463 = vmatprep.subr.mxu0 0.0
        %4464 = vmatpush2.msra.mxu0 0.0
        %4465 = vmatprep.subr.mxu0 0.0
        %4466 = vmatpush2.msra.mxu0 0.0
        %4467 = vmatprep.subr.mxu0 0.0
        %4468 = vmatpush2.msra.mxu0 0.0
        %4469 = vmatprep.subr.mxu0 0.0
        %4470 = vmatpush2.msra.mxu0 0.0
        %4471 = vmatprep.subr.mxu0 0.0
        %4472 = vmatpush2.msra.mxu0 0.0
        %4473 = vmatprep.mubr.f32.mxu0 0.0
        %v4474 = vand.u32 %v4199, 4294901760
        %v4475 = vsub.f32 %v4199, %v4474
        %4476 = vmatmul.mubr.f32.gmra.mxu0 %v4475
        %v4477 = vpop.f32.mrf.mxu0
        %v4478 = vadd.f32 %v4388, %v4477
        %v4479 = vpop.f32.mrf.mxu0
        %4480 = vmatprep.mubr.f32.mxu0 0.0
        %v4481 = vand.u32 %v4202, 4294901760
        %v4482 = vsub.f32 %v4202, %v4481
        %4483 = vmatmul.mubr.f32.gmra.mxu0 %v4482
        %v4484 = vpop.f32.mrf.mxu0
        %v4485 = vadd.f32 %v4394, %v4484
        %v4486 = vpop.f32.mrf.mxu0
        %4487 = vmatprep.mubr.f32.mxu0 0.0
        %v4488 = vand.u32 %v4205, 4294901760
        %v4489 = vsub.f32 %v4205, %v4488
        %4490 = vmatmul.mubr.f32.gmra.mxu0 %v4489
        %v4491 = vpop.f32.mrf.mxu0
        %v4492 = vadd.f32 %v4400, %v4491
        %v4493 = vpop.f32.mrf.mxu0
        %4494 = vdwg.mxu0
        %4495 = vmatprep.subr.mxu0 0.0
        %4496 = vmatpush1.msra.mxu0 0.0
        %4497 = vmatprep.subr.mxu0 0.0
        %4498 = vmatpush1.msra.mxu0 0.0
        %4499 = vmatprep.subr.mxu0 0.0
        %4500 = vmatpush1.msra.mxu0 0.0
        %4501 = vmatprep.subr.mxu0 0.0
        %4502 = vmatpush1.msra.mxu0 0.0
        %4503 = vmatprep.subr.mxu0 0.0
        %4504 = vmatpush1.msra.mxu0 0.0
        %4505 = vmatprep.subr.mxu0 0.0
        %4506 = vmatpush1.msra.mxu0 0.0
        %4507 = vmatprep.subr.mxu0 0.0
        %4508 = vmatpush1.msra.mxu0 0.0
        %4509 = vmatprep.subr.mxu0 0.0
        %4510 = vmatpush1.msra.mxu0 0.0
        %4511 = vmatprep.subr.mxu0 0.0
        %4512 = vmatpush1.msra.mxu0 0.0
        %4513 = vmatprep.subr.mxu0 0.0
        %4514 = vmatpush1.msra.mxu0 0.0
        %4515 = vmatprep.subr.mxu0 0.0
        %4516 = vmatpush1.msra.mxu0 0.0
        %4517 = vmatprep.subr.mxu0 0.0
        %4518 = vmatpush1.msra.mxu0 0.0
        %4519 = vmatprep.subr.mxu0 0.0
        %4520 = vmatpush1.msra.mxu0 0.0
        %4521 = vmatprep.subr.mxu0 0.0
        %v4522 = vand.u32 %v4197, 4294901760
        %4523 = vmatpush1.msra.mxu0 %v4522
        %4524 = vmatprep.subr.mxu0 0.0
        %v4525 = vand.u32 %v4196, 4294901760
        %4526 = vmatpush1.msra.mxu0 %v4525
        %4527 = vmatprep.subr.mxu0 0.0
        %v4528 = vand.u32 %v4195, 4294901760
        %4529 = vmatpush1.msra.mxu0 %v4528
        %4530 = vmatprep.subr.mxu0 0.0
        %4531 = vmatpush2.msra.mxu0 0.0
        %4532 = vmatprep.subr.mxu0 0.0
        %4533 = vmatpush2.msra.mxu0 0.0
        %4534 = vmatprep.subr.mxu0 0.0
        %4535 = vmatpush2.msra.mxu0 0.0
        %4536 = vmatprep.subr.mxu0 0.0
        %4537 = vmatpush2.msra.mxu0 0.0
        %4538 = vmatprep.subr.mxu0 0.0
        %4539 = vmatpush2.msra.mxu0 0.0
        %4540 = vmatprep.subr.mxu0 0.0
        %4541 = vmatpush2.msra.mxu0 0.0
        %4542 = vmatprep.subr.mxu0 0.0
        %4543 = vmatpush2.msra.mxu0 0.0
        %4544 = vmatprep.subr.mxu0 0.0
        %4545 = vmatpush2.msra.mxu0 0.0
        %4546 = vmatprep.subr.mxu0 0.0
        %4547 = vmatpush2.msra.mxu0 0.0
        %4548 = vmatprep.subr.mxu0 0.0
        %4549 = vmatpush2.msra.mxu0 0.0
        %4550 = vmatprep.subr.mxu0 0.0
        %4551 = vmatpush2.msra.mxu0 0.0
        %4552 = vmatprep.subr.mxu0 0.0
        %4553 = vmatpush2.msra.mxu0 0.0
        %4554 = vmatprep.subr.mxu0 0.0
        %4555 = vmatpush2.msra.mxu0 0.0
        %4556 = vmatprep.subr.mxu0 0.0
        %4557 = vmatpush2.msra.mxu0 0.0
        %4558 = vmatprep.subr.mxu0 0.0
        %4559 = vmatpush2.msra.mxu0 0.0
        %4560 = vmatprep.subr.mxu0 0.0
        %4561 = vmatpush2.msra.mxu0 0.0
        %4562 = vmatprep.mubr.f32.mxu0 0.0
        %v4563 = vand.u32 %v4199, 4294901760
        %v4564 = vsub.f32 %v4199, %v4563
        %v4565 = vand.u32 %v4564, 4294901760
        %4566 = vmatmul.mubr.f32.gmra.mxu0 %v4565
        %v4567 = vpop.f32.mrf.mxu0
        %v4568 = vadd.f32 %v4478, %v4567
        %v4569 = vpop.f32.mrf.mxu0
        %4570 = vmatprep.mubr.f32.mxu0 0.0
        %v4571 = vand.u32 %v4202, 4294901760
        %v4572 = vsub.f32 %v4202, %v4571
        %v4573 = vand.u32 %v4572, 4294901760
        %4574 = vmatmul.mubr.f32.gmra.mxu0 %v4573
        %v4575 = vpop.f32.mrf.mxu0
        %v4576 = vadd.f32 %v4485, %v4575
        %v4577 = vpop.f32.mrf.mxu0
        %4578 = vmatprep.mubr.f32.mxu0 0.0
        %v4579 = vand.u32 %v4205, 4294901760
        %v4580 = vsub.f32 %v4205, %v4579
        %v4581 = vand.u32 %v4580, 4294901760
        %4582 = vmatmul.mubr.f32.gmra.mxu0 %v4581
        %v4583 = vpop.f32.mrf.mxu0
        %v4584 = vadd.f32 %v4492, %v4583
        %v4585 = vpop.f32.mrf.mxu0
        %4586 = vdwg.mxu0
        %4587 = vmatprep.subr.mxu0 0.0
        %4588 = vmatpush1.msra.mxu0 0.0
        %4589 = vmatprep.subr.mxu0 0.0
        %4590 = vmatpush1.msra.mxu0 0.0
        %4591 = vmatprep.subr.mxu0 0.0
        %4592 = vmatpush1.msra.mxu0 0.0
        %4593 = vmatprep.subr.mxu0 0.0
        %4594 = vmatpush1.msra.mxu0 0.0
        %4595 = vmatprep.subr.mxu0 0.0
        %4596 = vmatpush1.msra.mxu0 0.0
        %4597 = vmatprep.subr.mxu0 0.0
        %4598 = vmatpush1.msra.mxu0 0.0
        %4599 = vmatprep.subr.mxu0 0.0
        %4600 = vmatpush1.msra.mxu0 0.0
        %4601 = vmatprep.subr.mxu0 0.0
        %4602 = vmatpush1.msra.mxu0 0.0
        %4603 = vmatprep.subr.mxu0 0.0
        %4604 = vmatpush1.msra.mxu0 0.0
        %4605 = vmatprep.subr.mxu0 0.0
        %4606 = vmatpush1.msra.mxu0 0.0
        %4607 = vmatprep.subr.mxu0 0.0
        %4608 = vmatpush1.msra.mxu0 0.0
        %4609 = vmatprep.subr.mxu0 0.0
        %4610 = vmatpush1.msra.mxu0 0.0
        %4611 = vmatprep.subr.mxu0 0.0
        %4612 = vmatpush1.msra.mxu0 0.0
        %4613 = vmatprep.subr.mxu0 0.0
        %v4614 = vand.u32 %v4197, 4294901760
        %v4615 = vsub.f32 %v4197, %v4614
        %v4616 = vand.u32 %v4615, 4294901760
        %4617 = vmatpush1.msra.mxu0 %v4616
        %4618 = vmatprep.subr.mxu0 0.0
        %v4619 = vand.u32 %v4196, 4294901760
        %v4620 = vsub.f32 %v4196, %v4619
        %v4621 = vand.u32 %v4620, 4294901760
        %4622 = vmatpush1.msra.mxu0 %v4621
        %4623 = vmatprep.subr.mxu0 0.0
        %v4624 = vand.u32 %v4195, 4294901760
        %v4625 = vsub.f32 %v4195, %v4624
        %v4626 = vand.u32 %v4625, 4294901760
        %4627 = vmatpush1.msra.mxu0 %v4626
        %4628 = vmatprep.subr.mxu0 0.0
        %4629 = vmatpush2.msra.mxu0 0.0
        %4630 = vmatprep.subr.mxu0 0.0
        %4631 = vmatpush2.msra.mxu0 0.0
        %4632 = vmatprep.subr.mxu0 0.0
        %4633 = vmatpush2.msra.mxu0 0.0
        %4634 = vmatprep.subr.mxu0 0.0
        %4635 = vmatpush2.msra.mxu0 0.0
        %4636 = vmatprep.subr.mxu0 0.0
        %4637 = vmatpush2.msra.mxu0 0.0
        %4638 = vmatprep.subr.mxu0 0.0
        %4639 = vmatpush2.msra.mxu0 0.0
        %4640 = vmatprep.subr.mxu0 0.0
        %4641 = vmatpush2.msra.mxu0 0.0
        %4642 = vmatprep.subr.mxu0 0.0
        %4643 = vmatpush2.msra.mxu0 0.0
        %4644 = vmatprep.subr.mxu0 0.0
        %4645 = vmatpush2.msra.mxu0 0.0
        %4646 = vmatprep.subr.mxu0 0.0
        %4647 = vmatpush2.msra.mxu0 0.0
        %4648 = vmatprep.subr.mxu0 0.0
        %4649 = vmatpush2.msra.mxu0 0.0
        %4650 = vmatprep.subr.mxu0 0.0
        %4651 = vmatpush2.msra.mxu0 0.0
        %4652 = vmatprep.subr.mxu0 0.0
        %4653 = vmatpush2.msra.mxu0 0.0
        %4654 = vmatprep.subr.mxu0 0.0
        %4655 = vmatpush2.msra.mxu0 0.0
        %4656 = vmatprep.subr.mxu0 0.0
        %4657 = vmatpush2.msra.mxu0 0.0
        %4658 = vmatprep.subr.mxu0 0.0
        %4659 = vmatpush2.msra.mxu0 0.0
        %4660 = vmatprep.mubr.f32.mxu0 0.0
        %v4661 = vand.u32 %v4199, 4294901760
        %4662 = vmatmul.mubr.f32.gmra.mxu0 %v4661
        %v4663 = vpop.f32.mrf.mxu0
        %v4664 = vadd.f32 %v4568, %v4663
        %v4665 = vpop.f32.mrf.mxu0
        %4666 = vmatprep.mubr.f32.mxu0 0.0
        %v4667 = vand.u32 %v4202, 4294901760
        %4668 = vmatmul.mubr.f32.gmra.mxu0 %v4667
        %v4669 = vpop.f32.mrf.mxu0
        %v4670 = vadd.f32 %v4576, %v4669
        %v4671 = vpop.f32.mrf.mxu0
        %4672 = vmatprep.mubr.f32.mxu0 0.0
        %v4673 = vand.u32 %v4205, 4294901760
        %4674 = vmatmul.mubr.f32.gmra.mxu0 %v4673
        %v4675 = vpop.f32.mrf.mxu0
        %v4676 = vadd.f32 %v4584, %v4675
        %v4677 = vpop.f32.mrf.mxu0
        %4678 = vdwg.mxu0
        %4679 = vmatprep.subr.mxu0 0.0
        %4680 = vmatpush1.msra.mxu0 0.0
        %4681 = vmatprep.subr.mxu0 0.0
        %4682 = vmatpush1.msra.mxu0 0.0
        %4683 = vmatprep.subr.mxu0 0.0
        %4684 = vmatpush1.msra.mxu0 0.0
        %4685 = vmatprep.subr.mxu0 0.0
        %4686 = vmatpush1.msra.mxu0 0.0
        %4687 = vmatprep.subr.mxu0 0.0
        %4688 = vmatpush1.msra.mxu0 0.0
        %4689 = vmatprep.subr.mxu0 0.0
        %4690 = vmatpush1.msra.mxu0 0.0
        %4691 = vmatprep.subr.mxu0 0.0
        %4692 = vmatpush1.msra.mxu0 0.0
        %4693 = vmatprep.subr.mxu0 0.0
        %4694 = vmatpush1.msra.mxu0 0.0
        %4695 = vmatprep.subr.mxu0 0.0
        %4696 = vmatpush1.msra.mxu0 0.0
        %4697 = vmatprep.subr.mxu0 0.0
        %4698 = vmatpush1.msra.mxu0 0.0
        %4699 = vmatprep.subr.mxu0 0.0
        %4700 = vmatpush1.msra.mxu0 0.0
        %4701 = vmatprep.subr.mxu0 0.0
        %4702 = vmatpush1.msra.mxu0 0.0
        %4703 = vmatprep.subr.mxu0 0.0
        %4704 = vmatpush1.msra.mxu0 0.0
        %4705 = vmatprep.subr.mxu0 0.0
        %v4706 = vand.u32 %v4197, 4294901760
        %4707 = vmatpush1.msra.mxu0 %v4706
        %4708 = vmatprep.subr.mxu0 0.0
        %v4709 = vand.u32 %v4196, 4294901760
        %4710 = vmatpush1.msra.mxu0 %v4709
        %4711 = vmatprep.subr.mxu0 0.0
        %v4712 = vand.u32 %v4195, 4294901760
        %4713 = vmatpush1.msra.mxu0 %v4712
        %4714 = vmatprep.subr.mxu0 0.0
        %4715 = vmatpush2.msra.mxu0 0.0
        %4716 = vmatprep.subr.mxu0 0.0
        %4717 = vmatpush2.msra.mxu0 0.0
        %4718 = vmatprep.subr.mxu0 0.0
        %4719 = vmatpush2.msra.mxu0 0.0
        %4720 = vmatprep.subr.mxu0 0.0
        %4721 = vmatpush2.msra.mxu0 0.0
        %4722 = vmatprep.subr.mxu0 0.0
        %4723 = vmatpush2.msra.mxu0 0.0
        %4724 = vmatprep.subr.mxu0 0.0
        %4725 = vmatpush2.msra.mxu0 0.0
        %4726 = vmatprep.subr.mxu0 0.0
        %4727 = vmatpush2.msra.mxu0 0.0
        %4728 = vmatprep.subr.mxu0 0.0
        %4729 = vmatpush2.msra.mxu0 0.0
        %4730 = vmatprep.subr.mxu0 0.0
        %4731 = vmatpush2.msra.mxu0 0.0
        %4732 = vmatprep.subr.mxu0 0.0
        %4733 = vmatpush2.msra.mxu0 0.0
        %4734 = vmatprep.subr.mxu0 0.0
        %4735 = vmatpush2.msra.mxu0 0.0
        %4736 = vmatprep.subr.mxu0 0.0
        %4737 = vmatpush2.msra.mxu0 0.0
        %4738 = vmatprep.subr.mxu0 0.0
        %4739 = vmatpush2.msra.mxu0 0.0
        %4740 = vmatprep.subr.mxu0 0.0
        %4741 = vmatpush2.msra.mxu0 0.0
        %4742 = vmatprep.subr.mxu0 0.0
        %4743 = vmatpush2.msra.mxu0 0.0
        %4744 = vmatprep.subr.mxu0 0.0
        %4745 = vmatpush2.msra.mxu0 0.0
        %4746 = vmatprep.mubr.f32.mxu0 0.0
        %v4747 = vand.u32 %v4199, 4294901760
        %4748 = vmatmul.mubr.f32.gmra.mxu0 %v4747
        %v4749 = vpop.f32.mrf.mxu0
        %v4750 = vadd.f32 %v4664, %v4749
        %v4751 = vpop.f32.mrf.mxu0
        %4752 = vmatprep.mubr.f32.mxu0 0.0
        %v4753 = vand.u32 %v4202, 4294901760
        %4754 = vmatmul.mubr.f32.gmra.mxu0 %v4753
        %v4755 = vpop.f32.mrf.mxu0
        %v4756 = vadd.f32 %v4670, %v4755
        %v4757 = vpop.f32.mrf.mxu0
        %4758 = vmatprep.mubr.f32.mxu0 0.0
        %v4759 = vand.u32 %v4205, 4294901760
        %4760 = vmatmul.mubr.f32.gmra.mxu0 %v4759
        %v4761 = vpop.f32.mrf.mxu0
        %v4762 = vadd.f32 %v4676, %v4761
        %v4763 = vpop.f32.mrf.mxu0
        %4764 = vdwg.mxu0
        %v4765 = vadd.f32 %v4117, %v4750
        %v4766 = vadd.f32 %v4118, %v4756
        %v4767 = vadd.f32 %v4119, %v4762
        %v4769 = vlaneseq
        %v4770 = vshrl.u32 %v4769, 7
        %v4771 = vsub.s32 0, %v4770
        %v4772 = vrot.slane %v2165, %v4771
        %v4774 = vadd.f32 %v4765, %v4772
        %v4775 = vadd.f32 %v4766, %v4772
        %v4776 = vadd.f32 %v4767, %v4772
        %vm4777 = vcmp.gt.f32.partialorder %v4774, 0.0
        %vm4778 = vcmp.gt.f32.partialorder %v4775, 0.0
        %vm4779 = vcmp.gt.f32.partialorder %v4776, 0.0
        %v4780 = vmin.f32 %v4774, 0.0
        %v4781 = vmin.f32 %v4775, 0.0
        %v4782 = vmin.f32 %v4776, 0.0
        %v4783 = vmul.f32 %v4780, 1.442695
        %v4784 = vpow.pop %v4783
        %v4785 = vmul.f32 %v4781, 1.442695
        %v4786 = vpow.pop %v4785
        %v4787 = vmul.f32 %v4782, 1.442695
        %v4788 = vpow.pop %v4787
        %v4789 = vsub.f32 %v4784, 1.0
        %v4790 = vsub.f32 %v4786, 1.0
        %v4791 = vsub.f32 %v4788, 1.0
        %v4792 = vsel %vm4777, %v4774, %v4789
        %v4793 = vsel %vm4778, %v4775, %v4790
        %v4794 = vsel %vm4779, %v4776, %v4791
        %v4795 = vld [vmem:[%s7] sm:$0xff]
        %v4796 = vld [vmem:[%s7 + $0x8] sm:$0xff]
        %v4797 = vld [vmem:[%s7 + $0x10] sm:$0xff]
        %v4798 = vld [vmem:[%s7 + $0x18] sm:$0xff]
        %v4799 = vld [vmem:[%s7 + $0x20] sm:$0xff]
        %v4800 = vld [vmem:[%s7 + $0x28] sm:$0xff]
        %v4801 = vld [vmem:[%s7 + $0x30] sm:$0xff]
        %v4802 = vld [vmem:[%s7 + $0x38] sm:$0xff]
        %v4803 = vld [vmem:[#allocation9] sm:$0x1]
        %v4805 = vlaneseq
        %v4806 = vshrl.u32 %v4805, 7
        %v4807 = vsub.s32 0, %v4806
        %v4808 = vrot.slane %v4803, %v4807
        %vm4810 = vcmask 523264
        %v4812 = vsel %vm4810, %v4792, 0
        %v4815 = vsel %vm4810, %v4793, 0
        %v4818 = vsel %vm4810, %v4794, 0
        %4820 = vmatprep.subr.mxu0 0.0
        %4821 = vmatpush1.msra.mxu0 0.0
        %4822 = vmatprep.subr.mxu0 0.0
        %4823 = vmatpush1.msra.mxu0 0.0
        %4824 = vmatprep.subr.mxu0 0.0
        %4825 = vmatpush1.msra.mxu0 0.0
        %4826 = vmatprep.subr.mxu0 0.0
        %4827 = vmatpush1.msra.mxu0 0.0
        %4828 = vmatprep.subr.mxu0 0.0
        %4829 = vmatpush1.msra.mxu0 0.0
        %4830 = vmatprep.subr.mxu0 0.0
        %4831 = vmatpush1.msra.mxu0 0.0
        %4832 = vmatprep.subr.mxu0 0.0
        %4833 = vmatpush1.msra.mxu0 0.0
        %4834 = vmatprep.subr.mxu0 0.0
        %4835 = vmatpush1.msra.mxu0 0.0
        %4836 = vmatprep.subr.mxu0 0.0
        %v4837 = vand.u32 %v4802, 4294901760
        %4838 = vmatpush1.msra.mxu0 %v4837
        %4839 = vmatprep.subr.mxu0 0.0
        %v4840 = vand.u32 %v4801, 4294901760
        %4841 = vmatpush1.msra.mxu0 %v4840
        %4842 = vmatprep.subr.mxu0 0.0
        %v4843 = vand.u32 %v4800, 4294901760
        %4844 = vmatpush1.msra.mxu0 %v4843
        %4845 = vmatprep.subr.mxu0 0.0
        %v4846 = vand.u32 %v4799, 4294901760
        %4847 = vmatpush1.msra.mxu0 %v4846
        %4848 = vmatprep.subr.mxu0 0.0
        %v4849 = vand.u32 %v4798, 4294901760
        %4850 = vmatpush1.msra.mxu0 %v4849
        %4851 = vmatprep.subr.mxu0 0.0
        %v4852 = vand.u32 %v4797, 4294901760
        %4853 = vmatpush1.msra.mxu0 %v4852
        %4854 = vmatprep.subr.mxu0 0.0
        %v4855 = vand.u32 %v4796, 4294901760
        %4856 = vmatpush1.msra.mxu0 %v4855
        %4857 = vmatprep.subr.mxu0 0.0
        %v4858 = vand.u32 %v4795, 4294901760
        %4859 = vmatpush1.msra.mxu0 %v4858
        %4860 = vmatprep.subr.mxu0 0.0
        %4861 = vmatpush2.msra.mxu0 0.0
        %4862 = vmatprep.subr.mxu0 0.0
        %4863 = vmatpush2.msra.mxu0 0.0
        %4864 = vmatprep.subr.mxu0 0.0
        %4865 = vmatpush2.msra.mxu0 0.0
        %4866 = vmatprep.subr.mxu0 0.0
        %4867 = vmatpush2.msra.mxu0 0.0
        %4868 = vmatprep.subr.mxu0 0.0
        %4869 = vmatpush2.msra.mxu0 0.0
        %4870 = vmatprep.subr.mxu0 0.0
        %4871 = vmatpush2.msra.mxu0 0.0
        %4872 = vmatprep.subr.mxu0 0.0
        %4873 = vmatpush2.msra.mxu0 0.0
        %4874 = vmatprep.subr.mxu0 0.0
        %4875 = vmatpush2.msra.mxu0 0.0
        %4876 = vmatprep.subr.mxu0 0.0
        %4877 = vmatpush2.msra.mxu0 0.0
        %4878 = vmatprep.subr.mxu0 0.0
        %4879 = vmatpush2.msra.mxu0 0.0
        %4880 = vmatprep.subr.mxu0 0.0
        %4881 = vmatpush2.msra.mxu0 0.0
        %4882 = vmatprep.subr.mxu0 0.0
        %4883 = vmatpush2.msra.mxu0 0.0
        %4884 = vmatprep.subr.mxu0 0.0
        %4885 = vmatpush2.msra.mxu0 0.0
        %4886 = vmatprep.subr.mxu0 0.0
        %4887 = vmatpush2.msra.mxu0 0.0
        %4888 = vmatprep.subr.mxu0 0.0
        %4889 = vmatpush2.msra.mxu0 0.0
        %4890 = vmatprep.subr.mxu0 0.0
        %4891 = vmatpush2.msra.mxu0 0.0
        %4892 = vmatprep.mubr.f32.mxu0 0.0
        %v4893 = vand.u32 %v4812, 4294901760
        %v4894 = vsub.f32 %v4812, %v4893
        %v4895 = vand.u32 %v4894, 4294901760
        %v4896 = vsub.f32 %v4894, %v4895
        %v4897 = vand.u32 %v4896, 4294901760
        %4898 = vmatmul.mubr.f32.gmra.mxu0 %v4897
        %v4899 = vpop.f32.mrf.mxu0
        %v4900 = vadd.f32 %v4808, %v4899
        %v4901 = vpop.f32.mrf.mxu0
        %4902 = vmatprep.mubr.f32.mxu0 0.0
        %v4903 = vand.u32 %v4815, 4294901760
        %v4904 = vsub.f32 %v4815, %v4903
        %v4905 = vand.u32 %v4904, 4294901760
        %v4906 = vsub.f32 %v4904, %v4905
        %v4907 = vand.u32 %v4906, 4294901760
        %4908 = vmatmul.mubr.f32.gmra.mxu0 %v4907
        %v4909 = vpop.f32.mrf.mxu0
        %v4910 = vadd.f32 %v4808, %v4909
        %v4911 = vpop.f32.mrf.mxu0
        %4912 = vmatprep.mubr.f32.mxu0 0.0
        %v4913 = vand.u32 %v4818, 4294901760
        %v4914 = vsub.f32 %v4818, %v4913
        %v4915 = vand.u32 %v4914, 4294901760
        %v4916 = vsub.f32 %v4914, %v4915
        %v4917 = vand.u32 %v4916, 4294901760
        %4918 = vmatmul.mubr.f32.gmra.mxu0 %v4917
        %v4919 = vpop.f32.mrf.mxu0
        %v4920 = vadd.f32 %v4808, %v4919
        %v4921 = vpop.f32.mrf.mxu0
        %4922 = vdwg.mxu0
        %4923 = vmatprep.subr.mxu0 0.0
        %4924 = vmatpush1.msra.mxu0 0.0
        %4925 = vmatprep.subr.mxu0 0.0
        %4926 = vmatpush1.msra.mxu0 0.0
        %4927 = vmatprep.subr.mxu0 0.0
        %4928 = vmatpush1.msra.mxu0 0.0
        %4929 = vmatprep.subr.mxu0 0.0
        %4930 = vmatpush1.msra.mxu0 0.0
        %4931 = vmatprep.subr.mxu0 0.0
        %4932 = vmatpush1.msra.mxu0 0.0
        %4933 = vmatprep.subr.mxu0 0.0
        %4934 = vmatpush1.msra.mxu0 0.0
        %4935 = vmatprep.subr.mxu0 0.0
        %4936 = vmatpush1.msra.mxu0 0.0
        %4937 = vmatprep.subr.mxu0 0.0
        %4938 = vmatpush1.msra.mxu0 0.0
        %4939 = vmatprep.subr.mxu0 0.0
        %v4940 = vand.u32 %v4802, 4294901760
        %v4941 = vsub.f32 %v4802, %v4940
        %v4942 = vand.u32 %v4941, 4294901760
        %v4943 = vsub.f32 %v4941, %v4942
        %v4944 = vand.u32 %v4943, 4294901760
        %4945 = vmatpush1.msra.mxu0 %v4944
        %4946 = vmatprep.subr.mxu0 0.0
        %v4947 = vand.u32 %v4801, 4294901760
        %v4948 = vsub.f32 %v4801, %v4947
        %v4949 = vand.u32 %v4948, 4294901760
        %v4950 = vsub.f32 %v4948, %v4949
        %v4951 = vand.u32 %v4950, 4294901760
        %4952 = vmatpush1.msra.mxu0 %v4951
        %4953 = vmatprep.subr.mxu0 0.0
        %v4954 = vand.u32 %v4800, 4294901760
        %v4955 = vsub.f32 %v4800, %v4954
        %v4956 = vand.u32 %v4955, 4294901760
        %v4957 = vsub.f32 %v4955, %v4956
        %v4958 = vand.u32 %v4957, 4294901760
        %4959 = vmatpush1.msra.mxu0 %v4958
        %4960 = vmatprep.subr.mxu0 0.0
        %v4961 = vand.u32 %v4799, 4294901760
        %v4962 = vsub.f32 %v4799, %v4961
        %v4963 = vand.u32 %v4962, 4294901760
        %v4964 = vsub.f32 %v4962, %v4963
        %v4965 = vand.u32 %v4964, 4294901760
        %4966 = vmatpush1.msra.mxu0 %v4965
        %4967 = vmatprep.subr.mxu0 0.0
        %v4968 = vand.u32 %v4798, 4294901760
        %v4969 = vsub.f32 %v4798, %v4968
        %v4970 = vand.u32 %v4969, 4294901760
        %v4971 = vsub.f32 %v4969, %v4970
        %v4972 = vand.u32 %v4971, 4294901760
        %4973 = vmatpush1.msra.mxu0 %v4972
        %4974 = vmatprep.subr.mxu0 0.0
        %v4975 = vand.u32 %v4797, 4294901760
        %v4976 = vsub.f32 %v4797, %v4975
        %v4977 = vand.u32 %v4976, 4294901760
        %v4978 = vsub.f32 %v4976, %v4977
        %v4979 = vand.u32 %v4978, 4294901760
        %4980 = vmatpush1.msra.mxu0 %v4979
        %4981 = vmatprep.subr.mxu0 0.0
        %v4982 = vand.u32 %v4796, 4294901760
        %v4983 = vsub.f32 %v4796, %v4982
        %v4984 = vand.u32 %v4983, 4294901760
        %v4985 = vsub.f32 %v4983, %v4984
        %v4986 = vand.u32 %v4985, 4294901760
        %4987 = vmatpush1.msra.mxu0 %v4986
        %4988 = vmatprep.subr.mxu0 0.0
        %v4989 = vand.u32 %v4795, 4294901760
        %v4990 = vsub.f32 %v4795, %v4989
        %v4991 = vand.u32 %v4990, 4294901760
        %v4992 = vsub.f32 %v4990, %v4991
        %v4993 = vand.u32 %v4992, 4294901760
        %4994 = vmatpush1.msra.mxu0 %v4993
        %4995 = vmatprep.subr.mxu0 0.0
        %4996 = vmatpush2.msra.mxu0 0.0
        %4997 = vmatprep.subr.mxu0 0.0
        %4998 = vmatpush2.msra.mxu0 0.0
        %4999 = vmatprep.subr.mxu0 0.0
        %5000 = vmatpush2.msra.mxu0 0.0
        %5001 = vmatprep.subr.mxu0 0.0
        %5002 = vmatpush2.msra.mxu0 0.0
        %5003 = vmatprep.subr.mxu0 0.0
        %5004 = vmatpush2.msra.mxu0 0.0
        %5005 = vmatprep.subr.mxu0 0.0
        %5006 = vmatpush2.msra.mxu0 0.0
        %5007 = vmatprep.subr.mxu0 0.0
        %5008 = vmatpush2.msra.mxu0 0.0
        %5009 = vmatprep.subr.mxu0 0.0
        %5010 = vmatpush2.msra.mxu0 0.0
        %5011 = vmatprep.subr.mxu0 0.0
        %5012 = vmatpush2.msra.mxu0 0.0
        %5013 = vmatprep.subr.mxu0 0.0
        %5014 = vmatpush2.msra.mxu0 0.0
        %5015 = vmatprep.subr.mxu0 0.0
        %5016 = vmatpush2.msra.mxu0 0.0
        %5017 = vmatprep.subr.mxu0 0.0
        %5018 = vmatpush2.msra.mxu0 0.0
        %5019 = vmatprep.subr.mxu0 0.0
        %5020 = vmatpush2.msra.mxu0 0.0
        %5021 = vmatprep.subr.mxu0 0.0
        %5022 = vmatpush2.msra.mxu0 0.0
        %5023 = vmatprep.subr.mxu0 0.0
        %5024 = vmatpush2.msra.mxu0 0.0
        %5025 = vmatprep.subr.mxu0 0.0
        %5026 = vmatpush2.msra.mxu0 0.0
        %5027 = vmatprep.mubr.f32.mxu0 0.0
        %v5028 = vand.u32 %v4812, 4294901760
        %5029 = vmatmul.mubr.f32.gmra.mxu0 %v5028
        %v5030 = vpop.f32.mrf.mxu0
        %v5031 = vadd.f32 %v4900, %v5030
        %v5032 = vpop.f32.mrf.mxu0
        %5033 = vmatprep.mubr.f32.mxu0 0.0
        %v5034 = vand.u32 %v4815, 4294901760
        %5035 = vmatmul.mubr.f32.gmra.mxu0 %v5034
        %v5036 = vpop.f32.mrf.mxu0
        %v5037 = vadd.f32 %v4910, %v5036
        %v5038 = vpop.f32.mrf.mxu0
        %5039 = vmatprep.mubr.f32.mxu0 0.0
        %v5040 = vand.u32 %v4818, 4294901760
        %5041 = vmatmul.mubr.f32.gmra.mxu0 %v5040
        %v5042 = vpop.f32.mrf.mxu0
        %v5043 = vadd.f32 %v4920, %v5042
        %v5044 = vpop.f32.mrf.mxu0
        %5045 = vdwg.mxu0
        %5046 = vmatprep.subr.mxu0 0.0
        %5047 = vmatpush1.msra.mxu0 0.0
        %5048 = vmatprep.subr.mxu0 0.0
        %5049 = vmatpush1.msra.mxu0 0.0
        %5050 = vmatprep.subr.mxu0 0.0
        %5051 = vmatpush1.msra.mxu0 0.0
        %5052 = vmatprep.subr.mxu0 0.0
        %5053 = vmatpush1.msra.mxu0 0.0
        %5054 = vmatprep.subr.mxu0 0.0
        %5055 = vmatpush1.msra.mxu0 0.0
        %5056 = vmatprep.subr.mxu0 0.0
        %5057 = vmatpush1.msra.mxu0 0.0
        %5058 = vmatprep.subr.mxu0 0.0
        %5059 = vmatpush1.msra.mxu0 0.0
        %5060 = vmatprep.subr.mxu0 0.0
        %5061 = vmatpush1.msra.mxu0 0.0
        %5062 = vmatprep.subr.mxu0 0.0
        %v5063 = vand.u32 %v4802, 4294901760
        %v5064 = vsub.f32 %v4802, %v5063
        %5065 = vmatpush1.msra.mxu0 %v5064
        %5066 = vmatprep.subr.mxu0 0.0
        %v5067 = vand.u32 %v4801, 4294901760
        %v5068 = vsub.f32 %v4801, %v5067
        %5069 = vmatpush1.msra.mxu0 %v5068
        %5070 = vmatprep.subr.mxu0 0.0
        %v5071 = vand.u32 %v4800, 4294901760
        %v5072 = vsub.f32 %v4800, %v5071
        %5073 = vmatpush1.msra.mxu0 %v5072
        %5074 = vmatprep.subr.mxu0 0.0
        %v5075 = vand.u32 %v4799, 4294901760
        %v5076 = vsub.f32 %v4799, %v5075
        %5077 = vmatpush1.msra.mxu0 %v5076
        %5078 = vmatprep.subr.mxu0 0.0
        %v5079 = vand.u32 %v4798, 4294901760
        %v5080 = vsub.f32 %v4798, %v5079
        %5081 = vmatpush1.msra.mxu0 %v5080
        %5082 = vmatprep.subr.mxu0 0.0
        %v5083 = vand.u32 %v4797, 4294901760
        %v5084 = vsub.f32 %v4797, %v5083
        %5085 = vmatpush1.msra.mxu0 %v5084
        %5086 = vmatprep.subr.mxu0 0.0
        %v5087 = vand.u32 %v4796, 4294901760
        %v5088 = vsub.f32 %v4796, %v5087
        %5089 = vmatpush1.msra.mxu0 %v5088
        %5090 = vmatprep.subr.mxu0 0.0
        %v5091 = vand.u32 %v4795, 4294901760
        %v5092 = vsub.f32 %v4795, %v5091
        %5093 = vmatpush1.msra.mxu0 %v5092
        %5094 = vmatprep.subr.mxu0 0.0
        %5095 = vmatpush2.msra.mxu0 0.0
        %5096 = vmatprep.subr.mxu0 0.0
        %5097 = vmatpush2.msra.mxu0 0.0
        %5098 = vmatprep.subr.mxu0 0.0
        %5099 = vmatpush2.msra.mxu0 0.0
        %5100 = vmatprep.subr.mxu0 0.0
        %5101 = vmatpush2.msra.mxu0 0.0
        %5102 = vmatprep.subr.mxu0 0.0
        %5103 = vmatpush2.msra.mxu0 0.0
        %5104 = vmatprep.subr.mxu0 0.0
        %5105 = vmatpush2.msra.mxu0 0.0
        %5106 = vmatprep.subr.mxu0 0.0
        %5107 = vmatpush2.msra.mxu0 0.0
        %5108 = vmatprep.subr.mxu0 0.0
        %5109 = vmatpush2.msra.mxu0 0.0
        %5110 = vmatprep.subr.mxu0 0.0
        %5111 = vmatpush2.msra.mxu0 0.0
        %5112 = vmatprep.subr.mxu0 0.0
        %5113 = vmatpush2.msra.mxu0 0.0
        %5114 = vmatprep.subr.mxu0 0.0
        %5115 = vmatpush2.msra.mxu0 0.0
        %5116 = vmatprep.subr.mxu0 0.0
        %5117 = vmatpush2.msra.mxu0 0.0
        %5118 = vmatprep.subr.mxu0 0.0
        %5119 = vmatpush2.msra.mxu0 0.0
        %5120 = vmatprep.subr.mxu0 0.0
        %5121 = vmatpush2.msra.mxu0 0.0
        %5122 = vmatprep.subr.mxu0 0.0
        %5123 = vmatpush2.msra.mxu0 0.0
        %5124 = vmatprep.subr.mxu0 0.0
        %5125 = vmatpush2.msra.mxu0 0.0
        %5126 = vmatprep.mubr.f32.mxu0 0.0
        %v5127 = vand.u32 %v4812, 4294901760
        %v5128 = vsub.f32 %v4812, %v5127
        %5129 = vmatmul.mubr.f32.gmra.mxu0 %v5128
        %v5130 = vpop.f32.mrf.mxu0
        %v5131 = vadd.f32 %v5031, %v5130
        %v5132 = vpop.f32.mrf.mxu0
        %5133 = vmatprep.mubr.f32.mxu0 0.0
        %v5134 = vand.u32 %v4815, 4294901760
        %v5135 = vsub.f32 %v4815, %v5134
        %5136 = vmatmul.mubr.f32.gmra.mxu0 %v5135
        %v5137 = vpop.f32.mrf.mxu0
        %v5138 = vadd.f32 %v5037, %v5137
        %v5139 = vpop.f32.mrf.mxu0
        %5140 = vmatprep.mubr.f32.mxu0 0.0
        %v5141 = vand.u32 %v4818, 4294901760
        %v5142 = vsub.f32 %v4818, %v5141
        %5143 = vmatmul.mubr.f32.gmra.mxu0 %v5142
        %v5144 = vpop.f32.mrf.mxu0
        %v5145 = vadd.f32 %v5043, %v5144
        %v5146 = vpop.f32.mrf.mxu0
        %5147 = vdwg.mxu0
        %5148 = vmatprep.subr.mxu0 0.0
        %5149 = vmatpush1.msra.mxu0 0.0
        %5150 = vmatprep.subr.mxu0 0.0
        %5151 = vmatpush1.msra.mxu0 0.0
        %5152 = vmatprep.subr.mxu0 0.0
        %5153 = vmatpush1.msra.mxu0 0.0
        %5154 = vmatprep.subr.mxu0 0.0
        %5155 = vmatpush1.msra.mxu0 0.0
        %5156 = vmatprep.subr.mxu0 0.0
        %5157 = vmatpush1.msra.mxu0 0.0
        %5158 = vmatprep.subr.mxu0 0.0
        %5159 = vmatpush1.msra.mxu0 0.0
        %5160 = vmatprep.subr.mxu0 0.0
        %5161 = vmatpush1.msra.mxu0 0.0
        %5162 = vmatprep.subr.mxu0 0.0
        %5163 = vmatpush1.msra.mxu0 0.0
        %5164 = vmatprep.subr.mxu0 0.0
        %v5165 = vand.u32 %v4802, 4294901760
        %5166 = vmatpush1.msra.mxu0 %v5165
        %5167 = vmatprep.subr.mxu0 0.0
        %v5168 = vand.u32 %v4801, 4294901760
        %5169 = vmatpush1.msra.mxu0 %v5168
        %5170 = vmatprep.subr.mxu0 0.0
        %v5171 = vand.u32 %v4800, 4294901760
        %5172 = vmatpush1.msra.mxu0 %v5171
        %5173 = vmatprep.subr.mxu0 0.0
        %v5174 = vand.u32 %v4799, 4294901760
        %5175 = vmatpush1.msra.mxu0 %v5174
        %5176 = vmatprep.subr.mxu0 0.0
        %v5177 = vand.u32 %v4798, 4294901760
        %5178 = vmatpush1.msra.mxu0 %v5177
        %5179 = vmatprep.subr.mxu0 0.0
        %v5180 = vand.u32 %v4797, 4294901760
        %5181 = vmatpush1.msra.mxu0 %v5180
        %5182 = vmatprep.subr.mxu0 0.0
        %v5183 = vand.u32 %v4796, 4294901760
        %5184 = vmatpush1.msra.mxu0 %v5183
        %5185 = vmatprep.subr.mxu0 0.0
        %v5186 = vand.u32 %v4795, 4294901760
        %5187 = vmatpush1.msra.mxu0 %v5186
        %5188 = vmatprep.subr.mxu0 0.0
        %5189 = vmatpush2.msra.mxu0 0.0
        %5190 = vmatprep.subr.mxu0 0.0
        %5191 = vmatpush2.msra.mxu0 0.0
        %5192 = vmatprep.subr.mxu0 0.0
        %5193 = vmatpush2.msra.mxu0 0.0
        %5194 = vmatprep.subr.mxu0 0.0
        %5195 = vmatpush2.msra.mxu0 0.0
        %5196 = vmatprep.subr.mxu0 0.0
        %5197 = vmatpush2.msra.mxu0 0.0
        %5198 = vmatprep.subr.mxu0 0.0
        %5199 = vmatpush2.msra.mxu0 0.0
        %5200 = vmatprep.subr.mxu0 0.0
        %5201 = vmatpush2.msra.mxu0 0.0
        %5202 = vmatprep.subr.mxu0 0.0
        %5203 = vmatpush2.msra.mxu0 0.0
        %5204 = vmatprep.subr.mxu0 0.0
        %5205 = vmatpush2.msra.mxu0 0.0
        %5206 = vmatprep.subr.mxu0 0.0
        %5207 = vmatpush2.msra.mxu0 0.0
        %5208 = vmatprep.subr.mxu0 0.0
        %5209 = vmatpush2.msra.mxu0 0.0
        %5210 = vmatprep.subr.mxu0 0.0
        %5211 = vmatpush2.msra.mxu0 0.0
        %5212 = vmatprep.subr.mxu0 0.0
        %5213 = vmatpush2.msra.mxu0 0.0
        %5214 = vmatprep.subr.mxu0 0.0
        %5215 = vmatpush2.msra.mxu0 0.0
        %5216 = vmatprep.subr.mxu0 0.0
        %5217 = vmatpush2.msra.mxu0 0.0
        %5218 = vmatprep.subr.mxu0 0.0
        %5219 = vmatpush2.msra.mxu0 0.0
        %5220 = vmatprep.mubr.f32.mxu0 0.0
        %v5221 = vand.u32 %v4812, 4294901760
        %v5222 = vsub.f32 %v4812, %v5221
        %v5223 = vand.u32 %v5222, 4294901760
        %5224 = vmatmul.mubr.f32.gmra.mxu0 %v5223
        %v5225 = vpop.f32.mrf.mxu0
        %v5226 = vadd.f32 %v5131, %v5225
        %v5227 = vpop.f32.mrf.mxu0
        %5228 = vmatprep.mubr.f32.mxu0 0.0
        %v5229 = vand.u32 %v4815, 4294901760
        %v5230 = vsub.f32 %v4815, %v5229
        %v5231 = vand.u32 %v5230, 4294901760
        %5232 = vmatmul.mubr.f32.gmra.mxu0 %v5231
        %v5233 = vpop.f32.mrf.mxu0
        %v5234 = vadd.f32 %v5138, %v5233
        %v5235 = vpop.f32.mrf.mxu0
        %5236 = vmatprep.mubr.f32.mxu0 0.0
        %v5237 = vand.u32 %v4818, 4294901760
        %v5238 = vsub.f32 %v4818, %v5237
        %v5239 = vand.u32 %v5238, 4294901760
        %5240 = vmatmul.mubr.f32.gmra.mxu0 %v5239
        %v5241 = vpop.f32.mrf.mxu0
        %v5242 = vadd.f32 %v5145, %v5241
        %v5243 = vpop.f32.mrf.mxu0
        %5244 = vdwg.mxu0
        %5245 = vmatprep.subr.mxu0 0.0
        %5246 = vmatpush1.msra.mxu0 0.0
        %5247 = vmatprep.subr.mxu0 0.0
        %5248 = vmatpush1.msra.mxu0 0.0
        %5249 = vmatprep.subr.mxu0 0.0
        %5250 = vmatpush1.msra.mxu0 0.0
        %5251 = vmatprep.subr.mxu0 0.0
        %5252 = vmatpush1.msra.mxu0 0.0
        %5253 = vmatprep.subr.mxu0 0.0
        %5254 = vmatpush1.msra.mxu0 0.0
        %5255 = vmatprep.subr.mxu0 0.0
        %5256 = vmatpush1.msra.mxu0 0.0
        %5257 = vmatprep.subr.mxu0 0.0
        %5258 = vmatpush1.msra.mxu0 0.0
        %5259 = vmatprep.subr.mxu0 0.0
        %5260 = vmatpush1.msra.mxu0 0.0
        %5261 = vmatprep.subr.mxu0 0.0
        %v5262 = vand.u32 %v4802, 4294901760
        %v5263 = vsub.f32 %v4802, %v5262
        %v5264 = vand.u32 %v5263, 4294901760
        %5265 = vmatpush1.msra.mxu0 %v5264
        %5266 = vmatprep.subr.mxu0 0.0
        %v5267 = vand.u32 %v4801, 4294901760
        %v5268 = vsub.f32 %v4801, %v5267
        %v5269 = vand.u32 %v5268, 4294901760
        %5270 = vmatpush1.msra.mxu0 %v5269
        %5271 = vmatprep.subr.mxu0 0.0
        %v5272 = vand.u32 %v4800, 4294901760
        %v5273 = vsub.f32 %v4800, %v5272
        %v5274 = vand.u32 %v5273, 4294901760
        %5275 = vmatpush1.msra.mxu0 %v5274
        %5276 = vmatprep.subr.mxu0 0.0
        %v5277 = vand.u32 %v4799, 4294901760
        %v5278 = vsub.f32 %v4799, %v5277
        %v5279 = vand.u32 %v5278, 4294901760
        %5280 = vmatpush1.msra.mxu0 %v5279
        %5281 = vmatprep.subr.mxu0 0.0
        %v5282 = vand.u32 %v4798, 4294901760
        %v5283 = vsub.f32 %v4798, %v5282
        %v5284 = vand.u32 %v5283, 4294901760
        %5285 = vmatpush1.msra.mxu0 %v5284
        %5286 = vmatprep.subr.mxu0 0.0
        %v5287 = vand.u32 %v4797, 4294901760
        %v5288 = vsub.f32 %v4797, %v5287
        %v5289 = vand.u32 %v5288, 4294901760
        %5290 = vmatpush1.msra.mxu0 %v5289
        %5291 = vmatprep.subr.mxu0 0.0
        %v5292 = vand.u32 %v4796, 4294901760
        %v5293 = vsub.f32 %v4796, %v5292
        %v5294 = vand.u32 %v5293, 4294901760
        %5295 = vmatpush1.msra.mxu0 %v5294
        %5296 = vmatprep.subr.mxu0 0.0
        %v5297 = vand.u32 %v4795, 4294901760
        %v5298 = vsub.f32 %v4795, %v5297
        %v5299 = vand.u32 %v5298, 4294901760
        %5300 = vmatpush1.msra.mxu0 %v5299
        %5301 = vmatprep.subr.mxu0 0.0
        %5302 = vmatpush2.msra.mxu0 0.0
        %5303 = vmatprep.subr.mxu0 0.0
        %5304 = vmatpush2.msra.mxu0 0.0
        %5305 = vmatprep.subr.mxu0 0.0
        %5306 = vmatpush2.msra.mxu0 0.0
        %5307 = vmatprep.subr.mxu0 0.0
        %5308 = vmatpush2.msra.mxu0 0.0
        %5309 = vmatprep.subr.mxu0 0.0
        %5310 = vmatpush2.msra.mxu0 0.0
        %5311 = vmatprep.subr.mxu0 0.0
        %5312 = vmatpush2.msra.mxu0 0.0
        %5313 = vmatprep.subr.mxu0 0.0
        %5314 = vmatpush2.msra.mxu0 0.0
        %5315 = vmatprep.subr.mxu0 0.0
        %5316 = vmatpush2.msra.mxu0 0.0
        %5317 = vmatprep.subr.mxu0 0.0
        %5318 = vmatpush2.msra.mxu0 0.0
        %5319 = vmatprep.subr.mxu0 0.0
        %5320 = vmatpush2.msra.mxu0 0.0
        %5321 = vmatprep.subr.mxu0 0.0
        %5322 = vmatpush2.msra.mxu0 0.0
        %5323 = vmatprep.subr.mxu0 0.0
        %5324 = vmatpush2.msra.mxu0 0.0
        %5325 = vmatprep.subr.mxu0 0.0
        %5326 = vmatpush2.msra.mxu0 0.0
        %5327 = vmatprep.subr.mxu0 0.0
        %5328 = vmatpush2.msra.mxu0 0.0
        %5329 = vmatprep.subr.mxu0 0.0
        %5330 = vmatpush2.msra.mxu0 0.0
        %5331 = vmatprep.subr.mxu0 0.0
        %5332 = vmatpush2.msra.mxu0 0.0
        %5333 = vmatprep.mubr.f32.mxu0 0.0
        %v5334 = vand.u32 %v4812, 4294901760
        %5335 = vmatmul.mubr.f32.gmra.mxu0 %v5334
        %v5336 = vpop.f32.mrf.mxu0
        %v5337 = vadd.f32 %v5226, %v5336
        %v5338 = vpop.f32.mrf.mxu0
        %5339 = vmatprep.mubr.f32.mxu0 0.0
        %v5340 = vand.u32 %v4815, 4294901760
        %5341 = vmatmul.mubr.f32.gmra.mxu0 %v5340
        %v5342 = vpop.f32.mrf.mxu0
        %v5343 = vadd.f32 %v5234, %v5342
        %v5344 = vpop.f32.mrf.mxu0
        %5345 = vmatprep.mubr.f32.mxu0 0.0
        %v5346 = vand.u32 %v4818, 4294901760
        %5347 = vmatmul.mubr.f32.gmra.mxu0 %v5346
        %v5348 = vpop.f32.mrf.mxu0
        %v5349 = vadd.f32 %v5242, %v5348
        %v5350 = vpop.f32.mrf.mxu0
        %5351 = vdwg.mxu0
        %5352 = vmatprep.subr.mxu0 0.0
        %5353 = vmatpush1.msra.mxu0 0.0
        %5354 = vmatprep.subr.mxu0 0.0
        %5355 = vmatpush1.msra.mxu0 0.0
        %5356 = vmatprep.subr.mxu0 0.0
        %5357 = vmatpush1.msra.mxu0 0.0
        %5358 = vmatprep.subr.mxu0 0.0
        %5359 = vmatpush1.msra.mxu0 0.0
        %5360 = vmatprep.subr.mxu0 0.0
        %5361 = vmatpush1.msra.mxu0 0.0
        %5362 = vmatprep.subr.mxu0 0.0
        %5363 = vmatpush1.msra.mxu0 0.0
        %5364 = vmatprep.subr.mxu0 0.0
        %5365 = vmatpush1.msra.mxu0 0.0
        %5366 = vmatprep.subr.mxu0 0.0
        %5367 = vmatpush1.msra.mxu0 0.0
        %5368 = vmatprep.subr.mxu0 0.0
        %v5369 = vand.u32 %v4802, 4294901760
        %5370 = vmatpush1.msra.mxu0 %v5369
        %5371 = vmatprep.subr.mxu0 0.0
        %v5372 = vand.u32 %v4801, 4294901760
        %5373 = vmatpush1.msra.mxu0 %v5372
        %5374 = vmatprep.subr.mxu0 0.0
        %v5375 = vand.u32 %v4800, 4294901760
        %5376 = vmatpush1.msra.mxu0 %v5375
        %5377 = vmatprep.subr.mxu0 0.0
        %v5378 = vand.u32 %v4799, 4294901760
        %5379 = vmatpush1.msra.mxu0 %v5378
        %5380 = vmatprep.subr.mxu0 0.0
        %v5381 = vand.u32 %v4798, 4294901760
        %5382 = vmatpush1.msra.mxu0 %v5381
        %5383 = vmatprep.subr.mxu0 0.0
        %v5384 = vand.u32 %v4797, 4294901760
        %5385 = vmatpush1.msra.mxu0 %v5384
        %5386 = vmatprep.subr.mxu0 0.0
        %v5387 = vand.u32 %v4796, 4294901760
        %5388 = vmatpush1.msra.mxu0 %v5387
        %5389 = vmatprep.subr.mxu0 0.0
        %v5390 = vand.u32 %v4795, 4294901760
        %5391 = vmatpush1.msra.mxu0 %v5390
        %5392 = vmatprep.subr.mxu0 0.0
        %5393 = vmatpush2.msra.mxu0 0.0
        %5394 = vmatprep.subr.mxu0 0.0
        %5395 = vmatpush2.msra.mxu0 0.0
        %5396 = vmatprep.subr.mxu0 0.0
        %5397 = vmatpush2.msra.mxu0 0.0
        %5398 = vmatprep.subr.mxu0 0.0
        %5399 = vmatpush2.msra.mxu0 0.0
        %5400 = vmatprep.subr.mxu0 0.0
        %5401 = vmatpush2.msra.mxu0 0.0
        %5402 = vmatprep.subr.mxu0 0.0
        %5403 = vmatpush2.msra.mxu0 0.0
        %5404 = vmatprep.subr.mxu0 0.0
        %5405 = vmatpush2.msra.mxu0 0.0
        %5406 = vmatprep.subr.mxu0 0.0
        %5407 = vmatpush2.msra.mxu0 0.0
        %5408 = vmatprep.subr.mxu0 0.0
        %5409 = vmatpush2.msra.mxu0 0.0
        %5410 = vmatprep.subr.mxu0 0.0
        %5411 = vmatpush2.msra.mxu0 0.0
        %5412 = vmatprep.subr.mxu0 0.0
        %5413 = vmatpush2.msra.mxu0 0.0
        %5414 = vmatprep.subr.mxu0 0.0
        %5415 = vmatpush2.msra.mxu0 0.0
        %5416 = vmatprep.subr.mxu0 0.0
        %5417 = vmatpush2.msra.mxu0 0.0
        %5418 = vmatprep.subr.mxu0 0.0
        %5419 = vmatpush2.msra.mxu0 0.0
        %5420 = vmatprep.subr.mxu0 0.0
        %5421 = vmatpush2.msra.mxu0 0.0
        %5422 = vmatprep.subr.mxu0 0.0
        %5423 = vmatpush2.msra.mxu0 0.0
        %5424 = vmatprep.mubr.f32.mxu0 0.0
        %v5425 = vand.u32 %v4812, 4294901760
        %5426 = vmatmul.mubr.f32.gmra.mxu0 %v5425
        %v5427 = vpop.f32.mrf.mxu0
        %v5428 = vadd.f32 %v5337, %v5427
        %v5429 = vpop.f32.mrf.mxu0
        %5430 = vmatprep.mubr.f32.mxu0 0.0
        %v5431 = vand.u32 %v4815, 4294901760
        %5432 = vmatmul.mubr.f32.gmra.mxu0 %v5431
        %v5433 = vpop.f32.mrf.mxu0
        %v5434 = vadd.f32 %v5343, %v5433
        %v5435 = vpop.f32.mrf.mxu0
        %5436 = vmatprep.mubr.f32.mxu0 0.0
        %v5437 = vand.u32 %v4818, 4294901760
        %5438 = vmatmul.mubr.f32.gmra.mxu0 %v5437
        %v5439 = vpop.f32.mrf.mxu0
        %v5440 = vadd.f32 %v5349, %v5439
        %v5441 = vpop.f32.mrf.mxu0
        %5442 = vdwg.mxu0
        %v5443 = vtanh.pop %v5428
        %v5444 = vtanh.pop %v5434
        %v5445 = vtanh.pop %v5440
        %v5447 = vlaneseq
        %v5448 = vshrl.u32 %v5447, 7
        %v5449 = vsub.s32 0, %v5448
        %v5450 = vrot.slane %v2166, %v5449
        %v5452 = vmul.f32 %v5443, %v5450
        %v5453 = vmul.f32 %v5444, %v5450
        %v5454 = vmul.f32 %v5445, %v5450
        %5456 = vset.pattern.permute.xlu0 0
        %5457 = vperm.xlu0 %5456, %v2167
        %v5458 = vpop.permute.xlu0 %5457
        %5461 = vset.pattern.permute.xlu0 0
        %5462 = vperm.xlu0 %5461, %v2168
        %v5463 = vpop.permute.xlu0 %5462
        %5466 = vset.pattern.permute.xlu0 0
        %5467 = vperm.xlu0 %5466, %v2169
        %v5468 = vpop.permute.xlu0 %5467
        %v5470 = vmul.f32 %v5452, %v5458
        %v5471 = vmul.f32 %v5453, %v5463
        %v5472 = vmul.f32 %v5454, %v5468
        %v5473 = vadd.f32 %v5470, %v5471
        %v5474 = vadd.f32 %v5473, %v5472
        %5475 = vadd.xlane.f32.xlu0 %v5474
        %v5476 = vpop.xlane.xlu0 %5475
        %v5477 = vrot.slane %v5476, 4
        %v5478 = vadd.f32 %v5476, %v5477
        %v5479 = vrot.slane %v5478, 2
        %v5480 = vadd.f32 %v5478, %v5479
        %v5481 = vrot.slane %v5480, 1
        %v5482 = vadd.f32 %v5480, %v5481
        %s5483 = vtos %v5482
        %s5484 = scalar_lea.vmem %s552, 24
        %v5485 = vld [vmem:[%s5484] sm:$0xff]
        %v5486 = vld [vmem:[%s5484 + $0x8] sm:$0xff]
        %v5487 = vld [vmem:[%s5484 + $0x10] sm:$0xff]
        %vm5488 = vcmp.gt.f32.partialorder %v5485, 0.0
        %vm5489 = vcmp.gt.f32.partialorder %v5486, 0.0
        %vm5490 = vcmp.gt.f32.partialorder %v5487, 0.0
        %5491 = vset.pattern.permute.xlu0 4
        %5492 = vperm.xlu0 %5491, %v2150
        %v5493 = vpop.permute.xlu0 %5492
        %5495 = vset.pattern.permute.xlu0 4
        %5496 = vperm.xlu0 %5495, %v2156
        %v5497 = vpop.permute.xlu0 %5496
        %5499 = vset.pattern.permute.xlu0 4
        %5500 = vperm.xlu0 %5499, %v2162
        %v5501 = vpop.permute.xlu0 %5500
        %v5503 = vlaneseq
        %v5504 = vshrl.u32 %v5503, 7
        %v5505 = vsub.s32 4, %v5504
        %v5506 = vrot.slane %v1629, %v5505
        %v5507 = vadd.f32 %v5493, %v5506
        %v5508 = vadd.f32 %v5497, %v5506
        %v5509 = vadd.f32 %v5501, %v5506
        %vm5510 = vcmp.gt.f32.partialorder %v5507, 0.0
        %vm5511 = vcmp.gt.f32.partialorder %v5508, 0.0
        %vm5512 = vcmp.gt.f32.partialorder %v5509, 0.0
        %v5513 = vmul.f32 %v5507, 0.2
        %v5514 = vmul.f32 %v5508, 0.2
        %v5515 = vmul.f32 %v5509, 0.2
        %v5516 = vsel %vm5510, %v5507, %v5513
        %v5517 = vsel %vm5511, %v5508, %v5514
        %v5518 = vsel %vm5512, %v5509, %v5515
        %v5519 = vsel %vm5488, %v5516, -1e+30
        %v5520 = vsel %vm5489, %v5517, -1e+30
        %v5521 = vsel %vm5490, %v5518, -1e+30
        %v5522 = vsel %vm2212, %v5519, -inf
        %5523 = vmax.xlane.f32.xlu0 %v5522
        %v5524 = vpop.xlane.xlu0 %5523
        %v5525 = vsel %vm2212, %v5520, -inf
        %5526 = vmax.xlane.f32.xlu0 %v5525
        %v5527 = vpop.xlane.xlu0 %5526
        %v5528 = vsel %vm2212, %v5521, -inf
        %5529 = vmax.xlane.f32.xlu0 %v5528
        %v5530 = vpop.xlane.xlu0 %5529
        %v5531 = vsub.f32 %v5519, %v5524
        %v5532 = vsub.f32 %v5520, %v5527
        %v5533 = vsub.f32 %v5521, %v5530
        %v5534 = vmul.f32 %v5531, 1.442695
        %v5535 = vpow.pop %v5534
        %v5536 = vmul.f32 %v5532, 1.442695
        %v5537 = vpow.pop %v5536
        %v5538 = vmul.f32 %v5533, 1.442695
        %v5539 = vpow.pop %v5538
        %v5540 = vsel %vm5488, %v5535, 0.0
        %v5541 = vsel %vm5489, %v5537, 0.0
        %v5542 = vsel %vm5490, %v5539, 0.0
        %v5543 = vsel %vm2212, %v5540, 0.0
        %5544 = vadd.xlane.f32.xlu0 %v5543
        %v5545 = vpop.xlane.xlu0 %5544
        %v5546 = vsel %vm2212, %v5541, 0.0
        %5547 = vadd.xlane.f32.xlu0 %v5546
        %v5548 = vpop.xlane.xlu0 %5547
        %v5549 = vsel %vm2212, %v5542, 0.0
        %5550 = vadd.xlane.f32.xlu0 %v5549
        %v5551 = vpop.xlane.xlu0 %5550
        %v5552 = vmax.f32 %v5545, 1e-09
        %v5553 = vmax.f32 %v5548, 1e-09
        %v5554 = vmax.f32 %v5551, 1e-09
        %v5555 = vrcp.pop %v5552
        %v5556 = vrcp.pop %v5553
        %v5557 = vrcp.pop %v5554
        %v5558 = vmul.f32 %v5540, %v5555
        %v5559 = vmul.f32 %v5541, %v5556
        %v5560 = vmul.f32 %v5542, %v5557
        %5564 = vrot.lane.b32.xlu0 %v1144, 64
        %v5565 = vpop.permute.xlu0 %5564
        %5566 = vrot.lane.b32.xlu0 %v1150, 64
        %v5567 = vpop.permute.xlu0 %5566
        %5568 = vrot.lane.b32.xlu0 %v1156, 64
        %v5569 = vpop.permute.xlu0 %5568
        %v5573 = vsel %vm2256, %v5565, 0.0
        %v5574 = vsel %vm2256, %v5567, 0.0
        %v5575 = vsel %vm2256, %v5569, 0.0
        %5576 = vset.pattern.permute.xlu0 5
        %5577 = vperm.xlu0 %5576, %v2150
        %v5578 = vpop.permute.xlu0 %5577
        %5580 = vset.pattern.permute.xlu0 5
        %5581 = vperm.xlu0 %5580, %v2156
        %v5582 = vpop.permute.xlu0 %5581
        %5584 = vset.pattern.permute.xlu0 5
        %5585 = vperm.xlu0 %5584, %v2162
        %v5586 = vpop.permute.xlu0 %5585
        %v5588 = vlaneseq
        %v5589 = vshrl.u32 %v5588, 7
        %v5590 = vsub.s32 5, %v5589
        %v5591 = vrot.slane %v1629, %v5590
        %v5592 = vadd.f32 %v5578, %v5591
        %v5593 = vadd.f32 %v5582, %v5591
        %v5594 = vadd.f32 %v5586, %v5591
        %vm5595 = vcmp.gt.f32.partialorder %v5592, 0.0
        %vm5596 = vcmp.gt.f32.partialorder %v5593, 0.0
        %vm5597 = vcmp.gt.f32.partialorder %v5594, 0.0
        %v5598 = vmul.f32 %v5592, 0.2
        %v5599 = vmul.f32 %v5593, 0.2
        %v5600 = vmul.f32 %v5594, 0.2
        %v5601 = vsel %vm5595, %v5592, %v5598
        %v5602 = vsel %vm5596, %v5593, %v5599
        %v5603 = vsel %vm5597, %v5594, %v5600
        %v5604 = vsel %vm5488, %v5601, -1e+30
        %v5605 = vsel %vm5489, %v5602, -1e+30
        %v5606 = vsel %vm5490, %v5603, -1e+30
        %v5607 = vsel %vm2212, %v5604, -inf
        %5608 = vmax.xlane.f32.xlu0 %v5607
        %v5609 = vpop.xlane.xlu0 %5608
        %v5610 = vsel %vm2212, %v5605, -inf
        %5611 = vmax.xlane.f32.xlu0 %v5610
        %v5612 = vpop.xlane.xlu0 %5611
        %v5613 = vsel %vm2212, %v5606, -inf
        %5614 = vmax.xlane.f32.xlu0 %v5613
        %v5615 = vpop.xlane.xlu0 %5614
        %v5616 = vsub.f32 %v5604, %v5609
        %v5617 = vsub.f32 %v5605, %v5612
        %v5618 = vsub.f32 %v5606, %v5615
        %v5619 = vmul.f32 %v5616, 1.442695
        %v5620 = vpow.pop %v5619
        %v5621 = vmul.f32 %v5617, 1.442695
        %v5622 = vpow.pop %v5621
        %v5623 = vmul.f32 %v5618, 1.442695
        %v5624 = vpow.pop %v5623
        %v5625 = vsel %vm5488, %v5620, 0.0
        %v5626 = vsel %vm5489, %v5622, 0.0
        %v5627 = vsel %vm5490, %v5624, 0.0
        %v5628 = vsel %vm2212, %v5625, 0.0
        %5629 = vadd.xlane.f32.xlu0 %v5628
        %v5630 = vpop.xlane.xlu0 %5629
        %v5631 = vsel %vm2212, %v5626, 0.0
        %5632 = vadd.xlane.f32.xlu0 %v5631
        %v5633 = vpop.xlane.xlu0 %5632
        %v5634 = vsel %vm2212, %v5627, 0.0
        %5635 = vadd.xlane.f32.xlu0 %v5634
        %v5636 = vpop.xlane.xlu0 %5635
        %v5637 = vmax.f32 %v5630, 1e-09
        %v5638 = vmax.f32 %v5633, 1e-09
        %v5639 = vmax.f32 %v5636, 1e-09
        %v5640 = vrcp.pop %v5637
        %v5641 = vrcp.pop %v5638
        %v5642 = vrcp.pop %v5639
        %v5643 = vmul.f32 %v5625, %v5640
        %v5644 = vmul.f32 %v5626, %v5641
        %v5645 = vmul.f32 %v5627, %v5642
        %v5646 = vsel %vm2334, %v5565, 0.0
        %v5647 = vsel %vm2334, %v5567, 0.0
        %v5648 = vsel %vm2334, %v5569, 0.0
        %v5650 = vsel %vm2212, %v5643, 0
        %v5653 = vsel %vm2212, %v5644, 0
        %v5656 = vsel %vm2212, %v5645, 0
        %5658 = vmatprep.subr.mxu0 0.0
        %5659 = vmatpush1.msra.mxu0 0.0
        %5660 = vmatprep.subr.mxu0 0.0
        %5661 = vmatpush1.msra.mxu0 0.0
        %5662 = vmatprep.subr.mxu0 0.0
        %5663 = vmatpush1.msra.mxu0 0.0
        %5664 = vmatprep.subr.mxu0 0.0
        %5665 = vmatpush1.msra.mxu0 0.0
        %5666 = vmatprep.subr.mxu0 0.0
        %5667 = vmatpush1.msra.mxu0 0.0
        %5668 = vmatprep.subr.mxu0 0.0
        %5669 = vmatpush1.msra.mxu0 0.0
        %5670 = vmatprep.subr.mxu0 0.0
        %5671 = vmatpush1.msra.mxu0 0.0
        %5672 = vmatprep.subr.mxu0 0.0
        %5673 = vmatpush1.msra.mxu0 0.0
        %5674 = vmatprep.subr.mxu0 0.0
        %5675 = vmatpush1.msra.mxu0 0.0
        %5676 = vmatprep.subr.mxu0 0.0
        %5677 = vmatpush1.msra.mxu0 0.0
        %5678 = vmatprep.subr.mxu0 0.0
        %5679 = vmatpush1.msra.mxu0 0.0
        %5680 = vmatprep.subr.mxu0 0.0
        %5681 = vmatpush1.msra.mxu0 0.0
        %5682 = vmatprep.subr.mxu0 0.0
        %5683 = vmatpush1.msra.mxu0 0.0
        %5684 = vmatprep.subr.mxu0 0.0
        %v5685 = vand.u32 %v5648, 4294901760
        %5686 = vmatpush1.msra.mxu0 %v5685
        %5687 = vmatprep.subr.mxu0 0.0
        %v5688 = vand.u32 %v5647, 4294901760
        %5689 = vmatpush1.msra.mxu0 %v5688
        %5690 = vmatprep.subr.mxu0 0.0
        %v5691 = vand.u32 %v5646, 4294901760
        %5692 = vmatpush1.msra.mxu0 %v5691
        %5693 = vmatprep.subr.mxu0 0.0
        %5694 = vmatpush2.msra.mxu0 0.0
        %5695 = vmatprep.subr.mxu0 0.0
        %5696 = vmatpush2.msra.mxu0 0.0
        %5697 = vmatprep.subr.mxu0 0.0
        %5698 = vmatpush2.msra.mxu0 0.0
        %5699 = vmatprep.subr.mxu0 0.0
        %5700 = vmatpush2.msra.mxu0 0.0
        %5701 = vmatprep.subr.mxu0 0.0
        %5702 = vmatpush2.msra.mxu0 0.0
        %5703 = vmatprep.subr.mxu0 0.0
        %5704 = vmatpush2.msra.mxu0 0.0
        %5705 = vmatprep.subr.mxu0 0.0
        %5706 = vmatpush2.msra.mxu0 0.0
        %5707 = vmatprep.subr.mxu0 0.0
        %5708 = vmatpush2.msra.mxu0 0.0
        %5709 = vmatprep.subr.mxu0 0.0
        %5710 = vmatpush2.msra.mxu0 0.0
        %5711 = vmatprep.subr.mxu0 0.0
        %5712 = vmatpush2.msra.mxu0 0.0
        %5713 = vmatprep.subr.mxu0 0.0
        %5714 = vmatpush2.msra.mxu0 0.0
        %5715 = vmatprep.subr.mxu0 0.0
        %5716 = vmatpush2.msra.mxu0 0.0
        %5717 = vmatprep.subr.mxu0 0.0
        %5718 = vmatpush2.msra.mxu0 0.0
        %5719 = vmatprep.subr.mxu0 0.0
        %5720 = vmatpush2.msra.mxu0 0.0
        %5721 = vmatprep.subr.mxu0 0.0
        %5722 = vmatpush2.msra.mxu0 0.0
        %5723 = vmatprep.subr.mxu0 0.0
        %5724 = vmatpush2.msra.mxu0 0.0
        %5725 = vmatprep.mubr.f32.mxu0 0.0
        %v5726 = vand.u32 %v5650, 4294901760
        %v5727 = vsub.f32 %v5650, %v5726
        %v5728 = vand.u32 %v5727, 4294901760
        %v5729 = vsub.f32 %v5727, %v5728
        %v5730 = vand.u32 %v5729, 4294901760
        %5731 = vmatmul.mubr.f32.gmra.mxu0 %v5730
        %v5732 = vpop.f32.mrf.mxu0
        %v5733 = vadd.f32 0.0, %v5732
        %v5734 = vpop.f32.mrf.mxu0
        %5735 = vmatprep.mubr.f32.mxu0 0.0
        %v5736 = vand.u32 %v5653, 4294901760
        %v5737 = vsub.f32 %v5653, %v5736
        %v5738 = vand.u32 %v5737, 4294901760
        %v5739 = vsub.f32 %v5737, %v5738
        %v5740 = vand.u32 %v5739, 4294901760
        %5741 = vmatmul.mubr.f32.gmra.mxu0 %v5740
        %v5742 = vpop.f32.mrf.mxu0
        %v5743 = vadd.f32 0.0, %v5742
        %v5744 = vpop.f32.mrf.mxu0
        %5745 = vmatprep.mubr.f32.mxu0 0.0
        %v5746 = vand.u32 %v5656, 4294901760
        %v5747 = vsub.f32 %v5656, %v5746
        %v5748 = vand.u32 %v5747, 4294901760
        %v5749 = vsub.f32 %v5747, %v5748
        %v5750 = vand.u32 %v5749, 4294901760
        %5751 = vmatmul.mubr.f32.gmra.mxu0 %v5750
        %v5752 = vpop.f32.mrf.mxu0
        %v5753 = vadd.f32 0.0, %v5752
        %v5754 = vpop.f32.mrf.mxu0
        %5755 = vdwg.mxu0
        %5756 = vmatprep.subr.mxu0 0.0
        %5757 = vmatpush1.msra.mxu0 0.0
        %5758 = vmatprep.subr.mxu0 0.0
        %5759 = vmatpush1.msra.mxu0 0.0
        %5760 = vmatprep.subr.mxu0 0.0
        %5761 = vmatpush1.msra.mxu0 0.0
        %5762 = vmatprep.subr.mxu0 0.0
        %5763 = vmatpush1.msra.mxu0 0.0
        %5764 = vmatprep.subr.mxu0 0.0
        %5765 = vmatpush1.msra.mxu0 0.0
        %5766 = vmatprep.subr.mxu0 0.0
        %5767 = vmatpush1.msra.mxu0 0.0
        %5768 = vmatprep.subr.mxu0 0.0
        %5769 = vmatpush1.msra.mxu0 0.0
        %5770 = vmatprep.subr.mxu0 0.0
        %5771 = vmatpush1.msra.mxu0 0.0
        %5772 = vmatprep.subr.mxu0 0.0
        %5773 = vmatpush1.msra.mxu0 0.0
        %5774 = vmatprep.subr.mxu0 0.0
        %5775 = vmatpush1.msra.mxu0 0.0
        %5776 = vmatprep.subr.mxu0 0.0
        %5777 = vmatpush1.msra.mxu0 0.0
        %5778 = vmatprep.subr.mxu0 0.0
        %5779 = vmatpush1.msra.mxu0 0.0
        %5780 = vmatprep.subr.mxu0 0.0
        %5781 = vmatpush1.msra.mxu0 0.0
        %5782 = vmatprep.subr.mxu0 0.0
        %v5783 = vand.u32 %v5648, 4294901760
        %v5784 = vsub.f32 %v5648, %v5783
        %v5785 = vand.u32 %v5784, 4294901760
        %v5786 = vsub.f32 %v5784, %v5785
        %v5787 = vand.u32 %v5786, 4294901760
        %5788 = vmatpush1.msra.mxu0 %v5787
        %5789 = vmatprep.subr.mxu0 0.0
        %v5790 = vand.u32 %v5647, 4294901760
        %v5791 = vsub.f32 %v5647, %v5790
        %v5792 = vand.u32 %v5791, 4294901760
        %v5793 = vsub.f32 %v5791, %v5792
        %v5794 = vand.u32 %v5793, 4294901760
        %5795 = vmatpush1.msra.mxu0 %v5794
        %5796 = vmatprep.subr.mxu0 0.0
        %v5797 = vand.u32 %v5646, 4294901760
        %v5798 = vsub.f32 %v5646, %v5797
        %v5799 = vand.u32 %v5798, 4294901760
        %v5800 = vsub.f32 %v5798, %v5799
        %v5801 = vand.u32 %v5800, 4294901760
        %5802 = vmatpush1.msra.mxu0 %v5801
        %5803 = vmatprep.subr.mxu0 0.0
        %5804 = vmatpush2.msra.mxu0 0.0
        %5805 = vmatprep.subr.mxu0 0.0
        %5806 = vmatpush2.msra.mxu0 0.0
        %5807 = vmatprep.subr.mxu0 0.0
        %5808 = vmatpush2.msra.mxu0 0.0
        %5809 = vmatprep.subr.mxu0 0.0
        %5810 = vmatpush2.msra.mxu0 0.0
        %5811 = vmatprep.subr.mxu0 0.0
        %5812 = vmatpush2.msra.mxu0 0.0
        %5813 = vmatprep.subr.mxu0 0.0
        %5814 = vmatpush2.msra.mxu0 0.0
        %5815 = vmatprep.subr.mxu0 0.0
        %5816 = vmatpush2.msra.mxu0 0.0
        %5817 = vmatprep.subr.mxu0 0.0
        %5818 = vmatpush2.msra.mxu0 0.0
        %5819 = vmatprep.subr.mxu0 0.0
        %5820 = vmatpush2.msra.mxu0 0.0
        %5821 = vmatprep.subr.mxu0 0.0
        %5822 = vmatpush2.msra.mxu0 0.0
        %5823 = vmatprep.subr.mxu0 0.0
        %5824 = vmatpush2.msra.mxu0 0.0
        %5825 = vmatprep.subr.mxu0 0.0
        %5826 = vmatpush2.msra.mxu0 0.0
        %5827 = vmatprep.subr.mxu0 0.0
        %5828 = vmatpush2.msra.mxu0 0.0
        %5829 = vmatprep.subr.mxu0 0.0
        %5830 = vmatpush2.msra.mxu0 0.0
        %5831 = vmatprep.subr.mxu0 0.0
        %5832 = vmatpush2.msra.mxu0 0.0
        %5833 = vmatprep.subr.mxu0 0.0
        %5834 = vmatpush2.msra.mxu0 0.0
        %5835 = vmatprep.mubr.f32.mxu0 0.0
        %v5836 = vand.u32 %v5650, 4294901760
        %5837 = vmatmul.mubr.f32.gmra.mxu0 %v5836
        %v5838 = vpop.f32.mrf.mxu0
        %v5839 = vadd.f32 %v5733, %v5838
        %v5840 = vpop.f32.mrf.mxu0
        %5841 = vmatprep.mubr.f32.mxu0 0.0
        %v5842 = vand.u32 %v5653, 4294901760
        %5843 = vmatmul.mubr.f32.gmra.mxu0 %v5842
        %v5844 = vpop.f32.mrf.mxu0
        %v5845 = vadd.f32 %v5743, %v5844
        %v5846 = vpop.f32.mrf.mxu0
        %5847 = vmatprep.mubr.f32.mxu0 0.0
        %v5848 = vand.u32 %v5656, 4294901760
        %5849 = vmatmul.mubr.f32.gmra.mxu0 %v5848
        %v5850 = vpop.f32.mrf.mxu0
        %v5851 = vadd.f32 %v5753, %v5850
        %v5852 = vpop.f32.mrf.mxu0
        %5853 = vdwg.mxu0
        %5854 = vmatprep.subr.mxu0 0.0
        %5855 = vmatpush1.msra.mxu0 0.0
        %5856 = vmatprep.subr.mxu0 0.0
        %5857 = vmatpush1.msra.mxu0 0.0
        %5858 = vmatprep.subr.mxu0 0.0
        %5859 = vmatpush1.msra.mxu0 0.0
        %5860 = vmatprep.subr.mxu0 0.0
        %5861 = vmatpush1.msra.mxu0 0.0
        %5862 = vmatprep.subr.mxu0 0.0
        %5863 = vmatpush1.msra.mxu0 0.0
        %5864 = vmatprep.subr.mxu0 0.0
        %5865 = vmatpush1.msra.mxu0 0.0
        %5866 = vmatprep.subr.mxu0 0.0
        %5867 = vmatpush1.msra.mxu0 0.0
        %5868 = vmatprep.subr.mxu0 0.0
        %5869 = vmatpush1.msra.mxu0 0.0
        %5870 = vmatprep.subr.mxu0 0.0
        %5871 = vmatpush1.msra.mxu0 0.0
        %5872 = vmatprep.subr.mxu0 0.0
        %5873 = vmatpush1.msra.mxu0 0.0
        %5874 = vmatprep.subr.mxu0 0.0
        %5875 = vmatpush1.msra.mxu0 0.0
        %5876 = vmatprep.subr.mxu0 0.0
        %5877 = vmatpush1.msra.mxu0 0.0
        %5878 = vmatprep.subr.mxu0 0.0
        %5879 = vmatpush1.msra.mxu0 0.0
        %5880 = vmatprep.subr.mxu0 0.0
        %v5881 = vand.u32 %v5648, 4294901760
        %v5882 = vsub.f32 %v5648, %v5881
        %5883 = vmatpush1.msra.mxu0 %v5882
        %5884 = vmatprep.subr.mxu0 0.0
        %v5885 = vand.u32 %v5647, 4294901760
        %v5886 = vsub.f32 %v5647, %v5885
        %5887 = vmatpush1.msra.mxu0 %v5886
        %5888 = vmatprep.subr.mxu0 0.0
        %v5889 = vand.u32 %v5646, 4294901760
        %v5890 = vsub.f32 %v5646, %v5889
        %5891 = vmatpush1.msra.mxu0 %v5890
        %5892 = vmatprep.subr.mxu0 0.0
        %5893 = vmatpush2.msra.mxu0 0.0
        %5894 = vmatprep.subr.mxu0 0.0
        %5895 = vmatpush2.msra.mxu0 0.0
        %5896 = vmatprep.subr.mxu0 0.0
        %5897 = vmatpush2.msra.mxu0 0.0
        %5898 = vmatprep.subr.mxu0 0.0
        %5899 = vmatpush2.msra.mxu0 0.0
        %5900 = vmatprep.subr.mxu0 0.0
        %5901 = vmatpush2.msra.mxu0 0.0
        %5902 = vmatprep.subr.mxu0 0.0
        %5903 = vmatpush2.msra.mxu0 0.0
        %5904 = vmatprep.subr.mxu0 0.0
        %5905 = vmatpush2.msra.mxu0 0.0
        %5906 = vmatprep.subr.mxu0 0.0
        %5907 = vmatpush2.msra.mxu0 0.0
        %5908 = vmatprep.subr.mxu0 0.0
        %5909 = vmatpush2.msra.mxu0 0.0
        %5910 = vmatprep.subr.mxu0 0.0
        %5911 = vmatpush2.msra.mxu0 0.0
        %5912 = vmatprep.subr.mxu0 0.0
        %5913 = vmatpush2.msra.mxu0 0.0
        %5914 = vmatprep.subr.mxu0 0.0
        %5915 = vmatpush2.msra.mxu0 0.0
        %5916 = vmatprep.subr.mxu0 0.0
        %5917 = vmatpush2.msra.mxu0 0.0
        %5918 = vmatprep.subr.mxu0 0.0
        %5919 = vmatpush2.msra.mxu0 0.0
        %5920 = vmatprep.subr.mxu0 0.0
        %5921 = vmatpush2.msra.mxu0 0.0
        %5922 = vmatprep.subr.mxu0 0.0
        %5923 = vmatpush2.msra.mxu0 0.0
        %5924 = vmatprep.mubr.f32.mxu0 0.0
        %v5925 = vand.u32 %v5650, 4294901760
        %v5926 = vsub.f32 %v5650, %v5925
        %5927 = vmatmul.mubr.f32.gmra.mxu0 %v5926
        %v5928 = vpop.f32.mrf.mxu0
        %v5929 = vadd.f32 %v5839, %v5928
        %v5930 = vpop.f32.mrf.mxu0
        %5931 = vmatprep.mubr.f32.mxu0 0.0
        %v5932 = vand.u32 %v5653, 4294901760
        %v5933 = vsub.f32 %v5653, %v5932
        %5934 = vmatmul.mubr.f32.gmra.mxu0 %v5933
        %v5935 = vpop.f32.mrf.mxu0
        %v5936 = vadd.f32 %v5845, %v5935
        %v5937 = vpop.f32.mrf.mxu0
        %5938 = vmatprep.mubr.f32.mxu0 0.0
        %v5939 = vand.u32 %v5656, 4294901760
        %v5940 = vsub.f32 %v5656, %v5939
        %5941 = vmatmul.mubr.f32.gmra.mxu0 %v5940
        %v5942 = vpop.f32.mrf.mxu0
        %v5943 = vadd.f32 %v5851, %v5942
        %v5944 = vpop.f32.mrf.mxu0
        %5945 = vdwg.mxu0
        %5946 = vmatprep.subr.mxu0 0.0
        %5947 = vmatpush1.msra.mxu0 0.0
        %5948 = vmatprep.subr.mxu0 0.0
        %5949 = vmatpush1.msra.mxu0 0.0
        %5950 = vmatprep.subr.mxu0 0.0
        %5951 = vmatpush1.msra.mxu0 0.0
        %5952 = vmatprep.subr.mxu0 0.0
        %5953 = vmatpush1.msra.mxu0 0.0
        %5954 = vmatprep.subr.mxu0 0.0
        %5955 = vmatpush1.msra.mxu0 0.0
        %5956 = vmatprep.subr.mxu0 0.0
        %5957 = vmatpush1.msra.mxu0 0.0
        %5958 = vmatprep.subr.mxu0 0.0
        %5959 = vmatpush1.msra.mxu0 0.0
        %5960 = vmatprep.subr.mxu0 0.0
        %5961 = vmatpush1.msra.mxu0 0.0
        %5962 = vmatprep.subr.mxu0 0.0
        %5963 = vmatpush1.msra.mxu0 0.0
        %5964 = vmatprep.subr.mxu0 0.0
        %5965 = vmatpush1.msra.mxu0 0.0
        %5966 = vmatprep.subr.mxu0 0.0
        %5967 = vmatpush1.msra.mxu0 0.0
        %5968 = vmatprep.subr.mxu0 0.0
        %5969 = vmatpush1.msra.mxu0 0.0
        %5970 = vmatprep.subr.mxu0 0.0
        %5971 = vmatpush1.msra.mxu0 0.0
        %5972 = vmatprep.subr.mxu0 0.0
        %v5973 = vand.u32 %v5648, 4294901760
        %5974 = vmatpush1.msra.mxu0 %v5973
        %5975 = vmatprep.subr.mxu0 0.0
        %v5976 = vand.u32 %v5647, 4294901760
        %5977 = vmatpush1.msra.mxu0 %v5976
        %5978 = vmatprep.subr.mxu0 0.0
        %v5979 = vand.u32 %v5646, 4294901760
        %5980 = vmatpush1.msra.mxu0 %v5979
        %5981 = vmatprep.subr.mxu0 0.0
        %5982 = vmatpush2.msra.mxu0 0.0
        %5983 = vmatprep.subr.mxu0 0.0
        %5984 = vmatpush2.msra.mxu0 0.0
        %5985 = vmatprep.subr.mxu0 0.0
        %5986 = vmatpush2.msra.mxu0 0.0
        %5987 = vmatprep.subr.mxu0 0.0
        %5988 = vmatpush2.msra.mxu0 0.0
        %5989 = vmatprep.subr.mxu0 0.0
        %5990 = vmatpush2.msra.mxu0 0.0
        %5991 = vmatprep.subr.mxu0 0.0
        %5992 = vmatpush2.msra.mxu0 0.0
        %5993 = vmatprep.subr.mxu0 0.0
        %5994 = vmatpush2.msra.mxu0 0.0
        %5995 = vmatprep.subr.mxu0 0.0
        %5996 = vmatpush2.msra.mxu0 0.0
        %5997 = vmatprep.subr.mxu0 0.0
        %5998 = vmatpush2.msra.mxu0 0.0
        %5999 = vmatprep.subr.mxu0 0.0
        %6000 = vmatpush2.msra.mxu0 0.0
        %6001 = vmatprep.subr.mxu0 0.0
        %6002 = vmatpush2.msra.mxu0 0.0
        %6003 = vmatprep.subr.mxu0 0.0
        %6004 = vmatpush2.msra.mxu0 0.0
        %6005 = vmatprep.subr.mxu0 0.0
        %6006 = vmatpush2.msra.mxu0 0.0
        %6007 = vmatprep.subr.mxu0 0.0
        %6008 = vmatpush2.msra.mxu0 0.0
        %6009 = vmatprep.subr.mxu0 0.0
        %6010 = vmatpush2.msra.mxu0 0.0
        %6011 = vmatprep.subr.mxu0 0.0
        %6012 = vmatpush2.msra.mxu0 0.0
        %6013 = vmatprep.mubr.f32.mxu0 0.0
        %v6014 = vand.u32 %v5650, 4294901760
        %v6015 = vsub.f32 %v5650, %v6014
        %v6016 = vand.u32 %v6015, 4294901760
        %6017 = vmatmul.mubr.f32.gmra.mxu0 %v6016
        %v6018 = vpop.f32.mrf.mxu0
        %v6019 = vadd.f32 %v5929, %v6018
        %v6020 = vpop.f32.mrf.mxu0
        %6021 = vmatprep.mubr.f32.mxu0 0.0
        %v6022 = vand.u32 %v5653, 4294901760
        %v6023 = vsub.f32 %v5653, %v6022
        %v6024 = vand.u32 %v6023, 4294901760
        %6025 = vmatmul.mubr.f32.gmra.mxu0 %v6024
        %v6026 = vpop.f32.mrf.mxu0
        %v6027 = vadd.f32 %v5936, %v6026
        %v6028 = vpop.f32.mrf.mxu0
        %6029 = vmatprep.mubr.f32.mxu0 0.0
        %v6030 = vand.u32 %v5656, 4294901760
        %v6031 = vsub.f32 %v5656, %v6030
        %v6032 = vand.u32 %v6031, 4294901760
        %6033 = vmatmul.mubr.f32.gmra.mxu0 %v6032
        %v6034 = vpop.f32.mrf.mxu0
        %v6035 = vadd.f32 %v5943, %v6034
        %v6036 = vpop.f32.mrf.mxu0
        %6037 = vdwg.mxu0
        %6038 = vmatprep.subr.mxu0 0.0
        %6039 = vmatpush1.msra.mxu0 0.0
        %6040 = vmatprep.subr.mxu0 0.0
        %6041 = vmatpush1.msra.mxu0 0.0
        %6042 = vmatprep.subr.mxu0 0.0
        %6043 = vmatpush1.msra.mxu0 0.0
        %6044 = vmatprep.subr.mxu0 0.0
        %6045 = vmatpush1.msra.mxu0 0.0
        %6046 = vmatprep.subr.mxu0 0.0
        %6047 = vmatpush1.msra.mxu0 0.0
        %6048 = vmatprep.subr.mxu0 0.0
        %6049 = vmatpush1.msra.mxu0 0.0
        %6050 = vmatprep.subr.mxu0 0.0
        %6051 = vmatpush1.msra.mxu0 0.0
        %6052 = vmatprep.subr.mxu0 0.0
        %6053 = vmatpush1.msra.mxu0 0.0
        %6054 = vmatprep.subr.mxu0 0.0
        %6055 = vmatpush1.msra.mxu0 0.0
        %6056 = vmatprep.subr.mxu0 0.0
        %6057 = vmatpush1.msra.mxu0 0.0
        %6058 = vmatprep.subr.mxu0 0.0
        %6059 = vmatpush1.msra.mxu0 0.0
        %6060 = vmatprep.subr.mxu0 0.0
        %6061 = vmatpush1.msra.mxu0 0.0
        %6062 = vmatprep.subr.mxu0 0.0
        %6063 = vmatpush1.msra.mxu0 0.0
        %6064 = vmatprep.subr.mxu0 0.0
        %v6065 = vand.u32 %v5648, 4294901760
        %v6066 = vsub.f32 %v5648, %v6065
        %v6067 = vand.u32 %v6066, 4294901760
        %6068 = vmatpush1.msra.mxu0 %v6067
        %6069 = vmatprep.subr.mxu0 0.0
        %v6070 = vand.u32 %v5647, 4294901760
        %v6071 = vsub.f32 %v5647, %v6070
        %v6072 = vand.u32 %v6071, 4294901760
        %6073 = vmatpush1.msra.mxu0 %v6072
        %6074 = vmatprep.subr.mxu0 0.0
        %v6075 = vand.u32 %v5646, 4294901760
        %v6076 = vsub.f32 %v5646, %v6075
        %v6077 = vand.u32 %v6076, 4294901760
        %6078 = vmatpush1.msra.mxu0 %v6077
        %6079 = vmatprep.subr.mxu0 0.0
        %6080 = vmatpush2.msra.mxu0 0.0
        %6081 = vmatprep.subr.mxu0 0.0
        %6082 = vmatpush2.msra.mxu0 0.0
        %6083 = vmatprep.subr.mxu0 0.0
        %6084 = vmatpush2.msra.mxu0 0.0
        %6085 = vmatprep.subr.mxu0 0.0
        %6086 = vmatpush2.msra.mxu0 0.0
        %6087 = vmatprep.subr.mxu0 0.0
        %6088 = vmatpush2.msra.mxu0 0.0
        %6089 = vmatprep.subr.mxu0 0.0
        %6090 = vmatpush2.msra.mxu0 0.0
        %6091 = vmatprep.subr.mxu0 0.0
        %6092 = vmatpush2.msra.mxu0 0.0
        %6093 = vmatprep.subr.mxu0 0.0
        %6094 = vmatpush2.msra.mxu0 0.0
        %6095 = vmatprep.subr.mxu0 0.0
        %6096 = vmatpush2.msra.mxu0 0.0
        %6097 = vmatprep.subr.mxu0 0.0
        %6098 = vmatpush2.msra.mxu0 0.0
        %6099 = vmatprep.subr.mxu0 0.0
        %6100 = vmatpush2.msra.mxu0 0.0
        %6101 = vmatprep.subr.mxu0 0.0
        %6102 = vmatpush2.msra.mxu0 0.0
        %6103 = vmatprep.subr.mxu0 0.0
        %6104 = vmatpush2.msra.mxu0 0.0
        %6105 = vmatprep.subr.mxu0 0.0
        %6106 = vmatpush2.msra.mxu0 0.0
        %6107 = vmatprep.subr.mxu0 0.0
        %6108 = vmatpush2.msra.mxu0 0.0
        %6109 = vmatprep.subr.mxu0 0.0
        %6110 = vmatpush2.msra.mxu0 0.0
        %6111 = vmatprep.mubr.f32.mxu0 0.0
        %v6112 = vand.u32 %v5650, 4294901760
        %6113 = vmatmul.mubr.f32.gmra.mxu0 %v6112
        %v6114 = vpop.f32.mrf.mxu0
        %v6115 = vadd.f32 %v6019, %v6114
        %v6116 = vpop.f32.mrf.mxu0
        %6117 = vmatprep.mubr.f32.mxu0 0.0
        %v6118 = vand.u32 %v5653, 4294901760
        %6119 = vmatmul.mubr.f32.gmra.mxu0 %v6118
        %v6120 = vpop.f32.mrf.mxu0
        %v6121 = vadd.f32 %v6027, %v6120
        %v6122 = vpop.f32.mrf.mxu0
        %6123 = vmatprep.mubr.f32.mxu0 0.0
        %v6124 = vand.u32 %v5656, 4294901760
        %6125 = vmatmul.mubr.f32.gmra.mxu0 %v6124
        %v6126 = vpop.f32.mrf.mxu0
        %v6127 = vadd.f32 %v6035, %v6126
        %v6128 = vpop.f32.mrf.mxu0
        %6129 = vdwg.mxu0
        %6130 = vmatprep.subr.mxu0 0.0
        %6131 = vmatpush1.msra.mxu0 0.0
        %6132 = vmatprep.subr.mxu0 0.0
        %6133 = vmatpush1.msra.mxu0 0.0
        %6134 = vmatprep.subr.mxu0 0.0
        %6135 = vmatpush1.msra.mxu0 0.0
        %6136 = vmatprep.subr.mxu0 0.0
        %6137 = vmatpush1.msra.mxu0 0.0
        %6138 = vmatprep.subr.mxu0 0.0
        %6139 = vmatpush1.msra.mxu0 0.0
        %6140 = vmatprep.subr.mxu0 0.0
        %6141 = vmatpush1.msra.mxu0 0.0
        %6142 = vmatprep.subr.mxu0 0.0
        %6143 = vmatpush1.msra.mxu0 0.0
        %6144 = vmatprep.subr.mxu0 0.0
        %6145 = vmatpush1.msra.mxu0 0.0
        %6146 = vmatprep.subr.mxu0 0.0
        %6147 = vmatpush1.msra.mxu0 0.0
        %6148 = vmatprep.subr.mxu0 0.0
        %6149 = vmatpush1.msra.mxu0 0.0
        %6150 = vmatprep.subr.mxu0 0.0
        %6151 = vmatpush1.msra.mxu0 0.0
        %6152 = vmatprep.subr.mxu0 0.0
        %6153 = vmatpush1.msra.mxu0 0.0
        %6154 = vmatprep.subr.mxu0 0.0
        %6155 = vmatpush1.msra.mxu0 0.0
        %6156 = vmatprep.subr.mxu0 0.0
        %v6157 = vand.u32 %v5648, 4294901760
        %6158 = vmatpush1.msra.mxu0 %v6157
        %6159 = vmatprep.subr.mxu0 0.0
        %v6160 = vand.u32 %v5647, 4294901760
        %6161 = vmatpush1.msra.mxu0 %v6160
        %6162 = vmatprep.subr.mxu0 0.0
        %v6163 = vand.u32 %v5646, 4294901760
        %6164 = vmatpush1.msra.mxu0 %v6163
        %6165 = vmatprep.subr.mxu0 0.0
        %6166 = vmatpush2.msra.mxu0 0.0
        %6167 = vmatprep.subr.mxu0 0.0
        %6168 = vmatpush2.msra.mxu0 0.0
        %6169 = vmatprep.subr.mxu0 0.0
        %6170 = vmatpush2.msra.mxu0 0.0
        %6171 = vmatprep.subr.mxu0 0.0
        %6172 = vmatpush2.msra.mxu0 0.0
        %6173 = vmatprep.subr.mxu0 0.0
        %6174 = vmatpush2.msra.mxu0 0.0
        %6175 = vmatprep.subr.mxu0 0.0
        %6176 = vmatpush2.msra.mxu0 0.0
        %6177 = vmatprep.subr.mxu0 0.0
        %6178 = vmatpush2.msra.mxu0 0.0
        %6179 = vmatprep.subr.mxu0 0.0
        %6180 = vmatpush2.msra.mxu0 0.0
        %6181 = vmatprep.subr.mxu0 0.0
        %6182 = vmatpush2.msra.mxu0 0.0
        %6183 = vmatprep.subr.mxu0 0.0
        %6184 = vmatpush2.msra.mxu0 0.0
        %6185 = vmatprep.subr.mxu0 0.0
        %6186 = vmatpush2.msra.mxu0 0.0
        %6187 = vmatprep.subr.mxu0 0.0
        %6188 = vmatpush2.msra.mxu0 0.0
        %6189 = vmatprep.subr.mxu0 0.0
        %6190 = vmatpush2.msra.mxu0 0.0
        %6191 = vmatprep.subr.mxu0 0.0
        %6192 = vmatpush2.msra.mxu0 0.0
        %6193 = vmatprep.subr.mxu0 0.0
        %6194 = vmatpush2.msra.mxu0 0.0
        %6195 = vmatprep.subr.mxu0 0.0
        %6196 = vmatpush2.msra.mxu0 0.0
        %6197 = vmatprep.mubr.f32.mxu0 0.0
        %v6198 = vand.u32 %v5650, 4294901760
        %6199 = vmatmul.mubr.f32.gmra.mxu0 %v6198
        %v6200 = vpop.f32.mrf.mxu0
        %v6201 = vadd.f32 %v6115, %v6200
        %v6202 = vpop.f32.mrf.mxu0
        %6203 = vmatprep.mubr.f32.mxu0 0.0
        %v6204 = vand.u32 %v5653, 4294901760
        %6205 = vmatmul.mubr.f32.gmra.mxu0 %v6204
        %v6206 = vpop.f32.mrf.mxu0
        %v6207 = vadd.f32 %v6121, %v6206
        %v6208 = vpop.f32.mrf.mxu0
        %6209 = vmatprep.mubr.f32.mxu0 0.0
        %v6210 = vand.u32 %v5656, 4294901760
        %6211 = vmatmul.mubr.f32.gmra.mxu0 %v6210
        %v6212 = vpop.f32.mrf.mxu0
        %v6213 = vadd.f32 %v6127, %v6212
        %v6214 = vpop.f32.mrf.mxu0
        %6215 = vdwg.mxu0
        %v6217 = vsel %vm2212, %v5558, 0
        %v6220 = vsel %vm2212, %v5559, 0
        %v6223 = vsel %vm2212, %v5560, 0
        %6225 = vmatprep.subr.mxu0 0.0
        %6226 = vmatpush1.msra.mxu0 0.0
        %6227 = vmatprep.subr.mxu0 0.0
        %6228 = vmatpush1.msra.mxu0 0.0
        %6229 = vmatprep.subr.mxu0 0.0
        %6230 = vmatpush1.msra.mxu0 0.0
        %6231 = vmatprep.subr.mxu0 0.0
        %6232 = vmatpush1.msra.mxu0 0.0
        %6233 = vmatprep.subr.mxu0 0.0
        %6234 = vmatpush1.msra.mxu0 0.0
        %6235 = vmatprep.subr.mxu0 0.0
        %6236 = vmatpush1.msra.mxu0 0.0
        %6237 = vmatprep.subr.mxu0 0.0
        %6238 = vmatpush1.msra.mxu0 0.0
        %6239 = vmatprep.subr.mxu0 0.0
        %6240 = vmatpush1.msra.mxu0 0.0
        %6241 = vmatprep.subr.mxu0 0.0
        %6242 = vmatpush1.msra.mxu0 0.0
        %6243 = vmatprep.subr.mxu0 0.0
        %6244 = vmatpush1.msra.mxu0 0.0
        %6245 = vmatprep.subr.mxu0 0.0
        %6246 = vmatpush1.msra.mxu0 0.0
        %6247 = vmatprep.subr.mxu0 0.0
        %6248 = vmatpush1.msra.mxu0 0.0
        %6249 = vmatprep.subr.mxu0 0.0
        %6250 = vmatpush1.msra.mxu0 0.0
        %6251 = vmatprep.subr.mxu0 0.0
        %v6252 = vand.u32 %v5575, 4294901760
        %6253 = vmatpush1.msra.mxu0 %v6252
        %6254 = vmatprep.subr.mxu0 0.0
        %v6255 = vand.u32 %v5574, 4294901760
        %6256 = vmatpush1.msra.mxu0 %v6255
        %6257 = vmatprep.subr.mxu0 0.0
        %v6258 = vand.u32 %v5573, 4294901760
        %6259 = vmatpush1.msra.mxu0 %v6258
        %6260 = vmatprep.subr.mxu0 0.0
        %6261 = vmatpush2.msra.mxu0 0.0
        %6262 = vmatprep.subr.mxu0 0.0
        %6263 = vmatpush2.msra.mxu0 0.0
        %6264 = vmatprep.subr.mxu0 0.0
        %6265 = vmatpush2.msra.mxu0 0.0
        %6266 = vmatprep.subr.mxu0 0.0
        %6267 = vmatpush2.msra.mxu0 0.0
        %6268 = vmatprep.subr.mxu0 0.0
        %6269 = vmatpush2.msra.mxu0 0.0
        %6270 = vmatprep.subr.mxu0 0.0
        %6271 = vmatpush2.msra.mxu0 0.0
        %6272 = vmatprep.subr.mxu0 0.0
        %6273 = vmatpush2.msra.mxu0 0.0
        %6274 = vmatprep.subr.mxu0 0.0
        %6275 = vmatpush2.msra.mxu0 0.0
        %6276 = vmatprep.subr.mxu0 0.0
        %6277 = vmatpush2.msra.mxu0 0.0
        %6278 = vmatprep.subr.mxu0 0.0
        %6279 = vmatpush2.msra.mxu0 0.0
        %6280 = vmatprep.subr.mxu0 0.0
        %6281 = vmatpush2.msra.mxu0 0.0
        %6282 = vmatprep.subr.mxu0 0.0
        %6283 = vmatpush2.msra.mxu0 0.0
        %6284 = vmatprep.subr.mxu0 0.0
        %6285 = vmatpush2.msra.mxu0 0.0
        %6286 = vmatprep.subr.mxu0 0.0
        %6287 = vmatpush2.msra.mxu0 0.0
        %6288 = vmatprep.subr.mxu0 0.0
        %6289 = vmatpush2.msra.mxu0 0.0
        %6290 = vmatprep.subr.mxu0 0.0
        %6291 = vmatpush2.msra.mxu0 0.0
        %6292 = vmatprep.mubr.f32.mxu0 0.0
        %v6293 = vand.u32 %v6217, 4294901760
        %v6294 = vsub.f32 %v6217, %v6293
        %v6295 = vand.u32 %v6294, 4294901760
        %v6296 = vsub.f32 %v6294, %v6295
        %v6297 = vand.u32 %v6296, 4294901760
        %6298 = vmatmul.mubr.f32.gmra.mxu0 %v6297
        %v6299 = vpop.f32.mrf.mxu0
        %v6300 = vadd.f32 %v6201, %v6299
        %v6301 = vpop.f32.mrf.mxu0
        %6302 = vmatprep.mubr.f32.mxu0 0.0
        %v6303 = vand.u32 %v6220, 4294901760
        %v6304 = vsub.f32 %v6220, %v6303
        %v6305 = vand.u32 %v6304, 4294901760
        %v6306 = vsub.f32 %v6304, %v6305
        %v6307 = vand.u32 %v6306, 4294901760
        %6308 = vmatmul.mubr.f32.gmra.mxu0 %v6307
        %v6309 = vpop.f32.mrf.mxu0
        %v6310 = vadd.f32 %v6207, %v6309
        %v6311 = vpop.f32.mrf.mxu0
        %6312 = vmatprep.mubr.f32.mxu0 0.0
        %v6313 = vand.u32 %v6223, 4294901760
        %v6314 = vsub.f32 %v6223, %v6313
        %v6315 = vand.u32 %v6314, 4294901760
        %v6316 = vsub.f32 %v6314, %v6315
        %v6317 = vand.u32 %v6316, 4294901760
        %6318 = vmatmul.mubr.f32.gmra.mxu0 %v6317
        %v6319 = vpop.f32.mrf.mxu0
        %v6320 = vadd.f32 %v6213, %v6319
        %v6321 = vpop.f32.mrf.mxu0
        %6322 = vdwg.mxu0
        %6323 = vmatprep.subr.mxu0 0.0
        %6324 = vmatpush1.msra.mxu0 0.0
        %6325 = vmatprep.subr.mxu0 0.0
        %6326 = vmatpush1.msra.mxu0 0.0
        %6327 = vmatprep.subr.mxu0 0.0
        %6328 = vmatpush1.msra.mxu0 0.0
        %6329 = vmatprep.subr.mxu0 0.0
        %6330 = vmatpush1.msra.mxu0 0.0
        %6331 = vmatprep.subr.mxu0 0.0
        %6332 = vmatpush1.msra.mxu0 0.0
        %6333 = vmatprep.subr.mxu0 0.0
        %6334 = vmatpush1.msra.mxu0 0.0
        %6335 = vmatprep.subr.mxu0 0.0
        %6336 = vmatpush1.msra.mxu0 0.0
        %6337 = vmatprep.subr.mxu0 0.0
        %6338 = vmatpush1.msra.mxu0 0.0
        %6339 = vmatprep.subr.mxu0 0.0
        %6340 = vmatpush1.msra.mxu0 0.0
        %6341 = vmatprep.subr.mxu0 0.0
        %6342 = vmatpush1.msra.mxu0 0.0
        %6343 = vmatprep.subr.mxu0 0.0
        %6344 = vmatpush1.msra.mxu0 0.0
        %6345 = vmatprep.subr.mxu0 0.0
        %6346 = vmatpush1.msra.mxu0 0.0
        %6347 = vmatprep.subr.mxu0 0.0
        %6348 = vmatpush1.msra.mxu0 0.0
        %6349 = vmatprep.subr.mxu0 0.0
        %v6350 = vand.u32 %v5575, 4294901760
        %v6351 = vsub.f32 %v5575, %v6350
        %v6352 = vand.u32 %v6351, 4294901760
        %v6353 = vsub.f32 %v6351, %v6352
        %v6354 = vand.u32 %v6353, 4294901760
        %6355 = vmatpush1.msra.mxu0 %v6354
        %6356 = vmatprep.subr.mxu0 0.0
        %v6357 = vand.u32 %v5574, 4294901760
        %v6358 = vsub.f32 %v5574, %v6357
        %v6359 = vand.u32 %v6358, 4294901760
        %v6360 = vsub.f32 %v6358, %v6359
        %v6361 = vand.u32 %v6360, 4294901760
        %6362 = vmatpush1.msra.mxu0 %v6361
        %6363 = vmatprep.subr.mxu0 0.0
        %v6364 = vand.u32 %v5573, 4294901760
        %v6365 = vsub.f32 %v5573, %v6364
        %v6366 = vand.u32 %v6365, 4294901760
        %v6367 = vsub.f32 %v6365, %v6366
        %v6368 = vand.u32 %v6367, 4294901760
        %6369 = vmatpush1.msra.mxu0 %v6368
        %6370 = vmatprep.subr.mxu0 0.0
        %6371 = vmatpush2.msra.mxu0 0.0
        %6372 = vmatprep.subr.mxu0 0.0
        %6373 = vmatpush2.msra.mxu0 0.0
        %6374 = vmatprep.subr.mxu0 0.0
        %6375 = vmatpush2.msra.mxu0 0.0
        %6376 = vmatprep.subr.mxu0 0.0
        %6377 = vmatpush2.msra.mxu0 0.0
        %6378 = vmatprep.subr.mxu0 0.0
        %6379 = vmatpush2.msra.mxu0 0.0
        %6380 = vmatprep.subr.mxu0 0.0
        %6381 = vmatpush2.msra.mxu0 0.0
        %6382 = vmatprep.subr.mxu0 0.0
        %6383 = vmatpush2.msra.mxu0 0.0
        %6384 = vmatprep.subr.mxu0 0.0
        %6385 = vmatpush2.msra.mxu0 0.0
        %6386 = vmatprep.subr.mxu0 0.0
        %6387 = vmatpush2.msra.mxu0 0.0
        %6388 = vmatprep.subr.mxu0 0.0
        %6389 = vmatpush2.msra.mxu0 0.0
        %6390 = vmatprep.subr.mxu0 0.0
        %6391 = vmatpush2.msra.mxu0 0.0
        %6392 = vmatprep.subr.mxu0 0.0
        %6393 = vmatpush2.msra.mxu0 0.0
        %6394 = vmatprep.subr.mxu0 0.0
        %6395 = vmatpush2.msra.mxu0 0.0
        %6396 = vmatprep.subr.mxu0 0.0
        %6397 = vmatpush2.msra.mxu0 0.0
        %6398 = vmatprep.subr.mxu0 0.0
        %6399 = vmatpush2.msra.mxu0 0.0
        %6400 = vmatprep.subr.mxu0 0.0
        %6401 = vmatpush2.msra.mxu0 0.0
        %6402 = vmatprep.mubr.f32.mxu0 0.0
        %v6403 = vand.u32 %v6217, 4294901760
        %6404 = vmatmul.mubr.f32.gmra.mxu0 %v6403
        %v6405 = vpop.f32.mrf.mxu0
        %v6406 = vadd.f32 %v6300, %v6405
        %v6407 = vpop.f32.mrf.mxu0
        %6408 = vmatprep.mubr.f32.mxu0 0.0
        %v6409 = vand.u32 %v6220, 4294901760
        %6410 = vmatmul.mubr.f32.gmra.mxu0 %v6409
        %v6411 = vpop.f32.mrf.mxu0
        %v6412 = vadd.f32 %v6310, %v6411
        %v6413 = vpop.f32.mrf.mxu0
        %6414 = vmatprep.mubr.f32.mxu0 0.0
        %v6415 = vand.u32 %v6223, 4294901760
        %6416 = vmatmul.mubr.f32.gmra.mxu0 %v6415
        %v6417 = vpop.f32.mrf.mxu0
        %v6418 = vadd.f32 %v6320, %v6417
        %v6419 = vpop.f32.mrf.mxu0
        %6420 = vdwg.mxu0
        %6421 = vmatprep.subr.mxu0 0.0
        %6422 = vmatpush1.msra.mxu0 0.0
        %6423 = vmatprep.subr.mxu0 0.0
        %6424 = vmatpush1.msra.mxu0 0.0
        %6425 = vmatprep.subr.mxu0 0.0
        %6426 = vmatpush1.msra.mxu0 0.0
        %6427 = vmatprep.subr.mxu0 0.0
        %6428 = vmatpush1.msra.mxu0 0.0
        %6429 = vmatprep.subr.mxu0 0.0
        %6430 = vmatpush1.msra.mxu0 0.0
        %6431 = vmatprep.subr.mxu0 0.0
        %6432 = vmatpush1.msra.mxu0 0.0
        %6433 = vmatprep.subr.mxu0 0.0
        %6434 = vmatpush1.msra.mxu0 0.0
        %6435 = vmatprep.subr.mxu0 0.0
        %6436 = vmatpush1.msra.mxu0 0.0
        %6437 = vmatprep.subr.mxu0 0.0
        %6438 = vmatpush1.msra.mxu0 0.0
        %6439 = vmatprep.subr.mxu0 0.0
        %6440 = vmatpush1.msra.mxu0 0.0
        %6441 = vmatprep.subr.mxu0 0.0
        %6442 = vmatpush1.msra.mxu0 0.0
        %6443 = vmatprep.subr.mxu0 0.0
        %6444 = vmatpush1.msra.mxu0 0.0
        %6445 = vmatprep.subr.mxu0 0.0
        %6446 = vmatpush1.msra.mxu0 0.0
        %6447 = vmatprep.subr.mxu0 0.0
        %v6448 = vand.u32 %v5575, 4294901760
        %v6449 = vsub.f32 %v5575, %v6448
        %6450 = vmatpush1.msra.mxu0 %v6449
        %6451 = vmatprep.subr.mxu0 0.0
        %v6452 = vand.u32 %v5574, 4294901760
        %v6453 = vsub.f32 %v5574, %v6452
        %6454 = vmatpush1.msra.mxu0 %v6453
        %6455 = vmatprep.subr.mxu0 0.0
        %v6456 = vand.u32 %v5573, 4294901760
        %v6457 = vsub.f32 %v5573, %v6456
        %6458 = vmatpush1.msra.mxu0 %v6457
        %6459 = vmatprep.subr.mxu0 0.0
        %6460 = vmatpush2.msra.mxu0 0.0
        %6461 = vmatprep.subr.mxu0 0.0
        %6462 = vmatpush2.msra.mxu0 0.0
        %6463 = vmatprep.subr.mxu0 0.0
        %6464 = vmatpush2.msra.mxu0 0.0
        %6465 = vmatprep.subr.mxu0 0.0
        %6466 = vmatpush2.msra.mxu0 0.0
        %6467 = vmatprep.subr.mxu0 0.0
        %6468 = vmatpush2.msra.mxu0 0.0
        %6469 = vmatprep.subr.mxu0 0.0
        %6470 = vmatpush2.msra.mxu0 0.0
        %6471 = vmatprep.subr.mxu0 0.0
        %6472 = vmatpush2.msra.mxu0 0.0
        %6473 = vmatprep.subr.mxu0 0.0
        %6474 = vmatpush2.msra.mxu0 0.0
        %6475 = vmatprep.subr.mxu0 0.0
        %6476 = vmatpush2.msra.mxu0 0.0
        %6477 = vmatprep.subr.mxu0 0.0
        %6478 = vmatpush2.msra.mxu0 0.0
        %6479 = vmatprep.subr.mxu0 0.0
        %6480 = vmatpush2.msra.mxu0 0.0
        %6481 = vmatprep.subr.mxu0 0.0
        %6482 = vmatpush2.msra.mxu0 0.0
        %6483 = vmatprep.subr.mxu0 0.0
        %6484 = vmatpush2.msra.mxu0 0.0
        %6485 = vmatprep.subr.mxu0 0.0
        %6486 = vmatpush2.msra.mxu0 0.0
        %6487 = vmatprep.subr.mxu0 0.0
        %6488 = vmatpush2.msra.mxu0 0.0
        %6489 = vmatprep.subr.mxu0 0.0
        %6490 = vmatpush2.msra.mxu0 0.0
        %6491 = vmatprep.mubr.f32.mxu0 0.0
        %v6492 = vand.u32 %v6217, 4294901760
        %v6493 = vsub.f32 %v6217, %v6492
        %6494 = vmatmul.mubr.f32.gmra.mxu0 %v6493
        %v6495 = vpop.f32.mrf.mxu0
        %v6496 = vadd.f32 %v6406, %v6495
        %v6497 = vpop.f32.mrf.mxu0
        %6498 = vmatprep.mubr.f32.mxu0 0.0
        %v6499 = vand.u32 %v6220, 4294901760
        %v6500 = vsub.f32 %v6220, %v6499
        %6501 = vmatmul.mubr.f32.gmra.mxu0 %v6500
        %v6502 = vpop.f32.mrf.mxu0
        %v6503 = vadd.f32 %v6412, %v6502
        %v6504 = vpop.f32.mrf.mxu0
        %6505 = vmatprep.mubr.f32.mxu0 0.0
        %v6506 = vand.u32 %v6223, 4294901760
        %v6507 = vsub.f32 %v6223, %v6506
        %6508 = vmatmul.mubr.f32.gmra.mxu0 %v6507
        %v6509 = vpop.f32.mrf.mxu0
        %v6510 = vadd.f32 %v6418, %v6509
        %v6511 = vpop.f32.mrf.mxu0
        %6512 = vdwg.mxu0
        %6513 = vmatprep.subr.mxu0 0.0
        %6514 = vmatpush1.msra.mxu0 0.0
        %6515 = vmatprep.subr.mxu0 0.0
        %6516 = vmatpush1.msra.mxu0 0.0
        %6517 = vmatprep.subr.mxu0 0.0
        %6518 = vmatpush1.msra.mxu0 0.0
        %6519 = vmatprep.subr.mxu0 0.0
        %6520 = vmatpush1.msra.mxu0 0.0
        %6521 = vmatprep.subr.mxu0 0.0
        %6522 = vmatpush1.msra.mxu0 0.0
        %6523 = vmatprep.subr.mxu0 0.0
        %6524 = vmatpush1.msra.mxu0 0.0
        %6525 = vmatprep.subr.mxu0 0.0
        %6526 = vmatpush1.msra.mxu0 0.0
        %6527 = vmatprep.subr.mxu0 0.0
        %6528 = vmatpush1.msra.mxu0 0.0
        %6529 = vmatprep.subr.mxu0 0.0
        %6530 = vmatpush1.msra.mxu0 0.0
        %6531 = vmatprep.subr.mxu0 0.0
        %6532 = vmatpush1.msra.mxu0 0.0
        %6533 = vmatprep.subr.mxu0 0.0
        %6534 = vmatpush1.msra.mxu0 0.0
        %6535 = vmatprep.subr.mxu0 0.0
        %6536 = vmatpush1.msra.mxu0 0.0
        %6537 = vmatprep.subr.mxu0 0.0
        %6538 = vmatpush1.msra.mxu0 0.0
        %6539 = vmatprep.subr.mxu0 0.0
        %v6540 = vand.u32 %v5575, 4294901760
        %6541 = vmatpush1.msra.mxu0 %v6540
        %6542 = vmatprep.subr.mxu0 0.0
        %v6543 = vand.u32 %v5574, 4294901760
        %6544 = vmatpush1.msra.mxu0 %v6543
        %6545 = vmatprep.subr.mxu0 0.0
        %v6546 = vand.u32 %v5573, 4294901760
        %6547 = vmatpush1.msra.mxu0 %v6546
        %6548 = vmatprep.subr.mxu0 0.0
        %6549 = vmatpush2.msra.mxu0 0.0
        %6550 = vmatprep.subr.mxu0 0.0
        %6551 = vmatpush2.msra.mxu0 0.0
        %6552 = vmatprep.subr.mxu0 0.0
        %6553 = vmatpush2.msra.mxu0 0.0
        %6554 = vmatprep.subr.mxu0 0.0
        %6555 = vmatpush2.msra.mxu0 0.0
        %6556 = vmatprep.subr.mxu0 0.0
        %6557 = vmatpush2.msra.mxu0 0.0
        %6558 = vmatprep.subr.mxu0 0.0
        %6559 = vmatpush2.msra.mxu0 0.0
        %6560 = vmatprep.subr.mxu0 0.0
        %6561 = vmatpush2.msra.mxu0 0.0
        %6562 = vmatprep.subr.mxu0 0.0
        %6563 = vmatpush2.msra.mxu0 0.0
        %6564 = vmatprep.subr.mxu0 0.0
        %6565 = vmatpush2.msra.mxu0 0.0
        %6566 = vmatprep.subr.mxu0 0.0
        %6567 = vmatpush2.msra.mxu0 0.0
        %6568 = vmatprep.subr.mxu0 0.0
        %6569 = vmatpush2.msra.mxu0 0.0
        %6570 = vmatprep.subr.mxu0 0.0
        %6571 = vmatpush2.msra.mxu0 0.0
        %6572 = vmatprep.subr.mxu0 0.0
        %6573 = vmatpush2.msra.mxu0 0.0
        %6574 = vmatprep.subr.mxu0 0.0
        %6575 = vmatpush2.msra.mxu0 0.0
        %6576 = vmatprep.subr.mxu0 0.0
        %6577 = vmatpush2.msra.mxu0 0.0
        %6578 = vmatprep.subr.mxu0 0.0
        %6579 = vmatpush2.msra.mxu0 0.0
        %6580 = vmatprep.mubr.f32.mxu0 0.0
        %v6581 = vand.u32 %v6217, 4294901760
        %v6582 = vsub.f32 %v6217, %v6581
        %v6583 = vand.u32 %v6582, 4294901760
        %6584 = vmatmul.mubr.f32.gmra.mxu0 %v6583
        %v6585 = vpop.f32.mrf.mxu0
        %v6586 = vadd.f32 %v6496, %v6585
        %v6587 = vpop.f32.mrf.mxu0
        %6588 = vmatprep.mubr.f32.mxu0 0.0
        %v6589 = vand.u32 %v6220, 4294901760
        %v6590 = vsub.f32 %v6220, %v6589
        %v6591 = vand.u32 %v6590, 4294901760
        %6592 = vmatmul.mubr.f32.gmra.mxu0 %v6591
        %v6593 = vpop.f32.mrf.mxu0
        %v6594 = vadd.f32 %v6503, %v6593
        %v6595 = vpop.f32.mrf.mxu0
        %6596 = vmatprep.mubr.f32.mxu0 0.0
        %v6597 = vand.u32 %v6223, 4294901760
        %v6598 = vsub.f32 %v6223, %v6597
        %v6599 = vand.u32 %v6598, 4294901760
        %6600 = vmatmul.mubr.f32.gmra.mxu0 %v6599
        %v6601 = vpop.f32.mrf.mxu0
        %v6602 = vadd.f32 %v6510, %v6601
        %v6603 = vpop.f32.mrf.mxu0
        %6604 = vdwg.mxu0
        %6605 = vmatprep.subr.mxu0 0.0
        %6606 = vmatpush1.msra.mxu0 0.0
        %6607 = vmatprep.subr.mxu0 0.0
        %6608 = vmatpush1.msra.mxu0 0.0
        %6609 = vmatprep.subr.mxu0 0.0
        %6610 = vmatpush1.msra.mxu0 0.0
        %6611 = vmatprep.subr.mxu0 0.0
        %6612 = vmatpush1.msra.mxu0 0.0
        %6613 = vmatprep.subr.mxu0 0.0
        %6614 = vmatpush1.msra.mxu0 0.0
        %6615 = vmatprep.subr.mxu0 0.0
        %6616 = vmatpush1.msra.mxu0 0.0
        %6617 = vmatprep.subr.mxu0 0.0
        %6618 = vmatpush1.msra.mxu0 0.0
        %6619 = vmatprep.subr.mxu0 0.0
        %6620 = vmatpush1.msra.mxu0 0.0
        %6621 = vmatprep.subr.mxu0 0.0
        %6622 = vmatpush1.msra.mxu0 0.0
        %6623 = vmatprep.subr.mxu0 0.0
        %6624 = vmatpush1.msra.mxu0 0.0
        %6625 = vmatprep.subr.mxu0 0.0
        %6626 = vmatpush1.msra.mxu0 0.0
        %6627 = vmatprep.subr.mxu0 0.0
        %6628 = vmatpush1.msra.mxu0 0.0
        %6629 = vmatprep.subr.mxu0 0.0
        %6630 = vmatpush1.msra.mxu0 0.0
        %6631 = vmatprep.subr.mxu0 0.0
        %v6632 = vand.u32 %v5575, 4294901760
        %v6633 = vsub.f32 %v5575, %v6632
        %v6634 = vand.u32 %v6633, 4294901760
        %6635 = vmatpush1.msra.mxu0 %v6634
        %6636 = vmatprep.subr.mxu0 0.0
        %v6637 = vand.u32 %v5574, 4294901760
        %v6638 = vsub.f32 %v5574, %v6637
        %v6639 = vand.u32 %v6638, 4294901760
        %6640 = vmatpush1.msra.mxu0 %v6639
        %6641 = vmatprep.subr.mxu0 0.0
        %v6642 = vand.u32 %v5573, 4294901760
        %v6643 = vsub.f32 %v5573, %v6642
        %v6644 = vand.u32 %v6643, 4294901760
        %6645 = vmatpush1.msra.mxu0 %v6644
        %6646 = vmatprep.subr.mxu0 0.0
        %6647 = vmatpush2.msra.mxu0 0.0
        %6648 = vmatprep.subr.mxu0 0.0
        %6649 = vmatpush2.msra.mxu0 0.0
        %6650 = vmatprep.subr.mxu0 0.0
        %6651 = vmatpush2.msra.mxu0 0.0
        %6652 = vmatprep.subr.mxu0 0.0
        %6653 = vmatpush2.msra.mxu0 0.0
        %6654 = vmatprep.subr.mxu0 0.0
        %6655 = vmatpush2.msra.mxu0 0.0
        %6656 = vmatprep.subr.mxu0 0.0
        %6657 = vmatpush2.msra.mxu0 0.0
        %6658 = vmatprep.subr.mxu0 0.0
        %6659 = vmatpush2.msra.mxu0 0.0
        %6660 = vmatprep.subr.mxu0 0.0
        %6661 = vmatpush2.msra.mxu0 0.0
        %6662 = vmatprep.subr.mxu0 0.0
        %6663 = vmatpush2.msra.mxu0 0.0
        %6664 = vmatprep.subr.mxu0 0.0
        %6665 = vmatpush2.msra.mxu0 0.0
        %6666 = vmatprep.subr.mxu0 0.0
        %6667 = vmatpush2.msra.mxu0 0.0
        %6668 = vmatprep.subr.mxu0 0.0
        %6669 = vmatpush2.msra.mxu0 0.0
        %6670 = vmatprep.subr.mxu0 0.0
        %6671 = vmatpush2.msra.mxu0 0.0
        %6672 = vmatprep.subr.mxu0 0.0
        %6673 = vmatpush2.msra.mxu0 0.0
        %6674 = vmatprep.subr.mxu0 0.0
        %6675 = vmatpush2.msra.mxu0 0.0
        %6676 = vmatprep.subr.mxu0 0.0
        %6677 = vmatpush2.msra.mxu0 0.0
        %6678 = vmatprep.mubr.f32.mxu0 0.0
        %v6679 = vand.u32 %v6217, 4294901760
        %6680 = vmatmul.mubr.f32.gmra.mxu0 %v6679
        %v6681 = vpop.f32.mrf.mxu0
        %v6682 = vadd.f32 %v6586, %v6681
        %v6683 = vpop.f32.mrf.mxu0
        %6684 = vmatprep.mubr.f32.mxu0 0.0
        %v6685 = vand.u32 %v6220, 4294901760
        %6686 = vmatmul.mubr.f32.gmra.mxu0 %v6685
        %v6687 = vpop.f32.mrf.mxu0
        %v6688 = vadd.f32 %v6594, %v6687
        %v6689 = vpop.f32.mrf.mxu0
        %6690 = vmatprep.mubr.f32.mxu0 0.0
        %v6691 = vand.u32 %v6223, 4294901760
        %6692 = vmatmul.mubr.f32.gmra.mxu0 %v6691
        %v6693 = vpop.f32.mrf.mxu0
        %v6694 = vadd.f32 %v6602, %v6693
        %v6695 = vpop.f32.mrf.mxu0
        %6696 = vdwg.mxu0
        %6697 = vmatprep.subr.mxu0 0.0
        %6698 = vmatpush1.msra.mxu0 0.0
        %6699 = vmatprep.subr.mxu0 0.0
        %6700 = vmatpush1.msra.mxu0 0.0
        %6701 = vmatprep.subr.mxu0 0.0
        %6702 = vmatpush1.msra.mxu0 0.0
        %6703 = vmatprep.subr.mxu0 0.0
        %6704 = vmatpush1.msra.mxu0 0.0
        %6705 = vmatprep.subr.mxu0 0.0
        %6706 = vmatpush1.msra.mxu0 0.0
        %6707 = vmatprep.subr.mxu0 0.0
        %6708 = vmatpush1.msra.mxu0 0.0
        %6709 = vmatprep.subr.mxu0 0.0
        %6710 = vmatpush1.msra.mxu0 0.0
        %6711 = vmatprep.subr.mxu0 0.0
        %6712 = vmatpush1.msra.mxu0 0.0
        %6713 = vmatprep.subr.mxu0 0.0
        %6714 = vmatpush1.msra.mxu0 0.0
        %6715 = vmatprep.subr.mxu0 0.0
        %6716 = vmatpush1.msra.mxu0 0.0
        %6717 = vmatprep.subr.mxu0 0.0
        %6718 = vmatpush1.msra.mxu0 0.0
        %6719 = vmatprep.subr.mxu0 0.0
        %6720 = vmatpush1.msra.mxu0 0.0
        %6721 = vmatprep.subr.mxu0 0.0
        %6722 = vmatpush1.msra.mxu0 0.0
        %6723 = vmatprep.subr.mxu0 0.0
        %v6724 = vand.u32 %v5575, 4294901760
        %6725 = vmatpush1.msra.mxu0 %v6724
        %6726 = vmatprep.subr.mxu0 0.0
        %v6727 = vand.u32 %v5574, 4294901760
        %6728 = vmatpush1.msra.mxu0 %v6727
        %6729 = vmatprep.subr.mxu0 0.0
        %v6730 = vand.u32 %v5573, 4294901760
        %6731 = vmatpush1.msra.mxu0 %v6730
        %6732 = vmatprep.subr.mxu0 0.0
        %6733 = vmatpush2.msra.mxu0 0.0
        %6734 = vmatprep.subr.mxu0 0.0
        %6735 = vmatpush2.msra.mxu0 0.0
        %6736 = vmatprep.subr.mxu0 0.0
        %6737 = vmatpush2.msra.mxu0 0.0
        %6738 = vmatprep.subr.mxu0 0.0
        %6739 = vmatpush2.msra.mxu0 0.0
        %6740 = vmatprep.subr.mxu0 0.0
        %6741 = vmatpush2.msra.mxu0 0.0
        %6742 = vmatprep.subr.mxu0 0.0
        %6743 = vmatpush2.msra.mxu0 0.0
        %6744 = vmatprep.subr.mxu0 0.0
        %6745 = vmatpush2.msra.mxu0 0.0
        %6746 = vmatprep.subr.mxu0 0.0
        %6747 = vmatpush2.msra.mxu0 0.0
        %6748 = vmatprep.subr.mxu0 0.0
        %6749 = vmatpush2.msra.mxu0 0.0
        %6750 = vmatprep.subr.mxu0 0.0
        %6751 = vmatpush2.msra.mxu0 0.0
        %6752 = vmatprep.subr.mxu0 0.0
        %6753 = vmatpush2.msra.mxu0 0.0
        %6754 = vmatprep.subr.mxu0 0.0
        %6755 = vmatpush2.msra.mxu0 0.0
        %6756 = vmatprep.subr.mxu0 0.0
        %6757 = vmatpush2.msra.mxu0 0.0
        %6758 = vmatprep.subr.mxu0 0.0
        %6759 = vmatpush2.msra.mxu0 0.0
        %6760 = vmatprep.subr.mxu0 0.0
        %6761 = vmatpush2.msra.mxu0 0.0
        %6762 = vmatprep.subr.mxu0 0.0
        %6763 = vmatpush2.msra.mxu0 0.0
        %6764 = vmatprep.mubr.f32.mxu0 0.0
        %v6765 = vand.u32 %v6217, 4294901760
        %6766 = vmatmul.mubr.f32.gmra.mxu0 %v6765
        %v6767 = vpop.f32.mrf.mxu0
        %v6768 = vadd.f32 %v6682, %v6767
        %v6769 = vpop.f32.mrf.mxu0
        %6770 = vmatprep.mubr.f32.mxu0 0.0
        %v6771 = vand.u32 %v6220, 4294901760
        %6772 = vmatmul.mubr.f32.gmra.mxu0 %v6771
        %v6773 = vpop.f32.mrf.mxu0
        %v6774 = vadd.f32 %v6688, %v6773
        %v6775 = vpop.f32.mrf.mxu0
        %6776 = vmatprep.mubr.f32.mxu0 0.0
        %v6777 = vand.u32 %v6223, 4294901760
        %6778 = vmatmul.mubr.f32.gmra.mxu0 %v6777
        %v6779 = vpop.f32.mrf.mxu0
        %v6780 = vadd.f32 %v6694, %v6779
        %v6781 = vpop.f32.mrf.mxu0
        %6782 = vdwg.mxu0
        %6783 = vset.pattern.permute.xlu0 6
        %6784 = vperm.xlu0 %6783, %v2150
        %v6785 = vpop.permute.xlu0 %6784
        %6787 = vset.pattern.permute.xlu0 6
        %6788 = vperm.xlu0 %6787, %v2156
        %v6789 = vpop.permute.xlu0 %6788
        %6791 = vset.pattern.permute.xlu0 6
        %6792 = vperm.xlu0 %6791, %v2162
        %v6793 = vpop.permute.xlu0 %6792
        %v6795 = vlaneseq
        %v6796 = vshrl.u32 %v6795, 7
        %v6797 = vsub.s32 6, %v6796
        %v6798 = vrot.slane %v1629, %v6797
        %v6799 = vadd.f32 %v6785, %v6798
        %v6800 = vadd.f32 %v6789, %v6798
        %v6801 = vadd.f32 %v6793, %v6798
        %vm6802 = vcmp.gt.f32.partialorder %v6799, 0.0
        %vm6803 = vcmp.gt.f32.partialorder %v6800, 0.0
        %vm6804 = vcmp.gt.f32.partialorder %v6801, 0.0
        %v6805 = vmul.f32 %v6799, 0.2
        %v6806 = vmul.f32 %v6800, 0.2
        %v6807 = vmul.f32 %v6801, 0.2
        %v6808 = vsel %vm6802, %v6799, %v6805
        %v6809 = vsel %vm6803, %v6800, %v6806
        %v6810 = vsel %vm6804, %v6801, %v6807
        %v6811 = vsel %vm5488, %v6808, -1e+30
        %v6812 = vsel %vm5489, %v6809, -1e+30
        %v6813 = vsel %vm5490, %v6810, -1e+30
        %v6814 = vsel %vm2212, %v6811, -inf
        %6815 = vmax.xlane.f32.xlu0 %v6814
        %v6816 = vpop.xlane.xlu0 %6815
        %v6817 = vsel %vm2212, %v6812, -inf
        %6818 = vmax.xlane.f32.xlu0 %v6817
        %v6819 = vpop.xlane.xlu0 %6818
        %v6820 = vsel %vm2212, %v6813, -inf
        %6821 = vmax.xlane.f32.xlu0 %v6820
        %v6822 = vpop.xlane.xlu0 %6821
        %v6823 = vsub.f32 %v6811, %v6816
        %v6824 = vsub.f32 %v6812, %v6819
        %v6825 = vsub.f32 %v6813, %v6822
        %v6826 = vmul.f32 %v6823, 1.442695
        %v6827 = vpow.pop %v6826
        %v6828 = vmul.f32 %v6824, 1.442695
        %v6829 = vpow.pop %v6828
        %v6830 = vmul.f32 %v6825, 1.442695
        %v6831 = vpow.pop %v6830
        %v6832 = vsel %vm5488, %v6827, 0.0
        %v6833 = vsel %vm5489, %v6829, 0.0
        %v6834 = vsel %vm5490, %v6831, 0.0
        %v6835 = vsel %vm2212, %v6832, 0.0
        %6836 = vadd.xlane.f32.xlu0 %v6835
        %v6837 = vpop.xlane.xlu0 %6836
        %v6838 = vsel %vm2212, %v6833, 0.0
        %6839 = vadd.xlane.f32.xlu0 %v6838
        %v6840 = vpop.xlane.xlu0 %6839
        %v6841 = vsel %vm2212, %v6834, 0.0
        %6842 = vadd.xlane.f32.xlu0 %v6841
        %v6843 = vpop.xlane.xlu0 %6842
        %v6844 = vmax.f32 %v6837, 1e-09
        %v6845 = vmax.f32 %v6840, 1e-09
        %v6846 = vmax.f32 %v6843, 1e-09
        %v6847 = vrcp.pop %v6844
        %v6848 = vrcp.pop %v6845
        %v6849 = vrcp.pop %v6846
        %v6850 = vmul.f32 %v6832, %v6847
        %v6851 = vmul.f32 %v6833, %v6848
        %v6852 = vmul.f32 %v6834, %v6849
        %v6853 = vsel %vm3546, %v5565, 0.0
        %v6854 = vsel %vm3546, %v5567, 0.0
        %v6855 = vsel %vm3546, %v5569, 0.0
        %v6857 = vsel %vm2212, %v6850, 0
        %v6860 = vsel %vm2212, %v6851, 0
        %v6863 = vsel %vm2212, %v6852, 0
        %6865 = vmatprep.subr.mxu0 0.0
        %6866 = vmatpush1.msra.mxu0 0.0
        %6867 = vmatprep.subr.mxu0 0.0
        %6868 = vmatpush1.msra.mxu0 0.0
        %6869 = vmatprep.subr.mxu0 0.0
        %6870 = vmatpush1.msra.mxu0 0.0
        %6871 = vmatprep.subr.mxu0 0.0
        %6872 = vmatpush1.msra.mxu0 0.0
        %6873 = vmatprep.subr.mxu0 0.0
        %6874 = vmatpush1.msra.mxu0 0.0
        %6875 = vmatprep.subr.mxu0 0.0
        %6876 = vmatpush1.msra.mxu0 0.0
        %6877 = vmatprep.subr.mxu0 0.0
        %6878 = vmatpush1.msra.mxu0 0.0
        %6879 = vmatprep.subr.mxu0 0.0
        %6880 = vmatpush1.msra.mxu0 0.0
        %6881 = vmatprep.subr.mxu0 0.0
        %6882 = vmatpush1.msra.mxu0 0.0
        %6883 = vmatprep.subr.mxu0 0.0
        %6884 = vmatpush1.msra.mxu0 0.0
        %6885 = vmatprep.subr.mxu0 0.0
        %6886 = vmatpush1.msra.mxu0 0.0
        %6887 = vmatprep.subr.mxu0 0.0
        %6888 = vmatpush1.msra.mxu0 0.0
        %6889 = vmatprep.subr.mxu0 0.0
        %6890 = vmatpush1.msra.mxu0 0.0
        %6891 = vmatprep.subr.mxu0 0.0
        %v6892 = vand.u32 %v6855, 4294901760
        %6893 = vmatpush1.msra.mxu0 %v6892
        %6894 = vmatprep.subr.mxu0 0.0
        %v6895 = vand.u32 %v6854, 4294901760
        %6896 = vmatpush1.msra.mxu0 %v6895
        %6897 = vmatprep.subr.mxu0 0.0
        %v6898 = vand.u32 %v6853, 4294901760
        %6899 = vmatpush1.msra.mxu0 %v6898
        %6900 = vmatprep.subr.mxu0 0.0
        %6901 = vmatpush2.msra.mxu0 0.0
        %6902 = vmatprep.subr.mxu0 0.0
        %6903 = vmatpush2.msra.mxu0 0.0
        %6904 = vmatprep.subr.mxu0 0.0
        %6905 = vmatpush2.msra.mxu0 0.0
        %6906 = vmatprep.subr.mxu0 0.0
        %6907 = vmatpush2.msra.mxu0 0.0
        %6908 = vmatprep.subr.mxu0 0.0
        %6909 = vmatpush2.msra.mxu0 0.0
        %6910 = vmatprep.subr.mxu0 0.0
        %6911 = vmatpush2.msra.mxu0 0.0
        %6912 = vmatprep.subr.mxu0 0.0
        %6913 = vmatpush2.msra.mxu0 0.0
        %6914 = vmatprep.subr.mxu0 0.0
        %6915 = vmatpush2.msra.mxu0 0.0
        %6916 = vmatprep.subr.mxu0 0.0
        %6917 = vmatpush2.msra.mxu0 0.0
        %6918 = vmatprep.subr.mxu0 0.0
        %6919 = vmatpush2.msra.mxu0 0.0
        %6920 = vmatprep.subr.mxu0 0.0
        %6921 = vmatpush2.msra.mxu0 0.0
        %6922 = vmatprep.subr.mxu0 0.0
        %6923 = vmatpush2.msra.mxu0 0.0
        %6924 = vmatprep.subr.mxu0 0.0
        %6925 = vmatpush2.msra.mxu0 0.0
        %6926 = vmatprep.subr.mxu0 0.0
        %6927 = vmatpush2.msra.mxu0 0.0
        %6928 = vmatprep.subr.mxu0 0.0
        %6929 = vmatpush2.msra.mxu0 0.0
        %6930 = vmatprep.subr.mxu0 0.0
        %6931 = vmatpush2.msra.mxu0 0.0
        %6932 = vmatprep.mubr.f32.mxu0 0.0
        %v6933 = vand.u32 %v6857, 4294901760
        %v6934 = vsub.f32 %v6857, %v6933
        %v6935 = vand.u32 %v6934, 4294901760
        %v6936 = vsub.f32 %v6934, %v6935
        %v6937 = vand.u32 %v6936, 4294901760
        %6938 = vmatmul.mubr.f32.gmra.mxu0 %v6937
        %v6939 = vpop.f32.mrf.mxu0
        %v6940 = vadd.f32 0.0, %v6939
        %v6941 = vpop.f32.mrf.mxu0
        %6942 = vmatprep.mubr.f32.mxu0 0.0
        %v6943 = vand.u32 %v6860, 4294901760
        %v6944 = vsub.f32 %v6860, %v6943
        %v6945 = vand.u32 %v6944, 4294901760
        %v6946 = vsub.f32 %v6944, %v6945
        %v6947 = vand.u32 %v6946, 4294901760
        %6948 = vmatmul.mubr.f32.gmra.mxu0 %v6947
        %v6949 = vpop.f32.mrf.mxu0
        %v6950 = vadd.f32 0.0, %v6949
        %v6951 = vpop.f32.mrf.mxu0
        %6952 = vmatprep.mubr.f32.mxu0 0.0
        %v6953 = vand.u32 %v6863, 4294901760
        %v6954 = vsub.f32 %v6863, %v6953
        %v6955 = vand.u32 %v6954, 4294901760
        %v6956 = vsub.f32 %v6954, %v6955
        %v6957 = vand.u32 %v6956, 4294901760
        %6958 = vmatmul.mubr.f32.gmra.mxu0 %v6957
        %v6959 = vpop.f32.mrf.mxu0
        %v6960 = vadd.f32 0.0, %v6959
        %v6961 = vpop.f32.mrf.mxu0
        %6962 = vdwg.mxu0
        %6963 = vmatprep.subr.mxu0 0.0
        %6964 = vmatpush1.msra.mxu0 0.0
        %6965 = vmatprep.subr.mxu0 0.0
        %6966 = vmatpush1.msra.mxu0 0.0
        %6967 = vmatprep.subr.mxu0 0.0
        %6968 = vmatpush1.msra.mxu0 0.0
        %6969 = vmatprep.subr.mxu0 0.0
        %6970 = vmatpush1.msra.mxu0 0.0
        %6971 = vmatprep.subr.mxu0 0.0
        %6972 = vmatpush1.msra.mxu0 0.0
        %6973 = vmatprep.subr.mxu0 0.0
        %6974 = vmatpush1.msra.mxu0 0.0
        %6975 = vmatprep.subr.mxu0 0.0
        %6976 = vmatpush1.msra.mxu0 0.0
        %6977 = vmatprep.subr.mxu0 0.0
        %6978 = vmatpush1.msra.mxu0 0.0
        %6979 = vmatprep.subr.mxu0 0.0
        %6980 = vmatpush1.msra.mxu0 0.0
        %6981 = vmatprep.subr.mxu0 0.0
        %6982 = vmatpush1.msra.mxu0 0.0
        %6983 = vmatprep.subr.mxu0 0.0
        %6984 = vmatpush1.msra.mxu0 0.0
        %6985 = vmatprep.subr.mxu0 0.0
        %6986 = vmatpush1.msra.mxu0 0.0
        %6987 = vmatprep.subr.mxu0 0.0
        %6988 = vmatpush1.msra.mxu0 0.0
        %6989 = vmatprep.subr.mxu0 0.0
        %v6990 = vand.u32 %v6855, 4294901760
        %v6991 = vsub.f32 %v6855, %v6990
        %v6992 = vand.u32 %v6991, 4294901760
        %v6993 = vsub.f32 %v6991, %v6992
        %v6994 = vand.u32 %v6993, 4294901760
        %6995 = vmatpush1.msra.mxu0 %v6994
        %6996 = vmatprep.subr.mxu0 0.0
        %v6997 = vand.u32 %v6854, 4294901760
        %v6998 = vsub.f32 %v6854, %v6997
        %v6999 = vand.u32 %v6998, 4294901760
        %v7000 = vsub.f32 %v6998, %v6999
        %v7001 = vand.u32 %v7000, 4294901760
        %7002 = vmatpush1.msra.mxu0 %v7001
        %7003 = vmatprep.subr.mxu0 0.0
        %v7004 = vand.u32 %v6853, 4294901760
        %v7005 = vsub.f32 %v6853, %v7004
        %v7006 = vand.u32 %v7005, 4294901760
        %v7007 = vsub.f32 %v7005, %v7006
        %v7008 = vand.u32 %v7007, 4294901760
        %7009 = vmatpush1.msra.mxu0 %v7008
        %7010 = vmatprep.subr.mxu0 0.0
        %7011 = vmatpush2.msra.mxu0 0.0
        %7012 = vmatprep.subr.mxu0 0.0
        %7013 = vmatpush2.msra.mxu0 0.0
        %7014 = vmatprep.subr.mxu0 0.0
        %7015 = vmatpush2.msra.mxu0 0.0
        %7016 = vmatprep.subr.mxu0 0.0
        %7017 = vmatpush2.msra.mxu0 0.0
        %7018 = vmatprep.subr.mxu0 0.0
        %7019 = vmatpush2.msra.mxu0 0.0
        %7020 = vmatprep.subr.mxu0 0.0
        %7021 = vmatpush2.msra.mxu0 0.0
        %7022 = vmatprep.subr.mxu0 0.0
        %7023 = vmatpush2.msra.mxu0 0.0
        %7024 = vmatprep.subr.mxu0 0.0
        %7025 = vmatpush2.msra.mxu0 0.0
        %7026 = vmatprep.subr.mxu0 0.0
        %7027 = vmatpush2.msra.mxu0 0.0
        %7028 = vmatprep.subr.mxu0 0.0
        %7029 = vmatpush2.msra.mxu0 0.0
        %7030 = vmatprep.subr.mxu0 0.0
        %7031 = vmatpush2.msra.mxu0 0.0
        %7032 = vmatprep.subr.mxu0 0.0
        %7033 = vmatpush2.msra.mxu0 0.0
        %7034 = vmatprep.subr.mxu0 0.0
        %7035 = vmatpush2.msra.mxu0 0.0
        %7036 = vmatprep.subr.mxu0 0.0
        %7037 = vmatpush2.msra.mxu0 0.0
        %7038 = vmatprep.subr.mxu0 0.0
        %7039 = vmatpush2.msra.mxu0 0.0
        %7040 = vmatprep.subr.mxu0 0.0
        %7041 = vmatpush2.msra.mxu0 0.0
        %7042 = vmatprep.mubr.f32.mxu0 0.0
        %v7043 = vand.u32 %v6857, 4294901760
        %7044 = vmatmul.mubr.f32.gmra.mxu0 %v7043
        %v7045 = vpop.f32.mrf.mxu0
        %v7046 = vadd.f32 %v6940, %v7045
        %v7047 = vpop.f32.mrf.mxu0
        %7048 = vmatprep.mubr.f32.mxu0 0.0
        %v7049 = vand.u32 %v6860, 4294901760
        %7050 = vmatmul.mubr.f32.gmra.mxu0 %v7049
        %v7051 = vpop.f32.mrf.mxu0
        %v7052 = vadd.f32 %v6950, %v7051
        %v7053 = vpop.f32.mrf.mxu0
        %7054 = vmatprep.mubr.f32.mxu0 0.0
        %v7055 = vand.u32 %v6863, 4294901760
        %7056 = vmatmul.mubr.f32.gmra.mxu0 %v7055
        %v7057 = vpop.f32.mrf.mxu0
        %v7058 = vadd.f32 %v6960, %v7057
        %v7059 = vpop.f32.mrf.mxu0
        %7060 = vdwg.mxu0
        %7061 = vmatprep.subr.mxu0 0.0
        %7062 = vmatpush1.msra.mxu0 0.0
        %7063 = vmatprep.subr.mxu0 0.0
        %7064 = vmatpush1.msra.mxu0 0.0
        %7065 = vmatprep.subr.mxu0 0.0
        %7066 = vmatpush1.msra.mxu0 0.0
        %7067 = vmatprep.subr.mxu0 0.0
        %7068 = vmatpush1.msra.mxu0 0.0
        %7069 = vmatprep.subr.mxu0 0.0
        %7070 = vmatpush1.msra.mxu0 0.0
        %7071 = vmatprep.subr.mxu0 0.0
        %7072 = vmatpush1.msra.mxu0 0.0
        %7073 = vmatprep.subr.mxu0 0.0
        %7074 = vmatpush1.msra.mxu0 0.0
        %7075 = vmatprep.subr.mxu0 0.0
        %7076 = vmatpush1.msra.mxu0 0.0
        %7077 = vmatprep.subr.mxu0 0.0
        %7078 = vmatpush1.msra.mxu0 0.0
        %7079 = vmatprep.subr.mxu0 0.0
        %7080 = vmatpush1.msra.mxu0 0.0
        %7081 = vmatprep.subr.mxu0 0.0
        %7082 = vmatpush1.msra.mxu0 0.0
        %7083 = vmatprep.subr.mxu0 0.0
        %7084 = vmatpush1.msra.mxu0 0.0
        %7085 = vmatprep.subr.mxu0 0.0
        %7086 = vmatpush1.msra.mxu0 0.0
        %7087 = vmatprep.subr.mxu0 0.0
        %v7088 = vand.u32 %v6855, 4294901760
        %v7089 = vsub.f32 %v6855, %v7088
        %7090 = vmatpush1.msra.mxu0 %v7089
        %7091 = vmatprep.subr.mxu0 0.0
        %v7092 = vand.u32 %v6854, 4294901760
        %v7093 = vsub.f32 %v6854, %v7092
        %7094 = vmatpush1.msra.mxu0 %v7093
        %7095 = vmatprep.subr.mxu0 0.0
        %v7096 = vand.u32 %v6853, 4294901760
        %v7097 = vsub.f32 %v6853, %v7096
        %7098 = vmatpush1.msra.mxu0 %v7097
        %7099 = vmatprep.subr.mxu0 0.0
        %7100 = vmatpush2.msra.mxu0 0.0
        %7101 = vmatprep.subr.mxu0 0.0
        %7102 = vmatpush2.msra.mxu0 0.0
        %7103 = vmatprep.subr.mxu0 0.0
        %7104 = vmatpush2.msra.mxu0 0.0
        %7105 = vmatprep.subr.mxu0 0.0
        %7106 = vmatpush2.msra.mxu0 0.0
        %7107 = vmatprep.subr.mxu0 0.0
        %7108 = vmatpush2.msra.mxu0 0.0
        %7109 = vmatprep.subr.mxu0 0.0
        %7110 = vmatpush2.msra.mxu0 0.0
        %7111 = vmatprep.subr.mxu0 0.0
        %7112 = vmatpush2.msra.mxu0 0.0
        %7113 = vmatprep.subr.mxu0 0.0
        %7114 = vmatpush2.msra.mxu0 0.0
        %7115 = vmatprep.subr.mxu0 0.0
        %7116 = vmatpush2.msra.mxu0 0.0
        %7117 = vmatprep.subr.mxu0 0.0
        %7118 = vmatpush2.msra.mxu0 0.0
        %7119 = vmatprep.subr.mxu0 0.0
        %7120 = vmatpush2.msra.mxu0 0.0
        %7121 = vmatprep.subr.mxu0 0.0
        %7122 = vmatpush2.msra.mxu0 0.0
        %7123 = vmatprep.subr.mxu0 0.0
        %7124 = vmatpush2.msra.mxu0 0.0
        %7125 = vmatprep.subr.mxu0 0.0
        %7126 = vmatpush2.msra.mxu0 0.0
        %7127 = vmatprep.subr.mxu0 0.0
        %7128 = vmatpush2.msra.mxu0 0.0
        %7129 = vmatprep.subr.mxu0 0.0
        %7130 = vmatpush2.msra.mxu0 0.0
        %7131 = vmatprep.mubr.f32.mxu0 0.0
        %v7132 = vand.u32 %v6857, 4294901760
        %v7133 = vsub.f32 %v6857, %v7132
        %7134 = vmatmul.mubr.f32.gmra.mxu0 %v7133
        %v7135 = vpop.f32.mrf.mxu0
        %v7136 = vadd.f32 %v7046, %v7135
        %v7137 = vpop.f32.mrf.mxu0
        %7138 = vmatprep.mubr.f32.mxu0 0.0
        %v7139 = vand.u32 %v6860, 4294901760
        %v7140 = vsub.f32 %v6860, %v7139
        %7141 = vmatmul.mubr.f32.gmra.mxu0 %v7140
        %v7142 = vpop.f32.mrf.mxu0
        %v7143 = vadd.f32 %v7052, %v7142
        %v7144 = vpop.f32.mrf.mxu0
        %7145 = vmatprep.mubr.f32.mxu0 0.0
        %v7146 = vand.u32 %v6863, 4294901760
        %v7147 = vsub.f32 %v6863, %v7146
        %7148 = vmatmul.mubr.f32.gmra.mxu0 %v7147
        %v7149 = vpop.f32.mrf.mxu0
        %v7150 = vadd.f32 %v7058, %v7149
        %v7151 = vpop.f32.mrf.mxu0
        %7152 = vdwg.mxu0
        %7153 = vmatprep.subr.mxu0 0.0
        %7154 = vmatpush1.msra.mxu0 0.0
        %7155 = vmatprep.subr.mxu0 0.0
        %7156 = vmatpush1.msra.mxu0 0.0
        %7157 = vmatprep.subr.mxu0 0.0
        %7158 = vmatpush1.msra.mxu0 0.0
        %7159 = vmatprep.subr.mxu0 0.0
        %7160 = vmatpush1.msra.mxu0 0.0
        %7161 = vmatprep.subr.mxu0 0.0
        %7162 = vmatpush1.msra.mxu0 0.0
        %7163 = vmatprep.subr.mxu0 0.0
        %7164 = vmatpush1.msra.mxu0 0.0
        %7165 = vmatprep.subr.mxu0 0.0
        %7166 = vmatpush1.msra.mxu0 0.0
        %7167 = vmatprep.subr.mxu0 0.0
        %7168 = vmatpush1.msra.mxu0 0.0
        %7169 = vmatprep.subr.mxu0 0.0
        %7170 = vmatpush1.msra.mxu0 0.0
        %7171 = vmatprep.subr.mxu0 0.0
        %7172 = vmatpush1.msra.mxu0 0.0
        %7173 = vmatprep.subr.mxu0 0.0
        %7174 = vmatpush1.msra.mxu0 0.0
        %7175 = vmatprep.subr.mxu0 0.0
        %7176 = vmatpush1.msra.mxu0 0.0
        %7177 = vmatprep.subr.mxu0 0.0
        %7178 = vmatpush1.msra.mxu0 0.0
        %7179 = vmatprep.subr.mxu0 0.0
        %v7180 = vand.u32 %v6855, 4294901760
        %7181 = vmatpush1.msra.mxu0 %v7180
        %7182 = vmatprep.subr.mxu0 0.0
        %v7183 = vand.u32 %v6854, 4294901760
        %7184 = vmatpush1.msra.mxu0 %v7183
        %7185 = vmatprep.subr.mxu0 0.0
        %v7186 = vand.u32 %v6853, 4294901760
        %7187 = vmatpush1.msra.mxu0 %v7186
        %7188 = vmatprep.subr.mxu0 0.0
        %7189 = vmatpush2.msra.mxu0 0.0
        %7190 = vmatprep.subr.mxu0 0.0
        %7191 = vmatpush2.msra.mxu0 0.0
        %7192 = vmatprep.subr.mxu0 0.0
        %7193 = vmatpush2.msra.mxu0 0.0
        %7194 = vmatprep.subr.mxu0 0.0
        %7195 = vmatpush2.msra.mxu0 0.0
        %7196 = vmatprep.subr.mxu0 0.0
        %7197 = vmatpush2.msra.mxu0 0.0
        %7198 = vmatprep.subr.mxu0 0.0
        %7199 = vmatpush2.msra.mxu0 0.0
        %7200 = vmatprep.subr.mxu0 0.0
        %7201 = vmatpush2.msra.mxu0 0.0
        %7202 = vmatprep.subr.mxu0 0.0
        %7203 = vmatpush2.msra.mxu0 0.0
        %7204 = vmatprep.subr.mxu0 0.0
        %7205 = vmatpush2.msra.mxu0 0.0
        %7206 = vmatprep.subr.mxu0 0.0
        %7207 = vmatpush2.msra.mxu0 0.0
        %7208 = vmatprep.subr.mxu0 0.0
        %7209 = vmatpush2.msra.mxu0 0.0
        %7210 = vmatprep.subr.mxu0 0.0
        %7211 = vmatpush2.msra.mxu0 0.0
        %7212 = vmatprep.subr.mxu0 0.0
        %7213 = vmatpush2.msra.mxu0 0.0
        %7214 = vmatprep.subr.mxu0 0.0
        %7215 = vmatpush2.msra.mxu0 0.0
        %7216 = vmatprep.subr.mxu0 0.0
        %7217 = vmatpush2.msra.mxu0 0.0
        %7218 = vmatprep.subr.mxu0 0.0
        %7219 = vmatpush2.msra.mxu0 0.0
        %7220 = vmatprep.mubr.f32.mxu0 0.0
        %v7221 = vand.u32 %v6857, 4294901760
        %v7222 = vsub.f32 %v6857, %v7221
        %v7223 = vand.u32 %v7222, 4294901760
        %7224 = vmatmul.mubr.f32.gmra.mxu0 %v7223
        %v7225 = vpop.f32.mrf.mxu0
        %v7226 = vadd.f32 %v7136, %v7225
        %v7227 = vpop.f32.mrf.mxu0
        %7228 = vmatprep.mubr.f32.mxu0 0.0
        %v7229 = vand.u32 %v6860, 4294901760
        %v7230 = vsub.f32 %v6860, %v7229
        %v7231 = vand.u32 %v7230, 4294901760
        %7232 = vmatmul.mubr.f32.gmra.mxu0 %v7231
        %v7233 = vpop.f32.mrf.mxu0
        %v7234 = vadd.f32 %v7143, %v7233
        %v7235 = vpop.f32.mrf.mxu0
        %7236 = vmatprep.mubr.f32.mxu0 0.0
        %v7237 = vand.u32 %v6863, 4294901760
        %v7238 = vsub.f32 %v6863, %v7237
        %v7239 = vand.u32 %v7238, 4294901760
        %7240 = vmatmul.mubr.f32.gmra.mxu0 %v7239
        %v7241 = vpop.f32.mrf.mxu0
        %v7242 = vadd.f32 %v7150, %v7241
        %v7243 = vpop.f32.mrf.mxu0
        %7244 = vdwg.mxu0
        %7245 = vmatprep.subr.mxu0 0.0
        %7246 = vmatpush1.msra.mxu0 0.0
        %7247 = vmatprep.subr.mxu0 0.0
        %7248 = vmatpush1.msra.mxu0 0.0
        %7249 = vmatprep.subr.mxu0 0.0
        %7250 = vmatpush1.msra.mxu0 0.0
        %7251 = vmatprep.subr.mxu0 0.0
        %7252 = vmatpush1.msra.mxu0 0.0
        %7253 = vmatprep.subr.mxu0 0.0
        %7254 = vmatpush1.msra.mxu0 0.0
        %7255 = vmatprep.subr.mxu0 0.0
        %7256 = vmatpush1.msra.mxu0 0.0
        %7257 = vmatprep.subr.mxu0 0.0
        %7258 = vmatpush1.msra.mxu0 0.0
        %7259 = vmatprep.subr.mxu0 0.0
        %7260 = vmatpush1.msra.mxu0 0.0
        %7261 = vmatprep.subr.mxu0 0.0
        %7262 = vmatpush1.msra.mxu0 0.0
        %7263 = vmatprep.subr.mxu0 0.0
        %7264 = vmatpush1.msra.mxu0 0.0
        %7265 = vmatprep.subr.mxu0 0.0
        %7266 = vmatpush1.msra.mxu0 0.0
        %7267 = vmatprep.subr.mxu0 0.0
        %7268 = vmatpush1.msra.mxu0 0.0
        %7269 = vmatprep.subr.mxu0 0.0
        %7270 = vmatpush1.msra.mxu0 0.0
        %7271 = vmatprep.subr.mxu0 0.0
        %v7272 = vand.u32 %v6855, 4294901760
        %v7273 = vsub.f32 %v6855, %v7272
        %v7274 = vand.u32 %v7273, 4294901760
        %7275 = vmatpush1.msra.mxu0 %v7274
        %7276 = vmatprep.subr.mxu0 0.0
        %v7277 = vand.u32 %v6854, 4294901760
        %v7278 = vsub.f32 %v6854, %v7277
        %v7279 = vand.u32 %v7278, 4294901760
        %7280 = vmatpush1.msra.mxu0 %v7279
        %7281 = vmatprep.subr.mxu0 0.0
        %v7282 = vand.u32 %v6853, 4294901760
        %v7283 = vsub.f32 %v6853, %v7282
        %v7284 = vand.u32 %v7283, 4294901760
        %7285 = vmatpush1.msra.mxu0 %v7284
        %7286 = vmatprep.subr.mxu0 0.0
        %7287 = vmatpush2.msra.mxu0 0.0
        %7288 = vmatprep.subr.mxu0 0.0
        %7289 = vmatpush2.msra.mxu0 0.0
        %7290 = vmatprep.subr.mxu0 0.0
        %7291 = vmatpush2.msra.mxu0 0.0
        %7292 = vmatprep.subr.mxu0 0.0
        %7293 = vmatpush2.msra.mxu0 0.0
        %7294 = vmatprep.subr.mxu0 0.0
        %7295 = vmatpush2.msra.mxu0 0.0
        %7296 = vmatprep.subr.mxu0 0.0
        %7297 = vmatpush2.msra.mxu0 0.0
        %7298 = vmatprep.subr.mxu0 0.0
        %7299 = vmatpush2.msra.mxu0 0.0
        %7300 = vmatprep.subr.mxu0 0.0
        %7301 = vmatpush2.msra.mxu0 0.0
        %7302 = vmatprep.subr.mxu0 0.0
        %7303 = vmatpush2.msra.mxu0 0.0
        %7304 = vmatprep.subr.mxu0 0.0
        %7305 = vmatpush2.msra.mxu0 0.0
        %7306 = vmatprep.subr.mxu0 0.0
        %7307 = vmatpush2.msra.mxu0 0.0
        %7308 = vmatprep.subr.mxu0 0.0
        %7309 = vmatpush2.msra.mxu0 0.0
        %7310 = vmatprep.subr.mxu0 0.0
        %7311 = vmatpush2.msra.mxu0 0.0
        %7312 = vmatprep.subr.mxu0 0.0
        %7313 = vmatpush2.msra.mxu0 0.0
        %7314 = vmatprep.subr.mxu0 0.0
        %7315 = vmatpush2.msra.mxu0 0.0
        %7316 = vmatprep.subr.mxu0 0.0
        %7317 = vmatpush2.msra.mxu0 0.0
        %7318 = vmatprep.mubr.f32.mxu0 0.0
        %v7319 = vand.u32 %v6857, 4294901760
        %7320 = vmatmul.mubr.f32.gmra.mxu0 %v7319
        %v7321 = vpop.f32.mrf.mxu0
        %v7322 = vadd.f32 %v7226, %v7321
        %v7323 = vpop.f32.mrf.mxu0
        %7324 = vmatprep.mubr.f32.mxu0 0.0
        %v7325 = vand.u32 %v6860, 4294901760
        %7326 = vmatmul.mubr.f32.gmra.mxu0 %v7325
        %v7327 = vpop.f32.mrf.mxu0
        %v7328 = vadd.f32 %v7234, %v7327
        %v7329 = vpop.f32.mrf.mxu0
        %7330 = vmatprep.mubr.f32.mxu0 0.0
        %v7331 = vand.u32 %v6863, 4294901760
        %7332 = vmatmul.mubr.f32.gmra.mxu0 %v7331
        %v7333 = vpop.f32.mrf.mxu0
        %v7334 = vadd.f32 %v7242, %v7333
        %v7335 = vpop.f32.mrf.mxu0
        %7336 = vdwg.mxu0
        %7337 = vmatprep.subr.mxu0 0.0
        %7338 = vmatpush1.msra.mxu0 0.0
        %7339 = vmatprep.subr.mxu0 0.0
        %7340 = vmatpush1.msra.mxu0 0.0
        %7341 = vmatprep.subr.mxu0 0.0
        %7342 = vmatpush1.msra.mxu0 0.0
        %7343 = vmatprep.subr.mxu0 0.0
        %7344 = vmatpush1.msra.mxu0 0.0
        %7345 = vmatprep.subr.mxu0 0.0
        %7346 = vmatpush1.msra.mxu0 0.0
        %7347 = vmatprep.subr.mxu0 0.0
        %7348 = vmatpush1.msra.mxu0 0.0
        %7349 = vmatprep.subr.mxu0 0.0
        %7350 = vmatpush1.msra.mxu0 0.0
        %7351 = vmatprep.subr.mxu0 0.0
        %7352 = vmatpush1.msra.mxu0 0.0
        %7353 = vmatprep.subr.mxu0 0.0
        %7354 = vmatpush1.msra.mxu0 0.0
        %7355 = vmatprep.subr.mxu0 0.0
        %7356 = vmatpush1.msra.mxu0 0.0
        %7357 = vmatprep.subr.mxu0 0.0
        %7358 = vmatpush1.msra.mxu0 0.0
        %7359 = vmatprep.subr.mxu0 0.0
        %7360 = vmatpush1.msra.mxu0 0.0
        %7361 = vmatprep.subr.mxu0 0.0
        %7362 = vmatpush1.msra.mxu0 0.0
        %7363 = vmatprep.subr.mxu0 0.0
        %v7364 = vand.u32 %v6855, 4294901760
        %7365 = vmatpush1.msra.mxu0 %v7364
        %7366 = vmatprep.subr.mxu0 0.0
        %v7367 = vand.u32 %v6854, 4294901760
        %7368 = vmatpush1.msra.mxu0 %v7367
        %7369 = vmatprep.subr.mxu0 0.0
        %v7370 = vand.u32 %v6853, 4294901760
        %7371 = vmatpush1.msra.mxu0 %v7370
        %7372 = vmatprep.subr.mxu0 0.0
        %7373 = vmatpush2.msra.mxu0 0.0
        %7374 = vmatprep.subr.mxu0 0.0
        %7375 = vmatpush2.msra.mxu0 0.0
        %7376 = vmatprep.subr.mxu0 0.0
        %7377 = vmatpush2.msra.mxu0 0.0
        %7378 = vmatprep.subr.mxu0 0.0
        %7379 = vmatpush2.msra.mxu0 0.0
        %7380 = vmatprep.subr.mxu0 0.0
        %7381 = vmatpush2.msra.mxu0 0.0
        %7382 = vmatprep.subr.mxu0 0.0
        %7383 = vmatpush2.msra.mxu0 0.0
        %7384 = vmatprep.subr.mxu0 0.0
        %7385 = vmatpush2.msra.mxu0 0.0
        %7386 = vmatprep.subr.mxu0 0.0
        %7387 = vmatpush2.msra.mxu0 0.0
        %7388 = vmatprep.subr.mxu0 0.0
        %7389 = vmatpush2.msra.mxu0 0.0
        %7390 = vmatprep.subr.mxu0 0.0
        %7391 = vmatpush2.msra.mxu0 0.0
        %7392 = vmatprep.subr.mxu0 0.0
        %7393 = vmatpush2.msra.mxu0 0.0
        %7394 = vmatprep.subr.mxu0 0.0
        %7395 = vmatpush2.msra.mxu0 0.0
        %7396 = vmatprep.subr.mxu0 0.0
        %7397 = vmatpush2.msra.mxu0 0.0
        %7398 = vmatprep.subr.mxu0 0.0
        %7399 = vmatpush2.msra.mxu0 0.0
        %7400 = vmatprep.subr.mxu0 0.0
        %7401 = vmatpush2.msra.mxu0 0.0
        %7402 = vmatprep.subr.mxu0 0.0
        %7403 = vmatpush2.msra.mxu0 0.0
        %7404 = vmatprep.mubr.f32.mxu0 0.0
        %v7405 = vand.u32 %v6857, 4294901760
        %7406 = vmatmul.mubr.f32.gmra.mxu0 %v7405
        %v7407 = vpop.f32.mrf.mxu0
        %v7408 = vadd.f32 %v7322, %v7407
        %v7409 = vpop.f32.mrf.mxu0
        %7410 = vmatprep.mubr.f32.mxu0 0.0
        %v7411 = vand.u32 %v6860, 4294901760
        %7412 = vmatmul.mubr.f32.gmra.mxu0 %v7411
        %v7413 = vpop.f32.mrf.mxu0
        %v7414 = vadd.f32 %v7328, %v7413
        %v7415 = vpop.f32.mrf.mxu0
        %7416 = vmatprep.mubr.f32.mxu0 0.0
        %v7417 = vand.u32 %v6863, 4294901760
        %7418 = vmatmul.mubr.f32.gmra.mxu0 %v7417
        %v7419 = vpop.f32.mrf.mxu0
        %v7420 = vadd.f32 %v7334, %v7419
        %v7421 = vpop.f32.mrf.mxu0
        %7422 = vdwg.mxu0
        %v7423 = vadd.f32 %v6768, %v7408
        %v7424 = vadd.f32 %v6774, %v7414
        %v7425 = vadd.f32 %v6780, %v7420
        %7426 = vset.pattern.permute.xlu0 7
        %7427 = vperm.xlu0 %7426, %v2150
        %v7428 = vpop.permute.xlu0 %7427
        %7430 = vset.pattern.permute.xlu0 7
        %7431 = vperm.xlu0 %7430, %v2156
        %v7432 = vpop.permute.xlu0 %7431
        %7434 = vset.pattern.permute.xlu0 7
        %7435 = vperm.xlu0 %7434, %v2162
        %v7436 = vpop.permute.xlu0 %7435
        %v7438 = vlaneseq
        %v7439 = vshrl.u32 %v7438, 7
        %v7440 = vsub.s32 7, %v7439
        %v7441 = vrot.slane %v1629, %v7440
        %v7442 = vadd.f32 %v7428, %v7441
        %v7443 = vadd.f32 %v7432, %v7441
        %v7444 = vadd.f32 %v7436, %v7441
        %vm7445 = vcmp.gt.f32.partialorder %v7442, 0.0
        %vm7446 = vcmp.gt.f32.partialorder %v7443, 0.0
        %vm7447 = vcmp.gt.f32.partialorder %v7444, 0.0
        %v7448 = vmul.f32 %v7442, 0.2
        %v7449 = vmul.f32 %v7443, 0.2
        %v7450 = vmul.f32 %v7444, 0.2
        %v7451 = vsel %vm7445, %v7442, %v7448
        %v7452 = vsel %vm7446, %v7443, %v7449
        %v7453 = vsel %vm7447, %v7444, %v7450
        %v7454 = vsel %vm5488, %v7451, -1e+30
        %v7455 = vsel %vm5489, %v7452, -1e+30
        %v7456 = vsel %vm5490, %v7453, -1e+30
        %v7457 = vsel %vm2212, %v7454, -inf
        %7458 = vmax.xlane.f32.xlu0 %v7457
        %v7459 = vpop.xlane.xlu0 %7458
        %v7460 = vsel %vm2212, %v7455, -inf
        %7461 = vmax.xlane.f32.xlu0 %v7460
        %v7462 = vpop.xlane.xlu0 %7461
        %v7463 = vsel %vm2212, %v7456, -inf
        %7464 = vmax.xlane.f32.xlu0 %v7463
        %v7465 = vpop.xlane.xlu0 %7464
        %v7466 = vsub.f32 %v7454, %v7459
        %v7467 = vsub.f32 %v7455, %v7462
        %v7468 = vsub.f32 %v7456, %v7465
        %v7469 = vmul.f32 %v7466, 1.442695
        %v7470 = vpow.pop %v7469
        %v7471 = vmul.f32 %v7467, 1.442695
        %v7472 = vpow.pop %v7471
        %v7473 = vmul.f32 %v7468, 1.442695
        %v7474 = vpow.pop %v7473
        %v7475 = vsel %vm5488, %v7470, 0.0
        %v7476 = vsel %vm5489, %v7472, 0.0
        %v7477 = vsel %vm5490, %v7474, 0.0
        %v7478 = vsel %vm2212, %v7475, 0.0
        %7479 = vadd.xlane.f32.xlu0 %v7478
        %v7480 = vpop.xlane.xlu0 %7479
        %v7481 = vsel %vm2212, %v7476, 0.0
        %7482 = vadd.xlane.f32.xlu0 %v7481
        %v7483 = vpop.xlane.xlu0 %7482
        %v7484 = vsel %vm2212, %v7477, 0.0
        %7485 = vadd.xlane.f32.xlu0 %v7484
        %v7486 = vpop.xlane.xlu0 %7485
        %v7487 = vmax.f32 %v7480, 1e-09
        %v7488 = vmax.f32 %v7483, 1e-09
        %v7489 = vmax.f32 %v7486, 1e-09
        %v7490 = vrcp.pop %v7487
        %v7491 = vrcp.pop %v7488
        %v7492 = vrcp.pop %v7489
        %v7493 = vmul.f32 %v7475, %v7490
        %v7494 = vmul.f32 %v7476, %v7491
        %v7495 = vmul.f32 %v7477, %v7492
        %v7496 = vsel %vm4194, %v5565, 0.0
        %v7497 = vsel %vm4194, %v5567, 0.0
        %v7498 = vsel %vm4194, %v5569, 0.0
        %v7500 = vsel %vm2212, %v7493, 0
        %v7503 = vsel %vm2212, %v7494, 0
        %v7506 = vsel %vm2212, %v7495, 0
        %7508 = vmatprep.subr.mxu0 0.0
        %7509 = vmatpush1.msra.mxu0 0.0
        %7510 = vmatprep.subr.mxu0 0.0
        %7511 = vmatpush1.msra.mxu0 0.0
        %7512 = vmatprep.subr.mxu0 0.0
        %7513 = vmatpush1.msra.mxu0 0.0
        %7514 = vmatprep.subr.mxu0 0.0
        %7515 = vmatpush1.msra.mxu0 0.0
        %7516 = vmatprep.subr.mxu0 0.0
        %7517 = vmatpush1.msra.mxu0 0.0
        %7518 = vmatprep.subr.mxu0 0.0
        %7519 = vmatpush1.msra.mxu0 0.0
        %7520 = vmatprep.subr.mxu0 0.0
        %7521 = vmatpush1.msra.mxu0 0.0
        %7522 = vmatprep.subr.mxu0 0.0
        %7523 = vmatpush1.msra.mxu0 0.0
        %7524 = vmatprep.subr.mxu0 0.0
        %7525 = vmatpush1.msra.mxu0 0.0
        %7526 = vmatprep.subr.mxu0 0.0
        %7527 = vmatpush1.msra.mxu0 0.0
        %7528 = vmatprep.subr.mxu0 0.0
        %7529 = vmatpush1.msra.mxu0 0.0
        %7530 = vmatprep.subr.mxu0 0.0
        %7531 = vmatpush1.msra.mxu0 0.0
        %7532 = vmatprep.subr.mxu0 0.0
        %7533 = vmatpush1.msra.mxu0 0.0
        %7534 = vmatprep.subr.mxu0 0.0
        %v7535 = vand.u32 %v7498, 4294901760
        %7536 = vmatpush1.msra.mxu0 %v7535
        %7537 = vmatprep.subr.mxu0 0.0
        %v7538 = vand.u32 %v7497, 4294901760
        %7539 = vmatpush1.msra.mxu0 %v7538
        %7540 = vmatprep.subr.mxu0 0.0
        %v7541 = vand.u32 %v7496, 4294901760
        %7542 = vmatpush1.msra.mxu0 %v7541
        %7543 = vmatprep.subr.mxu0 0.0
        %7544 = vmatpush2.msra.mxu0 0.0
        %7545 = vmatprep.subr.mxu0 0.0
        %7546 = vmatpush2.msra.mxu0 0.0
        %7547 = vmatprep.subr.mxu0 0.0
        %7548 = vmatpush2.msra.mxu0 0.0
        %7549 = vmatprep.subr.mxu0 0.0
        %7550 = vmatpush2.msra.mxu0 0.0
        %7551 = vmatprep.subr.mxu0 0.0
        %7552 = vmatpush2.msra.mxu0 0.0
        %7553 = vmatprep.subr.mxu0 0.0
        %7554 = vmatpush2.msra.mxu0 0.0
        %7555 = vmatprep.subr.mxu0 0.0
        %7556 = vmatpush2.msra.mxu0 0.0
        %7557 = vmatprep.subr.mxu0 0.0
        %7558 = vmatpush2.msra.mxu0 0.0
        %7559 = vmatprep.subr.mxu0 0.0
        %7560 = vmatpush2.msra.mxu0 0.0
        %7561 = vmatprep.subr.mxu0 0.0
        %7562 = vmatpush2.msra.mxu0 0.0
        %7563 = vmatprep.subr.mxu0 0.0
        %7564 = vmatpush2.msra.mxu0 0.0
        %7565 = vmatprep.subr.mxu0 0.0
        %7566 = vmatpush2.msra.mxu0 0.0
        %7567 = vmatprep.subr.mxu0 0.0
        %7568 = vmatpush2.msra.mxu0 0.0
        %7569 = vmatprep.subr.mxu0 0.0
        %7570 = vmatpush2.msra.mxu0 0.0
        %7571 = vmatprep.subr.mxu0 0.0
        %7572 = vmatpush2.msra.mxu0 0.0
        %7573 = vmatprep.subr.mxu0 0.0
        %7574 = vmatpush2.msra.mxu0 0.0
        %7575 = vmatprep.mubr.f32.mxu0 0.0
        %v7576 = vand.u32 %v7500, 4294901760
        %v7577 = vsub.f32 %v7500, %v7576
        %v7578 = vand.u32 %v7577, 4294901760
        %v7579 = vsub.f32 %v7577, %v7578
        %v7580 = vand.u32 %v7579, 4294901760
        %7581 = vmatmul.mubr.f32.gmra.mxu0 %v7580
        %v7582 = vpop.f32.mrf.mxu0
        %v7583 = vadd.f32 0.0, %v7582
        %v7584 = vpop.f32.mrf.mxu0
        %7585 = vmatprep.mubr.f32.mxu0 0.0
        %v7586 = vand.u32 %v7503, 4294901760
        %v7587 = vsub.f32 %v7503, %v7586
        %v7588 = vand.u32 %v7587, 4294901760
        %v7589 = vsub.f32 %v7587, %v7588
        %v7590 = vand.u32 %v7589, 4294901760
        %7591 = vmatmul.mubr.f32.gmra.mxu0 %v7590
        %v7592 = vpop.f32.mrf.mxu0
        %v7593 = vadd.f32 0.0, %v7592
        %v7594 = vpop.f32.mrf.mxu0
        %7595 = vmatprep.mubr.f32.mxu0 0.0
        %v7596 = vand.u32 %v7506, 4294901760
        %v7597 = vsub.f32 %v7506, %v7596
        %v7598 = vand.u32 %v7597, 4294901760
        %v7599 = vsub.f32 %v7597, %v7598
        %v7600 = vand.u32 %v7599, 4294901760
        %7601 = vmatmul.mubr.f32.gmra.mxu0 %v7600
        %v7602 = vpop.f32.mrf.mxu0
        %v7603 = vadd.f32 0.0, %v7602
        %v7604 = vpop.f32.mrf.mxu0
        %7605 = vdwg.mxu0
        %7606 = vmatprep.subr.mxu0 0.0
        %7607 = vmatpush1.msra.mxu0 0.0
        %7608 = vmatprep.subr.mxu0 0.0
        %7609 = vmatpush1.msra.mxu0 0.0
        %7610 = vmatprep.subr.mxu0 0.0
        %7611 = vmatpush1.msra.mxu0 0.0
        %7612 = vmatprep.subr.mxu0 0.0
        %7613 = vmatpush1.msra.mxu0 0.0
        %7614 = vmatprep.subr.mxu0 0.0
        %7615 = vmatpush1.msra.mxu0 0.0
        %7616 = vmatprep.subr.mxu0 0.0
        %7617 = vmatpush1.msra.mxu0 0.0
        %7618 = vmatprep.subr.mxu0 0.0
        %7619 = vmatpush1.msra.mxu0 0.0
        %7620 = vmatprep.subr.mxu0 0.0
        %7621 = vmatpush1.msra.mxu0 0.0
        %7622 = vmatprep.subr.mxu0 0.0
        %7623 = vmatpush1.msra.mxu0 0.0
        %7624 = vmatprep.subr.mxu0 0.0
        %7625 = vmatpush1.msra.mxu0 0.0
        %7626 = vmatprep.subr.mxu0 0.0
        %7627 = vmatpush1.msra.mxu0 0.0
        %7628 = vmatprep.subr.mxu0 0.0
        %7629 = vmatpush1.msra.mxu0 0.0
        %7630 = vmatprep.subr.mxu0 0.0
        %7631 = vmatpush1.msra.mxu0 0.0
        %7632 = vmatprep.subr.mxu0 0.0
        %v7633 = vand.u32 %v7498, 4294901760
        %v7634 = vsub.f32 %v7498, %v7633
        %v7635 = vand.u32 %v7634, 4294901760
        %v7636 = vsub.f32 %v7634, %v7635
        %v7637 = vand.u32 %v7636, 4294901760
        %7638 = vmatpush1.msra.mxu0 %v7637
        %7639 = vmatprep.subr.mxu0 0.0
        %v7640 = vand.u32 %v7497, 4294901760
        %v7641 = vsub.f32 %v7497, %v7640
        %v7642 = vand.u32 %v7641, 4294901760
        %v7643 = vsub.f32 %v7641, %v7642
        %v7644 = vand.u32 %v7643, 4294901760
        %7645 = vmatpush1.msra.mxu0 %v7644
        %7646 = vmatprep.subr.mxu0 0.0
        %v7647 = vand.u32 %v7496, 4294901760
        %v7648 = vsub.f32 %v7496, %v7647
        %v7649 = vand.u32 %v7648, 4294901760
        %v7650 = vsub.f32 %v7648, %v7649
        %v7651 = vand.u32 %v7650, 4294901760
        %7652 = vmatpush1.msra.mxu0 %v7651
        %7653 = vmatprep.subr.mxu0 0.0
        %7654 = vmatpush2.msra.mxu0 0.0
        %7655 = vmatprep.subr.mxu0 0.0
        %7656 = vmatpush2.msra.mxu0 0.0
        %7657 = vmatprep.subr.mxu0 0.0
        %7658 = vmatpush2.msra.mxu0 0.0
        %7659 = vmatprep.subr.mxu0 0.0
        %7660 = vmatpush2.msra.mxu0 0.0
        %7661 = vmatprep.subr.mxu0 0.0
        %7662 = vmatpush2.msra.mxu0 0.0
        %7663 = vmatprep.subr.mxu0 0.0
        %7664 = vmatpush2.msra.mxu0 0.0
        %7665 = vmatprep.subr.mxu0 0.0
        %7666 = vmatpush2.msra.mxu0 0.0
        %7667 = vmatprep.subr.mxu0 0.0
        %7668 = vmatpush2.msra.mxu0 0.0
        %7669 = vmatprep.subr.mxu0 0.0
        %7670 = vmatpush2.msra.mxu0 0.0
        %7671 = vmatprep.subr.mxu0 0.0
        %7672 = vmatpush2.msra.mxu0 0.0
        %7673 = vmatprep.subr.mxu0 0.0
        %7674 = vmatpush2.msra.mxu0 0.0
        %7675 = vmatprep.subr.mxu0 0.0
        %7676 = vmatpush2.msra.mxu0 0.0
        %7677 = vmatprep.subr.mxu0 0.0
        %7678 = vmatpush2.msra.mxu0 0.0
        %7679 = vmatprep.subr.mxu0 0.0
        %7680 = vmatpush2.msra.mxu0 0.0
        %7681 = vmatprep.subr.mxu0 0.0
        %7682 = vmatpush2.msra.mxu0 0.0
        %7683 = vmatprep.subr.mxu0 0.0
        %7684 = vmatpush2.msra.mxu0 0.0
        %7685 = vmatprep.mubr.f32.mxu0 0.0
        %v7686 = vand.u32 %v7500, 4294901760
        %7687 = vmatmul.mubr.f32.gmra.mxu0 %v7686
        %v7688 = vpop.f32.mrf.mxu0
        %v7689 = vadd.f32 %v7583, %v7688
        %v7690 = vpop.f32.mrf.mxu0
        %7691 = vmatprep.mubr.f32.mxu0 0.0
        %v7692 = vand.u32 %v7503, 4294901760
        %7693 = vmatmul.mubr.f32.gmra.mxu0 %v7692
        %v7694 = vpop.f32.mrf.mxu0
        %v7695 = vadd.f32 %v7593, %v7694
        %v7696 = vpop.f32.mrf.mxu0
        %7697 = vmatprep.mubr.f32.mxu0 0.0
        %v7698 = vand.u32 %v7506, 4294901760
        %7699 = vmatmul.mubr.f32.gmra.mxu0 %v7698
        %v7700 = vpop.f32.mrf.mxu0
        %v7701 = vadd.f32 %v7603, %v7700
        %v7702 = vpop.f32.mrf.mxu0
        %7703 = vdwg.mxu0
        %7704 = vmatprep.subr.mxu0 0.0
        %7705 = vmatpush1.msra.mxu0 0.0
        %7706 = vmatprep.subr.mxu0 0.0
        %7707 = vmatpush1.msra.mxu0 0.0
        %7708 = vmatprep.subr.mxu0 0.0
        %7709 = vmatpush1.msra.mxu0 0.0
        %7710 = vmatprep.subr.mxu0 0.0
        %7711 = vmatpush1.msra.mxu0 0.0
        %7712 = vmatprep.subr.mxu0 0.0
        %7713 = vmatpush1.msra.mxu0 0.0
        %7714 = vmatprep.subr.mxu0 0.0
        %7715 = vmatpush1.msra.mxu0 0.0
        %7716 = vmatprep.subr.mxu0 0.0
        %7717 = vmatpush1.msra.mxu0 0.0
        %7718 = vmatprep.subr.mxu0 0.0
        %7719 = vmatpush1.msra.mxu0 0.0
        %7720 = vmatprep.subr.mxu0 0.0
        %7721 = vmatpush1.msra.mxu0 0.0
        %7722 = vmatprep.subr.mxu0 0.0
        %7723 = vmatpush1.msra.mxu0 0.0
        %7724 = vmatprep.subr.mxu0 0.0
        %7725 = vmatpush1.msra.mxu0 0.0
        %7726 = vmatprep.subr.mxu0 0.0
        %7727 = vmatpush1.msra.mxu0 0.0
        %7728 = vmatprep.subr.mxu0 0.0
        %7729 = vmatpush1.msra.mxu0 0.0
        %7730 = vmatprep.subr.mxu0 0.0
        %v7731 = vand.u32 %v7498, 4294901760
        %v7732 = vsub.f32 %v7498, %v7731
        %7733 = vmatpush1.msra.mxu0 %v7732
        %7734 = vmatprep.subr.mxu0 0.0
        %v7735 = vand.u32 %v7497, 4294901760
        %v7736 = vsub.f32 %v7497, %v7735
        %7737 = vmatpush1.msra.mxu0 %v7736
        %7738 = vmatprep.subr.mxu0 0.0
        %v7739 = vand.u32 %v7496, 4294901760
        %v7740 = vsub.f32 %v7496, %v7739
        %7741 = vmatpush1.msra.mxu0 %v7740
        %7742 = vmatprep.subr.mxu0 0.0
        %7743 = vmatpush2.msra.mxu0 0.0
        %7744 = vmatprep.subr.mxu0 0.0
        %7745 = vmatpush2.msra.mxu0 0.0
        %7746 = vmatprep.subr.mxu0 0.0
        %7747 = vmatpush2.msra.mxu0 0.0
        %7748 = vmatprep.subr.mxu0 0.0
        %7749 = vmatpush2.msra.mxu0 0.0
        %7750 = vmatprep.subr.mxu0 0.0
        %7751 = vmatpush2.msra.mxu0 0.0
        %7752 = vmatprep.subr.mxu0 0.0
        %7753 = vmatpush2.msra.mxu0 0.0
        %7754 = vmatprep.subr.mxu0 0.0
        %7755 = vmatpush2.msra.mxu0 0.0
        %7756 = vmatprep.subr.mxu0 0.0
        %7757 = vmatpush2.msra.mxu0 0.0
        %7758 = vmatprep.subr.mxu0 0.0
        %7759 = vmatpush2.msra.mxu0 0.0
        %7760 = vmatprep.subr.mxu0 0.0
        %7761 = vmatpush2.msra.mxu0 0.0
        %7762 = vmatprep.subr.mxu0 0.0
        %7763 = vmatpush2.msra.mxu0 0.0
        %7764 = vmatprep.subr.mxu0 0.0
        %7765 = vmatpush2.msra.mxu0 0.0
        %7766 = vmatprep.subr.mxu0 0.0
        %7767 = vmatpush2.msra.mxu0 0.0
        %7768 = vmatprep.subr.mxu0 0.0
        %7769 = vmatpush2.msra.mxu0 0.0
        %7770 = vmatprep.subr.mxu0 0.0
        %7771 = vmatpush2.msra.mxu0 0.0
        %7772 = vmatprep.subr.mxu0 0.0
        %7773 = vmatpush2.msra.mxu0 0.0
        %7774 = vmatprep.mubr.f32.mxu0 0.0
        %v7775 = vand.u32 %v7500, 4294901760
        %v7776 = vsub.f32 %v7500, %v7775
        %7777 = vmatmul.mubr.f32.gmra.mxu0 %v7776
        %v7778 = vpop.f32.mrf.mxu0
        %v7779 = vadd.f32 %v7689, %v7778
        %v7780 = vpop.f32.mrf.mxu0
        %7781 = vmatprep.mubr.f32.mxu0 0.0
        %v7782 = vand.u32 %v7503, 4294901760
        %v7783 = vsub.f32 %v7503, %v7782
        %7784 = vmatmul.mubr.f32.gmra.mxu0 %v7783
        %v7785 = vpop.f32.mrf.mxu0
        %v7786 = vadd.f32 %v7695, %v7785
        %v7787 = vpop.f32.mrf.mxu0
        %7788 = vmatprep.mubr.f32.mxu0 0.0
        %v7789 = vand.u32 %v7506, 4294901760
        %v7790 = vsub.f32 %v7506, %v7789
        %7791 = vmatmul.mubr.f32.gmra.mxu0 %v7790
        %v7792 = vpop.f32.mrf.mxu0
        %v7793 = vadd.f32 %v7701, %v7792
        %v7794 = vpop.f32.mrf.mxu0
        %7795 = vdwg.mxu0
        %7796 = vmatprep.subr.mxu0 0.0
        %7797 = vmatpush1.msra.mxu0 0.0
        %7798 = vmatprep.subr.mxu0 0.0
        %7799 = vmatpush1.msra.mxu0 0.0
        %7800 = vmatprep.subr.mxu0 0.0
        %7801 = vmatpush1.msra.mxu0 0.0
        %7802 = vmatprep.subr.mxu0 0.0
        %7803 = vmatpush1.msra.mxu0 0.0
        %7804 = vmatprep.subr.mxu0 0.0
        %7805 = vmatpush1.msra.mxu0 0.0
        %7806 = vmatprep.subr.mxu0 0.0
        %7807 = vmatpush1.msra.mxu0 0.0
        %7808 = vmatprep.subr.mxu0 0.0
        %7809 = vmatpush1.msra.mxu0 0.0
        %7810 = vmatprep.subr.mxu0 0.0
        %7811 = vmatpush1.msra.mxu0 0.0
        %7812 = vmatprep.subr.mxu0 0.0
        %7813 = vmatpush1.msra.mxu0 0.0
        %7814 = vmatprep.subr.mxu0 0.0
        %7815 = vmatpush1.msra.mxu0 0.0
        %7816 = vmatprep.subr.mxu0 0.0
        %7817 = vmatpush1.msra.mxu0 0.0
        %7818 = vmatprep.subr.mxu0 0.0
        %7819 = vmatpush1.msra.mxu0 0.0
        %7820 = vmatprep.subr.mxu0 0.0
        %7821 = vmatpush1.msra.mxu0 0.0
        %7822 = vmatprep.subr.mxu0 0.0
        %v7823 = vand.u32 %v7498, 4294901760
        %7824 = vmatpush1.msra.mxu0 %v7823
        %7825 = vmatprep.subr.mxu0 0.0
        %v7826 = vand.u32 %v7497, 4294901760
        %7827 = vmatpush1.msra.mxu0 %v7826
        %7828 = vmatprep.subr.mxu0 0.0
        %v7829 = vand.u32 %v7496, 4294901760
        %7830 = vmatpush1.msra.mxu0 %v7829
        %7831 = vmatprep.subr.mxu0 0.0
        %7832 = vmatpush2.msra.mxu0 0.0
        %7833 = vmatprep.subr.mxu0 0.0
        %7834 = vmatpush2.msra.mxu0 0.0
        %7835 = vmatprep.subr.mxu0 0.0
        %7836 = vmatpush2.msra.mxu0 0.0
        %7837 = vmatprep.subr.mxu0 0.0
        %7838 = vmatpush2.msra.mxu0 0.0
        %7839 = vmatprep.subr.mxu0 0.0
        %7840 = vmatpush2.msra.mxu0 0.0
        %7841 = vmatprep.subr.mxu0 0.0
        %7842 = vmatpush2.msra.mxu0 0.0
        %7843 = vmatprep.subr.mxu0 0.0
        %7844 = vmatpush2.msra.mxu0 0.0
        %7845 = vmatprep.subr.mxu0 0.0
        %7846 = vmatpush2.msra.mxu0 0.0
        %7847 = vmatprep.subr.mxu0 0.0
        %7848 = vmatpush2.msra.mxu0 0.0
        %7849 = vmatprep.subr.mxu0 0.0
        %7850 = vmatpush2.msra.mxu0 0.0
        %7851 = vmatprep.subr.mxu0 0.0
        %7852 = vmatpush2.msra.mxu0 0.0
        %7853 = vmatprep.subr.mxu0 0.0
        %7854 = vmatpush2.msra.mxu0 0.0
        %7855 = vmatprep.subr.mxu0 0.0
        %7856 = vmatpush2.msra.mxu0 0.0
        %7857 = vmatprep.subr.mxu0 0.0
        %7858 = vmatpush2.msra.mxu0 0.0
        %7859 = vmatprep.subr.mxu0 0.0
        %7860 = vmatpush2.msra.mxu0 0.0
        %7861 = vmatprep.subr.mxu0 0.0
        %7862 = vmatpush2.msra.mxu0 0.0
        %7863 = vmatprep.mubr.f32.mxu0 0.0
        %v7864 = vand.u32 %v7500, 4294901760
        %v7865 = vsub.f32 %v7500, %v7864
        %v7866 = vand.u32 %v7865, 4294901760
        %7867 = vmatmul.mubr.f32.gmra.mxu0 %v7866
        %v7868 = vpop.f32.mrf.mxu0
        %v7869 = vadd.f32 %v7779, %v7868
        %v7870 = vpop.f32.mrf.mxu0
        %7871 = vmatprep.mubr.f32.mxu0 0.0
        %v7872 = vand.u32 %v7503, 4294901760
        %v7873 = vsub.f32 %v7503, %v7872
        %v7874 = vand.u32 %v7873, 4294901760
        %7875 = vmatmul.mubr.f32.gmra.mxu0 %v7874
        %v7876 = vpop.f32.mrf.mxu0
        %v7877 = vadd.f32 %v7786, %v7876
        %v7878 = vpop.f32.mrf.mxu0
        %7879 = vmatprep.mubr.f32.mxu0 0.0
        %v7880 = vand.u32 %v7506, 4294901760
        %v7881 = vsub.f32 %v7506, %v7880
        %v7882 = vand.u32 %v7881, 4294901760
        %7883 = vmatmul.mubr.f32.gmra.mxu0 %v7882
        %v7884 = vpop.f32.mrf.mxu0
        %v7885 = vadd.f32 %v7793, %v7884
        %v7886 = vpop.f32.mrf.mxu0
        %7887 = vdwg.mxu0
        %7888 = vmatprep.subr.mxu0 0.0
        %7889 = vmatpush1.msra.mxu0 0.0
        %7890 = vmatprep.subr.mxu0 0.0
        %7891 = vmatpush1.msra.mxu0 0.0
        %7892 = vmatprep.subr.mxu0 0.0
        %7893 = vmatpush1.msra.mxu0 0.0
        %7894 = vmatprep.subr.mxu0 0.0
        %7895 = vmatpush1.msra.mxu0 0.0
        %7896 = vmatprep.subr.mxu0 0.0
        %7897 = vmatpush1.msra.mxu0 0.0
        %7898 = vmatprep.subr.mxu0 0.0
        %7899 = vmatpush1.msra.mxu0 0.0
        %7900 = vmatprep.subr.mxu0 0.0
        %7901 = vmatpush1.msra.mxu0 0.0
        %7902 = vmatprep.subr.mxu0 0.0
        %7903 = vmatpush1.msra.mxu0 0.0
        %7904 = vmatprep.subr.mxu0 0.0
        %7905 = vmatpush1.msra.mxu0 0.0
        %7906 = vmatprep.subr.mxu0 0.0
        %7907 = vmatpush1.msra.mxu0 0.0
        %7908 = vmatprep.subr.mxu0 0.0
        %7909 = vmatpush1.msra.mxu0 0.0
        %7910 = vmatprep.subr.mxu0 0.0
        %7911 = vmatpush1.msra.mxu0 0.0
        %7912 = vmatprep.subr.mxu0 0.0
        %7913 = vmatpush1.msra.mxu0 0.0
        %7914 = vmatprep.subr.mxu0 0.0
        %v7915 = vand.u32 %v7498, 4294901760
        %v7916 = vsub.f32 %v7498, %v7915
        %v7917 = vand.u32 %v7916, 4294901760
        %7918 = vmatpush1.msra.mxu0 %v7917
        %7919 = vmatprep.subr.mxu0 0.0
        %v7920 = vand.u32 %v7497, 4294901760
        %v7921 = vsub.f32 %v7497, %v7920
        %v7922 = vand.u32 %v7921, 4294901760
        %7923 = vmatpush1.msra.mxu0 %v7922
        %7924 = vmatprep.subr.mxu0 0.0
        %v7925 = vand.u32 %v7496, 4294901760
        %v7926 = vsub.f32 %v7496, %v7925
        %v7927 = vand.u32 %v7926, 4294901760
        %7928 = vmatpush1.msra.mxu0 %v7927
        %7929 = vmatprep.subr.mxu0 0.0
        %7930 = vmatpush2.msra.mxu0 0.0
        %7931 = vmatprep.subr.mxu0 0.0
        %7932 = vmatpush2.msra.mxu0 0.0
        %7933 = vmatprep.subr.mxu0 0.0
        %7934 = vmatpush2.msra.mxu0 0.0
        %7935 = vmatprep.subr.mxu0 0.0
        %7936 = vmatpush2.msra.mxu0 0.0
        %7937 = vmatprep.subr.mxu0 0.0
        %7938 = vmatpush2.msra.mxu0 0.0
        %7939 = vmatprep.subr.mxu0 0.0
        %7940 = vmatpush2.msra.mxu0 0.0
        %7941 = vmatprep.subr.mxu0 0.0
        %7942 = vmatpush2.msra.mxu0 0.0
        %7943 = vmatprep.subr.mxu0 0.0
        %7944 = vmatpush2.msra.mxu0 0.0
        %7945 = vmatprep.subr.mxu0 0.0
        %7946 = vmatpush2.msra.mxu0 0.0
        %7947 = vmatprep.subr.mxu0 0.0
        %7948 = vmatpush2.msra.mxu0 0.0
        %7949 = vmatprep.subr.mxu0 0.0
        %7950 = vmatpush2.msra.mxu0 0.0
        %7951 = vmatprep.subr.mxu0 0.0
        %7952 = vmatpush2.msra.mxu0 0.0
        %7953 = vmatprep.subr.mxu0 0.0
        %7954 = vmatpush2.msra.mxu0 0.0
        %7955 = vmatprep.subr.mxu0 0.0
        %7956 = vmatpush2.msra.mxu0 0.0
        %7957 = vmatprep.subr.mxu0 0.0
        %7958 = vmatpush2.msra.mxu0 0.0
        %7959 = vmatprep.subr.mxu0 0.0
        %7960 = vmatpush2.msra.mxu0 0.0
        %7961 = vmatprep.mubr.f32.mxu0 0.0
        %v7962 = vand.u32 %v7500, 4294901760
        %7963 = vmatmul.mubr.f32.gmra.mxu0 %v7962
        %v7964 = vpop.f32.mrf.mxu0
        %v7965 = vadd.f32 %v7869, %v7964
        %v7966 = vpop.f32.mrf.mxu0
        %7967 = vmatprep.mubr.f32.mxu0 0.0
        %v7968 = vand.u32 %v7503, 4294901760
        %7969 = vmatmul.mubr.f32.gmra.mxu0 %v7968
        %v7970 = vpop.f32.mrf.mxu0
        %v7971 = vadd.f32 %v7877, %v7970
        %v7972 = vpop.f32.mrf.mxu0
        %7973 = vmatprep.mubr.f32.mxu0 0.0
        %v7974 = vand.u32 %v7506, 4294901760
        %7975 = vmatmul.mubr.f32.gmra.mxu0 %v7974
        %v7976 = vpop.f32.mrf.mxu0
        %v7977 = vadd.f32 %v7885, %v7976
        %v7978 = vpop.f32.mrf.mxu0
        %7979 = vdwg.mxu0
        %7980 = vmatprep.subr.mxu0 0.0
        %7981 = vmatpush1.msra.mxu0 0.0
        %7982 = vmatprep.subr.mxu0 0.0
        %7983 = vmatpush1.msra.mxu0 0.0
        %7984 = vmatprep.subr.mxu0 0.0
        %7985 = vmatpush1.msra.mxu0 0.0
        %7986 = vmatprep.subr.mxu0 0.0
        %7987 = vmatpush1.msra.mxu0 0.0
        %7988 = vmatprep.subr.mxu0 0.0
        %7989 = vmatpush1.msra.mxu0 0.0
        %7990 = vmatprep.subr.mxu0 0.0
        %7991 = vmatpush1.msra.mxu0 0.0
        %7992 = vmatprep.subr.mxu0 0.0
        %7993 = vmatpush1.msra.mxu0 0.0
        %7994 = vmatprep.subr.mxu0 0.0
        %7995 = vmatpush1.msra.mxu0 0.0
        %7996 = vmatprep.subr.mxu0 0.0
        %7997 = vmatpush1.msra.mxu0 0.0
        %7998 = vmatprep.subr.mxu0 0.0
        %7999 = vmatpush1.msra.mxu0 0.0
        %8000 = vmatprep.subr.mxu0 0.0
        %8001 = vmatpush1.msra.mxu0 0.0
        %8002 = vmatprep.subr.mxu0 0.0
        %8003 = vmatpush1.msra.mxu0 0.0
        %8004 = vmatprep.subr.mxu0 0.0
        %8005 = vmatpush1.msra.mxu0 0.0
        %8006 = vmatprep.subr.mxu0 0.0
        %v8007 = vand.u32 %v7498, 4294901760
        %8008 = vmatpush1.msra.mxu0 %v8007
        %8009 = vmatprep.subr.mxu0 0.0
        %v8010 = vand.u32 %v7497, 4294901760
        %8011 = vmatpush1.msra.mxu0 %v8010
        %8012 = vmatprep.subr.mxu0 0.0
        %v8013 = vand.u32 %v7496, 4294901760
        %8014 = vmatpush1.msra.mxu0 %v8013
        %8015 = vmatprep.subr.mxu0 0.0
        %8016 = vmatpush2.msra.mxu0 0.0
        %8017 = vmatprep.subr.mxu0 0.0
        %8018 = vmatpush2.msra.mxu0 0.0
        %8019 = vmatprep.subr.mxu0 0.0
        %8020 = vmatpush2.msra.mxu0 0.0
        %8021 = vmatprep.subr.mxu0 0.0
        %8022 = vmatpush2.msra.mxu0 0.0
        %8023 = vmatprep.subr.mxu0 0.0
        %8024 = vmatpush2.msra.mxu0 0.0
        %8025 = vmatprep.subr.mxu0 0.0
        %8026 = vmatpush2.msra.mxu0 0.0
        %8027 = vmatprep.subr.mxu0 0.0
        %8028 = vmatpush2.msra.mxu0 0.0
        %8029 = vmatprep.subr.mxu0 0.0
        %8030 = vmatpush2.msra.mxu0 0.0
        %8031 = vmatprep.subr.mxu0 0.0
        %8032 = vmatpush2.msra.mxu0 0.0
        %8033 = vmatprep.subr.mxu0 0.0
        %8034 = vmatpush2.msra.mxu0 0.0
        %8035 = vmatprep.subr.mxu0 0.0
        %8036 = vmatpush2.msra.mxu0 0.0
        %8037 = vmatprep.subr.mxu0 0.0
        %8038 = vmatpush2.msra.mxu0 0.0
        %8039 = vmatprep.subr.mxu0 0.0
        %8040 = vmatpush2.msra.mxu0 0.0
        %8041 = vmatprep.subr.mxu0 0.0
        %8042 = vmatpush2.msra.mxu0 0.0
        %8043 = vmatprep.subr.mxu0 0.0
        %8044 = vmatpush2.msra.mxu0 0.0
        %8045 = vmatprep.subr.mxu0 0.0
        %8046 = vmatpush2.msra.mxu0 0.0
        %8047 = vmatprep.mubr.f32.mxu0 0.0
        %v8048 = vand.u32 %v7500, 4294901760
        %8049 = vmatmul.mubr.f32.gmra.mxu0 %v8048
        %v8050 = vpop.f32.mrf.mxu0
        %v8051 = vadd.f32 %v7965, %v8050
        %v8052 = vpop.f32.mrf.mxu0
        %8053 = vmatprep.mubr.f32.mxu0 0.0
        %v8054 = vand.u32 %v7503, 4294901760
        %8055 = vmatmul.mubr.f32.gmra.mxu0 %v8054
        %v8056 = vpop.f32.mrf.mxu0
        %v8057 = vadd.f32 %v7971, %v8056
        %v8058 = vpop.f32.mrf.mxu0
        %8059 = vmatprep.mubr.f32.mxu0 0.0
        %v8060 = vand.u32 %v7506, 4294901760
        %8061 = vmatmul.mubr.f32.gmra.mxu0 %v8060
        %v8062 = vpop.f32.mrf.mxu0
        %v8063 = vadd.f32 %v7977, %v8062
        %v8064 = vpop.f32.mrf.mxu0
        %8065 = vdwg.mxu0
        %v8066 = vadd.f32 %v7423, %v8051
        %v8067 = vadd.f32 %v7424, %v8057
        %v8068 = vadd.f32 %v7425, %v8063
        %8069 = vrot.lane.b32.xlu0 %v4772, 64
        %v8070 = vpop.permute.xlu0 %8069
        %v8072 = vadd.f32 %v8066, %v8070
        %v8073 = vadd.f32 %v8067, %v8070
        %v8074 = vadd.f32 %v8068, %v8070
        %vm8075 = vcmp.gt.f32.partialorder %v8072, 0.0
        %vm8076 = vcmp.gt.f32.partialorder %v8073, 0.0
        %vm8077 = vcmp.gt.f32.partialorder %v8074, 0.0
        %v8078 = vmin.f32 %v8072, 0.0
        %v8079 = vmin.f32 %v8073, 0.0
        %v8080 = vmin.f32 %v8074, 0.0
        %v8081 = vmul.f32 %v8078, 1.442695
        %v8082 = vpow.pop %v8081
        %v8083 = vmul.f32 %v8079, 1.442695
        %v8084 = vpow.pop %v8083
        %v8085 = vmul.f32 %v8080, 1.442695
        %v8086 = vpow.pop %v8085
        %v8087 = vsub.f32 %v8082, 1.0
        %v8088 = vsub.f32 %v8084, 1.0
        %v8089 = vsub.f32 %v8086, 1.0
        %v8090 = vsel %vm8075, %v8072, %v8087
        %v8091 = vsel %vm8076, %v8073, %v8088
        %v8092 = vsel %vm8077, %v8074, %v8089
        %v8094 = vsel %vm4810, %v8090, 0
        %v8097 = vsel %vm4810, %v8091, 0
        %v8100 = vsel %vm4810, %v8092, 0
        %8102 = vmatprep.subr.mxu0 0.0
        %8103 = vmatpush1.msra.mxu0 0.0
        %8104 = vmatprep.subr.mxu0 0.0
        %8105 = vmatpush1.msra.mxu0 0.0
        %8106 = vmatprep.subr.mxu0 0.0
        %8107 = vmatpush1.msra.mxu0 0.0
        %8108 = vmatprep.subr.mxu0 0.0
        %8109 = vmatpush1.msra.mxu0 0.0
        %8110 = vmatprep.subr.mxu0 0.0
        %8111 = vmatpush1.msra.mxu0 0.0
        %8112 = vmatprep.subr.mxu0 0.0
        %8113 = vmatpush1.msra.mxu0 0.0
        %8114 = vmatprep.subr.mxu0 0.0
        %8115 = vmatpush1.msra.mxu0 0.0
        %8116 = vmatprep.subr.mxu0 0.0
        %8117 = vmatpush1.msra.mxu0 0.0
        %8118 = vmatprep.subr.mxu0 0.0
        %v8119 = vand.u32 %v4802, 4294901760
        %8120 = vmatpush1.msra.mxu0 %v8119
        %8121 = vmatprep.subr.mxu0 0.0
        %v8122 = vand.u32 %v4801, 4294901760
        %8123 = vmatpush1.msra.mxu0 %v8122
        %8124 = vmatprep.subr.mxu0 0.0
        %v8125 = vand.u32 %v4800, 4294901760
        %8126 = vmatpush1.msra.mxu0 %v8125
        %8127 = vmatprep.subr.mxu0 0.0
        %v8128 = vand.u32 %v4799, 4294901760
        %8129 = vmatpush1.msra.mxu0 %v8128
        %8130 = vmatprep.subr.mxu0 0.0
        %v8131 = vand.u32 %v4798, 4294901760
        %8132 = vmatpush1.msra.mxu0 %v8131
        %8133 = vmatprep.subr.mxu0 0.0
        %v8134 = vand.u32 %v4797, 4294901760
        %8135 = vmatpush1.msra.mxu0 %v8134
        %8136 = vmatprep.subr.mxu0 0.0
        %v8137 = vand.u32 %v4796, 4294901760
        %8138 = vmatpush1.msra.mxu0 %v8137
        %8139 = vmatprep.subr.mxu0 0.0
        %v8140 = vand.u32 %v4795, 4294901760
        %8141 = vmatpush1.msra.mxu0 %v8140
        %8142 = vmatprep.subr.mxu0 0.0
        %8143 = vmatpush2.msra.mxu0 0.0
        %8144 = vmatprep.subr.mxu0 0.0
        %8145 = vmatpush2.msra.mxu0 0.0
        %8146 = vmatprep.subr.mxu0 0.0
        %8147 = vmatpush2.msra.mxu0 0.0
        %8148 = vmatprep.subr.mxu0 0.0
        %8149 = vmatpush2.msra.mxu0 0.0
        %8150 = vmatprep.subr.mxu0 0.0
        %8151 = vmatpush2.msra.mxu0 0.0
        %8152 = vmatprep.subr.mxu0 0.0
        %8153 = vmatpush2.msra.mxu0 0.0
        %8154 = vmatprep.subr.mxu0 0.0
        %8155 = vmatpush2.msra.mxu0 0.0
        %8156 = vmatprep.subr.mxu0 0.0
        %8157 = vmatpush2.msra.mxu0 0.0
        %8158 = vmatprep.subr.mxu0 0.0
        %8159 = vmatpush2.msra.mxu0 0.0
        %8160 = vmatprep.subr.mxu0 0.0
        %8161 = vmatpush2.msra.mxu0 0.0
        %8162 = vmatprep.subr.mxu0 0.0
        %8163 = vmatpush2.msra.mxu0 0.0
        %8164 = vmatprep.subr.mxu0 0.0
        %8165 = vmatpush2.msra.mxu0 0.0
        %8166 = vmatprep.subr.mxu0 0.0
        %8167 = vmatpush2.msra.mxu0 0.0
        %8168 = vmatprep.subr.mxu0 0.0
        %8169 = vmatpush2.msra.mxu0 0.0
        %8170 = vmatprep.subr.mxu0 0.0
        %8171 = vmatpush2.msra.mxu0 0.0
        %8172 = vmatprep.subr.mxu0 0.0
        %8173 = vmatpush2.msra.mxu0 0.0
        %8174 = vmatprep.mubr.f32.mxu0 0.0
        %v8175 = vand.u32 %v8094, 4294901760
        %v8176 = vsub.f32 %v8094, %v8175
        %v8177 = vand.u32 %v8176, 4294901760
        %v8178 = vsub.f32 %v8176, %v8177
        %v8179 = vand.u32 %v8178, 4294901760
        %8180 = vmatmul.mubr.f32.gmra.mxu0 %v8179
        %v8181 = vpop.f32.mrf.mxu0
        %v8182 = vadd.f32 %v4808, %v8181
        %v8183 = vpop.f32.mrf.mxu0
        %8184 = vmatprep.mubr.f32.mxu0 0.0
        %v8185 = vand.u32 %v8097, 4294901760
        %v8186 = vsub.f32 %v8097, %v8185
        %v8187 = vand.u32 %v8186, 4294901760
        %v8188 = vsub.f32 %v8186, %v8187
        %v8189 = vand.u32 %v8188, 4294901760
        %8190 = vmatmul.mubr.f32.gmra.mxu0 %v8189
        %v8191 = vpop.f32.mrf.mxu0
        %v8192 = vadd.f32 %v4808, %v8191
        %v8193 = vpop.f32.mrf.mxu0
        %8194 = vmatprep.mubr.f32.mxu0 0.0
        %v8195 = vand.u32 %v8100, 4294901760
        %v8196 = vsub.f32 %v8100, %v8195
        %v8197 = vand.u32 %v8196, 4294901760
        %v8198 = vsub.f32 %v8196, %v8197
        %v8199 = vand.u32 %v8198, 4294901760
        %8200 = vmatmul.mubr.f32.gmra.mxu0 %v8199
        %v8201 = vpop.f32.mrf.mxu0
        %v8202 = vadd.f32 %v4808, %v8201
        %v8203 = vpop.f32.mrf.mxu0
        %8204 = vdwg.mxu0
        %8205 = vmatprep.subr.mxu0 0.0
        %8206 = vmatpush1.msra.mxu0 0.0
        %8207 = vmatprep.subr.mxu0 0.0
        %8208 = vmatpush1.msra.mxu0 0.0
        %8209 = vmatprep.subr.mxu0 0.0
        %8210 = vmatpush1.msra.mxu0 0.0
        %8211 = vmatprep.subr.mxu0 0.0
        %8212 = vmatpush1.msra.mxu0 0.0
        %8213 = vmatprep.subr.mxu0 0.0
        %8214 = vmatpush1.msra.mxu0 0.0
        %8215 = vmatprep.subr.mxu0 0.0
        %8216 = vmatpush1.msra.mxu0 0.0
        %8217 = vmatprep.subr.mxu0 0.0
        %8218 = vmatpush1.msra.mxu0 0.0
        %8219 = vmatprep.subr.mxu0 0.0
        %8220 = vmatpush1.msra.mxu0 0.0
        %8221 = vmatprep.subr.mxu0 0.0
        %v8222 = vand.u32 %v4802, 4294901760
        %v8223 = vsub.f32 %v4802, %v8222
        %v8224 = vand.u32 %v8223, 4294901760
        %v8225 = vsub.f32 %v8223, %v8224
        %v8226 = vand.u32 %v8225, 4294901760
        %8227 = vmatpush1.msra.mxu0 %v8226
        %8228 = vmatprep.subr.mxu0 0.0
        %v8229 = vand.u32 %v4801, 4294901760
        %v8230 = vsub.f32 %v4801, %v8229
        %v8231 = vand.u32 %v8230, 4294901760
        %v8232 = vsub.f32 %v8230, %v8231
        %v8233 = vand.u32 %v8232, 4294901760
        %8234 = vmatpush1.msra.mxu0 %v8233
        %8235 = vmatprep.subr.mxu0 0.0
        %v8236 = vand.u32 %v4800, 4294901760
        %v8237 = vsub.f32 %v4800, %v8236
        %v8238 = vand.u32 %v8237, 4294901760
        %v8239 = vsub.f32 %v8237, %v8238
        %v8240 = vand.u32 %v8239, 4294901760
        %8241 = vmatpush1.msra.mxu0 %v8240
        %8242 = vmatprep.subr.mxu0 0.0
        %v8243 = vand.u32 %v4799, 4294901760
        %v8244 = vsub.f32 %v4799, %v8243
        %v8245 = vand.u32 %v8244, 4294901760
        %v8246 = vsub.f32 %v8244, %v8245
        %v8247 = vand.u32 %v8246, 4294901760
        %8248 = vmatpush1.msra.mxu0 %v8247
        %8249 = vmatprep.subr.mxu0 0.0
        %v8250 = vand.u32 %v4798, 4294901760
        %v8251 = vsub.f32 %v4798, %v8250
        %v8252 = vand.u32 %v8251, 4294901760
        %v8253 = vsub.f32 %v8251, %v8252
        %v8254 = vand.u32 %v8253, 4294901760
        %8255 = vmatpush1.msra.mxu0 %v8254
        %8256 = vmatprep.subr.mxu0 0.0
        %v8257 = vand.u32 %v4797, 4294901760
        %v8258 = vsub.f32 %v4797, %v8257
        %v8259 = vand.u32 %v8258, 4294901760
        %v8260 = vsub.f32 %v8258, %v8259
        %v8261 = vand.u32 %v8260, 4294901760
        %8262 = vmatpush1.msra.mxu0 %v8261
        %8263 = vmatprep.subr.mxu0 0.0
        %v8264 = vand.u32 %v4796, 4294901760
        %v8265 = vsub.f32 %v4796, %v8264
        %v8266 = vand.u32 %v8265, 4294901760
        %v8267 = vsub.f32 %v8265, %v8266
        %v8268 = vand.u32 %v8267, 4294901760
        %8269 = vmatpush1.msra.mxu0 %v8268
        %8270 = vmatprep.subr.mxu0 0.0
        %v8271 = vand.u32 %v4795, 4294901760
        %v8272 = vsub.f32 %v4795, %v8271
        %v8273 = vand.u32 %v8272, 4294901760
        %v8274 = vsub.f32 %v8272, %v8273
        %v8275 = vand.u32 %v8274, 4294901760
        %8276 = vmatpush1.msra.mxu0 %v8275
        %8277 = vmatprep.subr.mxu0 0.0
        %8278 = vmatpush2.msra.mxu0 0.0
        %8279 = vmatprep.subr.mxu0 0.0
        %8280 = vmatpush2.msra.mxu0 0.0
        %8281 = vmatprep.subr.mxu0 0.0
        %8282 = vmatpush2.msra.mxu0 0.0
        %8283 = vmatprep.subr.mxu0 0.0
        %8284 = vmatpush2.msra.mxu0 0.0
        %8285 = vmatprep.subr.mxu0 0.0
        %8286 = vmatpush2.msra.mxu0 0.0
        %8287 = vmatprep.subr.mxu0 0.0
        %8288 = vmatpush2.msra.mxu0 0.0
        %8289 = vmatprep.subr.mxu0 0.0
        %8290 = vmatpush2.msra.mxu0 0.0
        %8291 = vmatprep.subr.mxu0 0.0
        %8292 = vmatpush2.msra.mxu0 0.0
        %8293 = vmatprep.subr.mxu0 0.0
        %8294 = vmatpush2.msra.mxu0 0.0
        %8295 = vmatprep.subr.mxu0 0.0
        %8296 = vmatpush2.msra.mxu0 0.0
        %8297 = vmatprep.subr.mxu0 0.0
        %8298 = vmatpush2.msra.mxu0 0.0
        %8299 = vmatprep.subr.mxu0 0.0
        %8300 = vmatpush2.msra.mxu0 0.0
        %8301 = vmatprep.subr.mxu0 0.0
        %8302 = vmatpush2.msra.mxu0 0.0
        %8303 = vmatprep.subr.mxu0 0.0
        %8304 = vmatpush2.msra.mxu0 0.0
        %8305 = vmatprep.subr.mxu0 0.0
        %8306 = vmatpush2.msra.mxu0 0.0
        %8307 = vmatprep.subr.mxu0 0.0
        %8308 = vmatpush2.msra.mxu0 0.0
        %8309 = vmatprep.mubr.f32.mxu0 0.0
        %v8310 = vand.u32 %v8094, 4294901760
        %8311 = vmatmul.mubr.f32.gmra.mxu0 %v8310
        %v8312 = vpop.f32.mrf.mxu0
        %v8313 = vadd.f32 %v8182, %v8312
        %v8314 = vpop.f32.mrf.mxu0
        %8315 = vmatprep.mubr.f32.mxu0 0.0
        %v8316 = vand.u32 %v8097, 4294901760
        %8317 = vmatmul.mubr.f32.gmra.mxu0 %v8316
        %v8318 = vpop.f32.mrf.mxu0
        %v8319 = vadd.f32 %v8192, %v8318
        %v8320 = vpop.f32.mrf.mxu0
        %8321 = vmatprep.mubr.f32.mxu0 0.0
        %v8322 = vand.u32 %v8100, 4294901760
        %8323 = vmatmul.mubr.f32.gmra.mxu0 %v8322
        %v8324 = vpop.f32.mrf.mxu0
        %v8325 = vadd.f32 %v8202, %v8324
        %v8326 = vpop.f32.mrf.mxu0
        %8327 = vdwg.mxu0
        %8328 = vmatprep.subr.mxu0 0.0
        %8329 = vmatpush1.msra.mxu0 0.0
        %8330 = vmatprep.subr.mxu0 0.0
        %8331 = vmatpush1.msra.mxu0 0.0
        %8332 = vmatprep.subr.mxu0 0.0
        %8333 = vmatpush1.msra.mxu0 0.0
        %8334 = vmatprep.subr.mxu0 0.0
        %8335 = vmatpush1.msra.mxu0 0.0
        %8336 = vmatprep.subr.mxu0 0.0
        %8337 = vmatpush1.msra.mxu0 0.0
        %8338 = vmatprep.subr.mxu0 0.0
        %8339 = vmatpush1.msra.mxu0 0.0
        %8340 = vmatprep.subr.mxu0 0.0
        %8341 = vmatpush1.msra.mxu0 0.0
        %8342 = vmatprep.subr.mxu0 0.0
        %8343 = vmatpush1.msra.mxu0 0.0
        %8344 = vmatprep.subr.mxu0 0.0
        %v8345 = vand.u32 %v4802, 4294901760
        %v8346 = vsub.f32 %v4802, %v8345
        %8347 = vmatpush1.msra.mxu0 %v8346
        %8348 = vmatprep.subr.mxu0 0.0
        %v8349 = vand.u32 %v4801, 4294901760
        %v8350 = vsub.f32 %v4801, %v8349
        %8351 = vmatpush1.msra.mxu0 %v8350
        %8352 = vmatprep.subr.mxu0 0.0
        %v8353 = vand.u32 %v4800, 4294901760
        %v8354 = vsub.f32 %v4800, %v8353
        %8355 = vmatpush1.msra.mxu0 %v8354
        %8356 = vmatprep.subr.mxu0 0.0
        %v8357 = vand.u32 %v4799, 4294901760
        %v8358 = vsub.f32 %v4799, %v8357
        %8359 = vmatpush1.msra.mxu0 %v8358
        %8360 = vmatprep.subr.mxu0 0.0
        %v8361 = vand.u32 %v4798, 4294901760
        %v8362 = vsub.f32 %v4798, %v8361
        %8363 = vmatpush1.msra.mxu0 %v8362
        %8364 = vmatprep.subr.mxu0 0.0
        %v8365 = vand.u32 %v4797, 4294901760
        %v8366 = vsub.f32 %v4797, %v8365
        %8367 = vmatpush1.msra.mxu0 %v8366
        %8368 = vmatprep.subr.mxu0 0.0
        %v8369 = vand.u32 %v4796, 4294901760
        %v8370 = vsub.f32 %v4796, %v8369
        %8371 = vmatpush1.msra.mxu0 %v8370
        %8372 = vmatprep.subr.mxu0 0.0
        %v8373 = vand.u32 %v4795, 4294901760
        %v8374 = vsub.f32 %v4795, %v8373
        %8375 = vmatpush1.msra.mxu0 %v8374
        %8376 = vmatprep.subr.mxu0 0.0
        %8377 = vmatpush2.msra.mxu0 0.0
        %8378 = vmatprep.subr.mxu0 0.0
        %8379 = vmatpush2.msra.mxu0 0.0
        %8380 = vmatprep.subr.mxu0 0.0
        %8381 = vmatpush2.msra.mxu0 0.0
        %8382 = vmatprep.subr.mxu0 0.0
        %8383 = vmatpush2.msra.mxu0 0.0
        %8384 = vmatprep.subr.mxu0 0.0
        %8385 = vmatpush2.msra.mxu0 0.0
        %8386 = vmatprep.subr.mxu0 0.0
        %8387 = vmatpush2.msra.mxu0 0.0
        %8388 = vmatprep.subr.mxu0 0.0
        %8389 = vmatpush2.msra.mxu0 0.0
        %8390 = vmatprep.subr.mxu0 0.0
        %8391 = vmatpush2.msra.mxu0 0.0
        %8392 = vmatprep.subr.mxu0 0.0
        %8393 = vmatpush2.msra.mxu0 0.0
        %8394 = vmatprep.subr.mxu0 0.0
        %8395 = vmatpush2.msra.mxu0 0.0
        %8396 = vmatprep.subr.mxu0 0.0
        %8397 = vmatpush2.msra.mxu0 0.0
        %8398 = vmatprep.subr.mxu0 0.0
        %8399 = vmatpush2.msra.mxu0 0.0
        %8400 = vmatprep.subr.mxu0 0.0
        %8401 = vmatpush2.msra.mxu0 0.0
        %8402 = vmatprep.subr.mxu0 0.0
        %8403 = vmatpush2.msra.mxu0 0.0
        %8404 = vmatprep.subr.mxu0 0.0
        %8405 = vmatpush2.msra.mxu0 0.0
        %8406 = vmatprep.subr.mxu0 0.0
        %8407 = vmatpush2.msra.mxu0 0.0
        %8408 = vmatprep.mubr.f32.mxu0 0.0
        %v8409 = vand.u32 %v8094, 4294901760
        %v8410 = vsub.f32 %v8094, %v8409
        %8411 = vmatmul.mubr.f32.gmra.mxu0 %v8410
        %v8412 = vpop.f32.mrf.mxu0
        %v8413 = vadd.f32 %v8313, %v8412
        %v8414 = vpop.f32.mrf.mxu0
        %8415 = vmatprep.mubr.f32.mxu0 0.0
        %v8416 = vand.u32 %v8097, 4294901760
        %v8417 = vsub.f32 %v8097, %v8416
        %8418 = vmatmul.mubr.f32.gmra.mxu0 %v8417
        %v8419 = vpop.f32.mrf.mxu0
        %v8420 = vadd.f32 %v8319, %v8419
        %v8421 = vpop.f32.mrf.mxu0
        %8422 = vmatprep.mubr.f32.mxu0 0.0
        %v8423 = vand.u32 %v8100, 4294901760
        %v8424 = vsub.f32 %v8100, %v8423
        %8425 = vmatmul.mubr.f32.gmra.mxu0 %v8424
        %v8426 = vpop.f32.mrf.mxu0
        %v8427 = vadd.f32 %v8325, %v8426
        %v8428 = vpop.f32.mrf.mxu0
        %8429 = vdwg.mxu0
        %8430 = vmatprep.subr.mxu0 0.0
        %8431 = vmatpush1.msra.mxu0 0.0
        %8432 = vmatprep.subr.mxu0 0.0
        %8433 = vmatpush1.msra.mxu0 0.0
        %8434 = vmatprep.subr.mxu0 0.0
        %8435 = vmatpush1.msra.mxu0 0.0
        %8436 = vmatprep.subr.mxu0 0.0
        %8437 = vmatpush1.msra.mxu0 0.0
        %8438 = vmatprep.subr.mxu0 0.0
        %8439 = vmatpush1.msra.mxu0 0.0
        %8440 = vmatprep.subr.mxu0 0.0
        %8441 = vmatpush1.msra.mxu0 0.0
        %8442 = vmatprep.subr.mxu0 0.0
        %8443 = vmatpush1.msra.mxu0 0.0
        %8444 = vmatprep.subr.mxu0 0.0
        %8445 = vmatpush1.msra.mxu0 0.0
        %8446 = vmatprep.subr.mxu0 0.0
        %v8447 = vand.u32 %v4802, 4294901760
        %8448 = vmatpush1.msra.mxu0 %v8447
        %8449 = vmatprep.subr.mxu0 0.0
        %v8450 = vand.u32 %v4801, 4294901760
        %8451 = vmatpush1.msra.mxu0 %v8450
        %8452 = vmatprep.subr.mxu0 0.0
        %v8453 = vand.u32 %v4800, 4294901760
        %8454 = vmatpush1.msra.mxu0 %v8453
        %8455 = vmatprep.subr.mxu0 0.0
        %v8456 = vand.u32 %v4799, 4294901760
        %8457 = vmatpush1.msra.mxu0 %v8456
        %8458 = vmatprep.subr.mxu0 0.0
        %v8459 = vand.u32 %v4798, 4294901760
        %8460 = vmatpush1.msra.mxu0 %v8459
        %8461 = vmatprep.subr.mxu0 0.0
        %v8462 = vand.u32 %v4797, 4294901760
        %8463 = vmatpush1.msra.mxu0 %v8462
        %8464 = vmatprep.subr.mxu0 0.0
        %v8465 = vand.u32 %v4796, 4294901760
        %8466 = vmatpush1.msra.mxu0 %v8465
        %8467 = vmatprep.subr.mxu0 0.0
        %v8468 = vand.u32 %v4795, 4294901760
        %8469 = vmatpush1.msra.mxu0 %v8468
        %8470 = vmatprep.subr.mxu0 0.0
        %8471 = vmatpush2.msra.mxu0 0.0
        %8472 = vmatprep.subr.mxu0 0.0
        %8473 = vmatpush2.msra.mxu0 0.0
        %8474 = vmatprep.subr.mxu0 0.0
        %8475 = vmatpush2.msra.mxu0 0.0
        %8476 = vmatprep.subr.mxu0 0.0
        %8477 = vmatpush2.msra.mxu0 0.0
        %8478 = vmatprep.subr.mxu0 0.0
        %8479 = vmatpush2.msra.mxu0 0.0
        %8480 = vmatprep.subr.mxu0 0.0
        %8481 = vmatpush2.msra.mxu0 0.0
        %8482 = vmatprep.subr.mxu0 0.0
        %8483 = vmatpush2.msra.mxu0 0.0
        %8484 = vmatprep.subr.mxu0 0.0
        %8485 = vmatpush2.msra.mxu0 0.0
        %8486 = vmatprep.subr.mxu0 0.0
        %8487 = vmatpush2.msra.mxu0 0.0
        %8488 = vmatprep.subr.mxu0 0.0
        %8489 = vmatpush2.msra.mxu0 0.0
        %8490 = vmatprep.subr.mxu0 0.0
        %8491 = vmatpush2.msra.mxu0 0.0
        %8492 = vmatprep.subr.mxu0 0.0
        %8493 = vmatpush2.msra.mxu0 0.0
        %8494 = vmatprep.subr.mxu0 0.0
        %8495 = vmatpush2.msra.mxu0 0.0
        %8496 = vmatprep.subr.mxu0 0.0
        %8497 = vmatpush2.msra.mxu0 0.0
        %8498 = vmatprep.subr.mxu0 0.0
        %8499 = vmatpush2.msra.mxu0 0.0
        %8500 = vmatprep.subr.mxu0 0.0
        %8501 = vmatpush2.msra.mxu0 0.0
        %8502 = vmatprep.mubr.f32.mxu0 0.0
        %v8503 = vand.u32 %v8094, 4294901760
        %v8504 = vsub.f32 %v8094, %v8503
        %v8505 = vand.u32 %v8504, 4294901760
        %8506 = vmatmul.mubr.f32.gmra.mxu0 %v8505
        %v8507 = vpop.f32.mrf.mxu0
        %v8508 = vadd.f32 %v8413, %v8507
        %v8509 = vpop.f32.mrf.mxu0
        %8510 = vmatprep.mubr.f32.mxu0 0.0
        %v8511 = vand.u32 %v8097, 4294901760
        %v8512 = vsub.f32 %v8097, %v8511
        %v8513 = vand.u32 %v8512, 4294901760
        %8514 = vmatmul.mubr.f32.gmra.mxu0 %v8513
        %v8515 = vpop.f32.mrf.mxu0
        %v8516 = vadd.f32 %v8420, %v8515
        %v8517 = vpop.f32.mrf.mxu0
        %8518 = vmatprep.mubr.f32.mxu0 0.0
        %v8519 = vand.u32 %v8100, 4294901760
        %v8520 = vsub.f32 %v8100, %v8519
        %v8521 = vand.u32 %v8520, 4294901760
        %8522 = vmatmul.mubr.f32.gmra.mxu0 %v8521
        %v8523 = vpop.f32.mrf.mxu0
        %v8524 = vadd.f32 %v8427, %v8523
        %v8525 = vpop.f32.mrf.mxu0
        %8526 = vdwg.mxu0
        %8527 = vmatprep.subr.mxu0 0.0
        %8528 = vmatpush1.msra.mxu0 0.0
        %8529 = vmatprep.subr.mxu0 0.0
        %8530 = vmatpush1.msra.mxu0 0.0
        %8531 = vmatprep.subr.mxu0 0.0
        %8532 = vmatpush1.msra.mxu0 0.0
        %8533 = vmatprep.subr.mxu0 0.0
        %8534 = vmatpush1.msra.mxu0 0.0
        %8535 = vmatprep.subr.mxu0 0.0
        %8536 = vmatpush1.msra.mxu0 0.0
        %8537 = vmatprep.subr.mxu0 0.0
        %8538 = vmatpush1.msra.mxu0 0.0
        %8539 = vmatprep.subr.mxu0 0.0
        %8540 = vmatpush1.msra.mxu0 0.0
        %8541 = vmatprep.subr.mxu0 0.0
        %8542 = vmatpush1.msra.mxu0 0.0
        %8543 = vmatprep.subr.mxu0 0.0
        %v8544 = vand.u32 %v4802, 4294901760
        %v8545 = vsub.f32 %v4802, %v8544
        %v8546 = vand.u32 %v8545, 4294901760
        %8547 = vmatpush1.msra.mxu0 %v8546
        %8548 = vmatprep.subr.mxu0 0.0
        %v8549 = vand.u32 %v4801, 4294901760
        %v8550 = vsub.f32 %v4801, %v8549
        %v8551 = vand.u32 %v8550, 4294901760
        %8552 = vmatpush1.msra.mxu0 %v8551
        %8553 = vmatprep.subr.mxu0 0.0
        %v8554 = vand.u32 %v4800, 4294901760
        %v8555 = vsub.f32 %v4800, %v8554
        %v8556 = vand.u32 %v8555, 4294901760
        %8557 = vmatpush1.msra.mxu0 %v8556
        %8558 = vmatprep.subr.mxu0 0.0
        %v8559 = vand.u32 %v4799, 4294901760
        %v8560 = vsub.f32 %v4799, %v8559
        %v8561 = vand.u32 %v8560, 4294901760
        %8562 = vmatpush1.msra.mxu0 %v8561
        %8563 = vmatprep.subr.mxu0 0.0
        %v8564 = vand.u32 %v4798, 4294901760
        %v8565 = vsub.f32 %v4798, %v8564
        %v8566 = vand.u32 %v8565, 4294901760
        %8567 = vmatpush1.msra.mxu0 %v8566
        %8568 = vmatprep.subr.mxu0 0.0
        %v8569 = vand.u32 %v4797, 4294901760
        %v8570 = vsub.f32 %v4797, %v8569
        %v8571 = vand.u32 %v8570, 4294901760
        %8572 = vmatpush1.msra.mxu0 %v8571
        %8573 = vmatprep.subr.mxu0 0.0
        %v8574 = vand.u32 %v4796, 4294901760
        %v8575 = vsub.f32 %v4796, %v8574
        %v8576 = vand.u32 %v8575, 4294901760
        %8577 = vmatpush1.msra.mxu0 %v8576
        %8578 = vmatprep.subr.mxu0 0.0
        %v8579 = vand.u32 %v4795, 4294901760
        %v8580 = vsub.f32 %v4795, %v8579
        %v8581 = vand.u32 %v8580, 4294901760
        %8582 = vmatpush1.msra.mxu0 %v8581
        %8583 = vmatprep.subr.mxu0 0.0
        %8584 = vmatpush2.msra.mxu0 0.0
        %8585 = vmatprep.subr.mxu0 0.0
        %8586 = vmatpush2.msra.mxu0 0.0
        %8587 = vmatprep.subr.mxu0 0.0
        %8588 = vmatpush2.msra.mxu0 0.0
        %8589 = vmatprep.subr.mxu0 0.0
        %8590 = vmatpush2.msra.mxu0 0.0
        %8591 = vmatprep.subr.mxu0 0.0
        %8592 = vmatpush2.msra.mxu0 0.0
        %8593 = vmatprep.subr.mxu0 0.0
        %8594 = vmatpush2.msra.mxu0 0.0
        %8595 = vmatprep.subr.mxu0 0.0
        %8596 = vmatpush2.msra.mxu0 0.0
        %8597 = vmatprep.subr.mxu0 0.0
        %8598 = vmatpush2.msra.mxu0 0.0
        %8599 = vmatprep.subr.mxu0 0.0
        %8600 = vmatpush2.msra.mxu0 0.0
        %8601 = vmatprep.subr.mxu0 0.0
        %8602 = vmatpush2.msra.mxu0 0.0
        %8603 = vmatprep.subr.mxu0 0.0
        %8604 = vmatpush2.msra.mxu0 0.0
        %8605 = vmatprep.subr.mxu0 0.0
        %8606 = vmatpush2.msra.mxu0 0.0
        %8607 = vmatprep.subr.mxu0 0.0
        %8608 = vmatpush2.msra.mxu0 0.0
        %8609 = vmatprep.subr.mxu0 0.0
        %8610 = vmatpush2.msra.mxu0 0.0
        %8611 = vmatprep.subr.mxu0 0.0
        %8612 = vmatpush2.msra.mxu0 0.0
        %8613 = vmatprep.subr.mxu0 0.0
        %8614 = vmatpush2.msra.mxu0 0.0
        %8615 = vmatprep.mubr.f32.mxu0 0.0
        %v8616 = vand.u32 %v8094, 4294901760
        %8617 = vmatmul.mubr.f32.gmra.mxu0 %v8616
        %v8618 = vpop.f32.mrf.mxu0
        %v8619 = vadd.f32 %v8508, %v8618
        %v8620 = vpop.f32.mrf.mxu0
        %8621 = vmatprep.mubr.f32.mxu0 0.0
        %v8622 = vand.u32 %v8097, 4294901760
        %8623 = vmatmul.mubr.f32.gmra.mxu0 %v8622
        %v8624 = vpop.f32.mrf.mxu0
        %v8625 = vadd.f32 %v8516, %v8624
        %v8626 = vpop.f32.mrf.mxu0
        %8627 = vmatprep.mubr.f32.mxu0 0.0
        %v8628 = vand.u32 %v8100, 4294901760
        %8629 = vmatmul.mubr.f32.gmra.mxu0 %v8628
        %v8630 = vpop.f32.mrf.mxu0
        %v8631 = vadd.f32 %v8524, %v8630
        %v8632 = vpop.f32.mrf.mxu0
        %8633 = vdwg.mxu0
        %8634 = vmatprep.subr.mxu0 0.0
        %8635 = vmatpush1.msra.mxu0 0.0
        %8636 = vmatprep.subr.mxu0 0.0
        %8637 = vmatpush1.msra.mxu0 0.0
        %8638 = vmatprep.subr.mxu0 0.0
        %8639 = vmatpush1.msra.mxu0 0.0
        %8640 = vmatprep.subr.mxu0 0.0
        %8641 = vmatpush1.msra.mxu0 0.0
        %8642 = vmatprep.subr.mxu0 0.0
        %8643 = vmatpush1.msra.mxu0 0.0
        %8644 = vmatprep.subr.mxu0 0.0
        %8645 = vmatpush1.msra.mxu0 0.0
        %8646 = vmatprep.subr.mxu0 0.0
        %8647 = vmatpush1.msra.mxu0 0.0
        %8648 = vmatprep.subr.mxu0 0.0
        %8649 = vmatpush1.msra.mxu0 0.0
        %8650 = vmatprep.subr.mxu0 0.0
        %v8651 = vand.u32 %v4802, 4294901760
        %8652 = vmatpush1.msra.mxu0 %v8651
        %8653 = vmatprep.subr.mxu0 0.0
        %v8654 = vand.u32 %v4801, 4294901760
        %8655 = vmatpush1.msra.mxu0 %v8654
        %8656 = vmatprep.subr.mxu0 0.0
        %v8657 = vand.u32 %v4800, 4294901760
        %8658 = vmatpush1.msra.mxu0 %v8657
        %8659 = vmatprep.subr.mxu0 0.0
        %v8660 = vand.u32 %v4799, 4294901760
        %8661 = vmatpush1.msra.mxu0 %v8660
        %8662 = vmatprep.subr.mxu0 0.0
        %v8663 = vand.u32 %v4798, 4294901760
        %8664 = vmatpush1.msra.mxu0 %v8663
        %8665 = vmatprep.subr.mxu0 0.0
        %v8666 = vand.u32 %v4797, 4294901760
        %8667 = vmatpush1.msra.mxu0 %v8666
        %8668 = vmatprep.subr.mxu0 0.0
        %v8669 = vand.u32 %v4796, 4294901760
        %8670 = vmatpush1.msra.mxu0 %v8669
        %8671 = vmatprep.subr.mxu0 0.0
        %v8672 = vand.u32 %v4795, 4294901760
        %8673 = vmatpush1.msra.mxu0 %v8672
        %8674 = vmatprep.subr.mxu0 0.0
        %8675 = vmatpush2.msra.mxu0 0.0
        %8676 = vmatprep.subr.mxu0 0.0
        %8677 = vmatpush2.msra.mxu0 0.0
        %8678 = vmatprep.subr.mxu0 0.0
        %8679 = vmatpush2.msra.mxu0 0.0
        %8680 = vmatprep.subr.mxu0 0.0
        %8681 = vmatpush2.msra.mxu0 0.0
        %8682 = vmatprep.subr.mxu0 0.0
        %8683 = vmatpush2.msra.mxu0 0.0
        %8684 = vmatprep.subr.mxu0 0.0
        %8685 = vmatpush2.msra.mxu0 0.0
        %8686 = vmatprep.subr.mxu0 0.0
        %8687 = vmatpush2.msra.mxu0 0.0
        %8688 = vmatprep.subr.mxu0 0.0
        %8689 = vmatpush2.msra.mxu0 0.0
        %8690 = vmatprep.subr.mxu0 0.0
        %8691 = vmatpush2.msra.mxu0 0.0
        %8692 = vmatprep.subr.mxu0 0.0
        %8693 = vmatpush2.msra.mxu0 0.0
        %8694 = vmatprep.subr.mxu0 0.0
        %8695 = vmatpush2.msra.mxu0 0.0
        %8696 = vmatprep.subr.mxu0 0.0
        %8697 = vmatpush2.msra.mxu0 0.0
        %8698 = vmatprep.subr.mxu0 0.0
        %8699 = vmatpush2.msra.mxu0 0.0
        %8700 = vmatprep.subr.mxu0 0.0
        %8701 = vmatpush2.msra.mxu0 0.0
        %8702 = vmatprep.subr.mxu0 0.0
        %8703 = vmatpush2.msra.mxu0 0.0
        %8704 = vmatprep.subr.mxu0 0.0
        %8705 = vmatpush2.msra.mxu0 0.0
        %8706 = vmatprep.mubr.f32.mxu0 0.0
        %v8707 = vand.u32 %v8094, 4294901760
        %8708 = vmatmul.mubr.f32.gmra.mxu0 %v8707
        %v8709 = vpop.f32.mrf.mxu0
        %v8710 = vadd.f32 %v8619, %v8709
        %v8711 = vpop.f32.mrf.mxu0
        %8712 = vmatprep.mubr.f32.mxu0 0.0
        %v8713 = vand.u32 %v8097, 4294901760
        %8714 = vmatmul.mubr.f32.gmra.mxu0 %v8713
        %v8715 = vpop.f32.mrf.mxu0
        %v8716 = vadd.f32 %v8625, %v8715
        %v8717 = vpop.f32.mrf.mxu0
        %8718 = vmatprep.mubr.f32.mxu0 0.0
        %v8719 = vand.u32 %v8100, 4294901760
        %8720 = vmatmul.mubr.f32.gmra.mxu0 %v8719
        %v8721 = vpop.f32.mrf.mxu0
        %v8722 = vadd.f32 %v8631, %v8721
        %v8723 = vpop.f32.mrf.mxu0
        %8724 = vdwg.mxu0
        %v8725 = vtanh.pop %v8710
        %v8726 = vtanh.pop %v8716
        %v8727 = vtanh.pop %v8722
        %v8728 = vmul.f32 %v8725, %v5450
        %v8729 = vmul.f32 %v8726, %v5450
        %v8730 = vmul.f32 %v8727, %v5450
        %v8731 = vmul.f32 %v8728, %v5458
        %v8732 = vmul.f32 %v8729, %v5463
        %v8733 = vmul.f32 %v8730, %v5468
        %v8734 = vadd.f32 %v8731, %v8732
        %v8735 = vadd.f32 %v8734, %v8733
        %8736 = vadd.xlane.f32.xlu0 %v8735
        %v8737 = vpop.xlane.xlu0 %8736
        %v8738 = vrot.slane %v8737, 4
        %v8739 = vadd.f32 %v8737, %v8738
        %v8740 = vrot.slane %v8739, 2
        %v8741 = vadd.f32 %v8739, %v8740
        %v8742 = vrot.slane %v8741, 1
        %v8743 = vadd.f32 %v8741, %v8742
        %s8744 = vtos %v8743
        %s8745 = smax.f32 %s5483, %s8744
        %s8746 = ssub.f32 %s5483, %s8745
        %v8747 = vstv %s8746
        %v8748 = vmul.f32 %v8747, 1.442695
        %v8749 = vpow.pop %v8748
        %s8750 = vtos %v8749
        %s8751 = ssub.f32 %s8744, %s8745
        %v8752 = vstv %s8751
        %v8753 = vmul.f32 %v8752, 1.442695
        %v8754 = vpow.pop %v8753
        %s8755 = vtos %v8754
        %s8756 = sadd.f32 %s8750, %s8755
        %v8757 = vstv %s8756
        %v8758 = vrcp.pop %v8757
        %s8759 = vtos %v8758
        %s8760 = smul.f32 %s8750, %s8759
        %v8761 = vstv %s8760
        %v8762 = vmul.f32 %v8761, %v4792
        %v8763 = vmul.f32 %v8761, %v4793
        %v8764 = vmul.f32 %v8761, %v4794
        %s8765 = smul.f32 %s8755, %s8759
        %v8766 = vstv %s8765
        %v8767 = vmul.f32 %v8766, %v8090
        %v8768 = vmul.f32 %v8766, %v8091
        %v8769 = vmul.f32 %v8766, %v8092
        %v8770 = vadd.f32 %v8762, %v8767
        %v8771 = vadd.f32 %v8763, %v8768
        %v8772 = vadd.f32 %v8764, %v8769
        %v8773 = vld [vmem:[%s562] sm:$0xff]
        %v8774 = vld [vmem:[%s562 + $0x8] sm:$0xff]
        %v8775 = vld [vmem:[%s562 + $0x10] sm:$0xff]
        %v8776 = vld [vmem:[%s562 + $0x18] sm:$0xff]
        %v8777 = vld [vmem:[%s562 + $0x20] sm:$0xff]
        %v8778 = vld [vmem:[%s562 + $0x28] sm:$0xff]
        %v8779 = vld [vmem:[%s562 + $0x30] sm:$0xff]
        %v8780 = vld [vmem:[%s562 + $0x38] sm:$0xff]
        %v8781 = vld [vmem:[%s565] sm:$0x1]
        %v8783 = vlaneseq
        %v8784 = vshrl.u32 %v8783, 7
        %v8785 = vsub.s32 0, %v8784
        %v8786 = vrot.slane %v8781, %v8785
        %v8789 = vsel %vm4810, %v8770, 0
        %v8792 = vsel %vm4810, %v8771, 0
        %v8795 = vsel %vm4810, %v8772, 0
        %8797 = vmatprep.subr.mxu0 0.0
        %8798 = vmatpush1.msra.mxu0 0.0
        %8799 = vmatprep.subr.mxu0 0.0
        %8800 = vmatpush1.msra.mxu0 0.0
        %8801 = vmatprep.subr.mxu0 0.0
        %8802 = vmatpush1.msra.mxu0 0.0
        %8803 = vmatprep.subr.mxu0 0.0
        %8804 = vmatpush1.msra.mxu0 0.0
        %8805 = vmatprep.subr.mxu0 0.0
        %8806 = vmatpush1.msra.mxu0 0.0
        %8807 = vmatprep.subr.mxu0 0.0
        %8808 = vmatpush1.msra.mxu0 0.0
        %8809 = vmatprep.subr.mxu0 0.0
        %8810 = vmatpush1.msra.mxu0 0.0
        %8811 = vmatprep.subr.mxu0 0.0
        %8812 = vmatpush1.msra.mxu0 0.0
        %8813 = vmatprep.subr.mxu0 0.0
        %v8814 = vand.u32 %v8780, 4294901760
        %8815 = vmatpush1.msra.mxu0 %v8814
        %8816 = vmatprep.subr.mxu0 0.0
        %v8817 = vand.u32 %v8779, 4294901760
        %8818 = vmatpush1.msra.mxu0 %v8817
        %8819 = vmatprep.subr.mxu0 0.0
        %v8820 = vand.u32 %v8778, 4294901760
        %8821 = vmatpush1.msra.mxu0 %v8820
        %8822 = vmatprep.subr.mxu0 0.0
        %v8823 = vand.u32 %v8777, 4294901760
        %8824 = vmatpush1.msra.mxu0 %v8823
        %8825 = vmatprep.subr.mxu0 0.0
        %v8826 = vand.u32 %v8776, 4294901760
        %8827 = vmatpush1.msra.mxu0 %v8826
        %8828 = vmatprep.subr.mxu0 0.0
        %v8829 = vand.u32 %v8775, 4294901760
        %8830 = vmatpush1.msra.mxu0 %v8829
        %8831 = vmatprep.subr.mxu0 0.0
        %v8832 = vand.u32 %v8774, 4294901760
        %8833 = vmatpush1.msra.mxu0 %v8832
        %8834 = vmatprep.subr.mxu0 0.0
        %v8835 = vand.u32 %v8773, 4294901760
        %8836 = vmatpush1.msra.mxu0 %v8835
        %8837 = vmatprep.subr.mxu0 0.0
        %8838 = vmatpush2.msra.mxu0 0.0
        %8839 = vmatprep.subr.mxu0 0.0
        %8840 = vmatpush2.msra.mxu0 0.0
        %8841 = vmatprep.subr.mxu0 0.0
        %8842 = vmatpush2.msra.mxu0 0.0
        %8843 = vmatprep.subr.mxu0 0.0
        %8844 = vmatpush2.msra.mxu0 0.0
        %8845 = vmatprep.subr.mxu0 0.0
        %8846 = vmatpush2.msra.mxu0 0.0
        %8847 = vmatprep.subr.mxu0 0.0
        %8848 = vmatpush2.msra.mxu0 0.0
        %8849 = vmatprep.subr.mxu0 0.0
        %8850 = vmatpush2.msra.mxu0 0.0
        %8851 = vmatprep.subr.mxu0 0.0
        %8852 = vmatpush2.msra.mxu0 0.0
        %8853 = vmatprep.subr.mxu0 0.0
        %8854 = vmatpush2.msra.mxu0 0.0
        %8855 = vmatprep.subr.mxu0 0.0
        %8856 = vmatpush2.msra.mxu0 0.0
        %8857 = vmatprep.subr.mxu0 0.0
        %8858 = vmatpush2.msra.mxu0 0.0
        %8859 = vmatprep.subr.mxu0 0.0
        %8860 = vmatpush2.msra.mxu0 0.0
        %8861 = vmatprep.subr.mxu0 0.0
        %8862 = vmatpush2.msra.mxu0 0.0
        %8863 = vmatprep.subr.mxu0 0.0
        %8864 = vmatpush2.msra.mxu0 0.0
        %8865 = vmatprep.subr.mxu0 0.0
        %8866 = vmatpush2.msra.mxu0 0.0
        %8867 = vmatprep.subr.mxu0 0.0
        %8868 = vmatpush2.msra.mxu0 0.0
        %8869 = vmatprep.mubr.f32.mxu0 0.0
        %v8870 = vand.u32 %v8789, 4294901760
        %v8871 = vsub.f32 %v8789, %v8870
        %v8872 = vand.u32 %v8871, 4294901760
        %v8873 = vsub.f32 %v8871, %v8872
        %v8874 = vand.u32 %v8873, 4294901760
        %8875 = vmatmul.mubr.f32.gmra.mxu0 %v8874
        %v8876 = vpop.f32.mrf.mxu0
        %v8877 = vadd.f32 %v8786, %v8876
        %v8878 = vpop.f32.mrf.mxu0
        %8879 = vmatprep.mubr.f32.mxu0 0.0
        %v8880 = vand.u32 %v8792, 4294901760
        %v8881 = vsub.f32 %v8792, %v8880
        %v8882 = vand.u32 %v8881, 4294901760
        %v8883 = vsub.f32 %v8881, %v8882
        %v8884 = vand.u32 %v8883, 4294901760
        %8885 = vmatmul.mubr.f32.gmra.mxu0 %v8884
        %v8886 = vpop.f32.mrf.mxu0
        %v8887 = vadd.f32 %v8786, %v8886
        %v8888 = vpop.f32.mrf.mxu0
        %8889 = vmatprep.mubr.f32.mxu0 0.0
        %v8890 = vand.u32 %v8795, 4294901760
        %v8891 = vsub.f32 %v8795, %v8890
        %v8892 = vand.u32 %v8891, 4294901760
        %v8893 = vsub.f32 %v8891, %v8892
        %v8894 = vand.u32 %v8893, 4294901760
        %8895 = vmatmul.mubr.f32.gmra.mxu0 %v8894
        %v8896 = vpop.f32.mrf.mxu0
        %v8897 = vadd.f32 %v8786, %v8896
        %v8898 = vpop.f32.mrf.mxu0
        %8899 = vdwg.mxu0
        %8900 = vmatprep.subr.mxu0 0.0
        %8901 = vmatpush1.msra.mxu0 0.0
        %8902 = vmatprep.subr.mxu0 0.0
        %8903 = vmatpush1.msra.mxu0 0.0
        %8904 = vmatprep.subr.mxu0 0.0
        %8905 = vmatpush1.msra.mxu0 0.0
        %8906 = vmatprep.subr.mxu0 0.0
        %8907 = vmatpush1.msra.mxu0 0.0
        %8908 = vmatprep.subr.mxu0 0.0
        %8909 = vmatpush1.msra.mxu0 0.0
        %8910 = vmatprep.subr.mxu0 0.0
        %8911 = vmatpush1.msra.mxu0 0.0
        %8912 = vmatprep.subr.mxu0 0.0
        %8913 = vmatpush1.msra.mxu0 0.0
        %8914 = vmatprep.subr.mxu0 0.0
        %8915 = vmatpush1.msra.mxu0 0.0
        %8916 = vmatprep.subr.mxu0 0.0
        %v8917 = vand.u32 %v8780, 4294901760
        %v8918 = vsub.f32 %v8780, %v8917
        %v8919 = vand.u32 %v8918, 4294901760
        %v8920 = vsub.f32 %v8918, %v8919
        %v8921 = vand.u32 %v8920, 4294901760
        %8922 = vmatpush1.msra.mxu0 %v8921
        %8923 = vmatprep.subr.mxu0 0.0
        %v8924 = vand.u32 %v8779, 4294901760
        %v8925 = vsub.f32 %v8779, %v8924
        %v8926 = vand.u32 %v8925, 4294901760
        %v8927 = vsub.f32 %v8925, %v8926
        %v8928 = vand.u32 %v8927, 4294901760
        %8929 = vmatpush1.msra.mxu0 %v8928
        %8930 = vmatprep.subr.mxu0 0.0
        %v8931 = vand.u32 %v8778, 4294901760
        %v8932 = vsub.f32 %v8778, %v8931
        %v8933 = vand.u32 %v8932, 4294901760
        %v8934 = vsub.f32 %v8932, %v8933
        %v8935 = vand.u32 %v8934, 4294901760
        %8936 = vmatpush1.msra.mxu0 %v8935
        %8937 = vmatprep.subr.mxu0 0.0
        %v8938 = vand.u32 %v8777, 4294901760
        %v8939 = vsub.f32 %v8777, %v8938
        %v8940 = vand.u32 %v8939, 4294901760
        %v8941 = vsub.f32 %v8939, %v8940
        %v8942 = vand.u32 %v8941, 4294901760
        %8943 = vmatpush1.msra.mxu0 %v8942
        %8944 = vmatprep.subr.mxu0 0.0
        %v8945 = vand.u32 %v8776, 4294901760
        %v8946 = vsub.f32 %v8776, %v8945
        %v8947 = vand.u32 %v8946, 4294901760
        %v8948 = vsub.f32 %v8946, %v8947
        %v8949 = vand.u32 %v8948, 4294901760
        %8950 = vmatpush1.msra.mxu0 %v8949
        %8951 = vmatprep.subr.mxu0 0.0
        %v8952 = vand.u32 %v8775, 4294901760
        %v8953 = vsub.f32 %v8775, %v8952
        %v8954 = vand.u32 %v8953, 4294901760
        %v8955 = vsub.f32 %v8953, %v8954
        %v8956 = vand.u32 %v8955, 4294901760
        %8957 = vmatpush1.msra.mxu0 %v8956
        %8958 = vmatprep.subr.mxu0 0.0
        %v8959 = vand.u32 %v8774, 4294901760
        %v8960 = vsub.f32 %v8774, %v8959
        %v8961 = vand.u32 %v8960, 4294901760
        %v8962 = vsub.f32 %v8960, %v8961
        %v8963 = vand.u32 %v8962, 4294901760
        %8964 = vmatpush1.msra.mxu0 %v8963
        %8965 = vmatprep.subr.mxu0 0.0
        %v8966 = vand.u32 %v8773, 4294901760
        %v8967 = vsub.f32 %v8773, %v8966
        %v8968 = vand.u32 %v8967, 4294901760
        %v8969 = vsub.f32 %v8967, %v8968
        %v8970 = vand.u32 %v8969, 4294901760
        %8971 = vmatpush1.msra.mxu0 %v8970
        %8972 = vmatprep.subr.mxu0 0.0
        %8973 = vmatpush2.msra.mxu0 0.0
        %8974 = vmatprep.subr.mxu0 0.0
        %8975 = vmatpush2.msra.mxu0 0.0
        %8976 = vmatprep.subr.mxu0 0.0
        %8977 = vmatpush2.msra.mxu0 0.0
        %8978 = vmatprep.subr.mxu0 0.0
        %8979 = vmatpush2.msra.mxu0 0.0
        %8980 = vmatprep.subr.mxu0 0.0
        %8981 = vmatpush2.msra.mxu0 0.0
        %8982 = vmatprep.subr.mxu0 0.0
        %8983 = vmatpush2.msra.mxu0 0.0
        %8984 = vmatprep.subr.mxu0 0.0
        %8985 = vmatpush2.msra.mxu0 0.0
        %8986 = vmatprep.subr.mxu0 0.0
        %8987 = vmatpush2.msra.mxu0 0.0
        %8988 = vmatprep.subr.mxu0 0.0
        %8989 = vmatpush2.msra.mxu0 0.0
        %8990 = vmatprep.subr.mxu0 0.0
        %8991 = vmatpush2.msra.mxu0 0.0
        %8992 = vmatprep.subr.mxu0 0.0
        %8993 = vmatpush2.msra.mxu0 0.0
        %8994 = vmatprep.subr.mxu0 0.0
        %8995 = vmatpush2.msra.mxu0 0.0
        %8996 = vmatprep.subr.mxu0 0.0
        %8997 = vmatpush2.msra.mxu0 0.0
        %8998 = vmatprep.subr.mxu0 0.0
        %8999 = vmatpush2.msra.mxu0 0.0
        %9000 = vmatprep.subr.mxu0 0.0
        %9001 = vmatpush2.msra.mxu0 0.0
        %9002 = vmatprep.subr.mxu0 0.0
        %9003 = vmatpush2.msra.mxu0 0.0
        %9004 = vmatprep.mubr.f32.mxu0 0.0
        %v9005 = vand.u32 %v8789, 4294901760
        %9006 = vmatmul.mubr.f32.gmra.mxu0 %v9005
        %v9007 = vpop.f32.mrf.mxu0
        %v9008 = vadd.f32 %v8877, %v9007
        %v9009 = vpop.f32.mrf.mxu0
        %9010 = vmatprep.mubr.f32.mxu0 0.0
        %v9011 = vand.u32 %v8792, 4294901760
        %9012 = vmatmul.mubr.f32.gmra.mxu0 %v9011
        %v9013 = vpop.f32.mrf.mxu0
        %v9014 = vadd.f32 %v8887, %v9013
        %v9015 = vpop.f32.mrf.mxu0
        %9016 = vmatprep.mubr.f32.mxu0 0.0
        %v9017 = vand.u32 %v8795, 4294901760
        %9018 = vmatmul.mubr.f32.gmra.mxu0 %v9017
        %v9019 = vpop.f32.mrf.mxu0
        %v9020 = vadd.f32 %v8897, %v9019
        %v9021 = vpop.f32.mrf.mxu0
        %9022 = vdwg.mxu0
        %9023 = vmatprep.subr.mxu0 0.0
        %9024 = vmatpush1.msra.mxu0 0.0
        %9025 = vmatprep.subr.mxu0 0.0
        %9026 = vmatpush1.msra.mxu0 0.0
        %9027 = vmatprep.subr.mxu0 0.0
        %9028 = vmatpush1.msra.mxu0 0.0
        %9029 = vmatprep.subr.mxu0 0.0
        %9030 = vmatpush1.msra.mxu0 0.0
        %9031 = vmatprep.subr.mxu0 0.0
        %9032 = vmatpush1.msra.mxu0 0.0
        %9033 = vmatprep.subr.mxu0 0.0
        %9034 = vmatpush1.msra.mxu0 0.0
        %9035 = vmatprep.subr.mxu0 0.0
        %9036 = vmatpush1.msra.mxu0 0.0
        %9037 = vmatprep.subr.mxu0 0.0
        %9038 = vmatpush1.msra.mxu0 0.0
        %9039 = vmatprep.subr.mxu0 0.0
        %v9040 = vand.u32 %v8780, 4294901760
        %v9041 = vsub.f32 %v8780, %v9040
        %9042 = vmatpush1.msra.mxu0 %v9041
        %9043 = vmatprep.subr.mxu0 0.0
        %v9044 = vand.u32 %v8779, 4294901760
        %v9045 = vsub.f32 %v8779, %v9044
        %9046 = vmatpush1.msra.mxu0 %v9045
        %9047 = vmatprep.subr.mxu0 0.0
        %v9048 = vand.u32 %v8778, 4294901760
        %v9049 = vsub.f32 %v8778, %v9048
        %9050 = vmatpush1.msra.mxu0 %v9049
        %9051 = vmatprep.subr.mxu0 0.0
        %v9052 = vand.u32 %v8777, 4294901760
        %v9053 = vsub.f32 %v8777, %v9052
        %9054 = vmatpush1.msra.mxu0 %v9053
        %9055 = vmatprep.subr.mxu0 0.0
        %v9056 = vand.u32 %v8776, 4294901760
        %v9057 = vsub.f32 %v8776, %v9056
        %9058 = vmatpush1.msra.mxu0 %v9057
        %9059 = vmatprep.subr.mxu0 0.0
        %v9060 = vand.u32 %v8775, 4294901760
        %v9061 = vsub.f32 %v8775, %v9060
        %9062 = vmatpush1.msra.mxu0 %v9061
        %9063 = vmatprep.subr.mxu0 0.0
        %v9064 = vand.u32 %v8774, 4294901760
        %v9065 = vsub.f32 %v8774, %v9064
        %9066 = vmatpush1.msra.mxu0 %v9065
        %9067 = vmatprep.subr.mxu0 0.0
        %v9068 = vand.u32 %v8773, 4294901760
        %v9069 = vsub.f32 %v8773, %v9068
        %9070 = vmatpush1.msra.mxu0 %v9069
        %9071 = vmatprep.subr.mxu0 0.0
        %9072 = vmatpush2.msra.mxu0 0.0
        %9073 = vmatprep.subr.mxu0 0.0
        %9074 = vmatpush2.msra.mxu0 0.0
        %9075 = vmatprep.subr.mxu0 0.0
        %9076 = vmatpush2.msra.mxu0 0.0
        %9077 = vmatprep.subr.mxu0 0.0
        %9078 = vmatpush2.msra.mxu0 0.0
        %9079 = vmatprep.subr.mxu0 0.0
        %9080 = vmatpush2.msra.mxu0 0.0
        %9081 = vmatprep.subr.mxu0 0.0
        %9082 = vmatpush2.msra.mxu0 0.0
        %9083 = vmatprep.subr.mxu0 0.0
        %9084 = vmatpush2.msra.mxu0 0.0
        %9085 = vmatprep.subr.mxu0 0.0
        %9086 = vmatpush2.msra.mxu0 0.0
        %9087 = vmatprep.subr.mxu0 0.0
        %9088 = vmatpush2.msra.mxu0 0.0
        %9089 = vmatprep.subr.mxu0 0.0
        %9090 = vmatpush2.msra.mxu0 0.0
        %9091 = vmatprep.subr.mxu0 0.0
        %9092 = vmatpush2.msra.mxu0 0.0
        %9093 = vmatprep.subr.mxu0 0.0
        %9094 = vmatpush2.msra.mxu0 0.0
        %9095 = vmatprep.subr.mxu0 0.0
        %9096 = vmatpush2.msra.mxu0 0.0
        %9097 = vmatprep.subr.mxu0 0.0
        %9098 = vmatpush2.msra.mxu0 0.0
        %9099 = vmatprep.subr.mxu0 0.0
        %9100 = vmatpush2.msra.mxu0 0.0
        %9101 = vmatprep.subr.mxu0 0.0
        %9102 = vmatpush2.msra.mxu0 0.0
        %9103 = vmatprep.mubr.f32.mxu0 0.0
        %v9104 = vand.u32 %v8789, 4294901760
        %v9105 = vsub.f32 %v8789, %v9104
        %9106 = vmatmul.mubr.f32.gmra.mxu0 %v9105
        %v9107 = vpop.f32.mrf.mxu0
        %v9108 = vadd.f32 %v9008, %v9107
        %v9109 = vpop.f32.mrf.mxu0
        %9110 = vmatprep.mubr.f32.mxu0 0.0
        %v9111 = vand.u32 %v8792, 4294901760
        %v9112 = vsub.f32 %v8792, %v9111
        %9113 = vmatmul.mubr.f32.gmra.mxu0 %v9112
        %v9114 = vpop.f32.mrf.mxu0
        %v9115 = vadd.f32 %v9014, %v9114
        %v9116 = vpop.f32.mrf.mxu0
        %9117 = vmatprep.mubr.f32.mxu0 0.0
        %v9118 = vand.u32 %v8795, 4294901760
        %v9119 = vsub.f32 %v8795, %v9118
        %9120 = vmatmul.mubr.f32.gmra.mxu0 %v9119
        %v9121 = vpop.f32.mrf.mxu0
        %v9122 = vadd.f32 %v9020, %v9121
        %v9123 = vpop.f32.mrf.mxu0
        %9124 = vdwg.mxu0
        %9125 = vmatprep.subr.mxu0 0.0
        %9126 = vmatpush1.msra.mxu0 0.0
        %9127 = vmatprep.subr.mxu0 0.0
        %9128 = vmatpush1.msra.mxu0 0.0
        %9129 = vmatprep.subr.mxu0 0.0
        %9130 = vmatpush1.msra.mxu0 0.0
        %9131 = vmatprep.subr.mxu0 0.0
        %9132 = vmatpush1.msra.mxu0 0.0
        %9133 = vmatprep.subr.mxu0 0.0
        %9134 = vmatpush1.msra.mxu0 0.0
        %9135 = vmatprep.subr.mxu0 0.0
        %9136 = vmatpush1.msra.mxu0 0.0
        %9137 = vmatprep.subr.mxu0 0.0
        %9138 = vmatpush1.msra.mxu0 0.0
        %9139 = vmatprep.subr.mxu0 0.0
        %9140 = vmatpush1.msra.mxu0 0.0
        %9141 = vmatprep.subr.mxu0 0.0
        %v9142 = vand.u32 %v8780, 4294901760
        %9143 = vmatpush1.msra.mxu0 %v9142
        %9144 = vmatprep.subr.mxu0 0.0
        %v9145 = vand.u32 %v8779, 4294901760
        %9146 = vmatpush1.msra.mxu0 %v9145
        %9147 = vmatprep.subr.mxu0 0.0
        %v9148 = vand.u32 %v8778, 4294901760
        %9149 = vmatpush1.msra.mxu0 %v9148
        %9150 = vmatprep.subr.mxu0 0.0
        %v9151 = vand.u32 %v8777, 4294901760
        %9152 = vmatpush1.msra.mxu0 %v9151
        %9153 = vmatprep.subr.mxu0 0.0
        %v9154 = vand.u32 %v8776, 4294901760
        %9155 = vmatpush1.msra.mxu0 %v9154
        %9156 = vmatprep.subr.mxu0 0.0
        %v9157 = vand.u32 %v8775, 4294901760
        %9158 = vmatpush1.msra.mxu0 %v9157
        %9159 = vmatprep.subr.mxu0 0.0
        %v9160 = vand.u32 %v8774, 4294901760
        %9161 = vmatpush1.msra.mxu0 %v9160
        %9162 = vmatprep.subr.mxu0 0.0
        %v9163 = vand.u32 %v8773, 4294901760
        %9164 = vmatpush1.msra.mxu0 %v9163
        %9165 = vmatprep.subr.mxu0 0.0
        %9166 = vmatpush2.msra.mxu0 0.0
        %9167 = vmatprep.subr.mxu0 0.0
        %9168 = vmatpush2.msra.mxu0 0.0
        %9169 = vmatprep.subr.mxu0 0.0
        %9170 = vmatpush2.msra.mxu0 0.0
        %9171 = vmatprep.subr.mxu0 0.0
        %9172 = vmatpush2.msra.mxu0 0.0
        %9173 = vmatprep.subr.mxu0 0.0
        %9174 = vmatpush2.msra.mxu0 0.0
        %9175 = vmatprep.subr.mxu0 0.0
        %9176 = vmatpush2.msra.mxu0 0.0
        %9177 = vmatprep.subr.mxu0 0.0
        %9178 = vmatpush2.msra.mxu0 0.0
        %9179 = vmatprep.subr.mxu0 0.0
        %9180 = vmatpush2.msra.mxu0 0.0
        %9181 = vmatprep.subr.mxu0 0.0
        %9182 = vmatpush2.msra.mxu0 0.0
        %9183 = vmatprep.subr.mxu0 0.0
        %9184 = vmatpush2.msra.mxu0 0.0
        %9185 = vmatprep.subr.mxu0 0.0
        %9186 = vmatpush2.msra.mxu0 0.0
        %9187 = vmatprep.subr.mxu0 0.0
        %9188 = vmatpush2.msra.mxu0 0.0
        %9189 = vmatprep.subr.mxu0 0.0
        %9190 = vmatpush2.msra.mxu0 0.0
        %9191 = vmatprep.subr.mxu0 0.0
        %9192 = vmatpush2.msra.mxu0 0.0
        %9193 = vmatprep.subr.mxu0 0.0
        %9194 = vmatpush2.msra.mxu0 0.0
        %9195 = vmatprep.subr.mxu0 0.0
        %9196 = vmatpush2.msra.mxu0 0.0
        %9197 = vmatprep.mubr.f32.mxu0 0.0
        %v9198 = vand.u32 %v8789, 4294901760
        %v9199 = vsub.f32 %v8789, %v9198
        %v9200 = vand.u32 %v9199, 4294901760
        %9201 = vmatmul.mubr.f32.gmra.mxu0 %v9200
        %v9202 = vpop.f32.mrf.mxu0
        %v9203 = vadd.f32 %v9108, %v9202
        %v9204 = vpop.f32.mrf.mxu0
        %9205 = vmatprep.mubr.f32.mxu0 0.0
        %v9206 = vand.u32 %v8792, 4294901760
        %v9207 = vsub.f32 %v8792, %v9206
        %v9208 = vand.u32 %v9207, 4294901760
        %9209 = vmatmul.mubr.f32.gmra.mxu0 %v9208
        %v9210 = vpop.f32.mrf.mxu0
        %v9211 = vadd.f32 %v9115, %v9210
        %v9212 = vpop.f32.mrf.mxu0
        %9213 = vmatprep.mubr.f32.mxu0 0.0
        %v9214 = vand.u32 %v8795, 4294901760
        %v9215 = vsub.f32 %v8795, %v9214
        %v9216 = vand.u32 %v9215, 4294901760
        %9217 = vmatmul.mubr.f32.gmra.mxu0 %v9216
        %v9218 = vpop.f32.mrf.mxu0
        %v9219 = vadd.f32 %v9122, %v9218
        %v9220 = vpop.f32.mrf.mxu0
        %9221 = vdwg.mxu0
        %9222 = vmatprep.subr.mxu0 0.0
        %9223 = vmatpush1.msra.mxu0 0.0
        %9224 = vmatprep.subr.mxu0 0.0
        %9225 = vmatpush1.msra.mxu0 0.0
        %9226 = vmatprep.subr.mxu0 0.0
        %9227 = vmatpush1.msra.mxu0 0.0
        %9228 = vmatprep.subr.mxu0 0.0
        %9229 = vmatpush1.msra.mxu0 0.0
        %9230 = vmatprep.subr.mxu0 0.0
        %9231 = vmatpush1.msra.mxu0 0.0
        %9232 = vmatprep.subr.mxu0 0.0
        %9233 = vmatpush1.msra.mxu0 0.0
        %9234 = vmatprep.subr.mxu0 0.0
        %9235 = vmatpush1.msra.mxu0 0.0
        %9236 = vmatprep.subr.mxu0 0.0
        %9237 = vmatpush1.msra.mxu0 0.0
        %9238 = vmatprep.subr.mxu0 0.0
        %v9239 = vand.u32 %v8780, 4294901760
        %v9240 = vsub.f32 %v8780, %v9239
        %v9241 = vand.u32 %v9240, 4294901760
        %9242 = vmatpush1.msra.mxu0 %v9241
        %9243 = vmatprep.subr.mxu0 0.0
        %v9244 = vand.u32 %v8779, 4294901760
        %v9245 = vsub.f32 %v8779, %v9244
        %v9246 = vand.u32 %v9245, 4294901760
        %9247 = vmatpush1.msra.mxu0 %v9246
        %9248 = vmatprep.subr.mxu0 0.0
        %v9249 = vand.u32 %v8778, 4294901760
        %v9250 = vsub.f32 %v8778, %v9249
        %v9251 = vand.u32 %v9250, 4294901760
        %9252 = vmatpush1.msra.mxu0 %v9251
        %9253 = vmatprep.subr.mxu0 0.0
        %v9254 = vand.u32 %v8777, 4294901760
        %v9255 = vsub.f32 %v8777, %v9254
        %v9256 = vand.u32 %v9255, 4294901760
        %9257 = vmatpush1.msra.mxu0 %v9256
        %9258 = vmatprep.subr.mxu0 0.0
        %v9259 = vand.u32 %v8776, 4294901760
        %v9260 = vsub.f32 %v8776, %v9259
        %v9261 = vand.u32 %v9260, 4294901760
        %9262 = vmatpush1.msra.mxu0 %v9261
        %9263 = vmatprep.subr.mxu0 0.0
        %v9264 = vand.u32 %v8775, 4294901760
        %v9265 = vsub.f32 %v8775, %v9264
        %v9266 = vand.u32 %v9265, 4294901760
        %9267 = vmatpush1.msra.mxu0 %v9266
        %9268 = vmatprep.subr.mxu0 0.0
        %v9269 = vand.u32 %v8774, 4294901760
        %v9270 = vsub.f32 %v8774, %v9269
        %v9271 = vand.u32 %v9270, 4294901760
        %9272 = vmatpush1.msra.mxu0 %v9271
        %9273 = vmatprep.subr.mxu0 0.0
        %v9274 = vand.u32 %v8773, 4294901760
        %v9275 = vsub.f32 %v8773, %v9274
        %v9276 = vand.u32 %v9275, 4294901760
        %9277 = vmatpush1.msra.mxu0 %v9276
        %9278 = vmatprep.subr.mxu0 0.0
        %9279 = vmatpush2.msra.mxu0 0.0
        %9280 = vmatprep.subr.mxu0 0.0
        %9281 = vmatpush2.msra.mxu0 0.0
        %9282 = vmatprep.subr.mxu0 0.0
        %9283 = vmatpush2.msra.mxu0 0.0
        %9284 = vmatprep.subr.mxu0 0.0
        %9285 = vmatpush2.msra.mxu0 0.0
        %9286 = vmatprep.subr.mxu0 0.0
        %9287 = vmatpush2.msra.mxu0 0.0
        %9288 = vmatprep.subr.mxu0 0.0
        %9289 = vmatpush2.msra.mxu0 0.0
        %9290 = vmatprep.subr.mxu0 0.0
        %9291 = vmatpush2.msra.mxu0 0.0
        %9292 = vmatprep.subr.mxu0 0.0
        %9293 = vmatpush2.msra.mxu0 0.0
        %9294 = vmatprep.subr.mxu0 0.0
        %9295 = vmatpush2.msra.mxu0 0.0
        %9296 = vmatprep.subr.mxu0 0.0
        %9297 = vmatpush2.msra.mxu0 0.0
        %9298 = vmatprep.subr.mxu0 0.0
        %9299 = vmatpush2.msra.mxu0 0.0
        %9300 = vmatprep.subr.mxu0 0.0
        %9301 = vmatpush2.msra.mxu0 0.0
        %9302 = vmatprep.subr.mxu0 0.0
        %9303 = vmatpush2.msra.mxu0 0.0
        %9304 = vmatprep.subr.mxu0 0.0
        %9305 = vmatpush2.msra.mxu0 0.0
        %9306 = vmatprep.subr.mxu0 0.0
        %9307 = vmatpush2.msra.mxu0 0.0
        %9308 = vmatprep.subr.mxu0 0.0
        %9309 = vmatpush2.msra.mxu0 0.0
        %9310 = vmatprep.mubr.f32.mxu0 0.0
        %v9311 = vand.u32 %v8789, 4294901760
        %9312 = vmatmul.mubr.f32.gmra.mxu0 %v9311
        %v9313 = vpop.f32.mrf.mxu0
        %v9314 = vadd.f32 %v9203, %v9313
        %v9315 = vpop.f32.mrf.mxu0
        %9316 = vmatprep.mubr.f32.mxu0 0.0
        %v9317 = vand.u32 %v8792, 4294901760
        %9318 = vmatmul.mubr.f32.gmra.mxu0 %v9317
        %v9319 = vpop.f32.mrf.mxu0
        %v9320 = vadd.f32 %v9211, %v9319
        %v9321 = vpop.f32.mrf.mxu0
        %9322 = vmatprep.mubr.f32.mxu0 0.0
        %v9323 = vand.u32 %v8795, 4294901760
        %9324 = vmatmul.mubr.f32.gmra.mxu0 %v9323
        %v9325 = vpop.f32.mrf.mxu0
        %v9326 = vadd.f32 %v9219, %v9325
        %v9327 = vpop.f32.mrf.mxu0
        %9328 = vdwg.mxu0
        %9329 = vmatprep.subr.mxu0 0.0
        %9330 = vmatpush1.msra.mxu0 0.0
        %9331 = vmatprep.subr.mxu0 0.0
        %9332 = vmatpush1.msra.mxu0 0.0
        %9333 = vmatprep.subr.mxu0 0.0
        %9334 = vmatpush1.msra.mxu0 0.0
        %9335 = vmatprep.subr.mxu0 0.0
        %9336 = vmatpush1.msra.mxu0 0.0
        %9337 = vmatprep.subr.mxu0 0.0
        %9338 = vmatpush1.msra.mxu0 0.0
        %9339 = vmatprep.subr.mxu0 0.0
        %9340 = vmatpush1.msra.mxu0 0.0
        %9341 = vmatprep.subr.mxu0 0.0
        %9342 = vmatpush1.msra.mxu0 0.0
        %9343 = vmatprep.subr.mxu0 0.0
        %9344 = vmatpush1.msra.mxu0 0.0
        %9345 = vmatprep.subr.mxu0 0.0
        %v9346 = vand.u32 %v8780, 4294901760
        %9347 = vmatpush1.msra.mxu0 %v9346
        %9348 = vmatprep.subr.mxu0 0.0
        %v9349 = vand.u32 %v8779, 4294901760
        %9350 = vmatpush1.msra.mxu0 %v9349
        %9351 = vmatprep.subr.mxu0 0.0
        %v9352 = vand.u32 %v8778, 4294901760
        %9353 = vmatpush1.msra.mxu0 %v9352
        %9354 = vmatprep.subr.mxu0 0.0
        %v9355 = vand.u32 %v8777, 4294901760
        %9356 = vmatpush1.msra.mxu0 %v9355
        %9357 = vmatprep.subr.mxu0 0.0
        %v9358 = vand.u32 %v8776, 4294901760
        %9359 = vmatpush1.msra.mxu0 %v9358
        %9360 = vmatprep.subr.mxu0 0.0
        %v9361 = vand.u32 %v8775, 4294901760
        %9362 = vmatpush1.msra.mxu0 %v9361
        %9363 = vmatprep.subr.mxu0 0.0
        %v9364 = vand.u32 %v8774, 4294901760
        %9365 = vmatpush1.msra.mxu0 %v9364
        %9366 = vmatprep.subr.mxu0 0.0
        %v9367 = vand.u32 %v8773, 4294901760
        %9368 = vmatpush1.msra.mxu0 %v9367
        %9369 = vmatprep.subr.mxu0 0.0
        %9370 = vmatpush2.msra.mxu0 0.0
        %9371 = vmatprep.subr.mxu0 0.0
        %9372 = vmatpush2.msra.mxu0 0.0
        %9373 = vmatprep.subr.mxu0 0.0
        %9374 = vmatpush2.msra.mxu0 0.0
        %9375 = vmatprep.subr.mxu0 0.0
        %9376 = vmatpush2.msra.mxu0 0.0
        %9377 = vmatprep.subr.mxu0 0.0
        %9378 = vmatpush2.msra.mxu0 0.0
        %9379 = vmatprep.subr.mxu0 0.0
        %9380 = vmatpush2.msra.mxu0 0.0
        %9381 = vmatprep.subr.mxu0 0.0
        %9382 = vmatpush2.msra.mxu0 0.0
        %9383 = vmatprep.subr.mxu0 0.0
        %9384 = vmatpush2.msra.mxu0 0.0
        %9385 = vmatprep.subr.mxu0 0.0
        %9386 = vmatpush2.msra.mxu0 0.0
        %9387 = vmatprep.subr.mxu0 0.0
        %9388 = vmatpush2.msra.mxu0 0.0
        %9389 = vmatprep.subr.mxu0 0.0
        %9390 = vmatpush2.msra.mxu0 0.0
        %9391 = vmatprep.subr.mxu0 0.0
        %9392 = vmatpush2.msra.mxu0 0.0
        %9393 = vmatprep.subr.mxu0 0.0
        %9394 = vmatpush2.msra.mxu0 0.0
        %9395 = vmatprep.subr.mxu0 0.0
        %9396 = vmatpush2.msra.mxu0 0.0
        %9397 = vmatprep.subr.mxu0 0.0
        %9398 = vmatpush2.msra.mxu0 0.0
        %9399 = vmatprep.subr.mxu0 0.0
        %9400 = vmatpush2.msra.mxu0 0.0
        %9401 = vmatprep.mubr.f32.mxu0 0.0
        %v9402 = vand.u32 %v8789, 4294901760
        %9403 = vmatmul.mubr.f32.gmra.mxu0 %v9402
        %v9404 = vpop.f32.mrf.mxu0
        %v9405 = vadd.f32 %v9314, %v9404
        %v9406 = vpop.f32.mrf.mxu0
        %9407 = vmatprep.mubr.f32.mxu0 0.0
        %v9408 = vand.u32 %v8792, 4294901760
        %9409 = vmatmul.mubr.f32.gmra.mxu0 %v9408
        %v9410 = vpop.f32.mrf.mxu0
        %v9411 = vadd.f32 %v9320, %v9410
        %v9412 = vpop.f32.mrf.mxu0
        %9413 = vmatprep.mubr.f32.mxu0 0.0
        %v9414 = vand.u32 %v8795, 4294901760
        %9415 = vmatmul.mubr.f32.gmra.mxu0 %v9414
        %v9416 = vpop.f32.mrf.mxu0
        %v9417 = vadd.f32 %v9326, %v9416
        %v9418 = vpop.f32.mrf.mxu0
        %9419 = vdwg.mxu0
        %vm9420 = vcmask 64512
        %9421 = vst.msk [vmem:[%s570] sm:$0xff] %vm9420, %v9405
        %9422 = vst.msk [vmem:[%s570 + $0x8] sm:$0xff] %vm9420, %v9411
        %9423 = vst.msk [vmem:[%s570 + $0x10] sm:$0xff] %vm9420, %v9417
        %p9424 = scmp.lt.s32.totalorder %s29, 1
        %s9425 = scalar_select %p9424, %s29, 1
        %s9426 = smul.addr %s9425, 3
        %s9427 = smul.addr %s9426, 8
        %s9428 = scalar_lea.vmem %s12, %s9427
        // Predicated region
        $region93: #{tpu_custom_call.1} parent=67 // pred_check
          %p9429 = pneg %p324
        $region94: #{tpu_custom_call.1} parent=67 // pred_check_branch
          %9431 = sbr.rel (%p9429) target = $region96
        $region95: #{tpu_custom_call.1} parent=67 // pred_region
          _
        $region96: #{tpu_custom_call.1} parent=67 // pred_fallthru
          _
      $region68: #{tpu_custom_call.1} parent=5 // pred_fallthru
        _
      %p9432 = scmp.le.s32.totalorder 2, %s24
      // Predicated region
      $region97: #{tpu_custom_call.1} parent=5 // pred_check
        %p9433 = pneg %p9432
      $region98: #{tpu_custom_call.1} parent=5 // pred_check_branch
        %9435 = sbr.rel (%p9433) target = $region100
      $region99: #{tpu_custom_call.1} parent=5 // pred_region
        %s9436 = ssub.s32 %s24, 2
        // Predicated region
        $region101: #{tpu_custom_call.1} parent=99 // pred_check
          %p9437 = pneg %p330
        $region102: #{tpu_custom_call.1} parent=99 // pred_check_branch
          %9439 = sbr.rel (%p9437) target = $region104
        $region103: #{tpu_custom_call.1} parent=99 // pred_region
          %p9440 = scmp.lt.s32.totalorder %s30, 1
          %s9441 = scalar_select %p9440, %s30, 1
          %s9442 = smul.addr %s9441, 3
          %s9443 = smul.addr %s9442, 8
          %s9444 = scalar_lea.vmem %s12, %s9443
        $region104: #{tpu_custom_call.1} parent=99 // pred_fallthru
          _
      $region100: #{tpu_custom_call.1} parent=5 // pred_fallthru
        _
    $region6: #{tpu_custom_call.1} parent=1 // loop_footer
      %s28 = sadd.s32 1, %s24
    $region7: #{tpu_custom_call.1} parent=1 // loop_footer_branch
      %23 = sbr.rel target = $region3
    $region8: #{tpu_custom_call.1} parent=1 // loop_exit
      _
    %9445 = vsyncpa [#allocation3], 1
    %s9446 = scalar_lea.sflag [#allocation3], 1
    %9447 = vsyncpa %s9446, 1
    %9448 = vsyncpa [#allocation5], 1
    %9449 = vsyncpa [#allocation8], 1
    %9450 = vsyncpa [#allocation11], 1

</llo_original>
